<compile_context>
chip_gen: v7x
topology: tpu7x:2x2x1
jax: 0.10.0
libtpu: 0.0.40
codegen_flags: <defaults>
</compile_context>

<pallas_src>
import jax
import jax.numpy as jnp
from jax import lax
from jax.experimental import pallas as pl
from jax.experimental.pallas import tpu as pltpu


def _make_kernel(H, W, B):
    HW = H * W
    NBHW = B * HW          # lanes per score group (all align images / all feature images)
    S = 2 * NBHW           # full fused lane axis

    def kernel(x_ref, mask_ref, w1_ref, b1_ref, w2_ref, b2_ref, w3_ref, b3_ref,
               out_ref):
        # x_ref    : (C, S)        fused activations [align b0..bB-1 | feat b0..bB-1]
        # mask_ref : (8, S)        f32 validity masks for the 8 non-center conv2 taps
        # w1_ref   : (64, C)       b1_ref : (64, 1)
        # w2_ref   : (9, 32, 64)   b2_ref : (32, 1)   (tap-major, tap t = ky*3+kx)
        # w3_ref   : (8, 32)       row 0 = real conv3 weights, rows 1..7 zero
        # b3_ref   : (1,) scalar in SMEM
        x = x_ref[...].astype(jnp.float32)                       # (C, S)

        # conv1: 1x1 conv == (64, C) @ (C, S) on the MXU
        a1 = jnp.dot(w1_ref[...], x, preferred_element_type=jnp.float32)
        a1 = jnp.maximum(a1 + b1_ref[...], 0.0)                  # (64, S)

        # conv2: 3x3 pad=1 as a 9-tap accumulate. Each tap is a lane roll
        # (XLU), a boundary-mask multiply (VPU), and one K=64 matmul (MXU)
        # feeding an f32 accumulator — no materialized im2col block.
        a2 = jnp.dot(w2_ref[4], a1, preferred_element_type=jnp.float32)  # center tap
        m_idx = 0
        for t in range(9):
            if t == 4:
                continue
            ky, kx = t // 3, t % 3
            off = (ky - 1) * W + (kx - 1)
            rolled = pltpu.roll(a1, shift=(-off) % S, axis=1)
            tap = rolled * mask_ref[m_idx:m_idx + 1, :]          # zero outside image
            a2 = a2 + jnp.dot(w2_ref[t], tap, preferred_element_type=jnp.float32)
            m_idx += 1
        a2 = jnp.maximum(a2 + b2_ref[...], 0.0)                  # (32, S)

        # conv3: 1x1 conv with one output channel, done on the MXU.
        # w3 is zero-padded to M=8 for clean tiling; only row 0 is real.
        s8 = jnp.dot(w3_ref[...], a2, preferred_element_type=jnp.float32)  # (8, S)
        s = jnp.maximum(s8[0:1, :] + b3_ref[0], 0.0)             # (1, S)

        # softmax over the two score channels (align vs feature), per pixel.
        s_a = s[:, :NBHW]
        s_f = s[:, NBHW:]
        m = jnp.maximum(s_a, s_f)
        ea = jnp.exp(s_a - m)
        ef = jnp.exp(s_f - m)
        # exact divide: approx EUP reciprocal would risk the 1e-4 tolerance.
        inv = 1.0 / (ea + ef)
        wa = ea * inv
        wf = ef * inv

        a_in = x[:, :NBHW]                                       # (C, NBHW)
        f_in = x[:, NBHW:]
        out_ref[...] = (wa * a_in + wf * f_in).astype(out_ref.dtype)

    return kernel


def _conv2_boundary_masks(H, W, n_images):
    """(8, n_images*H*W) f32 validity masks for the 8 non-center conv2 taps.

    Every fused image occupies a contiguous H*W lane chunk, so one per-pixel
    mask tiled n_images times also kills all cross-image roll leakage.
    """
    yy, xx = jnp.meshgrid(jnp.arange(H), jnp.arange(W), indexing="ij")
    yy = jnp.tile(yy.reshape(-1), n_images)
    xx = jnp.tile(xx.reshape(-1), n_images)
    rows = []
    for t in range(9):
        if t == 4:
            continue
        ky, kx = t // 3, t % 3
        ys = yy + (ky - 1)
        xs = xx + (kx - 1)
        valid = (ys >= 0) & (ys < H) & (xs >= 0) & (xs < W)
        rows.append(valid.astype(jnp.float32)[None, :])
    return jnp.concatenate(rows, axis=0)


@jax.jit
def aggregation_pallas(align_nchw, feat_nchw, params):
    """align_nchw, feat_nchw: (B, C, H, W) float32. Returns (B, C, H, W)."""
    B, C, H, W = align_nchw.shape
    HW = H * W
    NBHW = B * HW
    S = 2 * NBHW

    # One-time, tiny layout plumbing in XLA (free vs the kernel): channels on
    # sublanes, all 2*B images fused onto the lane axis (align group first,
    # batch-major inside each group).
    a = jnp.transpose(align_nchw, (1, 0, 2, 3)).reshape(C, NBHW)
    f = jnp.transpose(feat_nchw, (1, 0, 2, 3)).reshape(C, NBHW)
    x = jnp.concatenate([a, f], axis=1)                          # (C, S)
    masks = _conv2_boundary_masks(H, W, 2 * B)                   # (8, S)

    w1, b1, w2, b2, w3, b3 = params

    out = pl.pallas_call(
        _make_kernel(H, W, B),
        out_shape=jax.ShapeDtypeStruct((C, NBHW), align_nchw.dtype),
        grid=(1,),
        in_specs=[
            pl.BlockSpec((C, S), lambda i: (0, 0)),
            pl.BlockSpec((8, S), lambda i: (0, 0)),
            pl.BlockSpec((64, C), lambda i: (0, 0)),
            pl.BlockSpec((64, 1), lambda i: (0, 0)),
            pl.BlockSpec((9, 32, 64), lambda i: (0, 0, 0)),
            pl.BlockSpec((32, 1), lambda i: (0, 0)),
            pl.BlockSpec((8, 32), lambda i: (0, 0)),
            pl.BlockSpec(memory_space=pltpu.MemorySpace.SMEM),   # b3 scalar
        ],
        out_specs=pl.BlockSpec((C, NBHW), lambda i: (0, 0)),
        compiler_params=pltpu.CompilerParams(
            dimension_semantics=("arbitrary",)),
    )(x, masks, w1, b1, w2, b2, w3, b3)

    # (C, B*HW) -> (B, C, H, W): tiny wrapper-side transpose.
    return out.reshape(C, B, H, W).transpose(1, 0, 2, 3)


def make_params(key, num_channel):
    """Deterministic synthetic weights matching the nn.Conv2d shapes."""
    k1, k2, k3, k4, k5, k6 = jax.random.split(key, 6)
    conv1_w = 0.1 * jax.random.normal(k1, (64, num_channel, 1, 1), jnp.float32)
    conv1_b = 0.1 * jax.random.normal(k2, (64,), jnp.float32)
    conv2_w = 0.1 * jax.random.normal(k3, (32, 64, 3, 3), jnp.float32)
    conv2_b = 0.1 * jax.random.normal(k4, (32,), jnp.float32)
    conv3_w = 0.1 * jax.random.normal(k5, (1, 32, 1, 1), jnp.float32)
    conv3_b = 0.1 * jax.random.normal(k6, (1,), jnp.float32)

    # Repack for the channel-rows / spatial-lanes kernel layout.
    w1 = conv1_w.reshape(64, num_channel)                              # (64, C)
    b1 = conv1_b.reshape(64, 1)
    w2 = jnp.transpose(conv2_w, (2, 3, 0, 1)).reshape(9, 32, 64)       # tap-major
    b2 = conv2_b.reshape(32, 1)
    w3 = jnp.zeros((8, 32), jnp.float32).at[0].set(conv3_w.reshape(32))  # M=8 pad
    b3 = conv3_b.reshape(1)                                            # SMEM scalar
    torch_params = (conv1_w, conv1_b, conv2_w, conv2_b, conv3_w, conv3_b)
    kernel_params = (w1, b1, w2, b2, w3, b3)
    return kernel_params, torch_params


def aggregation_reference(align, feature, torch_params):
    """Pure-JAX NCHW reference mirroring the PyTorch forward."""
    c1w, c1b, c2w, c2b, c3w, c3b = torch_params
    dn = ("NCHW", "OIHW", "NCHW")
    x = jnp.concatenate([align, feature], axis=0)
    y = lax.conv_general_dilated(x, c1w, (1, 1), "VALID", dimension_numbers=dn)
    y = jnp.maximum(y + c1b[None, :, None, None], 0.0)
    y = lax.conv_general_dilated(y, c2w, (1, 1), ((1, 1), (1, 1)), dimension_numbers=dn)
    y = jnp.maximum(y + c2b[None, :, None, None], 0.0)
    y = lax.conv_general_dilated(y, c3w, (1, 1), "VALID", dimension_numbers=dn)
    y = jnp.maximum(y + c3b[None, :, None, None], 0.0)
    bsz = align.shape[0]
    a3, f3 = y[:bsz], y[bsz:]
    weights = jax.nn.softmax(jnp.concatenate([a3, f3], axis=1), axis=1)
    return weights[:, 0:1] * align + weights[:, 1:2] * feature


if __name__ == "__main__":
    B, C, H, W = 2, 4, 16, 16
    key = jax.random.PRNGKey(0)
    k_a, k_f, k_p = jax.random.split(key, 3)
    align_feature = jax.random.normal(k_a, (B, C, H, W), jnp.float32)
    feature = jax.random.normal(k_f, (B, C, H, W), jnp.float32)

    kernel_params, torch_params = make_params(k_p, C)

    out = aggregation_pallas(align_feature, feature, kernel_params)
    out = jax.block_until_ready(out)

    ref = aggregation_reference(align_feature, feature, torch_params)
    ref = jax.block_until_ready(ref)

    assert out.shape == (B, C, H, W)
    assert bool(jnp.allclose(out, ref, rtol=1e-4, atol=1e-4)), "mismatch vs reference"

    print("KERNEL_OK")
</pallas_src>

<mosaic_0001>
module attributes {stable_mosaic.version = 11 : i64} {
  func.func @kernel(%arg0: i32, %arg1: memref<4x1024xf32, #tpu.memory_space<vmem>>, %arg2: memref<8x1024xf32, #tpu.memory_space<vmem>>, %arg3: memref<64x4xf32, #tpu.memory_space<vmem>>, %arg4: memref<64x1xf32, #tpu.memory_space<vmem>>, %arg5: memref<9x32x64xf32, #tpu.memory_space<vmem>>, %arg6: memref<32x1xf32, #tpu.memory_space<vmem>>, %arg7: memref<8x32xf32, #tpu.memory_space<vmem>>, %arg8: memref<1xf32, #tpu.memory_space<smem>>, %arg9: memref<4x512xf32, #tpu.memory_space<vmem>>) attributes {dimension_semantics = [#tpu.dimension_semantics<arbitrary>], iteration_bounds = array<i64: 1>, scalar_prefetch = 0 : i64, scratch_operands = 0 : i64, tpu.core_type = #tpu.core_type<tc>, window_params = [{pipeline_mode = #tpu.pipeline_mode<synchronous>, transform_indices = @transform_0, window_bounds = array<i64: 4, 1024>}, {pipeline_mode = #tpu.pipeline_mode<synchronous>, transform_indices = @transform_1, window_bounds = array<i64: 8, 1024>}, {pipeline_mode = #tpu.pipeline_mode<synchronous>, transform_indices = @transform_2, window_bounds = array<i64: 64, 4>}, {pipeline_mode = #tpu.pipeline_mode<synchronous>, transform_indices = @transform_3, window_bounds = array<i64: 64, 1>}, {pipeline_mode = #tpu.pipeline_mode<synchronous>, transform_indices = @transform_4, window_bounds = array<i64: 9, 32, 64>}, {pipeline_mode = #tpu.pipeline_mode<synchronous>, transform_indices = @transform_5, window_bounds = array<i64: 32, 1>}, {pipeline_mode = #tpu.pipeline_mode<synchronous>, transform_indices = @transform_6, window_bounds = array<i64: 8, 32>}, {transform_indices = @transform_7, window_bounds = array<i64: 1>}, {pipeline_mode = #tpu.pipeline_mode<synchronous>, transform_indices = @transform_8, window_bounds = array<i64: 4, 512>}]} {
    %c0 = arith.constant 0 : index
    %c0_0 = arith.constant 0 : index
    %0 = vector.load %arg1[%c0, %c0_0] : memref<4x1024xf32, #tpu.memory_space<vmem>>, vector<4x1024xf32>
    %c0_1 = arith.constant 0 : index
    %c0_2 = arith.constant 0 : index
    %1 = vector.load %arg3[%c0_1, %c0_2] : memref<64x4xf32, #tpu.memory_space<vmem>>, vector<64x4xf32>
    %cst = arith.constant dense<0.000000e+00> : vector<64x1024xf32>
    %2 = tpu.matmul %1, %0, %cst {dimension_numbers = #tpu.dot_dimension_numbers<[1], [0], [0], [1], [0, 0, 1, 1], [], []>} : vector<64x4xf32>, vector<4x1024xf32>, vector<64x1024xf32> -> vector<64x1024xf32>
    %c0_3 = arith.constant 0 : index
    %c0_4 = arith.constant 0 : index
    %3 = vector.load %arg4[%c0_3, %c0_4] : memref<64x1xf32, #tpu.memory_space<vmem>>, vector<64x1xf32>
    %4 = vector.broadcast %3 : vector<64x1xf32> to vector<64x1024xf32>
    %5 = arith.addf %2, %4 : vector<64x1024xf32>
    %cst_5 = arith.constant 0.000000e+00 : f32
    %6 = vector.broadcast %cst_5 : f32 to vector<64x1024xf32>
    %7 = arith.maximumf %5, %6 : vector<64x1024xf32>
    %c4 = arith.constant 4 : index
    %c0_6 = arith.constant 0 : index
    %c0_7 = arith.constant 0 : index
    %8 = vector.load %arg5[%c4, %c0_6, %c0_7] : memref<9x32x64xf32, #tpu.memory_space<vmem>>, vector<1x32x64xf32>
    %9 = vector.shape_cast %8 : vector<1x32x64xf32> to vector<32x64xf32>
    %cst_8 = arith.constant dense<0.000000e+00> : vector<32x1024xf32>
    %10 = tpu.matmul %9, %7, %cst_8 {dimension_numbers = #tpu.dot_dimension_numbers<[1], [0], [0], [1], [0, 0, 1, 1], [], []>} : vector<32x64xf32>, vector<64x1024xf32>, vector<32x1024xf32> -> vector<32x1024xf32>
    %c17_i32 = arith.constant 17 : i32
    %11 = tpu.dynamic_rotate %7 by %c17_i32 dim 1 : vector<64x1024xf32>, i32 -> vector<64x1024xf32>
    %c0_9 = arith.constant 0 : index
    %c0_10 = arith.constant 0 : index
    %12 = vector.load %arg2[%c0_9, %c0_10] : memref<8x1024xf32, #tpu.memory_space<vmem>>, vector<1x1024xf32>
    %13 = vector.broadcast %12 : vector<1x1024xf32> to vector<64x1024xf32>
    %14 = arith.mulf %11, %13 : vector<64x1024xf32>
    %c0_11 = arith.constant 0 : index
    %c0_12 = arith.constant 0 : index
    %c0_13 = arith.constant 0 : index
    %15 = vector.load %arg5[%c0_11, %c0_12, %c0_13] : memref<9x32x64xf32, #tpu.memory_space<vmem>>, vector<1x32x64xf32>
    %16 = vector.shape_cast %15 : vector<1x32x64xf32> to vector<32x64xf32>
    %cst_14 = arith.constant dense<0.000000e+00> : vector<32x1024xf32>
    %17 = tpu.matmul %16, %14, %cst_14 {dimension_numbers = #tpu.dot_dimension_numbers<[1], [0], [0], [1], [0, 0, 1, 1], [], []>} : vector<32x64xf32>, vector<64x1024xf32>, vector<32x1024xf32> -> vector<32x1024xf32>
    %18 = arith.addf %10, %17 : vector<32x1024xf32>
    %c16_i32 = arith.constant 16 : i32
    %19 = tpu.dynamic_rotate %7 by %c16_i32 dim 1 : vector<64x1024xf32>, i32 -> vector<64x1024xf32>
    %c1 = arith.constant 1 : index
    %c0_15 = arith.constant 0 : index
    %20 = vector.load %arg2[%c1, %c0_15] : memref<8x1024xf32, #tpu.memory_space<vmem>>, vector<1x1024xf32>
    %21 = vector.broadcast %20 : vector<1x1024xf32> to vector<64x1024xf32>
    %22 = arith.mulf %19, %21 : vector<64x1024xf32>
    %c1_16 = arith.constant 1 : index
    %c0_17 = arith.constant 0 : index
    %c0_18 = arith.constant 0 : index
    %23 = vector.load %arg5[%c1_16, %c0_17, %c0_18] : memref<9x32x64xf32, #tpu.memory_space<vmem>>, vector<1x32x64xf32>
    %24 = vector.shape_cast %23 : vector<1x32x64xf32> to vector<32x64xf32>
    %cst_19 = arith.constant dense<0.000000e+00> : vector<32x1024xf32>
    %25 = tpu.matmul %24, %22, %cst_19 {dimension_numbers = #tpu.dot_dimension_numbers<[1], [0], [0], [1], [0, 0, 1, 1], [], []>} : vector<32x64xf32>, vector<64x1024xf32>, vector<32x1024xf32> -> vector<32x1024xf32>
    %26 = arith.addf %18, %25 : vector<32x1024xf32>
    %c15_i32 = arith.constant 15 : i32
    %27 = tpu.dynamic_rotate %7 by %c15_i32 dim 1 : vector<64x1024xf32>, i32 -> vector<64x1024xf32>
    %c2 = arith.constant 2 : index
    %c0_20 = arith.constant 0 : index
    %28 = vector.load %arg2[%c2, %c0_20] : memref<8x1024xf32, #tpu.memory_space<vmem>>, vector<1x1024xf32>
    %29 = vector.broadcast %28 : vector<1x1024xf32> to vector<64x1024xf32>
    %30 = arith.mulf %27, %29 : vector<64x1024xf32>
    %c2_21 = arith.constant 2 : index
    %c0_22 = arith.constant 0 : index
    %c0_23 = arith.constant 0 : index
    %31 = vector.load %arg5[%c2_21, %c0_22, %c0_23] : memref<9x32x64xf32, #tpu.memory_space<vmem>>, vector<1x32x64xf32>
    %32 = vector.shape_cast %31 : vector<1x32x64xf32> to vector<32x64xf32>
    %cst_24 = arith.constant dense<0.000000e+00> : vector<32x1024xf32>
    %33 = tpu.matmul %32, %30, %cst_24 {dimension_numbers = #tpu.dot_dimension_numbers<[1], [0], [0], [1], [0, 0, 1, 1], [], []>} : vector<32x64xf32>, vector<64x1024xf32>, vector<32x1024xf32> -> vector<32x1024xf32>
    %34 = arith.addf %26, %33 : vector<32x1024xf32>
    %c1_i32 = arith.constant 1 : i32
    %35 = tpu.dynamic_rotate %7 by %c1_i32 dim 1 : vector<64x1024xf32>, i32 -> vector<64x1024xf32>
    %c3 = arith.constant 3 : index
    %c0_25 = arith.constant 0 : index
    %36 = vector.load %arg2[%c3, %c0_25] : memref<8x1024xf32, #tpu.memory_space<vmem>>, vector<1x1024xf32>
    %37 = vector.broadcast %36 : vector<1x1024xf32> to vector<64x1024xf32>
    %38 = arith.mulf %35, %37 : vector<64x1024xf32>
    %c3_26 = arith.constant 3 : index
    %c0_27 = arith.constant 0 : index
    %c0_28 = arith.constant 0 : index
    %39 = vector.load %arg5[%c3_26, %c0_27, %c0_28] : memref<9x32x64xf32, #tpu.memory_space<vmem>>, vector<1x32x64xf32>
    %40 = vector.shape_cast %39 : vector<1x32x64xf32> to vector<32x64xf32>
    %cst_29 = arith.constant dense<0.000000e+00> : vector<32x1024xf32>
    %41 = tpu.matmul %40, %38, %cst_29 {dimension_numbers = #tpu.dot_dimension_numbers<[1], [0], [0], [1], [0, 0, 1, 1], [], []>} : vector<32x64xf32>, vector<64x1024xf32>, vector<32x1024xf32> -> vector<32x1024xf32>
    %42 = arith.addf %34, %41 : vector<32x1024xf32>
    %c1023_i32 = arith.constant 1023 : i32
    %43 = tpu.dynamic_rotate %7 by %c1023_i32 dim 1 : vector<64x1024xf32>, i32 -> vector<64x1024xf32>
    %c4_30 = arith.constant 4 : index
    %c0_31 = arith.constant 0 : index
    %44 = vector.load %arg2[%c4_30, %c0_31] : memref<8x1024xf32, #tpu.memory_space<vmem>>, vector<1x1024xf32>
    %45 = vector.broadcast %44 : vector<1x1024xf32> to vector<64x1024xf32>
    %46 = arith.mulf %43, %45 : vector<64x1024xf32>
    %c5 = arith.constant 5 : index
    %c0_32 = arith.constant 0 : index
    %c0_33 = arith.constant 0 : index
    %47 = vector.load %arg5[%c5, %c0_32, %c0_33] : memref<9x32x64xf32, #tpu.memory_space<vmem>>, vector<1x32x64xf32>
    %48 = vector.shape_cast %47 : vector<1x32x64xf32> to vector<32x64xf32>
    %cst_34 = arith.constant dense<0.000000e+00> : vector<32x1024xf32>
    %49 = tpu.matmul %48, %46, %cst_34 {dimension_numbers = #tpu.dot_dimension_numbers<[1], [0], [0], [1], [0, 0, 1, 1], [], []>} : vector<32x64xf32>, vector<64x1024xf32>, vector<32x1024xf32> -> vector<32x1024xf32>
    %50 = arith.addf %42, %49 : vector<32x1024xf32>
    %c1009_i32 = arith.constant 1009 : i32
    %51 = tpu.dynamic_rotate %7 by %c1009_i32 dim 1 : vector<64x1024xf32>, i32 -> vector<64x1024xf32>
    %c5_35 = arith.constant 5 : index
    %c0_36 = arith.constant 0 : index
    %52 = vector.load %arg2[%c5_35, %c0_36] : memref<8x1024xf32, #tpu.memory_space<vmem>>, vector<1x1024xf32>
    %53 = vector.broadcast %52 : vector<1x1024xf32> to vector<64x1024xf32>
    %54 = arith.mulf %51, %53 : vector<64x1024xf32>
    %c6 = arith.constant 6 : index
    %c0_37 = arith.constant 0 : index
    %c0_38 = arith.constant 0 : index
    %55 = vector.load %arg5[%c6, %c0_37, %c0_38] : memref<9x32x64xf32, #tpu.memory_space<vmem>>, vector<1x32x64xf32>
    %56 = vector.shape_cast %55 : vector<1x32x64xf32> to vector<32x64xf32>
    %cst_39 = arith.constant dense<0.000000e+00> : vector<32x1024xf32>
    %57 = tpu.matmul %56, %54, %cst_39 {dimension_numbers = #tpu.dot_dimension_numbers<[1], [0], [0], [1], [0, 0, 1, 1], [], []>} : vector<32x64xf32>, vector<64x1024xf32>, vector<32x1024xf32> -> vector<32x1024xf32>
    %58 = arith.addf %50, %57 : vector<32x1024xf32>
    %c1008_i32 = arith.constant 1008 : i32
    %59 = tpu.dynamic_rotate %7 by %c1008_i32 dim 1 : vector<64x1024xf32>, i32 -> vector<64x1024xf32>
    %c6_40 = arith.constant 6 : index
    %c0_41 = arith.constant 0 : index
    %60 = vector.load %arg2[%c6_40, %c0_41] : memref<8x1024xf32, #tpu.memory_space<vmem>>, vector<1x1024xf32>
    %61 = vector.broadcast %60 : vector<1x1024xf32> to vector<64x1024xf32>
    %62 = arith.mulf %59, %61 : vector<64x1024xf32>
    %c7 = arith.constant 7 : index
    %c0_42 = arith.constant 0 : index
    %c0_43 = arith.constant 0 : index
    %63 = vector.load %arg5[%c7, %c0_42, %c0_43] : memref<9x32x64xf32, #tpu.memory_space<vmem>>, vector<1x32x64xf32>
    %64 = vector.shape_cast %63 : vector<1x32x64xf32> to vector<32x64xf32>
    %cst_44 = arith.constant dense<0.000000e+00> : vector<32x1024xf32>
    %65 = tpu.matmul %64, %62, %cst_44 {dimension_numbers = #tpu.dot_dimension_numbers<[1], [0], [0], [1], [0, 0, 1, 1], [], []>} : vector<32x64xf32>, vector<64x1024xf32>, vector<32x1024xf32> -> vector<32x1024xf32>
    %66 = arith.addf %58, %65 : vector<32x1024xf32>
    %c1007_i32 = arith.constant 1007 : i32
    %67 = tpu.dynamic_rotate %7 by %c1007_i32 dim 1 : vector<64x1024xf32>, i32 -> vector<64x1024xf32>
    %c7_45 = arith.constant 7 : index
    %c0_46 = arith.constant 0 : index
    %68 = vector.load %arg2[%c7_45, %c0_46] : memref<8x1024xf32, #tpu.memory_space<vmem>>, vector<1x1024xf32>
    %69 = vector.broadcast %68 : vector<1x1024xf32> to vector<64x1024xf32>
    %70 = arith.mulf %67, %69 : vector<64x1024xf32>
    %c8 = arith.constant 8 : index
    %c0_47 = arith.constant 0 : index
    %c0_48 = arith.constant 0 : index
    %71 = vector.load %arg5[%c8, %c0_47, %c0_48] : memref<9x32x64xf32, #tpu.memory_space<vmem>>, vector<1x32x64xf32>
    %72 = vector.shape_cast %71 : vector<1x32x64xf32> to vector<32x64xf32>
    %cst_49 = arith.constant dense<0.000000e+00> : vector<32x1024xf32>
    %73 = tpu.matmul %72, %70, %cst_49 {dimension_numbers = #tpu.dot_dimension_numbers<[1], [0], [0], [1], [0, 0, 1, 1], [], []>} : vector<32x64xf32>, vector<64x1024xf32>, vector<32x1024xf32> -> vector<32x1024xf32>
    %74 = arith.addf %66, %73 : vector<32x1024xf32>
    %c0_50 = arith.constant 0 : index
    %c0_51 = arith.constant 0 : index
    %75 = vector.load %arg6[%c0_50, %c0_51] : memref<32x1xf32, #tpu.memory_space<vmem>>, vector<32x1xf32>
    %76 = vector.broadcast %75 : vector<32x1xf32> to vector<32x1024xf32>
    %77 = arith.addf %74, %76 : vector<32x1024xf32>
    %cst_52 = arith.constant 0.000000e+00 : f32
    %78 = vector.broadcast %cst_52 : f32 to vector<32x1024xf32>
    %79 = arith.maximumf %77, %78 : vector<32x1024xf32>
    %c0_53 = arith.constant 0 : index
    %c0_54 = arith.constant 0 : index
    %80 = vector.load %arg7[%c0_53, %c0_54] : memref<8x32xf32, #tpu.memory_space<vmem>>, vector<8x32xf32>
    %cst_55 = arith.constant dense<0.000000e+00> : vector<8x1024xf32>
    %81 = tpu.matmul %80, %79, %cst_55 {dimension_numbers = #tpu.dot_dimension_numbers<[1], [0], [0], [1], [0, 0, 1, 1], [], []>} : vector<8x32xf32>, vector<32x1024xf32>, vector<8x1024xf32> -> vector<8x1024xf32>
    %82 = vector.extract_strided_slice %81 {offsets = [0, 0], sizes = [1, 1024], strides = [1, 1]} : vector<8x1024xf32> to vector<1x1024xf32>
    %c0_56 = arith.constant 0 : index
    %83 = memref.load %arg8[%c0_56] : memref<1xf32, #tpu.memory_space<smem>>
    %84 = vector.broadcast %83 : f32 to vector<1x1024xf32>
    %85 = arith.addf %82, %84 : vector<1x1024xf32>
    %cst_57 = arith.constant 0.000000e+00 : f32
    %86 = vector.broadcast %cst_57 : f32 to vector<1x1024xf32>
    %87 = arith.maximumf %85, %86 : vector<1x1024xf32>
    %88 = vector.extract_strided_slice %87 {offsets = [0, 0], sizes = [1, 512], strides = [1, 1]} : vector<1x1024xf32> to vector<1x512xf32>
    %89 = vector.extract_strided_slice %87 {offsets = [0, 512], sizes = [1, 512], strides = [1, 1]} : vector<1x1024xf32> to vector<1x512xf32>
    %90 = arith.maximumf %88, %89 : vector<1x512xf32>
    %91 = arith.subf %88, %90 : vector<1x512xf32>
    %92 = math.exp %91 : vector<1x512xf32>
    %93 = arith.subf %89, %90 : vector<1x512xf32>
    %94 = math.exp %93 : vector<1x512xf32>
    %95 = arith.addf %92, %94 : vector<1x512xf32>
    %cst_58 = arith.constant 1.000000e+00 : f32
    %96 = vector.broadcast %cst_58 : f32 to vector<1x512xf32>
    %97 = arith.divf %96, %95 : vector<1x512xf32>
    %98 = arith.mulf %92, %97 : vector<1x512xf32>
    %99 = arith.mulf %94, %97 : vector<1x512xf32>
    %100 = vector.extract_strided_slice %0 {offsets = [0, 0], sizes = [4, 512], strides = [1, 1]} : vector<4x1024xf32> to vector<4x512xf32>
    %101 = vector.extract_strided_slice %0 {offsets = [0, 512], sizes = [4, 512], strides = [1, 1]} : vector<4x1024xf32> to vector<4x512xf32>
    %102 = vector.broadcast %98 : vector<1x512xf32> to vector<4x512xf32>
    %103 = arith.mulf %102, %100 : vector<4x512xf32>
    %104 = vector.broadcast %99 : vector<1x512xf32> to vector<4x512xf32>
    %105 = arith.mulf %104, %101 : vector<4x512xf32>
    %106 = arith.addf %103, %105 : vector<4x512xf32>
    %c0_59 = arith.constant 0 : index
    %c0_60 = arith.constant 0 : index
    %107 = vector.load %arg9[%c0_59, %c0_60] : memref<4x512xf32, #tpu.memory_space<vmem>>, vector<4x512xf32>
    tpu.vector_store %arg9[%c0_59, %c0_60], %106 {strides = array<i32>} : memref<4x512xf32, #tpu.memory_space<vmem>>, vector<4x512xf32>,
    return
  }
  func.func @transform_0(%arg0: i32) -> (i32, i32) {
    %c0_i32 = arith.constant 0 : i32
    %c0_i32_0 = arith.constant 0 : i32
    %c0_i32_1 = arith.constant 0 : i32
    return %c0_i32, %c0_i32_0 : i32, i32
  }
  func.func @transform_1(%arg0: i32) -> (i32, i32) {
    %c0_i32 = arith.constant 0 : i32
    %c0_i32_0 = arith.constant 0 : i32
    %c0_i32_1 = arith.constant 0 : i32
    return %c0_i32, %c0_i32_0 : i32, i32
  }
  func.func @transform_2(%arg0: i32) -> (i32, i32) {
    %c0_i32 = arith.constant 0 : i32
    %c0_i32_0 = arith.constant 0 : i32
    %c0_i32_1 = arith.constant 0 : i32
    return %c0_i32, %c0_i32_0 : i32, i32
  }
  func.func @transform_3(%arg0: i32) -> (i32, i32) {
    %c0_i32 = arith.constant 0 : i32
    %c0_i32_0 = arith.constant 0 : i32
    %c0_i32_1 = arith.constant 0 : i32
    return %c0_i32, %c0_i32_0 : i32, i32
  }
  func.func @transform_4(%arg0: i32) -> (i32, i32, i32) {
    %c0_i32 = arith.constant 0 : i32
    %c0_i32_0 = arith.constant 0 : i32
    %c0_i32_1 = arith.constant 0 : i32
    %c0_i32_2 = arith.constant 0 : i32
    return %c0_i32, %c0_i32_0, %c0_i32_1 : i32, i32, i32
  }
  func.func @transform_5(%arg0: i32) -> (i32, i32) {
    %c0_i32 = arith.constant 0 : i32
    %c0_i32_0 = arith.constant 0 : i32
    %c0_i32_1 = arith.constant 0 : i32
    return %c0_i32, %c0_i32_0 : i32, i32
  }
  func.func @transform_6(%arg0: i32) -> (i32, i32) {
    %c0_i32 = arith.constant 0 : i32
    %c0_i32_0 = arith.constant 0 : i32
    %c0_i32_1 = arith.constant 0 : i32
    return %c0_i32, %c0_i32_0 : i32, i32
  }
  func.func @transform_7(%arg0: i32) -> i32 {
    %c0_i32 = arith.constant 0 : i32
    %c0_i32_0 = arith.constant 0 : i32
    return %c0_i32 : i32
  }
  func.func @transform_8(%arg0: i32) -> (i32, i32) {
    %c0_i32 = arith.constant 0 : i32
    %c0_i32_0 = arith.constant 0 : i32
    %c0_i32_1 = arith.constant 0 : i32
    return %c0_i32, %c0_i32_0 : i32, i32
  }
}

</mosaic_0001>

<llo_original>
// kernel: aggregation_pallas.1
$region0: #{aggregation_pallas.1}
  #allocation0 [shape = 'u32[]', space=smem, size = 0x4, offset = 0x4, fixed_abs, tag = 'smem constant byte address 0x4 - core index']
  #allocation1 [shape = 'u32[144,128]{1,0:T(1,128)}', space=vmem, size = 0x12000, scoped, tag = 'internal scratch']
  #allocation2 [shape = 'f32[1]{0:T(128)S(6)}', space=smem, size = 0x200, scoped, tag = 'scoped memory for aggregation_pallas.1']
  %s0 = inlined_call_operand.vmem [shape: f32[4,1024], index: 0, kind: input, shape index: {}]
  %s1 = inlined_call_operand.vmem [shape: f32[8,1024], index: 1, kind: input, shape index: {}]
  %s2 = inlined_call_operand.vmem [shape: f32[64,4], index: 2, kind: input, shape index: {}]
  %s3 = inlined_call_operand.vmem [shape: f32[64,1], index: 3, kind: input, shape index: {}]
  %s4 = inlined_call_operand.vmem [shape: f32[9,32,64], index: 4, kind: input, shape index: {}]
  %s5 = inlined_call_operand.vmem [shape: f32[32,1], index: 5, kind: input, shape index: {}]
  %s6 = inlined_call_operand.vmem [shape: f32[8,32], index: 6, kind: input, shape index: {}]
  %s7 = inlined_call_operand.<no memory space> [shape: f32[1], index: 7, kind: input, shape index: {}]
  %s8 = inlined_call_operand.vmem [shape: f32[4,512], index: 8, kind: output, shape index: {}]
  %s9 = sld [smem:[#allocation0]]
  $region42: #{aggregation_pallas.1} parent=0
    _
  %s11 = ssub.s32 1, %s9
  %s12 = scalar_select 0, %s11, %s9
  %13 = sst [smem:[#allocation2]] %s7
  // Predicated region
  $region2: #{aggregation_pallas.1} parent=0 // pred_check
    _
  $region3: #{aggregation_pallas.1} parent=0 // pred_check_branch
    %15 = sbr.rel (0) target = $region5
  $region4: #{aggregation_pallas.1} parent=0 // pred_region
    _
  $region5: #{aggregation_pallas.1} parent=0 // pred_fallthru
    _
  // Predicated region
  $region6: #{aggregation_pallas.1} parent=0 // pred_check
    _
  $region7: #{aggregation_pallas.1} parent=0 // pred_check_branch
    %17 = sbr.rel (0) target = $region9
  $region8: #{aggregation_pallas.1} parent=0 // pred_region
    _
  $region9: #{aggregation_pallas.1} parent=0 // pred_fallthru
    _
  // Predicated region
  $region10: #{aggregation_pallas.1} parent=0 // pred_check
    _
  $region11: #{aggregation_pallas.1} parent=0 // pred_check_branch
    %19 = sbr.rel (0) target = $region13
  $region12: #{aggregation_pallas.1} parent=0 // pred_region
    _
  $region13: #{aggregation_pallas.1} parent=0 // pred_fallthru
    _
  // Predicated region
  $region14: #{aggregation_pallas.1} parent=0 // pred_check
    _
  $region15: #{aggregation_pallas.1} parent=0 // pred_check_branch
    %21 = sbr.rel (0) target = $region17
  $region16: #{aggregation_pallas.1} parent=0 // pred_region
    _
  $region17: #{aggregation_pallas.1} parent=0 // pred_fallthru
    _
  // Predicated region
  $region18: #{aggregation_pallas.1} parent=0 // pred_check
    _
  $region19: #{aggregation_pallas.1} parent=0 // pred_check_branch
    %23 = sbr.rel (0) target = $region21
  $region20: #{aggregation_pallas.1} parent=0 // pred_region
    _
  $region21: #{aggregation_pallas.1} parent=0 // pred_fallthru
    _
  // Predicated region
  $region22: #{aggregation_pallas.1} parent=0 // pred_check
    _
  $region23: #{aggregation_pallas.1} parent=0 // pred_check_branch
    %25 = sbr.rel (0) target = $region25
  $region24: #{aggregation_pallas.1} parent=0 // pred_region
    _
  $region25: #{aggregation_pallas.1} parent=0 // pred_fallthru
    _
  // Predicated region
  $region26: #{aggregation_pallas.1} parent=0 // pred_check
    _
  $region27: #{aggregation_pallas.1} parent=0 // pred_check_branch
    %27 = sbr.rel (0) target = $region29
  $region28: #{aggregation_pallas.1} parent=0 // pred_region
    _
  $region29: #{aggregation_pallas.1} parent=0 // pred_fallthru
    _
  // Predicated region
  $region30: #{aggregation_pallas.1} parent=0 // pred_check
    _
  $region31: #{aggregation_pallas.1} parent=0 // pred_check_branch
    %29 = sbr.rel (0) target = $region33
  $region32: #{aggregation_pallas.1} parent=0 // pred_region
    _
  $region33: #{aggregation_pallas.1} parent=0 // pred_fallthru
    _
  %v30 = vld [vmem:[%s0] sm:$0xff]
  %v31 = vld [vmem:[%s0 + $0x8] sm:$0xff]
  %v32 = vld [vmem:[%s0 + $0x10] sm:$0xff]
  %v33 = vld [vmem:[%s0 + $0x18] sm:$0xff]
  %v34 = vld [vmem:[%s2] sm:$0xff]
  %v35 = vld [vmem:[%s2 + $0x8] sm:$0xff]
  %v36 = vld [vmem:[%s2 + $0x10] sm:$0xff]
  %v37 = vld [vmem:[%s2 + $0x18] sm:$0xff]
  %v38 = vld [vmem:[%s2 + $0x20] sm:$0xff]
  %v39 = vld [vmem:[%s2 + $0x28] sm:$0xff]
  %v40 = vld [vmem:[%s2 + $0x30] sm:$0xff]
  %v41 = vld [vmem:[%s2 + $0x38] sm:$0xff]
  %v42 = vld [vmem:[%s3] sm:$0xff]
  %v43 = vld [vmem:[%s3 + $0x8] sm:$0xff]
  %v44 = vld [vmem:[%s3 + $0x10] sm:$0xff]
  %v45 = vld [vmem:[%s3 + $0x18] sm:$0xff]
  %v46 = vld [vmem:[%s3 + $0x20] sm:$0xff]
  %v47 = vld [vmem:[%s3 + $0x28] sm:$0xff]
  %v48 = vld [vmem:[%s3 + $0x30] sm:$0xff]
  %v49 = vld [vmem:[%s3 + $0x38] sm:$0xff]
  %51 = vset.pattern.permute.xlu0 0
  %52 = vperm.xlu0 %51, %v42
  %v53 = vpop.permute.xlu0 %52
  %56 = vset.pattern.permute.xlu0 0
  %57 = vperm.xlu0 %56, %v43
  %v58 = vpop.permute.xlu0 %57
  %61 = vset.pattern.permute.xlu0 0
  %62 = vperm.xlu0 %61, %v44
  %v63 = vpop.permute.xlu0 %62
  %66 = vset.pattern.permute.xlu0 0
  %67 = vperm.xlu0 %66, %v45
  %v68 = vpop.permute.xlu0 %67
  %71 = vset.pattern.permute.xlu0 0
  %72 = vperm.xlu0 %71, %v46
  %v73 = vpop.permute.xlu0 %72
  %76 = vset.pattern.permute.xlu0 0
  %77 = vperm.xlu0 %76, %v47
  %v78 = vpop.permute.xlu0 %77
  %81 = vset.pattern.permute.xlu0 0
  %82 = vperm.xlu0 %81, %v48
  %v83 = vpop.permute.xlu0 %82
  %86 = vset.pattern.permute.xlu0 0
  %87 = vperm.xlu0 %86, %v49
  %v88 = vpop.permute.xlu0 %87
  %v94 = vcombine.high %v30, %v30
  %v95 = vcombine.high %v31, %v31
  %v96 = vcombine.high %v32, %v32
  %v97 = vcombine.high %v33, %v33
  %vm98 = vcmask 31744
  %v100 = vsel %vm98, %v34, 0
  %v103 = vsel %vm98, %v35, 0
  %v106 = vsel %vm98, %v36, 0
  %v109 = vsel %vm98, %v37, 0
  %v112 = vsel %vm98, %v38, 0
  %v115 = vsel %vm98, %v39, 0
  %v118 = vsel %vm98, %v40, 0
  %v121 = vsel %vm98, %v41, 0
  %vm123 = vcmask 1043456
  %v124 = vsel %vm123, %v30, 0
  %v126 = vsel %vm123, %v94, 0
  %v128 = vsel %vm123, %v31, 0
  %v130 = vsel %vm123, %v95, 0
  %v132 = vsel %vm123, %v32, 0
  %v134 = vsel %vm123, %v96, 0
  %v136 = vsel %vm123, %v33, 0
  %v138 = vsel %vm123, %v97, 0
  %140 = vmatprep.subr.mxu0 %v126
  %141 = vmatpush1.msra.mxu0 %v124
  %142 = vmatprep.subr.mxu0 0.0
  %143 = vmatpush1.msra.mxu0 0.0
  %144 = vmatprep.subr.mxu0 0.0
  %145 = vmatpush1.msra.mxu0 0.0
  %146 = vmatprep.subr.mxu0 0.0
  %147 = vmatpush1.msra.mxu0 0.0
  %148 = vmatprep.subr.mxu0 0.0
  %149 = vmatpush1.msra.mxu0 0.0
  %150 = vmatprep.subr.mxu0 0.0
  %151 = vmatpush1.msra.mxu0 0.0
  %152 = vmatprep.subr.mxu0 0.0
  %153 = vmatpush1.msra.mxu0 0.0
  %154 = vmatprep.subr.mxu0 0.0
  %155 = vmatpush1.msra.mxu0 0.0
  %156 = vmatprep.subr.mxu0 0.0
  %157 = vmatpush1.msra.mxu0 0.0
  %158 = vmatprep.subr.mxu0 0.0
  %159 = vmatpush1.msra.mxu0 0.0
  %160 = vmatprep.subr.mxu0 0.0
  %161 = vmatpush1.msra.mxu0 0.0
  %162 = vmatprep.subr.mxu0 0.0
  %163 = vmatpush1.msra.mxu0 0.0
  %164 = vmatprep.subr.mxu0 0.0
  %165 = vmatpush1.msra.mxu0 0.0
  %166 = vmatprep.subr.mxu0 0.0
  %167 = vmatpush1.msra.mxu0 0.0
  %168 = vmatprep.subr.mxu0 0.0
  %169 = vmatpush1.msra.mxu0 0.0
  %170 = vmatprep.subr.mxu0 0.0
  %171 = vmatpush1.msra.mxu0 0.0
  %172 = vmatprep.subr.mxu0 0.0
  %173 = vmatpush1.msra.mxu0 0.0
  %174 = vmatprep.subr.mxu0 0.0
  %175 = vmatpush1.msra.mxu0 0.0
  %176 = vmatprep.subr.mxu0 0.0
  %177 = vmatpush1.msra.mxu0 0.0
  %178 = vmatprep.subr.mxu0 0.0
  %179 = vmatpush1.msra.mxu0 0.0
  %180 = vmatprep.subr.mxu0 0.0
  %181 = vmatpush1.msra.mxu0 0.0
  %182 = vmatprep.subr.mxu0 0.0
  %183 = vmatpush1.msra.mxu0 0.0
  %184 = vmatprep.subr.mxu0 0.0
  %185 = vmatpush1.msra.mxu0 0.0
  %186 = vmatprep.subr.mxu0 0.0
  %187 = vmatpush1.msra.mxu0 0.0
  %188 = vmatprep.subr.mxu0 0.0
  %189 = vmatpush1.msra.mxu0 0.0
  %190 = vmatprep.subr.mxu0 0.0
  %191 = vmatpush1.msra.mxu0 0.0
  %192 = vmatprep.subr.mxu0 0.0
  %193 = vmatpush1.msra.mxu0 0.0
  %194 = vmatprep.subr.mxu0 0.0
  %195 = vmatpush1.msra.mxu0 0.0
  %196 = vmatprep.subr.mxu0 0.0
  %197 = vmatpush1.msra.mxu0 0.0
  %198 = vmatprep.subr.mxu0 0.0
  %199 = vmatpush1.msra.mxu0 0.0
  %200 = vmatprep.subr.mxu0 0.0
  %201 = vmatpush1.msra.mxu0 0.0
  %202 = vmatprep.subr.mxu0 0.0
  %203 = vmatpush1.msra.mxu0 0.0
  %204 = vmatprep.mubr.f32.mxu0 0.0
  %205 = vmatmul.mubr.f32.gmra.mrb[0].mxu0 %v100
  %v206 = vpop.f32.mrb[0].mxu0
  %v207 = vadd.f32 %v53, %v206
  %v208 = vpop.f32.mrb[0].mxu0
  %v209 = vadd.f32 %v53, %v208
  %210 = vmatprep.mubr.f32.mxu0 0.0
  %211 = vmatmul.mubr.f32.gmra.mrb[0].mxu0 %v103
  %v212 = vpop.f32.mrb[0].mxu0
  %v213 = vadd.f32 %v58, %v212
  %v214 = vpop.f32.mrb[0].mxu0
  %v215 = vadd.f32 %v58, %v214
  %216 = vmatprep.mubr.f32.mxu0 0.0
  %217 = vmatmul.mubr.f32.gmra.mrb[0].mxu0 %v106
  %v218 = vpop.f32.mrb[0].mxu0
  %v219 = vadd.f32 %v63, %v218
  %v220 = vpop.f32.mrb[0].mxu0
  %v221 = vadd.f32 %v63, %v220
  %222 = vmatprep.mubr.f32.mxu0 0.0
  %223 = vmatmul.mubr.f32.gmra.mrb[0].mxu0 %v109
  %v224 = vpop.f32.mrb[0].mxu0
  %v225 = vadd.f32 %v68, %v224
  %v226 = vpop.f32.mrb[0].mxu0
  %v227 = vadd.f32 %v68, %v226
  %228 = vmatprep.mubr.f32.mxu0 0.0
  %229 = vmatmul.mubr.f32.gmra.mrb[0].mxu0 %v112
  %v230 = vpop.f32.mrb[0].mxu0
  %v231 = vadd.f32 %v73, %v230
  %v232 = vpop.f32.mrb[0].mxu0
  %v233 = vadd.f32 %v73, %v232
  %234 = vmatprep.mubr.f32.mxu0 0.0
  %235 = vmatmul.mubr.f32.gmra.mrb[0].mxu0 %v115
  %v236 = vpop.f32.mrb[0].mxu0
  %v237 = vadd.f32 %v78, %v236
  %v238 = vpop.f32.mrb[0].mxu0
  %v239 = vadd.f32 %v78, %v238
  %240 = vmatprep.mubr.f32.mxu0 0.0
  %241 = vmatmul.mubr.f32.gmra.mrb[0].mxu0 %v118
  %v242 = vpop.f32.mrb[0].mxu0
  %v243 = vadd.f32 %v83, %v242
  %v244 = vpop.f32.mrb[0].mxu0
  %v245 = vadd.f32 %v83, %v244
  %246 = vmatprep.mubr.f32.mxu0 0.0
  %247 = vmatmul.mubr.f32.gmra.mrb[0].mxu0 %v121
  %v248 = vpop.f32.mrb[0].mxu0
  %v249 = vadd.f32 %v88, %v248
  %v250 = vpop.f32.mrb[0].mxu0
  %v251 = vadd.f32 %v88, %v250
  %252 = vdwg.mxu0
  %253 = vmatprep.subr.mxu0 %v130
  %254 = vmatpush1.msra.mxu0 %v128
  %255 = vmatprep.subr.mxu0 0.0
  %256 = vmatpush1.msra.mxu0 0.0
  %257 = vmatprep.subr.mxu0 0.0
  %258 = vmatpush1.msra.mxu0 0.0
  %259 = vmatprep.subr.mxu0 0.0
  %260 = vmatpush1.msra.mxu0 0.0
  %261 = vmatprep.subr.mxu0 0.0
  %262 = vmatpush1.msra.mxu0 0.0
  %263 = vmatprep.subr.mxu0 0.0
  %264 = vmatpush1.msra.mxu0 0.0
  %265 = vmatprep.subr.mxu0 0.0
  %266 = vmatpush1.msra.mxu0 0.0
  %267 = vmatprep.subr.mxu0 0.0
  %268 = vmatpush1.msra.mxu0 0.0
  %269 = vmatprep.subr.mxu0 0.0
  %270 = vmatpush1.msra.mxu0 0.0
  %271 = vmatprep.subr.mxu0 0.0
  %272 = vmatpush1.msra.mxu0 0.0
  %273 = vmatprep.subr.mxu0 0.0
  %274 = vmatpush1.msra.mxu0 0.0
  %275 = vmatprep.subr.mxu0 0.0
  %276 = vmatpush1.msra.mxu0 0.0
  %277 = vmatprep.subr.mxu0 0.0
  %278 = vmatpush1.msra.mxu0 0.0
  %279 = vmatprep.subr.mxu0 0.0
  %280 = vmatpush1.msra.mxu0 0.0
  %281 = vmatprep.subr.mxu0 0.0
  %282 = vmatpush1.msra.mxu0 0.0
  %283 = vmatprep.subr.mxu0 0.0
  %284 = vmatpush1.msra.mxu0 0.0
  %285 = vmatprep.subr.mxu0 0.0
  %286 = vmatpush1.msra.mxu0 0.0
  %287 = vmatprep.subr.mxu0 0.0
  %288 = vmatpush1.msra.mxu0 0.0
  %289 = vmatprep.subr.mxu0 0.0
  %290 = vmatpush1.msra.mxu0 0.0
  %291 = vmatprep.subr.mxu0 0.0
  %292 = vmatpush1.msra.mxu0 0.0
  %293 = vmatprep.subr.mxu0 0.0
  %294 = vmatpush1.msra.mxu0 0.0
  %295 = vmatprep.subr.mxu0 0.0
  %296 = vmatpush1.msra.mxu0 0.0
  %297 = vmatprep.subr.mxu0 0.0
  %298 = vmatpush1.msra.mxu0 0.0
  %299 = vmatprep.subr.mxu0 0.0
  %300 = vmatpush1.msra.mxu0 0.0
  %301 = vmatprep.subr.mxu0 0.0
  %302 = vmatpush1.msra.mxu0 0.0
  %303 = vmatprep.subr.mxu0 0.0
  %304 = vmatpush1.msra.mxu0 0.0
  %305 = vmatprep.subr.mxu0 0.0
  %306 = vmatpush1.msra.mxu0 0.0
  %307 = vmatprep.subr.mxu0 0.0
  %308 = vmatpush1.msra.mxu0 0.0
  %309 = vmatprep.subr.mxu0 0.0
  %310 = vmatpush1.msra.mxu0 0.0
  %311 = vmatprep.subr.mxu0 0.0
  %312 = vmatpush1.msra.mxu0 0.0
  %313 = vmatprep.subr.mxu0 0.0
  %314 = vmatpush1.msra.mxu0 0.0
  %315 = vmatprep.subr.mxu0 0.0
  %316 = vmatpush1.msra.mxu0 0.0
  %317 = vmatprep.mubr.f32.mxu0 0.0
  %318 = vmatmul.mubr.f32.gmra.mrb[0].mxu0 %v100
  %v319 = vpop.f32.mrb[0].mxu0
  %v320 = vadd.f32 %v53, %v319
  %v321 = vpop.f32.mrb[0].mxu0
  %v322 = vadd.f32 %v53, %v321
  %323 = vmatprep.mubr.f32.mxu0 0.0
  %324 = vmatmul.mubr.f32.gmra.mrb[0].mxu0 %v103
  %v325 = vpop.f32.mrb[0].mxu0
  %v326 = vadd.f32 %v58, %v325
  %v327 = vpop.f32.mrb[0].mxu0
  %v328 = vadd.f32 %v58, %v327
  %329 = vmatprep.mubr.f32.mxu0 0.0
  %330 = vmatmul.mubr.f32.gmra.mrb[0].mxu0 %v106
  %v331 = vpop.f32.mrb[0].mxu0
  %v332 = vadd.f32 %v63, %v331
  %v333 = vpop.f32.mrb[0].mxu0
  %v334 = vadd.f32 %v63, %v333
  %335 = vmatprep.mubr.f32.mxu0 0.0
  %336 = vmatmul.mubr.f32.gmra.mrb[0].mxu0 %v109
  %v337 = vpop.f32.mrb[0].mxu0
  %v338 = vadd.f32 %v68, %v337
  %v339 = vpop.f32.mrb[0].mxu0
  %v340 = vadd.f32 %v68, %v339
  %341 = vmatprep.mubr.f32.mxu0 0.0
  %342 = vmatmul.mubr.f32.gmra.mrb[0].mxu0 %v112
  %v343 = vpop.f32.mrb[0].mxu0
  %v344 = vadd.f32 %v73, %v343
  %v345 = vpop.f32.mrb[0].mxu0
  %v346 = vadd.f32 %v73, %v345
  %347 = vmatprep.mubr.f32.mxu0 0.0
  %348 = vmatmul.mubr.f32.gmra.mrb[0].mxu0 %v115
  %v349 = vpop.f32.mrb[0].mxu0
  %v350 = vadd.f32 %v78, %v349
  %v351 = vpop.f32.mrb[0].mxu0
  %v352 = vadd.f32 %v78, %v351
  %353 = vmatprep.mubr.f32.mxu0 0.0
  %354 = vmatmul.mubr.f32.gmra.mrb[0].mxu0 %v118
  %v355 = vpop.f32.mrb[0].mxu0
  %v356 = vadd.f32 %v83, %v355
  %v357 = vpop.f32.mrb[0].mxu0
  %v358 = vadd.f32 %v83, %v357
  %359 = vmatprep.mubr.f32.mxu0 0.0
  %360 = vmatmul.mubr.f32.gmra.mrb[0].mxu0 %v121
  %v361 = vpop.f32.mrb[0].mxu0
  %v362 = vadd.f32 %v88, %v361
  %v363 = vpop.f32.mrb[0].mxu0
  %v364 = vadd.f32 %v88, %v363
  %365 = vdwg.mxu0
  %366 = vmatprep.subr.mxu0 %v134
  %367 = vmatpush1.msra.mxu0 %v132
  %368 = vmatprep.subr.mxu0 0.0
  %369 = vmatpush1.msra.mxu0 0.0
  %370 = vmatprep.subr.mxu0 0.0
  %371 = vmatpush1.msra.mxu0 0.0
  %372 = vmatprep.subr.mxu0 0.0
  %373 = vmatpush1.msra.mxu0 0.0
  %374 = vmatprep.subr.mxu0 0.0
  %375 = vmatpush1.msra.mxu0 0.0
  %376 = vmatprep.subr.mxu0 0.0
  %377 = vmatpush1.msra.mxu0 0.0
  %378 = vmatprep.subr.mxu0 0.0
  %379 = vmatpush1.msra.mxu0 0.0
  %380 = vmatprep.subr.mxu0 0.0
  %381 = vmatpush1.msra.mxu0 0.0
  %382 = vmatprep.subr.mxu0 0.0
  %383 = vmatpush1.msra.mxu0 0.0
  %384 = vmatprep.subr.mxu0 0.0
  %385 = vmatpush1.msra.mxu0 0.0
  %386 = vmatprep.subr.mxu0 0.0
  %387 = vmatpush1.msra.mxu0 0.0
  %388 = vmatprep.subr.mxu0 0.0
  %389 = vmatpush1.msra.mxu0 0.0
  %390 = vmatprep.subr.mxu0 0.0
  %391 = vmatpush1.msra.mxu0 0.0
  %392 = vmatprep.subr.mxu0 0.0
  %393 = vmatpush1.msra.mxu0 0.0
  %394 = vmatprep.subr.mxu0 0.0
  %395 = vmatpush1.msra.mxu0 0.0
  %396 = vmatprep.subr.mxu0 0.0
  %397 = vmatpush1.msra.mxu0 0.0
  %398 = vmatprep.subr.mxu0 0.0
  %399 = vmatpush1.msra.mxu0 0.0
  %400 = vmatprep.subr.mxu0 0.0
  %401 = vmatpush1.msra.mxu0 0.0
  %402 = vmatprep.subr.mxu0 0.0
  %403 = vmatpush1.msra.mxu0 0.0
  %404 = vmatprep.subr.mxu0 0.0
  %405 = vmatpush1.msra.mxu0 0.0
  %406 = vmatprep.subr.mxu0 0.0
  %407 = vmatpush1.msra.mxu0 0.0
  %408 = vmatprep.subr.mxu0 0.0
  %409 = vmatpush1.msra.mxu0 0.0
  %410 = vmatprep.subr.mxu0 0.0
  %411 = vmatpush1.msra.mxu0 0.0
  %412 = vmatprep.subr.mxu0 0.0
  %413 = vmatpush1.msra.mxu0 0.0
  %414 = vmatprep.subr.mxu0 0.0
  %415 = vmatpush1.msra.mxu0 0.0
  %416 = vmatprep.subr.mxu0 0.0
  %417 = vmatpush1.msra.mxu0 0.0
  %418 = vmatprep.subr.mxu0 0.0
  %419 = vmatpush1.msra.mxu0 0.0
  %420 = vmatprep.subr.mxu0 0.0
  %421 = vmatpush1.msra.mxu0 0.0
  %422 = vmatprep.subr.mxu0 0.0
  %423 = vmatpush1.msra.mxu0 0.0
  %424 = vmatprep.subr.mxu0 0.0
  %425 = vmatpush1.msra.mxu0 0.0
  %426 = vmatprep.subr.mxu0 0.0
  %427 = vmatpush1.msra.mxu0 0.0
  %428 = vmatprep.subr.mxu0 0.0
  %429 = vmatpush1.msra.mxu0 0.0
  %430 = vmatprep.mubr.f32.mxu0 0.0
  %431 = vmatmul.mubr.f32.gmra.mrb[0].mxu0 %v100
  %v432 = vpop.f32.mrb[0].mxu0
  %v433 = vadd.f32 %v53, %v432
  %v434 = vpop.f32.mrb[0].mxu0
  %v435 = vadd.f32 %v53, %v434
  %436 = vmatprep.mubr.f32.mxu0 0.0
  %437 = vmatmul.mubr.f32.gmra.mrb[0].mxu0 %v103
  %v438 = vpop.f32.mrb[0].mxu0
  %v439 = vadd.f32 %v58, %v438
  %v440 = vpop.f32.mrb[0].mxu0
  %v441 = vadd.f32 %v58, %v440
  %442 = vmatprep.mubr.f32.mxu0 0.0
  %443 = vmatmul.mubr.f32.gmra.mrb[0].mxu0 %v106
  %v444 = vpop.f32.mrb[0].mxu0
  %v445 = vadd.f32 %v63, %v444
  %v446 = vpop.f32.mrb[0].mxu0
  %v447 = vadd.f32 %v63, %v446
  %448 = vmatprep.mubr.f32.mxu0 0.0
  %449 = vmatmul.mubr.f32.gmra.mrb[0].mxu0 %v109
  %v450 = vpop.f32.mrb[0].mxu0
  %v451 = vadd.f32 %v68, %v450
  %v452 = vpop.f32.mrb[0].mxu0
  %v453 = vadd.f32 %v68, %v452
  %454 = vmatprep.mubr.f32.mxu0 0.0
  %455 = vmatmul.mubr.f32.gmra.mrb[0].mxu0 %v112
  %v456 = vpop.f32.mrb[0].mxu0
  %v457 = vadd.f32 %v73, %v456
  %v458 = vpop.f32.mrb[0].mxu0
  %v459 = vadd.f32 %v73, %v458
  %460 = vmatprep.mubr.f32.mxu0 0.0
  %461 = vmatmul.mubr.f32.gmra.mrb[0].mxu0 %v115
  %v462 = vpop.f32.mrb[0].mxu0
  %v463 = vadd.f32 %v78, %v462
  %v464 = vpop.f32.mrb[0].mxu0
  %v465 = vadd.f32 %v78, %v464
  %466 = vmatprep.mubr.f32.mxu0 0.0
  %467 = vmatmul.mubr.f32.gmra.mrb[0].mxu0 %v118
  %v468 = vpop.f32.mrb[0].mxu0
  %v469 = vadd.f32 %v83, %v468
  %v470 = vpop.f32.mrb[0].mxu0
  %v471 = vadd.f32 %v83, %v470
  %472 = vmatprep.mubr.f32.mxu0 0.0
  %473 = vmatmul.mubr.f32.gmra.mrb[0].mxu0 %v121
  %v474 = vpop.f32.mrb[0].mxu0
  %v475 = vadd.f32 %v88, %v474
  %v476 = vpop.f32.mrb[0].mxu0
  %v477 = vadd.f32 %v88, %v476
  %478 = vdwg.mxu0
  %479 = vmatprep.subr.mxu0 %v138
  %480 = vmatpush1.msra.mxu0 %v136
  %481 = vmatprep.subr.mxu0 0.0
  %482 = vmatpush1.msra.mxu0 0.0
  %483 = vmatprep.subr.mxu0 0.0
  %484 = vmatpush1.msra.mxu0 0.0
  %485 = vmatprep.subr.mxu0 0.0
  %486 = vmatpush1.msra.mxu0 0.0
  %487 = vmatprep.subr.mxu0 0.0
  %488 = vmatpush1.msra.mxu0 0.0
  %489 = vmatprep.subr.mxu0 0.0
  %490 = vmatpush1.msra.mxu0 0.0
  %491 = vmatprep.subr.mxu0 0.0
  %492 = vmatpush1.msra.mxu0 0.0
  %493 = vmatprep.subr.mxu0 0.0
  %494 = vmatpush1.msra.mxu0 0.0
  %495 = vmatprep.subr.mxu0 0.0
  %496 = vmatpush1.msra.mxu0 0.0
  %497 = vmatprep.subr.mxu0 0.0
  %498 = vmatpush1.msra.mxu0 0.0
  %499 = vmatprep.subr.mxu0 0.0
  %500 = vmatpush1.msra.mxu0 0.0
  %501 = vmatprep.subr.mxu0 0.0
  %502 = vmatpush1.msra.mxu0 0.0
  %503 = vmatprep.subr.mxu0 0.0
  %504 = vmatpush1.msra.mxu0 0.0
  %505 = vmatprep.subr.mxu0 0.0
  %506 = vmatpush1.msra.mxu0 0.0
  %507 = vmatprep.subr.mxu0 0.0
  %508 = vmatpush1.msra.mxu0 0.0
  %509 = vmatprep.subr.mxu0 0.0
  %510 = vmatpush1.msra.mxu0 0.0
  %511 = vmatprep.subr.mxu0 0.0
  %512 = vmatpush1.msra.mxu0 0.0
  %513 = vmatprep.subr.mxu0 0.0
  %514 = vmatpush1.msra.mxu0 0.0
  %515 = vmatprep.subr.mxu0 0.0
  %516 = vmatpush1.msra.mxu0 0.0
  %517 = vmatprep.subr.mxu0 0.0
  %518 = vmatpush1.msra.mxu0 0.0
  %519 = vmatprep.subr.mxu0 0.0
  %520 = vmatpush1.msra.mxu0 0.0
  %521 = vmatprep.subr.mxu0 0.0
  %522 = vmatpush1.msra.mxu0 0.0
  %523 = vmatprep.subr.mxu0 0.0
  %524 = vmatpush1.msra.mxu0 0.0
  %525 = vmatprep.subr.mxu0 0.0
  %526 = vmatpush1.msra.mxu0 0.0
  %527 = vmatprep.subr.mxu0 0.0
  %528 = vmatpush1.msra.mxu0 0.0
  %529 = vmatprep.subr.mxu0 0.0
  %530 = vmatpush1.msra.mxu0 0.0
  %531 = vmatprep.subr.mxu0 0.0
  %532 = vmatpush1.msra.mxu0 0.0
  %533 = vmatprep.subr.mxu0 0.0
  %534 = vmatpush1.msra.mxu0 0.0
  %535 = vmatprep.subr.mxu0 0.0
  %536 = vmatpush1.msra.mxu0 0.0
  %537 = vmatprep.subr.mxu0 0.0
  %538 = vmatpush1.msra.mxu0 0.0
  %539 = vmatprep.subr.mxu0 0.0
  %540 = vmatpush1.msra.mxu0 0.0
  %541 = vmatprep.subr.mxu0 0.0
  %542 = vmatpush1.msra.mxu0 0.0
  %543 = vmatprep.mubr.f32.mxu0 0.0
  %544 = vmatmul.mubr.f32.gmra.mrb[0].mxu0 %v100
  %v545 = vpop.f32.mrb[0].mxu0
  %v546 = vadd.f32 %v53, %v545
  %v547 = vpop.f32.mrb[0].mxu0
  %v548 = vadd.f32 %v53, %v547
  %549 = vmatprep.mubr.f32.mxu0 0.0
  %550 = vmatmul.mubr.f32.gmra.mrb[0].mxu0 %v103
  %v551 = vpop.f32.mrb[0].mxu0
  %v552 = vadd.f32 %v58, %v551
  %v553 = vpop.f32.mrb[0].mxu0
  %v554 = vadd.f32 %v58, %v553
  %555 = vmatprep.mubr.f32.mxu0 0.0
  %556 = vmatmul.mubr.f32.gmra.mrb[0].mxu0 %v106
  %v557 = vpop.f32.mrb[0].mxu0
  %v558 = vadd.f32 %v63, %v557
  %v559 = vpop.f32.mrb[0].mxu0
  %v560 = vadd.f32 %v63, %v559
  %561 = vmatprep.mubr.f32.mxu0 0.0
  %562 = vmatmul.mubr.f32.gmra.mrb[0].mxu0 %v109
  %v563 = vpop.f32.mrb[0].mxu0
  %v564 = vadd.f32 %v68, %v563
  %v565 = vpop.f32.mrb[0].mxu0
  %v566 = vadd.f32 %v68, %v565
  %567 = vmatprep.mubr.f32.mxu0 0.0
  %568 = vmatmul.mubr.f32.gmra.mrb[0].mxu0 %v112
  %v569 = vpop.f32.mrb[0].mxu0
  %v570 = vadd.f32 %v73, %v569
  %v571 = vpop.f32.mrb[0].mxu0
  %v572 = vadd.f32 %v73, %v571
  %573 = vmatprep.mubr.f32.mxu0 0.0
  %574 = vmatmul.mubr.f32.gmra.mrb[0].mxu0 %v115
  %v575 = vpop.f32.mrb[0].mxu0
  %v576 = vadd.f32 %v78, %v575
  %v577 = vpop.f32.mrb[0].mxu0
  %v578 = vadd.f32 %v78, %v577
  %579 = vmatprep.mubr.f32.mxu0 0.0
  %580 = vmatmul.mubr.f32.gmra.mrb[0].mxu0 %v118
  %v581 = vpop.f32.mrb[0].mxu0
  %v582 = vadd.f32 %v83, %v581
  %v583 = vpop.f32.mrb[0].mxu0
  %v584 = vadd.f32 %v83, %v583
  %585 = vmatprep.mubr.f32.mxu0 0.0
  %586 = vmatmul.mubr.f32.gmra.mrb[0].mxu0 %v121
  %v587 = vpop.f32.mrb[0].mxu0
  %v588 = vadd.f32 %v88, %v587
  %v589 = vpop.f32.mrb[0].mxu0
  %v590 = vadd.f32 %v88, %v589
  %591 = vdwg.mxu0
  %v592 = vmax.f32 %v207, 0.0
  %v593 = vmax.f32 %v209, 0.0
  %v594 = vmax.f32 %v320, 0.0
  %v595 = vmax.f32 %v322, 0.0
  %v596 = vmax.f32 %v433, 0.0
  %v597 = vmax.f32 %v435, 0.0
  %v598 = vmax.f32 %v546, 0.0
  %v599 = vmax.f32 %v548, 0.0
  %v600 = vmax.f32 %v213, 0.0
  %v601 = vmax.f32 %v215, 0.0
  %v602 = vmax.f32 %v326, 0.0
  %v603 = vmax.f32 %v328, 0.0
  %v604 = vmax.f32 %v439, 0.0
  %v605 = vmax.f32 %v441, 0.0
  %v606 = vmax.f32 %v552, 0.0
  %v607 = vmax.f32 %v554, 0.0
  %v608 = vmax.f32 %v219, 0.0
  %v609 = vmax.f32 %v221, 0.0
  %v610 = vmax.f32 %v332, 0.0
  %v611 = vmax.f32 %v334, 0.0
  %v612 = vmax.f32 %v445, 0.0
  %v613 = vmax.f32 %v447, 0.0
  %v614 = vmax.f32 %v558, 0.0
  %v615 = vmax.f32 %v560, 0.0
  %v616 = vmax.f32 %v225, 0.0
  %v617 = vmax.f32 %v227, 0.0
  %v618 = vmax.f32 %v338, 0.0
  %v619 = vmax.f32 %v340, 0.0
  %v620 = vmax.f32 %v451, 0.0
  %v621 = vmax.f32 %v453, 0.0
  %v622 = vmax.f32 %v564, 0.0
  %v623 = vmax.f32 %v566, 0.0
  %v624 = vmax.f32 %v231, 0.0
  %v625 = vmax.f32 %v233, 0.0
  %v626 = vmax.f32 %v344, 0.0
  %v627 = vmax.f32 %v346, 0.0
  %v628 = vmax.f32 %v457, 0.0
  %v629 = vmax.f32 %v459, 0.0
  %v630 = vmax.f32 %v570, 0.0
  %v631 = vmax.f32 %v572, 0.0
  %v632 = vmax.f32 %v237, 0.0
  %v633 = vmax.f32 %v239, 0.0
  %v634 = vmax.f32 %v350, 0.0
  %v635 = vmax.f32 %v352, 0.0
  %v636 = vmax.f32 %v463, 0.0
  %v637 = vmax.f32 %v465, 0.0
  %v638 = vmax.f32 %v576, 0.0
  %v639 = vmax.f32 %v578, 0.0
  %v640 = vmax.f32 %v243, 0.0
  %v641 = vmax.f32 %v245, 0.0
  %v642 = vmax.f32 %v356, 0.0
  %v643 = vmax.f32 %v358, 0.0
  %v644 = vmax.f32 %v469, 0.0
  %v645 = vmax.f32 %v471, 0.0
  %v646 = vmax.f32 %v582, 0.0
  %v647 = vmax.f32 %v584, 0.0
  %v648 = vmax.f32 %v249, 0.0
  %v649 = vmax.f32 %v251, 0.0
  %v650 = vmax.f32 %v362, 0.0
  %v651 = vmax.f32 %v364, 0.0
  %v652 = vmax.f32 %v475, 0.0
  %v653 = vmax.f32 %v477, 0.0
  %v654 = vmax.f32 %v588, 0.0
  %v655 = vmax.f32 %v590, 0.0
  %s656 = scalar_lea.vmem %s4, 128
  %v657 = vld [vmem:[%s656] sm:$0xff]
  %v658 = vld [vmem:[%s656 + $0x8] sm:$0xff]
  %v659 = vld [vmem:[%s656 + $0x10] sm:$0xff]
  %v660 = vld [vmem:[%s656 + $0x18] sm:$0xff]
  %661 = vrot.lane.b32.xlu0 %v592, 17
  %v662 = vpop.permute.xlu0 %661
  %663 = vrot.lane.b32.xlu0 %v600, 17
  %v664 = vpop.permute.xlu0 %663
  %665 = vrot.lane.b32.xlu0 %v608, 17
  %v666 = vpop.permute.xlu0 %665
  %667 = vrot.lane.b32.xlu0 %v616, 17
  %v668 = vpop.permute.xlu0 %667
  %669 = vrot.lane.b32.xlu0 %v624, 17
  %v670 = vpop.permute.xlu0 %669
  %671 = vrot.lane.b32.xlu0 %v632, 17
  %v672 = vpop.permute.xlu0 %671
  %673 = vrot.lane.b32.xlu0 %v640, 17
  %v674 = vpop.permute.xlu0 %673
  %675 = vrot.lane.b32.xlu0 %v648, 17
  %v676 = vpop.permute.xlu0 %675
  %677 = vrot.lane.b32.xlu0 %v593, 17
  %v678 = vpop.permute.xlu0 %677
  %679 = vrot.lane.b32.xlu0 %v601, 17
  %v680 = vpop.permute.xlu0 %679
  %681 = vrot.lane.b32.xlu0 %v609, 17
  %v682 = vpop.permute.xlu0 %681
  %683 = vrot.lane.b32.xlu0 %v617, 17
  %v684 = vpop.permute.xlu0 %683
  %685 = vrot.lane.b32.xlu0 %v625, 17
  %v686 = vpop.permute.xlu0 %685
  %687 = vrot.lane.b32.xlu0 %v633, 17
  %v688 = vpop.permute.xlu0 %687
  %689 = vrot.lane.b32.xlu0 %v641, 17
  %v690 = vpop.permute.xlu0 %689
  %691 = vrot.lane.b32.xlu0 %v649, 17
  %v692 = vpop.permute.xlu0 %691
  %693 = vrot.lane.b32.xlu0 %v594, 17
  %v694 = vpop.permute.xlu0 %693
  %695 = vrot.lane.b32.xlu0 %v602, 17
  %v696 = vpop.permute.xlu0 %695
  %697 = vrot.lane.b32.xlu0 %v610, 17
  %v698 = vpop.permute.xlu0 %697
  %699 = vrot.lane.b32.xlu0 %v618, 17
  %v700 = vpop.permute.xlu0 %699
  %701 = vrot.lane.b32.xlu0 %v626, 17
  %v702 = vpop.permute.xlu0 %701
  %703 = vrot.lane.b32.xlu0 %v634, 17
  %v704 = vpop.permute.xlu0 %703
  %705 = vrot.lane.b32.xlu0 %v642, 17
  %v706 = vpop.permute.xlu0 %705
  %707 = vrot.lane.b32.xlu0 %v650, 17
  %v708 = vpop.permute.xlu0 %707
  %709 = vrot.lane.b32.xlu0 %v595, 17
  %v710 = vpop.permute.xlu0 %709
  %711 = vrot.lane.b32.xlu0 %v603, 17
  %v712 = vpop.permute.xlu0 %711
  %713 = vrot.lane.b32.xlu0 %v611, 17
  %v714 = vpop.permute.xlu0 %713
  %715 = vrot.lane.b32.xlu0 %v619, 17
  %v716 = vpop.permute.xlu0 %715
  %717 = vrot.lane.b32.xlu0 %v627, 17
  %v718 = vpop.permute.xlu0 %717
  %719 = vrot.lane.b32.xlu0 %v635, 17
  %v720 = vpop.permute.xlu0 %719
  %721 = vrot.lane.b32.xlu0 %v643, 17
  %v722 = vpop.permute.xlu0 %721
  %723 = vrot.lane.b32.xlu0 %v651, 17
  %v724 = vpop.permute.xlu0 %723
  %725 = vrot.lane.b32.xlu0 %v596, 17
  %v726 = vpop.permute.xlu0 %725
  %727 = vrot.lane.b32.xlu0 %v604, 17
  %v728 = vpop.permute.xlu0 %727
  %729 = vrot.lane.b32.xlu0 %v612, 17
  %v730 = vpop.permute.xlu0 %729
  %731 = vrot.lane.b32.xlu0 %v620, 17
  %v732 = vpop.permute.xlu0 %731
  %733 = vrot.lane.b32.xlu0 %v628, 17
  %v734 = vpop.permute.xlu0 %733
  %735 = vrot.lane.b32.xlu0 %v636, 17
  %v736 = vpop.permute.xlu0 %735
  %737 = vrot.lane.b32.xlu0 %v644, 17
  %v738 = vpop.permute.xlu0 %737
  %739 = vrot.lane.b32.xlu0 %v652, 17
  %v740 = vpop.permute.xlu0 %739
  %741 = vrot.lane.b32.xlu0 %v597, 17
  %v742 = vpop.permute.xlu0 %741
  %743 = vrot.lane.b32.xlu0 %v605, 17
  %v744 = vpop.permute.xlu0 %743
  %745 = vrot.lane.b32.xlu0 %v613, 17
  %v746 = vpop.permute.xlu0 %745
  %747 = vrot.lane.b32.xlu0 %v621, 17
  %v748 = vpop.permute.xlu0 %747
  %749 = vrot.lane.b32.xlu0 %v629, 17
  %v750 = vpop.permute.xlu0 %749
  %751 = vrot.lane.b32.xlu0 %v637, 17
  %v752 = vpop.permute.xlu0 %751
  %753 = vrot.lane.b32.xlu0 %v645, 17
  %v754 = vpop.permute.xlu0 %753
  %755 = vrot.lane.b32.xlu0 %v653, 17
  %v756 = vpop.permute.xlu0 %755
  %757 = vrot.lane.b32.xlu0 %v598, 17
  %v758 = vpop.permute.xlu0 %757
  %759 = vrot.lane.b32.xlu0 %v606, 17
  %v760 = vpop.permute.xlu0 %759
  %761 = vrot.lane.b32.xlu0 %v614, 17
  %v762 = vpop.permute.xlu0 %761
  %763 = vrot.lane.b32.xlu0 %v622, 17
  %v764 = vpop.permute.xlu0 %763
  %765 = vrot.lane.b32.xlu0 %v630, 17
  %v766 = vpop.permute.xlu0 %765
  %767 = vrot.lane.b32.xlu0 %v638, 17
  %v768 = vpop.permute.xlu0 %767
  %769 = vrot.lane.b32.xlu0 %v646, 17
  %v770 = vpop.permute.xlu0 %769
  %771 = vrot.lane.b32.xlu0 %v654, 17
  %v772 = vpop.permute.xlu0 %771
  %773 = vrot.lane.b32.xlu0 %v599, 17
  %v774 = vpop.permute.xlu0 %773
  %775 = vrot.lane.b32.xlu0 %v607, 17
  %v776 = vpop.permute.xlu0 %775
  %777 = vrot.lane.b32.xlu0 %v615, 17
  %v778 = vpop.permute.xlu0 %777
  %779 = vrot.lane.b32.xlu0 %v623, 17
  %v780 = vpop.permute.xlu0 %779
  %781 = vrot.lane.b32.xlu0 %v631, 17
  %v782 = vpop.permute.xlu0 %781
  %783 = vrot.lane.b32.xlu0 %v639, 17
  %v784 = vpop.permute.xlu0 %783
  %785 = vrot.lane.b32.xlu0 %v647, 17
  %v786 = vpop.permute.xlu0 %785
  %787 = vrot.lane.b32.xlu0 %v655, 17
  %v788 = vpop.permute.xlu0 %787
  %v789 = vlaneseq
  %v790 = vand.u32 %v789, 127
  %vm791 = vcmp.lt.s32.totalorder %v790, 17
  %v792 = vsel %vm791, %v758, %v774
  %v793 = vsel %vm791, %v760, %v776
  %v794 = vsel %vm791, %v762, %v778
  %v795 = vsel %vm791, %v764, %v780
  %v796 = vsel %vm791, %v766, %v782
  %v797 = vsel %vm791, %v768, %v784
  %v798 = vsel %vm791, %v770, %v786
  %v799 = vsel %vm791, %v772, %v788
  %v800 = vsel %vm791, %v742, %v758
  %v801 = vsel %vm791, %v744, %v760
  %v802 = vsel %vm791, %v746, %v762
  %v803 = vsel %vm791, %v748, %v764
  %v804 = vsel %vm791, %v750, %v766
  %v805 = vsel %vm791, %v752, %v768
  %v806 = vsel %vm791, %v754, %v770
  %v807 = vsel %vm791, %v756, %v772
  %v808 = vsel %vm791, %v726, %v742
  %v809 = vsel %vm791, %v728, %v744
  %v810 = vsel %vm791, %v730, %v746
  %v811 = vsel %vm791, %v732, %v748
  %v812 = vsel %vm791, %v734, %v750
  %v813 = vsel %vm791, %v736, %v752
  %v814 = vsel %vm791, %v738, %v754
  %v815 = vsel %vm791, %v740, %v756
  %v816 = vsel %vm791, %v710, %v726
  %v817 = vsel %vm791, %v712, %v728
  %v818 = vsel %vm791, %v714, %v730
  %v819 = vsel %vm791, %v716, %v732
  %v820 = vsel %vm791, %v718, %v734
  %v821 = vsel %vm791, %v720, %v736
  %v822 = vsel %vm791, %v722, %v738
  %v823 = vsel %vm791, %v724, %v740
  %v824 = vsel %vm791, %v694, %v710
  %v825 = vsel %vm791, %v696, %v712
  %v826 = vsel %vm791, %v698, %v714
  %v827 = vsel %vm791, %v700, %v716
  %v828 = vsel %vm791, %v702, %v718
  %v829 = vsel %vm791, %v704, %v720
  %v830 = vsel %vm791, %v706, %v722
  %v831 = vsel %vm791, %v708, %v724
  %v832 = vsel %vm791, %v678, %v694
  %v833 = vsel %vm791, %v680, %v696
  %v834 = vsel %vm791, %v682, %v698
  %v835 = vsel %vm791, %v684, %v700
  %v836 = vsel %vm791, %v686, %v702
  %v837 = vsel %vm791, %v688, %v704
  %v838 = vsel %vm791, %v690, %v706
  %v839 = vsel %vm791, %v692, %v708
  %v840 = vsel %vm791, %v662, %v678
  %v841 = vsel %vm791, %v664, %v680
  %v842 = vsel %vm791, %v666, %v682
  %v843 = vsel %vm791, %v668, %v684
  %v844 = vsel %vm791, %v670, %v686
  %v845 = vsel %vm791, %v672, %v688
  %v846 = vsel %vm791, %v674, %v690
  %v847 = vsel %vm791, %v676, %v692
  %v848 = vsel %vm791, %v774, %v662
  %v849 = vsel %vm791, %v776, %v664
  %v850 = vsel %vm791, %v778, %v666
  %v851 = vsel %vm791, %v780, %v668
  %v852 = vsel %vm791, %v782, %v670
  %v853 = vsel %vm791, %v784, %v672
  %v854 = vsel %vm791, %v786, %v674
  %v855 = vsel %vm791, %v788, %v676
  %v856 = vld [vmem:[%s1] ss:$8 sm:$0xf]
  %v857 = vld [vmem:[%s1] ss:$8 sm:$0xf0]
  %v858 = vor.u32 %v856, %v857
  %v860 = vlaneseq
  %v861 = vshrl.u32 %v860, 7
  %v862 = vsub.s32 0, %v861
  %v863 = vrot.slane %v858, %v862
  %v864 = vlaneseq
  %v865 = vshrl.u32 %v864, 7
  %v866 = vsub.s32 1, %v865
  %v867 = vrot.slane %v858, %v866
  %v868 = vlaneseq
  %v869 = vshrl.u32 %v868, 7
  %v870 = vsub.s32 2, %v869
  %v871 = vrot.slane %v858, %v870
  %v872 = vlaneseq
  %v873 = vshrl.u32 %v872, 7
  %v874 = vsub.s32 3, %v873
  %v875 = vrot.slane %v858, %v874
  %v876 = vlaneseq
  %v877 = vshrl.u32 %v876, 7
  %v878 = vsub.s32 4, %v877
  %v879 = vrot.slane %v858, %v878
  %v880 = vlaneseq
  %v881 = vshrl.u32 %v880, 7
  %v882 = vsub.s32 5, %v881
  %v883 = vrot.slane %v858, %v882
  %v884 = vlaneseq
  %v885 = vshrl.u32 %v884, 7
  %v886 = vsub.s32 6, %v885
  %v887 = vrot.slane %v858, %v886
  %v888 = vlaneseq
  %v889 = vshrl.u32 %v888, 7
  %v890 = vsub.s32 7, %v889
  %v891 = vrot.slane %v858, %v890
  %v900 = vmul.f32 %v848, %v863
  %v901 = vmul.f32 %v840, %v867
  %v902 = vmul.f32 %v832, %v871
  %v903 = vmul.f32 %v824, %v875
  %v904 = vmul.f32 %v816, %v879
  %v905 = vmul.f32 %v808, %v883
  %v906 = vmul.f32 %v800, %v887
  %v907 = vmul.f32 %v792, %v891
  %v908 = vmul.f32 %v849, %v863
  %v909 = vmul.f32 %v841, %v867
  %v910 = vmul.f32 %v833, %v871
  %v911 = vmul.f32 %v825, %v875
  %v912 = vmul.f32 %v817, %v879
  %v913 = vmul.f32 %v809, %v883
  %v914 = vmul.f32 %v801, %v887
  %v915 = vmul.f32 %v793, %v891
  %v916 = vmul.f32 %v850, %v863
  %v917 = vmul.f32 %v842, %v867
  %v918 = vmul.f32 %v834, %v871
  %v919 = vmul.f32 %v826, %v875
  %v920 = vmul.f32 %v818, %v879
  %v921 = vmul.f32 %v810, %v883
  %v922 = vmul.f32 %v802, %v887
  %v923 = vmul.f32 %v794, %v891
  %v924 = vmul.f32 %v851, %v863
  %v925 = vmul.f32 %v843, %v867
  %v926 = vmul.f32 %v835, %v871
  %v927 = vmul.f32 %v827, %v875
  %v928 = vmul.f32 %v819, %v879
  %v929 = vmul.f32 %v811, %v883
  %v930 = vmul.f32 %v803, %v887
  %v931 = vmul.f32 %v795, %v891
  %v932 = vmul.f32 %v852, %v863
  %v933 = vmul.f32 %v844, %v867
  %v934 = vmul.f32 %v836, %v871
  %v935 = vmul.f32 %v828, %v875
  %v936 = vmul.f32 %v820, %v879
  %v937 = vmul.f32 %v812, %v883
  %v938 = vmul.f32 %v804, %v887
  %v939 = vmul.f32 %v796, %v891
  %v940 = vmul.f32 %v853, %v863
  %v941 = vmul.f32 %v845, %v867
  %v942 = vmul.f32 %v837, %v871
  %v943 = vmul.f32 %v829, %v875
  %v944 = vmul.f32 %v821, %v879
  %v945 = vmul.f32 %v813, %v883
  %v946 = vmul.f32 %v805, %v887
  %v947 = vmul.f32 %v797, %v891
  %v948 = vmul.f32 %v854, %v863
  %v949 = vmul.f32 %v846, %v867
  %v950 = vmul.f32 %v838, %v871
  %v951 = vmul.f32 %v830, %v875
  %v952 = vmul.f32 %v822, %v879
  %v953 = vmul.f32 %v814, %v883
  %v954 = vmul.f32 %v806, %v887
  %v955 = vmul.f32 %v798, %v891
  %v956 = vmul.f32 %v855, %v863
  %v957 = vmul.f32 %v847, %v867
  %v958 = vmul.f32 %v839, %v871
  %v959 = vmul.f32 %v831, %v875
  %v960 = vmul.f32 %v823, %v879
  %v961 = vmul.f32 %v815, %v883
  %v962 = vmul.f32 %v807, %v887
  %v963 = vmul.f32 %v799, %v891
  %v964 = vld [vmem:[%s4] sm:$0xff]
  %v965 = vld [vmem:[%s4 + $0x8] sm:$0xff]
  %v966 = vld [vmem:[%s4 + $0x10] sm:$0xff]
  %v967 = vld [vmem:[%s4 + $0x18] sm:$0xff]
  %vm968 = vcmask 523264
  %v970 = vsel %vm968, %v964, 0
  %v973 = vsel %vm968, %v965, 0
  %v976 = vsel %vm968, %v966, 0
  %v979 = vsel %vm968, %v967, 0
  %981 = vmatprep.subr.mxu0 %v901
  %982 = vmatpush1.msra.mxu0 %v900
  %983 = vmatprep.subr.mxu0 %v909
  %984 = vmatpush1.msra.mxu0 %v908
  %985 = vmatprep.subr.mxu0 %v917
  %986 = vmatpush1.msra.mxu0 %v916
  %987 = vmatprep.subr.mxu0 %v925
  %988 = vmatpush1.msra.mxu0 %v924
  %989 = vmatprep.subr.mxu0 %v933
  %990 = vmatpush1.msra.mxu0 %v932
  %991 = vmatprep.subr.mxu0 %v941
  %992 = vmatpush1.msra.mxu0 %v940
  %993 = vmatprep.subr.mxu0 %v949
  %994 = vmatpush1.msra.mxu0 %v948
  %995 = vmatprep.subr.mxu0 %v957
  %996 = vmatpush1.msra.mxu0 %v956
  %997 = vmatprep.subr.mxu0 0.0
  %998 = vmatpush1.msra.mxu0 0.0
  %999 = vmatprep.subr.mxu0 0.0
  %1000 = vmatpush1.msra.mxu0 0.0
  %1001 = vmatprep.subr.mxu0 0.0
  %1002 = vmatpush1.msra.mxu0 0.0
  %1003 = vmatprep.subr.mxu0 0.0
  %1004 = vmatpush1.msra.mxu0 0.0
  %1005 = vmatprep.subr.mxu0 0.0
  %1006 = vmatpush1.msra.mxu0 0.0
  %1007 = vmatprep.subr.mxu0 0.0
  %1008 = vmatpush1.msra.mxu0 0.0
  %1009 = vmatprep.subr.mxu0 0.0
  %1010 = vmatpush1.msra.mxu0 0.0
  %1011 = vmatprep.subr.mxu0 0.0
  %1012 = vmatpush1.msra.mxu0 0.0
  %1013 = vmatprep.subr.mxu0 0.0
  %1014 = vmatpush1.msra.mxu0 0.0
  %1015 = vmatprep.subr.mxu0 0.0
  %1016 = vmatpush1.msra.mxu0 0.0
  %1017 = vmatprep.subr.mxu0 0.0
  %1018 = vmatpush1.msra.mxu0 0.0
  %1019 = vmatprep.subr.mxu0 0.0
  %1020 = vmatpush1.msra.mxu0 0.0
  %1021 = vmatprep.subr.mxu0 0.0
  %1022 = vmatpush1.msra.mxu0 0.0
  %1023 = vmatprep.subr.mxu0 0.0
  %1024 = vmatpush1.msra.mxu0 0.0
  %1025 = vmatprep.subr.mxu0 0.0
  %1026 = vmatpush1.msra.mxu0 0.0
  %1027 = vmatprep.subr.mxu0 0.0
  %1028 = vmatpush1.msra.mxu0 0.0
  %1029 = vmatprep.subr.mxu0 0.0
  %1030 = vmatpush1.msra.mxu0 0.0
  %1031 = vmatprep.subr.mxu0 0.0
  %1032 = vmatpush1.msra.mxu0 0.0
  %1033 = vmatprep.subr.mxu0 0.0
  %1034 = vmatpush1.msra.mxu0 0.0
  %1035 = vmatprep.subr.mxu0 0.0
  %1036 = vmatpush1.msra.mxu0 0.0
  %1037 = vmatprep.subr.mxu0 0.0
  %1038 = vmatpush1.msra.mxu0 0.0
  %1039 = vmatprep.subr.mxu0 0.0
  %1040 = vmatpush1.msra.mxu0 0.0
  %1041 = vmatprep.subr.mxu0 0.0
  %1042 = vmatpush1.msra.mxu0 0.0
  %1043 = vmatprep.subr.mxu0 0.0
  %1044 = vmatpush1.msra.mxu0 0.0
  %1045 = vmatprep.mubr.f32.mxu0 0.0
  %1046 = vmatmul.mubr.f32.gmra.mrb[0].mxu0 %v970
  %v1047 = vpop.f32.mrb[0].mxu0
  %v1048 = vadd.f32 0.0, %v1047
  %v1049 = vpop.f32.mrb[0].mxu0
  %v1050 = vadd.f32 0.0, %v1049
  %1051 = vmatprep.mubr.f32.mxu0 0.0
  %1052 = vmatmul.mubr.f32.gmra.mrb[0].mxu0 %v973
  %v1053 = vpop.f32.mrb[0].mxu0
  %v1054 = vadd.f32 0.0, %v1053
  %v1055 = vpop.f32.mrb[0].mxu0
  %v1056 = vadd.f32 0.0, %v1055
  %1057 = vmatprep.mubr.f32.mxu0 0.0
  %1058 = vmatmul.mubr.f32.gmra.mrb[0].mxu0 %v976
  %v1059 = vpop.f32.mrb[0].mxu0
  %v1060 = vadd.f32 0.0, %v1059
  %v1061 = vpop.f32.mrb[0].mxu0
  %v1062 = vadd.f32 0.0, %v1061
  %1063 = vmatprep.mubr.f32.mxu0 0.0
  %1064 = vmatmul.mubr.f32.gmra.mrb[0].mxu0 %v979
  %v1065 = vpop.f32.mrb[0].mxu0
  %v1066 = vadd.f32 0.0, %v1065
  %v1067 = vpop.f32.mrb[0].mxu0
  %v1068 = vadd.f32 0.0, %v1067
  %1069 = vdwg.mxu0
  %1070 = vmatprep.subr.mxu0 %v903
  %1071 = vmatpush1.msra.mxu0 %v902
  %1072 = vmatprep.subr.mxu0 %v911
  %1073 = vmatpush1.msra.mxu0 %v910
  %1074 = vmatprep.subr.mxu0 %v919
  %1075 = vmatpush1.msra.mxu0 %v918
  %1076 = vmatprep.subr.mxu0 %v927
  %1077 = vmatpush1.msra.mxu0 %v926
  %1078 = vmatprep.subr.mxu0 %v935
  %1079 = vmatpush1.msra.mxu0 %v934
  %1080 = vmatprep.subr.mxu0 %v943
  %1081 = vmatpush1.msra.mxu0 %v942
  %1082 = vmatprep.subr.mxu0 %v951
  %1083 = vmatpush1.msra.mxu0 %v950
  %1084 = vmatprep.subr.mxu0 %v959
  %1085 = vmatpush1.msra.mxu0 %v958
  %1086 = vmatprep.subr.mxu0 0.0
  %1087 = vmatpush1.msra.mxu0 0.0
  %1088 = vmatprep.subr.mxu0 0.0
  %1089 = vmatpush1.msra.mxu0 0.0
  %1090 = vmatprep.subr.mxu0 0.0
  %1091 = vmatpush1.msra.mxu0 0.0
  %1092 = vmatprep.subr.mxu0 0.0
  %1093 = vmatpush1.msra.mxu0 0.0
  %1094 = vmatprep.subr.mxu0 0.0
  %1095 = vmatpush1.msra.mxu0 0.0
  %1096 = vmatprep.subr.mxu0 0.0
  %1097 = vmatpush1.msra.mxu0 0.0
  %1098 = vmatprep.subr.mxu0 0.0
  %1099 = vmatpush1.msra.mxu0 0.0
  %1100 = vmatprep.subr.mxu0 0.0
  %1101 = vmatpush1.msra.mxu0 0.0
  %1102 = vmatprep.subr.mxu0 0.0
  %1103 = vmatpush1.msra.mxu0 0.0
  %1104 = vmatprep.subr.mxu0 0.0
  %1105 = vmatpush1.msra.mxu0 0.0
  %1106 = vmatprep.subr.mxu0 0.0
  %1107 = vmatpush1.msra.mxu0 0.0
  %1108 = vmatprep.subr.mxu0 0.0
  %1109 = vmatpush1.msra.mxu0 0.0
  %1110 = vmatprep.subr.mxu0 0.0
  %1111 = vmatpush1.msra.mxu0 0.0
  %1112 = vmatprep.subr.mxu0 0.0
  %1113 = vmatpush1.msra.mxu0 0.0
  %1114 = vmatprep.subr.mxu0 0.0
  %1115 = vmatpush1.msra.mxu0 0.0
  %1116 = vmatprep.subr.mxu0 0.0
  %1117 = vmatpush1.msra.mxu0 0.0
  %1118 = vmatprep.subr.mxu0 0.0
  %1119 = vmatpush1.msra.mxu0 0.0
  %1120 = vmatprep.subr.mxu0 0.0
  %1121 = vmatpush1.msra.mxu0 0.0
  %1122 = vmatprep.subr.mxu0 0.0
  %1123 = vmatpush1.msra.mxu0 0.0
  %1124 = vmatprep.subr.mxu0 0.0
  %1125 = vmatpush1.msra.mxu0 0.0
  %1126 = vmatprep.subr.mxu0 0.0
  %1127 = vmatpush1.msra.mxu0 0.0
  %1128 = vmatprep.subr.mxu0 0.0
  %1129 = vmatpush1.msra.mxu0 0.0
  %1130 = vmatprep.subr.mxu0 0.0
  %1131 = vmatpush1.msra.mxu0 0.0
  %1132 = vmatprep.subr.mxu0 0.0
  %1133 = vmatpush1.msra.mxu0 0.0
  %1134 = vmatprep.mubr.f32.mxu0 0.0
  %1135 = vmatmul.mubr.f32.gmra.mrb[0].mxu0 %v970
  %v1136 = vpop.f32.mrb[0].mxu0
  %v1137 = vadd.f32 0.0, %v1136
  %v1138 = vpop.f32.mrb[0].mxu0
  %v1139 = vadd.f32 0.0, %v1138
  %1140 = vmatprep.mubr.f32.mxu0 0.0
  %1141 = vmatmul.mubr.f32.gmra.mrb[0].mxu0 %v973
  %v1142 = vpop.f32.mrb[0].mxu0
  %v1143 = vadd.f32 0.0, %v1142
  %v1144 = vpop.f32.mrb[0].mxu0
  %v1145 = vadd.f32 0.0, %v1144
  %1146 = vmatprep.mubr.f32.mxu0 0.0
  %1147 = vmatmul.mubr.f32.gmra.mrb[0].mxu0 %v976
  %v1148 = vpop.f32.mrb[0].mxu0
  %v1149 = vadd.f32 0.0, %v1148
  %v1150 = vpop.f32.mrb[0].mxu0
  %v1151 = vadd.f32 0.0, %v1150
  %1152 = vmatprep.mubr.f32.mxu0 0.0
  %1153 = vmatmul.mubr.f32.gmra.mrb[0].mxu0 %v979
  %v1154 = vpop.f32.mrb[0].mxu0
  %v1155 = vadd.f32 0.0, %v1154
  %v1156 = vpop.f32.mrb[0].mxu0
  %v1157 = vadd.f32 0.0, %v1156
  %1158 = vdwg.mxu0
  %1159 = vmatprep.subr.mxu0 %v905
  %1160 = vmatpush1.msra.mxu0 %v904
  %1161 = vmatprep.subr.mxu0 %v913
  %1162 = vmatpush1.msra.mxu0 %v912
  %1163 = vmatprep.subr.mxu0 %v921
  %1164 = vmatpush1.msra.mxu0 %v920
  %1165 = vmatprep.subr.mxu0 %v929
  %1166 = vmatpush1.msra.mxu0 %v928
  %1167 = vmatprep.subr.mxu0 %v937
  %1168 = vmatpush1.msra.mxu0 %v936
  %1169 = vmatprep.subr.mxu0 %v945
  %1170 = vmatpush1.msra.mxu0 %v944
  %1171 = vmatprep.subr.mxu0 %v953
  %1172 = vmatpush1.msra.mxu0 %v952
  %1173 = vmatprep.subr.mxu0 %v961
  %1174 = vmatpush1.msra.mxu0 %v960
  %1175 = vmatprep.subr.mxu0 0.0
  %1176 = vmatpush1.msra.mxu0 0.0
  %1177 = vmatprep.subr.mxu0 0.0
  %1178 = vmatpush1.msra.mxu0 0.0
  %1179 = vmatprep.subr.mxu0 0.0
  %1180 = vmatpush1.msra.mxu0 0.0
  %1181 = vmatprep.subr.mxu0 0.0
  %1182 = vmatpush1.msra.mxu0 0.0
  %1183 = vmatprep.subr.mxu0 0.0
  %1184 = vmatpush1.msra.mxu0 0.0
  %1185 = vmatprep.subr.mxu0 0.0
  %1186 = vmatpush1.msra.mxu0 0.0
  %1187 = vmatprep.subr.mxu0 0.0
  %1188 = vmatpush1.msra.mxu0 0.0
  %1189 = vmatprep.subr.mxu0 0.0
  %1190 = vmatpush1.msra.mxu0 0.0
  %1191 = vmatprep.subr.mxu0 0.0
  %1192 = vmatpush1.msra.mxu0 0.0
  %1193 = vmatprep.subr.mxu0 0.0
  %1194 = vmatpush1.msra.mxu0 0.0
  %1195 = vmatprep.subr.mxu0 0.0
  %1196 = vmatpush1.msra.mxu0 0.0
  %1197 = vmatprep.subr.mxu0 0.0
  %1198 = vmatpush1.msra.mxu0 0.0
  %1199 = vmatprep.subr.mxu0 0.0
  %1200 = vmatpush1.msra.mxu0 0.0
  %1201 = vmatprep.subr.mxu0 0.0
  %1202 = vmatpush1.msra.mxu0 0.0
  %1203 = vmatprep.subr.mxu0 0.0
  %1204 = vmatpush1.msra.mxu0 0.0
  %1205 = vmatprep.subr.mxu0 0.0
  %1206 = vmatpush1.msra.mxu0 0.0
  %1207 = vmatprep.subr.mxu0 0.0
  %1208 = vmatpush1.msra.mxu0 0.0
  %1209 = vmatprep.subr.mxu0 0.0
  %1210 = vmatpush1.msra.mxu0 0.0
  %1211 = vmatprep.subr.mxu0 0.0
  %1212 = vmatpush1.msra.mxu0 0.0
  %1213 = vmatprep.subr.mxu0 0.0
  %1214 = vmatpush1.msra.mxu0 0.0
  %1215 = vmatprep.subr.mxu0 0.0
  %1216 = vmatpush1.msra.mxu0 0.0
  %1217 = vmatprep.subr.mxu0 0.0
  %1218 = vmatpush1.msra.mxu0 0.0
  %1219 = vmatprep.subr.mxu0 0.0
  %1220 = vmatpush1.msra.mxu0 0.0
  %1221 = vmatprep.subr.mxu0 0.0
  %1222 = vmatpush1.msra.mxu0 0.0
  %1223 = vmatprep.mubr.f32.mxu0 0.0
  %1224 = vmatmul.mubr.f32.gmra.mrb[0].mxu0 %v970
  %v1225 = vpop.f32.mrb[0].mxu0
  %v1226 = vadd.f32 0.0, %v1225
  %v1227 = vpop.f32.mrb[0].mxu0
  %v1228 = vadd.f32 0.0, %v1227
  %1229 = vmatprep.mubr.f32.mxu0 0.0
  %1230 = vmatmul.mubr.f32.gmra.mrb[0].mxu0 %v973
  %v1231 = vpop.f32.mrb[0].mxu0
  %v1232 = vadd.f32 0.0, %v1231
  %v1233 = vpop.f32.mrb[0].mxu0
  %v1234 = vadd.f32 0.0, %v1233
  %1235 = vmatprep.mubr.f32.mxu0 0.0
  %1236 = vmatmul.mubr.f32.gmra.mrb[0].mxu0 %v976
  %v1237 = vpop.f32.mrb[0].mxu0
  %v1238 = vadd.f32 0.0, %v1237
  %v1239 = vpop.f32.mrb[0].mxu0
  %v1240 = vadd.f32 0.0, %v1239
  %1241 = vmatprep.mubr.f32.mxu0 0.0
  %1242 = vmatmul.mubr.f32.gmra.mrb[0].mxu0 %v979
  %v1243 = vpop.f32.mrb[0].mxu0
  %v1244 = vadd.f32 0.0, %v1243
  %v1245 = vpop.f32.mrb[0].mxu0
  %v1246 = vadd.f32 0.0, %v1245
  %1247 = vdwg.mxu0
  %1248 = vmatprep.subr.mxu0 %v907
  %1249 = vmatpush1.msra.mxu0 %v906
  %1250 = vmatprep.subr.mxu0 %v915
  %1251 = vmatpush1.msra.mxu0 %v914
  %1252 = vmatprep.subr.mxu0 %v923
  %1253 = vmatpush1.msra.mxu0 %v922
  %1254 = vmatprep.subr.mxu0 %v931
  %1255 = vmatpush1.msra.mxu0 %v930
  %1256 = vmatprep.subr.mxu0 %v939
  %1257 = vmatpush1.msra.mxu0 %v938
  %1258 = vmatprep.subr.mxu0 %v947
  %1259 = vmatpush1.msra.mxu0 %v946
  %1260 = vmatprep.subr.mxu0 %v955
  %1261 = vmatpush1.msra.mxu0 %v954
  %1262 = vmatprep.subr.mxu0 %v963
  %1263 = vmatpush1.msra.mxu0 %v962
  %1264 = vmatprep.subr.mxu0 0.0
  %1265 = vmatpush1.msra.mxu0 0.0
  %1266 = vmatprep.subr.mxu0 0.0
  %1267 = vmatpush1.msra.mxu0 0.0
  %1268 = vmatprep.subr.mxu0 0.0
  %1269 = vmatpush1.msra.mxu0 0.0
  %1270 = vmatprep.subr.mxu0 0.0
  %1271 = vmatpush1.msra.mxu0 0.0
  %1272 = vmatprep.subr.mxu0 0.0
  %1273 = vmatpush1.msra.mxu0 0.0
  %1274 = vmatprep.subr.mxu0 0.0
  %1275 = vmatpush1.msra.mxu0 0.0
  %1276 = vmatprep.subr.mxu0 0.0
  %1277 = vmatpush1.msra.mxu0 0.0
  %1278 = vmatprep.subr.mxu0 0.0
  %1279 = vmatpush1.msra.mxu0 0.0
  %1280 = vmatprep.subr.mxu0 0.0
  %1281 = vmatpush1.msra.mxu0 0.0
  %1282 = vmatprep.subr.mxu0 0.0
  %1283 = vmatpush1.msra.mxu0 0.0
  %1284 = vmatprep.subr.mxu0 0.0
  %1285 = vmatpush1.msra.mxu0 0.0
  %1286 = vmatprep.subr.mxu0 0.0
  %1287 = vmatpush1.msra.mxu0 0.0
  %1288 = vmatprep.subr.mxu0 0.0
  %1289 = vmatpush1.msra.mxu0 0.0
  %1290 = vmatprep.subr.mxu0 0.0
  %1291 = vmatpush1.msra.mxu0 0.0
  %1292 = vmatprep.subr.mxu0 0.0
  %1293 = vmatpush1.msra.mxu0 0.0
  %1294 = vmatprep.subr.mxu0 0.0
  %1295 = vmatpush1.msra.mxu0 0.0
  %1296 = vmatprep.subr.mxu0 0.0
  %1297 = vmatpush1.msra.mxu0 0.0
  %1298 = vmatprep.subr.mxu0 0.0
  %1299 = vmatpush1.msra.mxu0 0.0
  %1300 = vmatprep.subr.mxu0 0.0
  %1301 = vmatpush1.msra.mxu0 0.0
  %1302 = vmatprep.subr.mxu0 0.0
  %1303 = vmatpush1.msra.mxu0 0.0
  %1304 = vmatprep.subr.mxu0 0.0
  %1305 = vmatpush1.msra.mxu0 0.0
  %1306 = vmatprep.subr.mxu0 0.0
  %1307 = vmatpush1.msra.mxu0 0.0
  %1308 = vmatprep.subr.mxu0 0.0
  %1309 = vmatpush1.msra.mxu0 0.0
  %1310 = vmatprep.subr.mxu0 0.0
  %1311 = vmatpush1.msra.mxu0 0.0
  %1312 = vmatprep.mubr.f32.mxu0 0.0
  %1313 = vmatmul.mubr.f32.gmra.mrb[0].mxu0 %v970
  %v1314 = vpop.f32.mrb[0].mxu0
  %v1315 = vadd.f32 0.0, %v1314
  %v1316 = vpop.f32.mrb[0].mxu0
  %v1317 = vadd.f32 0.0, %v1316
  %1318 = vmatprep.mubr.f32.mxu0 0.0
  %1319 = vmatmul.mubr.f32.gmra.mrb[0].mxu0 %v973
  %v1320 = vpop.f32.mrb[0].mxu0
  %v1321 = vadd.f32 0.0, %v1320
  %v1322 = vpop.f32.mrb[0].mxu0
  %v1323 = vadd.f32 0.0, %v1322
  %1324 = vmatprep.mubr.f32.mxu0 0.0
  %1325 = vmatmul.mubr.f32.gmra.mrb[0].mxu0 %v976
  %v1326 = vpop.f32.mrb[0].mxu0
  %v1327 = vadd.f32 0.0, %v1326
  %v1328 = vpop.f32.mrb[0].mxu0
  %v1329 = vadd.f32 0.0, %v1328
  %1330 = vmatprep.mubr.f32.mxu0 0.0
  %1331 = vmatmul.mubr.f32.gmra.mrb[0].mxu0 %v979
  %v1332 = vpop.f32.mrb[0].mxu0
  %v1333 = vadd.f32 0.0, %v1332
  %v1334 = vpop.f32.mrb[0].mxu0
  %v1335 = vadd.f32 0.0, %v1334
  %1336 = vdwg.mxu0
  %v1338 = vsel %vm968, %v657, 0
  %v1341 = vsel %vm968, %v658, 0
  %v1344 = vsel %vm968, %v659, 0
  %v1347 = vsel %vm968, %v660, 0
  %1349 = vmatprep.subr.mxu0 %v593
  %1350 = vmatpush1.msra.mxu0 %v592
  %1351 = vmatprep.subr.mxu0 %v601
  %1352 = vmatpush1.msra.mxu0 %v600
  %1353 = vmatprep.subr.mxu0 %v609
  %1354 = vmatpush1.msra.mxu0 %v608
  %1355 = vmatprep.subr.mxu0 %v617
  %1356 = vmatpush1.msra.mxu0 %v616
  %1357 = vmatprep.subr.mxu0 %v625
  %1358 = vmatpush1.msra.mxu0 %v624
  %1359 = vmatprep.subr.mxu0 %v633
  %1360 = vmatpush1.msra.mxu0 %v632
  %1361 = vmatprep.subr.mxu0 %v641
  %1362 = vmatpush1.msra.mxu0 %v640
  %1363 = vmatprep.subr.mxu0 %v649
  %1364 = vmatpush1.msra.mxu0 %v648
  %1365 = vmatprep.subr.mxu0 0.0
  %1366 = vmatpush1.msra.mxu0 0.0
  %1367 = vmatprep.subr.mxu0 0.0
  %1368 = vmatpush1.msra.mxu0 0.0
  %1369 = vmatprep.subr.mxu0 0.0
  %1370 = vmatpush1.msra.mxu0 0.0
  %1371 = vmatprep.subr.mxu0 0.0
  %1372 = vmatpush1.msra.mxu0 0.0
  %1373 = vmatprep.subr.mxu0 0.0
  %1374 = vmatpush1.msra.mxu0 0.0
  %1375 = vmatprep.subr.mxu0 0.0
  %1376 = vmatpush1.msra.mxu0 0.0
  %1377 = vmatprep.subr.mxu0 0.0
  %1378 = vmatpush1.msra.mxu0 0.0
  %1379 = vmatprep.subr.mxu0 0.0
  %1380 = vmatpush1.msra.mxu0 0.0
  %1381 = vmatprep.subr.mxu0 0.0
  %1382 = vmatpush1.msra.mxu0 0.0
  %1383 = vmatprep.subr.mxu0 0.0
  %1384 = vmatpush1.msra.mxu0 0.0
  %1385 = vmatprep.subr.mxu0 0.0
  %1386 = vmatpush1.msra.mxu0 0.0
  %1387 = vmatprep.subr.mxu0 0.0
  %1388 = vmatpush1.msra.mxu0 0.0
  %1389 = vmatprep.subr.mxu0 0.0
  %1390 = vmatpush1.msra.mxu0 0.0
  %1391 = vmatprep.subr.mxu0 0.0
  %1392 = vmatpush1.msra.mxu0 0.0
  %1393 = vmatprep.subr.mxu0 0.0
  %1394 = vmatpush1.msra.mxu0 0.0
  %1395 = vmatprep.subr.mxu0 0.0
  %1396 = vmatpush1.msra.mxu0 0.0
  %1397 = vmatprep.subr.mxu0 0.0
  %1398 = vmatpush1.msra.mxu0 0.0
  %1399 = vmatprep.subr.mxu0 0.0
  %1400 = vmatpush1.msra.mxu0 0.0
  %1401 = vmatprep.subr.mxu0 0.0
  %1402 = vmatpush1.msra.mxu0 0.0
  %1403 = vmatprep.subr.mxu0 0.0
  %1404 = vmatpush1.msra.mxu0 0.0
  %1405 = vmatprep.subr.mxu0 0.0
  %1406 = vmatpush1.msra.mxu0 0.0
  %1407 = vmatprep.subr.mxu0 0.0
  %1408 = vmatpush1.msra.mxu0 0.0
  %1409 = vmatprep.subr.mxu0 0.0
  %1410 = vmatpush1.msra.mxu0 0.0
  %1411 = vmatprep.subr.mxu0 0.0
  %1412 = vmatpush1.msra.mxu0 0.0
  %1413 = vmatprep.mubr.f32.mxu0 0.0
  %1414 = vmatmul.mubr.f32.gmra.mrb[0].mxu0 %v1338
  %v1415 = vpop.f32.mrb[0].mxu0
  %v1416 = vadd.f32 %v1048, %v1415
  %v1417 = vpop.f32.mrb[0].mxu0
  %v1418 = vadd.f32 %v1050, %v1417
  %1419 = vmatprep.mubr.f32.mxu0 0.0
  %1420 = vmatmul.mubr.f32.gmra.mrb[0].mxu0 %v1341
  %v1421 = vpop.f32.mrb[0].mxu0
  %v1422 = vadd.f32 %v1054, %v1421
  %v1423 = vpop.f32.mrb[0].mxu0
  %v1424 = vadd.f32 %v1056, %v1423
  %1425 = vmatprep.mubr.f32.mxu0 0.0
  %1426 = vmatmul.mubr.f32.gmra.mrb[0].mxu0 %v1344
  %v1427 = vpop.f32.mrb[0].mxu0
  %v1428 = vadd.f32 %v1060, %v1427
  %v1429 = vpop.f32.mrb[0].mxu0
  %v1430 = vadd.f32 %v1062, %v1429
  %1431 = vmatprep.mubr.f32.mxu0 0.0
  %1432 = vmatmul.mubr.f32.gmra.mrb[0].mxu0 %v1347
  %v1433 = vpop.f32.mrb[0].mxu0
  %v1434 = vadd.f32 %v1066, %v1433
  %v1435 = vpop.f32.mrb[0].mxu0
  %v1436 = vadd.f32 %v1068, %v1435
  %1437 = vdwg.mxu0
  %1438 = vmatprep.subr.mxu0 %v595
  %1439 = vmatpush1.msra.mxu0 %v594
  %1440 = vmatprep.subr.mxu0 %v603
  %1441 = vmatpush1.msra.mxu0 %v602
  %1442 = vmatprep.subr.mxu0 %v611
  %1443 = vmatpush1.msra.mxu0 %v610
  %1444 = vmatprep.subr.mxu0 %v619
  %1445 = vmatpush1.msra.mxu0 %v618
  %1446 = vmatprep.subr.mxu0 %v627
  %1447 = vmatpush1.msra.mxu0 %v626
  %1448 = vmatprep.subr.mxu0 %v635
  %1449 = vmatpush1.msra.mxu0 %v634
  %1450 = vmatprep.subr.mxu0 %v643
  %1451 = vmatpush1.msra.mxu0 %v642
  %1452 = vmatprep.subr.mxu0 %v651
  %1453 = vmatpush1.msra.mxu0 %v650
  %1454 = vmatprep.subr.mxu0 0.0
  %1455 = vmatpush1.msra.mxu0 0.0
  %1456 = vmatprep.subr.mxu0 0.0
  %1457 = vmatpush1.msra.mxu0 0.0
  %1458 = vmatprep.subr.mxu0 0.0
  %1459 = vmatpush1.msra.mxu0 0.0
  %1460 = vmatprep.subr.mxu0 0.0
  %1461 = vmatpush1.msra.mxu0 0.0
  %1462 = vmatprep.subr.mxu0 0.0
  %1463 = vmatpush1.msra.mxu0 0.0
  %1464 = vmatprep.subr.mxu0 0.0
  %1465 = vmatpush1.msra.mxu0 0.0
  %1466 = vmatprep.subr.mxu0 0.0
  %1467 = vmatpush1.msra.mxu0 0.0
  %1468 = vmatprep.subr.mxu0 0.0
  %1469 = vmatpush1.msra.mxu0 0.0
  %1470 = vmatprep.subr.mxu0 0.0
  %1471 = vmatpush1.msra.mxu0 0.0
  %1472 = vmatprep.subr.mxu0 0.0
  %1473 = vmatpush1.msra.mxu0 0.0
  %1474 = vmatprep.subr.mxu0 0.0
  %1475 = vmatpush1.msra.mxu0 0.0
  %1476 = vmatprep.subr.mxu0 0.0
  %1477 = vmatpush1.msra.mxu0 0.0
  %1478 = vmatprep.subr.mxu0 0.0
  %1479 = vmatpush1.msra.mxu0 0.0
  %1480 = vmatprep.subr.mxu0 0.0
  %1481 = vmatpush1.msra.mxu0 0.0
  %1482 = vmatprep.subr.mxu0 0.0
  %1483 = vmatpush1.msra.mxu0 0.0
  %1484 = vmatprep.subr.mxu0 0.0
  %1485 = vmatpush1.msra.mxu0 0.0
  %1486 = vmatprep.subr.mxu0 0.0
  %1487 = vmatpush1.msra.mxu0 0.0
  %1488 = vmatprep.subr.mxu0 0.0
  %1489 = vmatpush1.msra.mxu0 0.0
  %1490 = vmatprep.subr.mxu0 0.0
  %1491 = vmatpush1.msra.mxu0 0.0
  %1492 = vmatprep.subr.mxu0 0.0
  %1493 = vmatpush1.msra.mxu0 0.0
  %1494 = vmatprep.subr.mxu0 0.0
  %1495 = vmatpush1.msra.mxu0 0.0
  %1496 = vmatprep.subr.mxu0 0.0
  %1497 = vmatpush1.msra.mxu0 0.0
  %1498 = vmatprep.subr.mxu0 0.0
  %1499 = vmatpush1.msra.mxu0 0.0
  %1500 = vmatprep.subr.mxu0 0.0
  %1501 = vmatpush1.msra.mxu0 0.0
  %1502 = vmatprep.mubr.f32.mxu0 0.0
  %1503 = vmatmul.mubr.f32.gmra.mrb[0].mxu0 %v1338
  %v1504 = vpop.f32.mrb[0].mxu0
  %v1505 = vadd.f32 %v1137, %v1504
  %v1506 = vpop.f32.mrb[0].mxu0
  %v1507 = vadd.f32 %v1139, %v1506
  %1508 = vmatprep.mubr.f32.mxu0 0.0
  %1509 = vmatmul.mubr.f32.gmra.mrb[0].mxu0 %v1341
  %v1510 = vpop.f32.mrb[0].mxu0
  %v1511 = vadd.f32 %v1143, %v1510
  %v1512 = vpop.f32.mrb[0].mxu0
  %v1513 = vadd.f32 %v1145, %v1512
  %1514 = vmatprep.mubr.f32.mxu0 0.0
  %1515 = vmatmul.mubr.f32.gmra.mrb[0].mxu0 %v1344
  %v1516 = vpop.f32.mrb[0].mxu0
  %v1517 = vadd.f32 %v1149, %v1516
  %v1518 = vpop.f32.mrb[0].mxu0
  %v1519 = vadd.f32 %v1151, %v1518
  %1520 = vmatprep.mubr.f32.mxu0 0.0
  %1521 = vmatmul.mubr.f32.gmra.mrb[0].mxu0 %v1347
  %v1522 = vpop.f32.mrb[0].mxu0
  %v1523 = vadd.f32 %v1155, %v1522
  %v1524 = vpop.f32.mrb[0].mxu0
  %v1525 = vadd.f32 %v1157, %v1524
  %1526 = vdwg.mxu0
  %1527 = vmatprep.subr.mxu0 %v597
  %1528 = vmatpush1.msra.mxu0 %v596
  %1529 = vmatprep.subr.mxu0 %v605
  %1530 = vmatpush1.msra.mxu0 %v604
  %1531 = vmatprep.subr.mxu0 %v613
  %1532 = vmatpush1.msra.mxu0 %v612
  %1533 = vmatprep.subr.mxu0 %v621
  %1534 = vmatpush1.msra.mxu0 %v620
  %1535 = vmatprep.subr.mxu0 %v629
  %1536 = vmatpush1.msra.mxu0 %v628
  %1537 = vmatprep.subr.mxu0 %v637
  %1538 = vmatpush1.msra.mxu0 %v636
  %1539 = vmatprep.subr.mxu0 %v645
  %1540 = vmatpush1.msra.mxu0 %v644
  %1541 = vmatprep.subr.mxu0 %v653
  %1542 = vmatpush1.msra.mxu0 %v652
  %1543 = vmatprep.subr.mxu0 0.0
  %1544 = vmatpush1.msra.mxu0 0.0
  %1545 = vmatprep.subr.mxu0 0.0
  %1546 = vmatpush1.msra.mxu0 0.0
  %1547 = vmatprep.subr.mxu0 0.0
  %1548 = vmatpush1.msra.mxu0 0.0
  %1549 = vmatprep.subr.mxu0 0.0
  %1550 = vmatpush1.msra.mxu0 0.0
  %1551 = vmatprep.subr.mxu0 0.0
  %1552 = vmatpush1.msra.mxu0 0.0
  %1553 = vmatprep.subr.mxu0 0.0
  %1554 = vmatpush1.msra.mxu0 0.0
  %1555 = vmatprep.subr.mxu0 0.0
  %1556 = vmatpush1.msra.mxu0 0.0
  %1557 = vmatprep.subr.mxu0 0.0
  %1558 = vmatpush1.msra.mxu0 0.0
  %1559 = vmatprep.subr.mxu0 0.0
  %1560 = vmatpush1.msra.mxu0 0.0
  %1561 = vmatprep.subr.mxu0 0.0
  %1562 = vmatpush1.msra.mxu0 0.0
  %1563 = vmatprep.subr.mxu0 0.0
  %1564 = vmatpush1.msra.mxu0 0.0
  %1565 = vmatprep.subr.mxu0 0.0
  %1566 = vmatpush1.msra.mxu0 0.0
  %1567 = vmatprep.subr.mxu0 0.0
  %1568 = vmatpush1.msra.mxu0 0.0
  %1569 = vmatprep.subr.mxu0 0.0
  %1570 = vmatpush1.msra.mxu0 0.0
  %1571 = vmatprep.subr.mxu0 0.0
  %1572 = vmatpush1.msra.mxu0 0.0
  %1573 = vmatprep.subr.mxu0 0.0
  %1574 = vmatpush1.msra.mxu0 0.0
  %1575 = vmatprep.subr.mxu0 0.0
  %1576 = vmatpush1.msra.mxu0 0.0
  %1577 = vmatprep.subr.mxu0 0.0
  %1578 = vmatpush1.msra.mxu0 0.0
  %1579 = vmatprep.subr.mxu0 0.0
  %1580 = vmatpush1.msra.mxu0 0.0
  %1581 = vmatprep.subr.mxu0 0.0
  %1582 = vmatpush1.msra.mxu0 0.0
  %1583 = vmatprep.subr.mxu0 0.0
  %1584 = vmatpush1.msra.mxu0 0.0
  %1585 = vmatprep.subr.mxu0 0.0
  %1586 = vmatpush1.msra.mxu0 0.0
  %1587 = vmatprep.subr.mxu0 0.0
  %1588 = vmatpush1.msra.mxu0 0.0
  %1589 = vmatprep.subr.mxu0 0.0
  %1590 = vmatpush1.msra.mxu0 0.0
  %1591 = vmatprep.mubr.f32.mxu0 0.0
  %1592 = vmatmul.mubr.f32.gmra.mrb[0].mxu0 %v1338
  %v1593 = vpop.f32.mrb[0].mxu0
  %v1594 = vadd.f32 %v1226, %v1593
  %v1595 = vpop.f32.mrb[0].mxu0
  %v1596 = vadd.f32 %v1228, %v1595
  %1597 = vmatprep.mubr.f32.mxu0 0.0
  %1598 = vmatmul.mubr.f32.gmra.mrb[0].mxu0 %v1341
  %v1599 = vpop.f32.mrb[0].mxu0
  %v1600 = vadd.f32 %v1232, %v1599
  %v1601 = vpop.f32.mrb[0].mxu0
  %v1602 = vadd.f32 %v1234, %v1601
  %1603 = vmatprep.mubr.f32.mxu0 0.0
  %1604 = vmatmul.mubr.f32.gmra.mrb[0].mxu0 %v1344
  %v1605 = vpop.f32.mrb[0].mxu0
  %v1606 = vadd.f32 %v1238, %v1605
  %v1607 = vpop.f32.mrb[0].mxu0
  %v1608 = vadd.f32 %v1240, %v1607
  %1609 = vmatprep.mubr.f32.mxu0 0.0
  %1610 = vmatmul.mubr.f32.gmra.mrb[0].mxu0 %v1347
  %v1611 = vpop.f32.mrb[0].mxu0
  %v1612 = vadd.f32 %v1244, %v1611
  %v1613 = vpop.f32.mrb[0].mxu0
  %v1614 = vadd.f32 %v1246, %v1613
  %1615 = vdwg.mxu0
  %1616 = vmatprep.subr.mxu0 %v599
  %1617 = vmatpush1.msra.mxu0 %v598
  %1618 = vmatprep.subr.mxu0 %v607
  %1619 = vmatpush1.msra.mxu0 %v606
  %1620 = vmatprep.subr.mxu0 %v615
  %1621 = vmatpush1.msra.mxu0 %v614
  %1622 = vmatprep.subr.mxu0 %v623
  %1623 = vmatpush1.msra.mxu0 %v622
  %1624 = vmatprep.subr.mxu0 %v631
  %1625 = vmatpush1.msra.mxu0 %v630
  %1626 = vmatprep.subr.mxu0 %v639
  %1627 = vmatpush1.msra.mxu0 %v638
  %1628 = vmatprep.subr.mxu0 %v647
  %1629 = vmatpush1.msra.mxu0 %v646
  %1630 = vmatprep.subr.mxu0 %v655
  %1631 = vmatpush1.msra.mxu0 %v654
  %1632 = vmatprep.subr.mxu0 0.0
  %1633 = vmatpush1.msra.mxu0 0.0
  %1634 = vmatprep.subr.mxu0 0.0
  %1635 = vmatpush1.msra.mxu0 0.0
  %1636 = vmatprep.subr.mxu0 0.0
  %1637 = vmatpush1.msra.mxu0 0.0
  %1638 = vmatprep.subr.mxu0 0.0
  %1639 = vmatpush1.msra.mxu0 0.0
  %1640 = vmatprep.subr.mxu0 0.0
  %1641 = vmatpush1.msra.mxu0 0.0
  %1642 = vmatprep.subr.mxu0 0.0
  %1643 = vmatpush1.msra.mxu0 0.0
  %1644 = vmatprep.subr.mxu0 0.0
  %1645 = vmatpush1.msra.mxu0 0.0
  %1646 = vmatprep.subr.mxu0 0.0
  %1647 = vmatpush1.msra.mxu0 0.0
  %1648 = vmatprep.subr.mxu0 0.0
  %1649 = vmatpush1.msra.mxu0 0.0
  %1650 = vmatprep.subr.mxu0 0.0
  %1651 = vmatpush1.msra.mxu0 0.0
  %1652 = vmatprep.subr.mxu0 0.0
  %1653 = vmatpush1.msra.mxu0 0.0
  %1654 = vmatprep.subr.mxu0 0.0
  %1655 = vmatpush1.msra.mxu0 0.0
  %1656 = vmatprep.subr.mxu0 0.0
  %1657 = vmatpush1.msra.mxu0 0.0
  %1658 = vmatprep.subr.mxu0 0.0
  %1659 = vmatpush1.msra.mxu0 0.0
  %1660 = vmatprep.subr.mxu0 0.0
  %1661 = vmatpush1.msra.mxu0 0.0
  %1662 = vmatprep.subr.mxu0 0.0
  %1663 = vmatpush1.msra.mxu0 0.0
  %1664 = vmatprep.subr.mxu0 0.0
  %1665 = vmatpush1.msra.mxu0 0.0
  %1666 = vmatprep.subr.mxu0 0.0
  %1667 = vmatpush1.msra.mxu0 0.0
  %1668 = vmatprep.subr.mxu0 0.0
  %1669 = vmatpush1.msra.mxu0 0.0
  %1670 = vmatprep.subr.mxu0 0.0
  %1671 = vmatpush1.msra.mxu0 0.0
  %1672 = vmatprep.subr.mxu0 0.0
  %1673 = vmatpush1.msra.mxu0 0.0
  %1674 = vmatprep.subr.mxu0 0.0
  %1675 = vmatpush1.msra.mxu0 0.0
  %1676 = vmatprep.subr.mxu0 0.0
  %1677 = vmatpush1.msra.mxu0 0.0
  %1678 = vmatprep.subr.mxu0 0.0
  %1679 = vmatpush1.msra.mxu0 0.0
  %1680 = vmatprep.mubr.f32.mxu0 0.0
  %1681 = vmatmul.mubr.f32.gmra.mrb[0].mxu0 %v1338
  %v1682 = vpop.f32.mrb[0].mxu0
  %v1683 = vadd.f32 %v1315, %v1682
  %v1684 = vpop.f32.mrb[0].mxu0
  %v1685 = vadd.f32 %v1317, %v1684
  %1686 = vmatprep.mubr.f32.mxu0 0.0
  %1687 = vmatmul.mubr.f32.gmra.mrb[0].mxu0 %v1341
  %v1688 = vpop.f32.mrb[0].mxu0
  %v1689 = vadd.f32 %v1321, %v1688
  %v1690 = vpop.f32.mrb[0].mxu0
  %v1691 = vadd.f32 %v1323, %v1690
  %1692 = vmatprep.mubr.f32.mxu0 0.0
  %1693 = vmatmul.mubr.f32.gmra.mrb[0].mxu0 %v1344
  %v1694 = vpop.f32.mrb[0].mxu0
  %v1695 = vadd.f32 %v1327, %v1694
  %v1696 = vpop.f32.mrb[0].mxu0
  %v1697 = vadd.f32 %v1329, %v1696
  %1698 = vmatprep.mubr.f32.mxu0 0.0
  %1699 = vmatmul.mubr.f32.gmra.mrb[0].mxu0 %v1347
  %v1700 = vpop.f32.mrb[0].mxu0
  %v1701 = vadd.f32 %v1333, %v1700
  %v1702 = vpop.f32.mrb[0].mxu0
  %v1703 = vadd.f32 %v1335, %v1702
  %1704 = vdwg.mxu0
  %1705 = vrot.lane.b32.xlu0 %v592, 16
  %v1706 = vpop.permute.xlu0 %1705
  %1707 = vrot.lane.b32.xlu0 %v600, 16
  %v1708 = vpop.permute.xlu0 %1707
  %1709 = vrot.lane.b32.xlu0 %v608, 16
  %v1710 = vpop.permute.xlu0 %1709
  %1711 = vrot.lane.b32.xlu0 %v616, 16
  %v1712 = vpop.permute.xlu0 %1711
  %1713 = vrot.lane.b32.xlu0 %v624, 16
  %v1714 = vpop.permute.xlu0 %1713
  %1715 = vrot.lane.b32.xlu0 %v632, 16
  %v1716 = vpop.permute.xlu0 %1715
  %1717 = vrot.lane.b32.xlu0 %v640, 16
  %v1718 = vpop.permute.xlu0 %1717
  %1719 = vrot.lane.b32.xlu0 %v648, 16
  %v1720 = vpop.permute.xlu0 %1719
  %1721 = vrot.lane.b32.xlu0 %v593, 16
  %v1722 = vpop.permute.xlu0 %1721
  %1723 = vrot.lane.b32.xlu0 %v601, 16
  %v1724 = vpop.permute.xlu0 %1723
  %1725 = vrot.lane.b32.xlu0 %v609, 16
  %v1726 = vpop.permute.xlu0 %1725
  %1727 = vrot.lane.b32.xlu0 %v617, 16
  %v1728 = vpop.permute.xlu0 %1727
  %1729 = vrot.lane.b32.xlu0 %v625, 16
  %v1730 = vpop.permute.xlu0 %1729
  %1731 = vrot.lane.b32.xlu0 %v633, 16
  %v1732 = vpop.permute.xlu0 %1731
  %1733 = vrot.lane.b32.xlu0 %v641, 16
  %v1734 = vpop.permute.xlu0 %1733
  %1735 = vrot.lane.b32.xlu0 %v649, 16
  %v1736 = vpop.permute.xlu0 %1735
  %1737 = vrot.lane.b32.xlu0 %v594, 16
  %v1738 = vpop.permute.xlu0 %1737
  %1739 = vrot.lane.b32.xlu0 %v602, 16
  %v1740 = vpop.permute.xlu0 %1739
  %1741 = vrot.lane.b32.xlu0 %v610, 16
  %v1742 = vpop.permute.xlu0 %1741
  %1743 = vrot.lane.b32.xlu0 %v618, 16
  %v1744 = vpop.permute.xlu0 %1743
  %1745 = vrot.lane.b32.xlu0 %v626, 16
  %v1746 = vpop.permute.xlu0 %1745
  %1747 = vrot.lane.b32.xlu0 %v634, 16
  %v1748 = vpop.permute.xlu0 %1747
  %1749 = vrot.lane.b32.xlu0 %v642, 16
  %v1750 = vpop.permute.xlu0 %1749
  %1751 = vrot.lane.b32.xlu0 %v650, 16
  %v1752 = vpop.permute.xlu0 %1751
  %1753 = vrot.lane.b32.xlu0 %v595, 16
  %v1754 = vpop.permute.xlu0 %1753
  %1755 = vrot.lane.b32.xlu0 %v603, 16
  %v1756 = vpop.permute.xlu0 %1755
  %1757 = vrot.lane.b32.xlu0 %v611, 16
  %v1758 = vpop.permute.xlu0 %1757
  %1759 = vrot.lane.b32.xlu0 %v619, 16
  %v1760 = vpop.permute.xlu0 %1759
  %1761 = vrot.lane.b32.xlu0 %v627, 16
  %v1762 = vpop.permute.xlu0 %1761
  %1763 = vrot.lane.b32.xlu0 %v635, 16
  %v1764 = vpop.permute.xlu0 %1763
  %1765 = vrot.lane.b32.xlu0 %v643, 16
  %v1766 = vpop.permute.xlu0 %1765
  %1767 = vrot.lane.b32.xlu0 %v651, 16
  %v1768 = vpop.permute.xlu0 %1767
  %1769 = vrot.lane.b32.xlu0 %v596, 16
  %v1770 = vpop.permute.xlu0 %1769
  %1771 = vrot.lane.b32.xlu0 %v604, 16
  %v1772 = vpop.permute.xlu0 %1771
  %1773 = vrot.lane.b32.xlu0 %v612, 16
  %v1774 = vpop.permute.xlu0 %1773
  %1775 = vrot.lane.b32.xlu0 %v620, 16
  %v1776 = vpop.permute.xlu0 %1775
  %1777 = vrot.lane.b32.xlu0 %v628, 16
  %v1778 = vpop.permute.xlu0 %1777
  %1779 = vrot.lane.b32.xlu0 %v636, 16
  %v1780 = vpop.permute.xlu0 %1779
  %1781 = vrot.lane.b32.xlu0 %v644, 16
  %v1782 = vpop.permute.xlu0 %1781
  %1783 = vrot.lane.b32.xlu0 %v652, 16
  %v1784 = vpop.permute.xlu0 %1783
  %1785 = vrot.lane.b32.xlu0 %v597, 16
  %v1786 = vpop.permute.xlu0 %1785
  %1787 = vrot.lane.b32.xlu0 %v605, 16
  %v1788 = vpop.permute.xlu0 %1787
  %1789 = vrot.lane.b32.xlu0 %v613, 16
  %v1790 = vpop.permute.xlu0 %1789
  %1791 = vrot.lane.b32.xlu0 %v621, 16
  %v1792 = vpop.permute.xlu0 %1791
  %1793 = vrot.lane.b32.xlu0 %v629, 16
  %v1794 = vpop.permute.xlu0 %1793
  %1795 = vrot.lane.b32.xlu0 %v637, 16
  %v1796 = vpop.permute.xlu0 %1795
  %1797 = vrot.lane.b32.xlu0 %v645, 16
  %v1798 = vpop.permute.xlu0 %1797
  %1799 = vrot.lane.b32.xlu0 %v653, 16
  %v1800 = vpop.permute.xlu0 %1799
  %1801 = vrot.lane.b32.xlu0 %v598, 16
  %v1802 = vpop.permute.xlu0 %1801
  %1803 = vrot.lane.b32.xlu0 %v606, 16
  %v1804 = vpop.permute.xlu0 %1803
  %1805 = vrot.lane.b32.xlu0 %v614, 16
  %v1806 = vpop.permute.xlu0 %1805
  %1807 = vrot.lane.b32.xlu0 %v622, 16
  %v1808 = vpop.permute.xlu0 %1807
  %1809 = vrot.lane.b32.xlu0 %v630, 16
  %v1810 = vpop.permute.xlu0 %1809
  %1811 = vrot.lane.b32.xlu0 %v638, 16
  %v1812 = vpop.permute.xlu0 %1811
  %1813 = vrot.lane.b32.xlu0 %v646, 16
  %v1814 = vpop.permute.xlu0 %1813
  %1815 = vrot.lane.b32.xlu0 %v654, 16
  %v1816 = vpop.permute.xlu0 %1815
  %1817 = vrot.lane.b32.xlu0 %v599, 16
  %v1818 = vpop.permute.xlu0 %1817
  %1819 = vrot.lane.b32.xlu0 %v607, 16
  %v1820 = vpop.permute.xlu0 %1819
  %1821 = vrot.lane.b32.xlu0 %v615, 16
  %v1822 = vpop.permute.xlu0 %1821
  %1823 = vrot.lane.b32.xlu0 %v623, 16
  %v1824 = vpop.permute.xlu0 %1823
  %1825 = vrot.lane.b32.xlu0 %v631, 16
  %v1826 = vpop.permute.xlu0 %1825
  %1827 = vrot.lane.b32.xlu0 %v639, 16
  %v1828 = vpop.permute.xlu0 %1827
  %1829 = vrot.lane.b32.xlu0 %v647, 16
  %v1830 = vpop.permute.xlu0 %1829
  %1831 = vrot.lane.b32.xlu0 %v655, 16
  %v1832 = vpop.permute.xlu0 %1831
  %vm1833 = vcmp.lt.s32.totalorder %v790, 16
  %v1834 = vsel %vm1833, %v1802, %v1818
  %v1835 = vsel %vm1833, %v1804, %v1820
  %v1836 = vsel %vm1833, %v1806, %v1822
  %v1837 = vsel %vm1833, %v1808, %v1824
  %v1838 = vsel %vm1833, %v1810, %v1826
  %v1839 = vsel %vm1833, %v1812, %v1828
  %v1840 = vsel %vm1833, %v1814, %v1830
  %v1841 = vsel %vm1833, %v1816, %v1832
  %v1842 = vsel %vm1833, %v1786, %v1802
  %v1843 = vsel %vm1833, %v1788, %v1804
  %v1844 = vsel %vm1833, %v1790, %v1806
  %v1845 = vsel %vm1833, %v1792, %v1808
  %v1846 = vsel %vm1833, %v1794, %v1810
  %v1847 = vsel %vm1833, %v1796, %v1812
  %v1848 = vsel %vm1833, %v1798, %v1814
  %v1849 = vsel %vm1833, %v1800, %v1816
  %v1850 = vsel %vm1833, %v1770, %v1786
  %v1851 = vsel %vm1833, %v1772, %v1788
  %v1852 = vsel %vm1833, %v1774, %v1790
  %v1853 = vsel %vm1833, %v1776, %v1792
  %v1854 = vsel %vm1833, %v1778, %v1794
  %v1855 = vsel %vm1833, %v1780, %v1796
  %v1856 = vsel %vm1833, %v1782, %v1798
  %v1857 = vsel %vm1833, %v1784, %v1800
  %v1858 = vsel %vm1833, %v1754, %v1770
  %v1859 = vsel %vm1833, %v1756, %v1772
  %v1860 = vsel %vm1833, %v1758, %v1774
  %v1861 = vsel %vm1833, %v1760, %v1776
  %v1862 = vsel %vm1833, %v1762, %v1778
  %v1863 = vsel %vm1833, %v1764, %v1780
  %v1864 = vsel %vm1833, %v1766, %v1782
  %v1865 = vsel %vm1833, %v1768, %v1784
  %v1866 = vsel %vm1833, %v1738, %v1754
  %v1867 = vsel %vm1833, %v1740, %v1756
  %v1868 = vsel %vm1833, %v1742, %v1758
  %v1869 = vsel %vm1833, %v1744, %v1760
  %v1870 = vsel %vm1833, %v1746, %v1762
  %v1871 = vsel %vm1833, %v1748, %v1764
  %v1872 = vsel %vm1833, %v1750, %v1766
  %v1873 = vsel %vm1833, %v1752, %v1768
  %v1874 = vsel %vm1833, %v1722, %v1738
  %v1875 = vsel %vm1833, %v1724, %v1740
  %v1876 = vsel %vm1833, %v1726, %v1742
  %v1877 = vsel %vm1833, %v1728, %v1744
  %v1878 = vsel %vm1833, %v1730, %v1746
  %v1879 = vsel %vm1833, %v1732, %v1748
  %v1880 = vsel %vm1833, %v1734, %v1750
  %v1881 = vsel %vm1833, %v1736, %v1752
  %v1882 = vsel %vm1833, %v1706, %v1722
  %v1883 = vsel %vm1833, %v1708, %v1724
  %v1884 = vsel %vm1833, %v1710, %v1726
  %v1885 = vsel %vm1833, %v1712, %v1728
  %v1886 = vsel %vm1833, %v1714, %v1730
  %v1887 = vsel %vm1833, %v1716, %v1732
  %v1888 = vsel %vm1833, %v1718, %v1734
  %v1889 = vsel %vm1833, %v1720, %v1736
  %v1890 = vsel %vm1833, %v1818, %v1706
  %v1891 = vsel %vm1833, %v1820, %v1708
  %v1892 = vsel %vm1833, %v1822, %v1710
  %v1893 = vsel %vm1833, %v1824, %v1712
  %v1894 = vsel %vm1833, %v1826, %v1714
  %v1895 = vsel %vm1833, %v1828, %v1716
  %v1896 = vsel %vm1833, %v1830, %v1718
  %v1897 = vsel %vm1833, %v1832, %v1720
  %s1898 = scalar_lea.vmem %s1, 1
  %v1899 = vld [vmem:[%s1898] ss:$8 sm:$0xf]
  %v1900 = vld [vmem:[%s1898] ss:$8 sm:$0xf0]
  %v1901 = vor.u32 %v1899, %v1900
  %v1903 = vlaneseq
  %v1904 = vshrl.u32 %v1903, 7
  %v1905 = vsub.s32 0, %v1904
  %v1906 = vrot.slane %v1901, %v1905
  %v1907 = vlaneseq
  %v1908 = vshrl.u32 %v1907, 7
  %v1909 = vsub.s32 1, %v1908
  %v1910 = vrot.slane %v1901, %v1909
  %v1911 = vlaneseq
  %v1912 = vshrl.u32 %v1911, 7
  %v1913 = vsub.s32 2, %v1912
  %v1914 = vrot.slane %v1901, %v1913
  %v1915 = vlaneseq
  %v1916 = vshrl.u32 %v1915, 7
  %v1917 = vsub.s32 3, %v1916
  %v1918 = vrot.slane %v1901, %v1917
  %v1919 = vlaneseq
  %v1920 = vshrl.u32 %v1919, 7
  %v1921 = vsub.s32 4, %v1920
  %v1922 = vrot.slane %v1901, %v1921
  %v1923 = vlaneseq
  %v1924 = vshrl.u32 %v1923, 7
  %v1925 = vsub.s32 5, %v1924
  %v1926 = vrot.slane %v1901, %v1925
  %v1927 = vlaneseq
  %v1928 = vshrl.u32 %v1927, 7
  %v1929 = vsub.s32 6, %v1928
  %v1930 = vrot.slane %v1901, %v1929
  %v1931 = vlaneseq
  %v1932 = vshrl.u32 %v1931, 7
  %v1933 = vsub.s32 7, %v1932
  %v1934 = vrot.slane %v1901, %v1933
  %v1943 = vmul.f32 %v1890, %v1906
  %v1944 = vmul.f32 %v1882, %v1910
  %v1945 = vmul.f32 %v1874, %v1914
  %v1946 = vmul.f32 %v1866, %v1918
  %v1947 = vmul.f32 %v1858, %v1922
  %v1948 = vmul.f32 %v1850, %v1926
  %v1949 = vmul.f32 %v1842, %v1930
  %v1950 = vmul.f32 %v1834, %v1934
  %v1951 = vmul.f32 %v1891, %v1906
  %v1952 = vmul.f32 %v1883, %v1910
  %v1953 = vmul.f32 %v1875, %v1914
  %v1954 = vmul.f32 %v1867, %v1918
  %v1955 = vmul.f32 %v1859, %v1922
  %v1956 = vmul.f32 %v1851, %v1926
  %v1957 = vmul.f32 %v1843, %v1930
  %v1958 = vmul.f32 %v1835, %v1934
  %v1959 = vmul.f32 %v1892, %v1906
  %v1960 = vmul.f32 %v1884, %v1910
  %v1961 = vmul.f32 %v1876, %v1914
  %v1962 = vmul.f32 %v1868, %v1918
  %v1963 = vmul.f32 %v1860, %v1922
  %v1964 = vmul.f32 %v1852, %v1926
  %v1965 = vmul.f32 %v1844, %v1930
  %v1966 = vmul.f32 %v1836, %v1934
  %v1967 = vmul.f32 %v1893, %v1906
  %v1968 = vmul.f32 %v1885, %v1910
  %v1969 = vmul.f32 %v1877, %v1914
  %v1970 = vmul.f32 %v1869, %v1918
  %v1971 = vmul.f32 %v1861, %v1922
  %v1972 = vmul.f32 %v1853, %v1926
  %v1973 = vmul.f32 %v1845, %v1930
  %v1974 = vmul.f32 %v1837, %v1934
  %v1975 = vmul.f32 %v1894, %v1906
  %v1976 = vmul.f32 %v1886, %v1910
  %v1977 = vmul.f32 %v1878, %v1914
  %v1978 = vmul.f32 %v1870, %v1918
  %v1979 = vmul.f32 %v1862, %v1922
  %v1980 = vmul.f32 %v1854, %v1926
  %v1981 = vmul.f32 %v1846, %v1930
  %v1982 = vmul.f32 %v1838, %v1934
  %v1983 = vmul.f32 %v1895, %v1906
  %v1984 = vmul.f32 %v1887, %v1910
  %v1985 = vmul.f32 %v1879, %v1914
  %v1986 = vmul.f32 %v1871, %v1918
  %v1987 = vmul.f32 %v1863, %v1922
  %v1988 = vmul.f32 %v1855, %v1926
  %v1989 = vmul.f32 %v1847, %v1930
  %v1990 = vmul.f32 %v1839, %v1934
  %v1991 = vmul.f32 %v1896, %v1906
  %v1992 = vmul.f32 %v1888, %v1910
  %v1993 = vmul.f32 %v1880, %v1914
  %v1994 = vmul.f32 %v1872, %v1918
  %v1995 = vmul.f32 %v1864, %v1922
  %v1996 = vmul.f32 %v1856, %v1926
  %v1997 = vmul.f32 %v1848, %v1930
  %v1998 = vmul.f32 %v1840, %v1934
  %v1999 = vmul.f32 %v1897, %v1906
  %v2000 = vmul.f32 %v1889, %v1910
  %v2001 = vmul.f32 %v1881, %v1914
  %v2002 = vmul.f32 %v1873, %v1918
  %v2003 = vmul.f32 %v1865, %v1922
  %v2004 = vmul.f32 %v1857, %v1926
  %v2005 = vmul.f32 %v1849, %v1930
  %v2006 = vmul.f32 %v1841, %v1934
  %s2007 = scalar_lea.vmem %s4, 32
  %v2008 = vld [vmem:[%s2007] sm:$0xff]
  %v2009 = vld [vmem:[%s2007 + $0x8] sm:$0xff]
  %v2010 = vld [vmem:[%s2007 + $0x10] sm:$0xff]
  %v2011 = vld [vmem:[%s2007 + $0x18] sm:$0xff]
  %v2013 = vsel %vm968, %v2008, 0
  %v2016 = vsel %vm968, %v2009, 0
  %v2019 = vsel %vm968, %v2010, 0
  %v2022 = vsel %vm968, %v2011, 0
  %2024 = vmatprep.subr.mxu0 %v1944
  %2025 = vmatpush1.msra.mxu0 %v1943
  %2026 = vmatprep.subr.mxu0 %v1952
  %2027 = vmatpush1.msra.mxu0 %v1951
  %2028 = vmatprep.subr.mxu0 %v1960
  %2029 = vmatpush1.msra.mxu0 %v1959
  %2030 = vmatprep.subr.mxu0 %v1968
  %2031 = vmatpush1.msra.mxu0 %v1967
  %2032 = vmatprep.subr.mxu0 %v1976
  %2033 = vmatpush1.msra.mxu0 %v1975
  %2034 = vmatprep.subr.mxu0 %v1984
  %2035 = vmatpush1.msra.mxu0 %v1983
  %2036 = vmatprep.subr.mxu0 %v1992
  %2037 = vmatpush1.msra.mxu0 %v1991
  %2038 = vmatprep.subr.mxu0 %v2000
  %2039 = vmatpush1.msra.mxu0 %v1999
  %2040 = vmatprep.subr.mxu0 0.0
  %2041 = vmatpush1.msra.mxu0 0.0
  %2042 = vmatprep.subr.mxu0 0.0
  %2043 = vmatpush1.msra.mxu0 0.0
  %2044 = vmatprep.subr.mxu0 0.0
  %2045 = vmatpush1.msra.mxu0 0.0
  %2046 = vmatprep.subr.mxu0 0.0
  %2047 = vmatpush1.msra.mxu0 0.0
  %2048 = vmatprep.subr.mxu0 0.0
  %2049 = vmatpush1.msra.mxu0 0.0
  %2050 = vmatprep.subr.mxu0 0.0
  %2051 = vmatpush1.msra.mxu0 0.0
  %2052 = vmatprep.subr.mxu0 0.0
  %2053 = vmatpush1.msra.mxu0 0.0
  %2054 = vmatprep.subr.mxu0 0.0
  %2055 = vmatpush1.msra.mxu0 0.0
  %2056 = vmatprep.subr.mxu0 0.0
  %2057 = vmatpush1.msra.mxu0 0.0
  %2058 = vmatprep.subr.mxu0 0.0
  %2059 = vmatpush1.msra.mxu0 0.0
  %2060 = vmatprep.subr.mxu0 0.0
  %2061 = vmatpush1.msra.mxu0 0.0
  %2062 = vmatprep.subr.mxu0 0.0
  %2063 = vmatpush1.msra.mxu0 0.0
  %2064 = vmatprep.subr.mxu0 0.0
  %2065 = vmatpush1.msra.mxu0 0.0
  %2066 = vmatprep.subr.mxu0 0.0
  %2067 = vmatpush1.msra.mxu0 0.0
  %2068 = vmatprep.subr.mxu0 0.0
  %2069 = vmatpush1.msra.mxu0 0.0
  %2070 = vmatprep.subr.mxu0 0.0
  %2071 = vmatpush1.msra.mxu0 0.0
  %2072 = vmatprep.subr.mxu0 0.0
  %2073 = vmatpush1.msra.mxu0 0.0
  %2074 = vmatprep.subr.mxu0 0.0
  %2075 = vmatpush1.msra.mxu0 0.0
  %2076 = vmatprep.subr.mxu0 0.0
  %2077 = vmatpush1.msra.mxu0 0.0
  %2078 = vmatprep.subr.mxu0 0.0
  %2079 = vmatpush1.msra.mxu0 0.0
  %2080 = vmatprep.subr.mxu0 0.0
  %2081 = vmatpush1.msra.mxu0 0.0
  %2082 = vmatprep.subr.mxu0 0.0
  %2083 = vmatpush1.msra.mxu0 0.0
  %2084 = vmatprep.subr.mxu0 0.0
  %2085 = vmatpush1.msra.mxu0 0.0
  %2086 = vmatprep.subr.mxu0 0.0
  %2087 = vmatpush1.msra.mxu0 0.0
  %2088 = vmatprep.mubr.f32.mxu0 0.0
  %2089 = vmatmul.mubr.f32.gmra.mrb[0].mxu0 %v2013
  %v2090 = vpop.f32.mrb[0].mxu0
  %v2091 = vadd.f32 0.0, %v2090
  %v2092 = vpop.f32.mrb[0].mxu0
  %v2093 = vadd.f32 0.0, %v2092
  %2094 = vmatprep.mubr.f32.mxu0 0.0
  %2095 = vmatmul.mubr.f32.gmra.mrb[0].mxu0 %v2016
  %v2096 = vpop.f32.mrb[0].mxu0
  %v2097 = vadd.f32 0.0, %v2096
  %v2098 = vpop.f32.mrb[0].mxu0
  %v2099 = vadd.f32 0.0, %v2098
  %2100 = vmatprep.mubr.f32.mxu0 0.0
  %2101 = vmatmul.mubr.f32.gmra.mrb[0].mxu0 %v2019
  %v2102 = vpop.f32.mrb[0].mxu0
  %v2103 = vadd.f32 0.0, %v2102
  %v2104 = vpop.f32.mrb[0].mxu0
  %v2105 = vadd.f32 0.0, %v2104
  %2106 = vmatprep.mubr.f32.mxu0 0.0
  %2107 = vmatmul.mubr.f32.gmra.mrb[0].mxu0 %v2022
  %v2108 = vpop.f32.mrb[0].mxu0
  %v2109 = vadd.f32 0.0, %v2108
  %v2110 = vpop.f32.mrb[0].mxu0
  %v2111 = vadd.f32 0.0, %v2110
  %2112 = vdwg.mxu0
  %2113 = vmatprep.subr.mxu0 %v1946
  %2114 = vmatpush1.msra.mxu0 %v1945
  %2115 = vmatprep.subr.mxu0 %v1954
  %2116 = vmatpush1.msra.mxu0 %v1953
  %2117 = vmatprep.subr.mxu0 %v1962
  %2118 = vmatpush1.msra.mxu0 %v1961
  %2119 = vmatprep.subr.mxu0 %v1970
  %2120 = vmatpush1.msra.mxu0 %v1969
  %2121 = vmatprep.subr.mxu0 %v1978
  %2122 = vmatpush1.msra.mxu0 %v1977
  %2123 = vmatprep.subr.mxu0 %v1986
  %2124 = vmatpush1.msra.mxu0 %v1985
  %2125 = vmatprep.subr.mxu0 %v1994
  %2126 = vmatpush1.msra.mxu0 %v1993
  %2127 = vmatprep.subr.mxu0 %v2002
  %2128 = vmatpush1.msra.mxu0 %v2001
  %2129 = vmatprep.subr.mxu0 0.0
  %2130 = vmatpush1.msra.mxu0 0.0
  %2131 = vmatprep.subr.mxu0 0.0
  %2132 = vmatpush1.msra.mxu0 0.0
  %2133 = vmatprep.subr.mxu0 0.0
  %2134 = vmatpush1.msra.mxu0 0.0
  %2135 = vmatprep.subr.mxu0 0.0
  %2136 = vmatpush1.msra.mxu0 0.0
  %2137 = vmatprep.subr.mxu0 0.0
  %2138 = vmatpush1.msra.mxu0 0.0
  %2139 = vmatprep.subr.mxu0 0.0
  %2140 = vmatpush1.msra.mxu0 0.0
  %2141 = vmatprep.subr.mxu0 0.0
  %2142 = vmatpush1.msra.mxu0 0.0
  %2143 = vmatprep.subr.mxu0 0.0
  %2144 = vmatpush1.msra.mxu0 0.0
  %2145 = vmatprep.subr.mxu0 0.0
  %2146 = vmatpush1.msra.mxu0 0.0
  %2147 = vmatprep.subr.mxu0 0.0
  %2148 = vmatpush1.msra.mxu0 0.0
  %2149 = vmatprep.subr.mxu0 0.0
  %2150 = vmatpush1.msra.mxu0 0.0
  %2151 = vmatprep.subr.mxu0 0.0
  %2152 = vmatpush1.msra.mxu0 0.0
  %2153 = vmatprep.subr.mxu0 0.0
  %2154 = vmatpush1.msra.mxu0 0.0
  %2155 = vmatprep.subr.mxu0 0.0
  %2156 = vmatpush1.msra.mxu0 0.0
  %2157 = vmatprep.subr.mxu0 0.0
  %2158 = vmatpush1.msra.mxu0 0.0
  %2159 = vmatprep.subr.mxu0 0.0
  %2160 = vmatpush1.msra.mxu0 0.0
  %2161 = vmatprep.subr.mxu0 0.0
  %2162 = vmatpush1.msra.mxu0 0.0
  %2163 = vmatprep.subr.mxu0 0.0
  %2164 = vmatpush1.msra.mxu0 0.0
  %2165 = vmatprep.subr.mxu0 0.0
  %2166 = vmatpush1.msra.mxu0 0.0
  %2167 = vmatprep.subr.mxu0 0.0
  %2168 = vmatpush1.msra.mxu0 0.0
  %2169 = vmatprep.subr.mxu0 0.0
  %2170 = vmatpush1.msra.mxu0 0.0
  %2171 = vmatprep.subr.mxu0 0.0
  %2172 = vmatpush1.msra.mxu0 0.0
  %2173 = vmatprep.subr.mxu0 0.0
  %2174 = vmatpush1.msra.mxu0 0.0
  %2175 = vmatprep.subr.mxu0 0.0
  %2176 = vmatpush1.msra.mxu0 0.0
  %2177 = vmatprep.mubr.f32.mxu0 0.0
  %2178 = vmatmul.mubr.f32.gmra.mrb[0].mxu0 %v2013
  %v2179 = vpop.f32.mrb[0].mxu0
  %v2180 = vadd.f32 0.0, %v2179
  %v2181 = vpop.f32.mrb[0].mxu0
  %v2182 = vadd.f32 0.0, %v2181
  %2183 = vmatprep.mubr.f32.mxu0 0.0
  %2184 = vmatmul.mubr.f32.gmra.mrb[0].mxu0 %v2016
  %v2185 = vpop.f32.mrb[0].mxu0
  %v2186 = vadd.f32 0.0, %v2185
  %v2187 = vpop.f32.mrb[0].mxu0
  %v2188 = vadd.f32 0.0, %v2187
  %2189 = vmatprep.mubr.f32.mxu0 0.0
  %2190 = vmatmul.mubr.f32.gmra.mrb[0].mxu0 %v2019
  %v2191 = vpop.f32.mrb[0].mxu0
  %v2192 = vadd.f32 0.0, %v2191
  %v2193 = vpop.f32.mrb[0].mxu0
  %v2194 = vadd.f32 0.0, %v2193
  %2195 = vmatprep.mubr.f32.mxu0 0.0
  %2196 = vmatmul.mubr.f32.gmra.mrb[0].mxu0 %v2022
  %v2197 = vpop.f32.mrb[0].mxu0
  %v2198 = vadd.f32 0.0, %v2197
  %v2199 = vpop.f32.mrb[0].mxu0
  %v2200 = vadd.f32 0.0, %v2199
  %2201 = vdwg.mxu0
  %2202 = vmatprep.subr.mxu0 %v1948
  %2203 = vmatpush1.msra.mxu0 %v1947
  %2204 = vmatprep.subr.mxu0 %v1956
  %2205 = vmatpush1.msra.mxu0 %v1955
  %2206 = vmatprep.subr.mxu0 %v1964
  %2207 = vmatpush1.msra.mxu0 %v1963
  %2208 = vmatprep.subr.mxu0 %v1972
  %2209 = vmatpush1.msra.mxu0 %v1971
  %2210 = vmatprep.subr.mxu0 %v1980
  %2211 = vmatpush1.msra.mxu0 %v1979
  %2212 = vmatprep.subr.mxu0 %v1988
  %2213 = vmatpush1.msra.mxu0 %v1987
  %2214 = vmatprep.subr.mxu0 %v1996
  %2215 = vmatpush1.msra.mxu0 %v1995
  %2216 = vmatprep.subr.mxu0 %v2004
  %2217 = vmatpush1.msra.mxu0 %v2003
  %2218 = vmatprep.subr.mxu0 0.0
  %2219 = vmatpush1.msra.mxu0 0.0
  %2220 = vmatprep.subr.mxu0 0.0
  %2221 = vmatpush1.msra.mxu0 0.0
  %2222 = vmatprep.subr.mxu0 0.0
  %2223 = vmatpush1.msra.mxu0 0.0
  %2224 = vmatprep.subr.mxu0 0.0
  %2225 = vmatpush1.msra.mxu0 0.0
  %2226 = vmatprep.subr.mxu0 0.0
  %2227 = vmatpush1.msra.mxu0 0.0
  %2228 = vmatprep.subr.mxu0 0.0
  %2229 = vmatpush1.msra.mxu0 0.0
  %2230 = vmatprep.subr.mxu0 0.0
  %2231 = vmatpush1.msra.mxu0 0.0
  %2232 = vmatprep.subr.mxu0 0.0
  %2233 = vmatpush1.msra.mxu0 0.0
  %2234 = vmatprep.subr.mxu0 0.0
  %2235 = vmatpush1.msra.mxu0 0.0
  %2236 = vmatprep.subr.mxu0 0.0
  %2237 = vmatpush1.msra.mxu0 0.0
  %2238 = vmatprep.subr.mxu0 0.0
  %2239 = vmatpush1.msra.mxu0 0.0
  %2240 = vmatprep.subr.mxu0 0.0
  %2241 = vmatpush1.msra.mxu0 0.0
  %2242 = vmatprep.subr.mxu0 0.0
  %2243 = vmatpush1.msra.mxu0 0.0
  %2244 = vmatprep.subr.mxu0 0.0
  %2245 = vmatpush1.msra.mxu0 0.0
  %2246 = vmatprep.subr.mxu0 0.0
  %2247 = vmatpush1.msra.mxu0 0.0
  %2248 = vmatprep.subr.mxu0 0.0
  %2249 = vmatpush1.msra.mxu0 0.0
  %2250 = vmatprep.subr.mxu0 0.0
  %2251 = vmatpush1.msra.mxu0 0.0
  %2252 = vmatprep.subr.mxu0 0.0
  %2253 = vmatpush1.msra.mxu0 0.0
  %2254 = vmatprep.subr.mxu0 0.0
  %2255 = vmatpush1.msra.mxu0 0.0
  %2256 = vmatprep.subr.mxu0 0.0
  %2257 = vmatpush1.msra.mxu0 0.0
  %2258 = vmatprep.subr.mxu0 0.0
  %2259 = vmatpush1.msra.mxu0 0.0
  %2260 = vmatprep.subr.mxu0 0.0
  %2261 = vmatpush1.msra.mxu0 0.0
  %2262 = vmatprep.subr.mxu0 0.0
  %2263 = vmatpush1.msra.mxu0 0.0
  %2264 = vmatprep.subr.mxu0 0.0
  %2265 = vmatpush1.msra.mxu0 0.0
  %2266 = vmatprep.mubr.f32.mxu0 0.0
  %2267 = vmatmul.mubr.f32.gmra.mrb[0].mxu0 %v2013
  %v2268 = vpop.f32.mrb[0].mxu0
  %v2269 = vadd.f32 0.0, %v2268
  %v2270 = vpop.f32.mrb[0].mxu0
  %v2271 = vadd.f32 0.0, %v2270
  %2272 = vmatprep.mubr.f32.mxu0 0.0
  %2273 = vmatmul.mubr.f32.gmra.mrb[0].mxu0 %v2016
  %v2274 = vpop.f32.mrb[0].mxu0
  %v2275 = vadd.f32 0.0, %v2274
  %v2276 = vpop.f32.mrb[0].mxu0
  %v2277 = vadd.f32 0.0, %v2276
  %2278 = vmatprep.mubr.f32.mxu0 0.0
  %2279 = vmatmul.mubr.f32.gmra.mrb[0].mxu0 %v2019
  %v2280 = vpop.f32.mrb[0].mxu0
  %v2281 = vadd.f32 0.0, %v2280
  %v2282 = vpop.f32.mrb[0].mxu0
  %v2283 = vadd.f32 0.0, %v2282
  %2284 = vmatprep.mubr.f32.mxu0 0.0
  %2285 = vmatmul.mubr.f32.gmra.mrb[0].mxu0 %v2022
  %v2286 = vpop.f32.mrb[0].mxu0
  %v2287 = vadd.f32 0.0, %v2286
  %v2288 = vpop.f32.mrb[0].mxu0
  %v2289 = vadd.f32 0.0, %v2288
  %2290 = vdwg.mxu0
  %2291 = vmatprep.subr.mxu0 %v1950
  %2292 = vmatpush1.msra.mxu0 %v1949
  %2293 = vmatprep.subr.mxu0 %v1958
  %2294 = vmatpush1.msra.mxu0 %v1957
  %2295 = vmatprep.subr.mxu0 %v1966
  %2296 = vmatpush1.msra.mxu0 %v1965
  %2297 = vmatprep.subr.mxu0 %v1974
  %2298 = vmatpush1.msra.mxu0 %v1973
  %2299 = vmatprep.subr.mxu0 %v1982
  %2300 = vmatpush1.msra.mxu0 %v1981
  %2301 = vmatprep.subr.mxu0 %v1990
  %2302 = vmatpush1.msra.mxu0 %v1989
  %2303 = vmatprep.subr.mxu0 %v1998
  %2304 = vmatpush1.msra.mxu0 %v1997
  %2305 = vmatprep.subr.mxu0 %v2006
  %2306 = vmatpush1.msra.mxu0 %v2005
  %2307 = vmatprep.subr.mxu0 0.0
  %2308 = vmatpush1.msra.mxu0 0.0
  %2309 = vmatprep.subr.mxu0 0.0
  %2310 = vmatpush1.msra.mxu0 0.0
  %2311 = vmatprep.subr.mxu0 0.0
  %2312 = vmatpush1.msra.mxu0 0.0
  %2313 = vmatprep.subr.mxu0 0.0
  %2314 = vmatpush1.msra.mxu0 0.0
  %2315 = vmatprep.subr.mxu0 0.0
  %2316 = vmatpush1.msra.mxu0 0.0
  %2317 = vmatprep.subr.mxu0 0.0
  %2318 = vmatpush1.msra.mxu0 0.0
  %2319 = vmatprep.subr.mxu0 0.0
  %2320 = vmatpush1.msra.mxu0 0.0
  %2321 = vmatprep.subr.mxu0 0.0
  %2322 = vmatpush1.msra.mxu0 0.0
  %2323 = vmatprep.subr.mxu0 0.0
  %2324 = vmatpush1.msra.mxu0 0.0
  %2325 = vmatprep.subr.mxu0 0.0
  %2326 = vmatpush1.msra.mxu0 0.0
  %2327 = vmatprep.subr.mxu0 0.0
  %2328 = vmatpush1.msra.mxu0 0.0
  %2329 = vmatprep.subr.mxu0 0.0
  %2330 = vmatpush1.msra.mxu0 0.0
  %2331 = vmatprep.subr.mxu0 0.0
  %2332 = vmatpush1.msra.mxu0 0.0
  %2333 = vmatprep.subr.mxu0 0.0
  %2334 = vmatpush1.msra.mxu0 0.0
  %2335 = vmatprep.subr.mxu0 0.0
  %2336 = vmatpush1.msra.mxu0 0.0
  %2337 = vmatprep.subr.mxu0 0.0
  %2338 = vmatpush1.msra.mxu0 0.0
  %2339 = vmatprep.subr.mxu0 0.0
  %2340 = vmatpush1.msra.mxu0 0.0
  %2341 = vmatprep.subr.mxu0 0.0
  %2342 = vmatpush1.msra.mxu0 0.0
  %2343 = vmatprep.subr.mxu0 0.0
  %2344 = vmatpush1.msra.mxu0 0.0
  %2345 = vmatprep.subr.mxu0 0.0
  %2346 = vmatpush1.msra.mxu0 0.0
  %2347 = vmatprep.subr.mxu0 0.0
  %2348 = vmatpush1.msra.mxu0 0.0
  %2349 = vmatprep.subr.mxu0 0.0
  %2350 = vmatpush1.msra.mxu0 0.0
  %2351 = vmatprep.subr.mxu0 0.0
  %2352 = vmatpush1.msra.mxu0 0.0
  %2353 = vmatprep.subr.mxu0 0.0
  %2354 = vmatpush1.msra.mxu0 0.0
  %2355 = vmatprep.mubr.f32.mxu0 0.0
  %2356 = vmatmul.mubr.f32.gmra.mrb[0].mxu0 %v2013
  %v2357 = vpop.f32.mrb[0].mxu0
  %v2358 = vadd.f32 0.0, %v2357
  %v2359 = vpop.f32.mrb[0].mxu0
  %v2360 = vadd.f32 0.0, %v2359
  %2361 = vmatprep.mubr.f32.mxu0 0.0
  %2362 = vmatmul.mubr.f32.gmra.mrb[0].mxu0 %v2016
  %v2363 = vpop.f32.mrb[0].mxu0
  %v2364 = vadd.f32 0.0, %v2363
  %v2365 = vpop.f32.mrb[0].mxu0
  %v2366 = vadd.f32 0.0, %v2365
  %2367 = vmatprep.mubr.f32.mxu0 0.0
  %2368 = vmatmul.mubr.f32.gmra.mrb[0].mxu0 %v2019
  %v2369 = vpop.f32.mrb[0].mxu0
  %v2370 = vadd.f32 0.0, %v2369
  %v2371 = vpop.f32.mrb[0].mxu0
  %v2372 = vadd.f32 0.0, %v2371
  %2373 = vmatprep.mubr.f32.mxu0 0.0
  %2374 = vmatmul.mubr.f32.gmra.mrb[0].mxu0 %v2022
  %v2375 = vpop.f32.mrb[0].mxu0
  %v2376 = vadd.f32 0.0, %v2375
  %v2377 = vpop.f32.mrb[0].mxu0
  %v2378 = vadd.f32 0.0, %v2377
  %2379 = vdwg.mxu0
  %v2380 = vadd.f32 %v1416, %v2091
  %v2381 = vadd.f32 %v1418, %v2093
  %v2382 = vadd.f32 %v1505, %v2180
  %v2383 = vadd.f32 %v1507, %v2182
  %v2384 = vadd.f32 %v1594, %v2269
  %v2385 = vadd.f32 %v1596, %v2271
  %v2386 = vadd.f32 %v1683, %v2358
  %v2387 = vadd.f32 %v1685, %v2360
  %v2388 = vadd.f32 %v1422, %v2097
  %v2389 = vadd.f32 %v1424, %v2099
  %v2390 = vadd.f32 %v1511, %v2186
  %v2391 = vadd.f32 %v1513, %v2188
  %v2392 = vadd.f32 %v1600, %v2275
  %v2393 = vadd.f32 %v1602, %v2277
  %v2394 = vadd.f32 %v1689, %v2364
  %v2395 = vadd.f32 %v1691, %v2366
  %v2396 = vadd.f32 %v1428, %v2103
  %v2397 = vadd.f32 %v1430, %v2105
  %v2398 = vadd.f32 %v1517, %v2192
  %v2399 = vadd.f32 %v1519, %v2194
  %v2400 = vadd.f32 %v1606, %v2281
  %v2401 = vadd.f32 %v1608, %v2283
  %v2402 = vadd.f32 %v1695, %v2370
  %v2403 = vadd.f32 %v1697, %v2372
  %v2404 = vadd.f32 %v1434, %v2109
  %v2405 = vadd.f32 %v1436, %v2111
  %v2406 = vadd.f32 %v1523, %v2198
  %v2407 = vadd.f32 %v1525, %v2200
  %v2408 = vadd.f32 %v1612, %v2287
  %v2409 = vadd.f32 %v1614, %v2289
  %v2410 = vadd.f32 %v1701, %v2376
  %v2411 = vadd.f32 %v1703, %v2378
  %2412 = vrot.lane.b32.xlu0 %v592, 15
  %v2413 = vpop.permute.xlu0 %2412
  %2414 = vrot.lane.b32.xlu0 %v600, 15
  %v2415 = vpop.permute.xlu0 %2414
  %2416 = vrot.lane.b32.xlu0 %v608, 15
  %v2417 = vpop.permute.xlu0 %2416
  %2418 = vrot.lane.b32.xlu0 %v616, 15
  %v2419 = vpop.permute.xlu0 %2418
  %2420 = vrot.lane.b32.xlu0 %v624, 15
  %v2421 = vpop.permute.xlu0 %2420
  %2422 = vrot.lane.b32.xlu0 %v632, 15
  %v2423 = vpop.permute.xlu0 %2422
  %2424 = vrot.lane.b32.xlu0 %v640, 15
  %v2425 = vpop.permute.xlu0 %2424
  %2426 = vrot.lane.b32.xlu0 %v648, 15
  %v2427 = vpop.permute.xlu0 %2426
  %2428 = vrot.lane.b32.xlu0 %v593, 15
  %v2429 = vpop.permute.xlu0 %2428
  %2430 = vrot.lane.b32.xlu0 %v601, 15
  %v2431 = vpop.permute.xlu0 %2430
  %2432 = vrot.lane.b32.xlu0 %v609, 15
  %v2433 = vpop.permute.xlu0 %2432
  %2434 = vrot.lane.b32.xlu0 %v617, 15
  %v2435 = vpop.permute.xlu0 %2434
  %2436 = vrot.lane.b32.xlu0 %v625, 15
  %v2437 = vpop.permute.xlu0 %2436
  %2438 = vrot.lane.b32.xlu0 %v633, 15
  %v2439 = vpop.permute.xlu0 %2438
  %2440 = vrot.lane.b32.xlu0 %v641, 15
  %v2441 = vpop.permute.xlu0 %2440
  %2442 = vrot.lane.b32.xlu0 %v649, 15
  %v2443 = vpop.permute.xlu0 %2442
  %2444 = vrot.lane.b32.xlu0 %v594, 15
  %v2445 = vpop.permute.xlu0 %2444
  %2446 = vrot.lane.b32.xlu0 %v602, 15
  %v2447 = vpop.permute.xlu0 %2446
  %2448 = vrot.lane.b32.xlu0 %v610, 15
  %v2449 = vpop.permute.xlu0 %2448
  %2450 = vrot.lane.b32.xlu0 %v618, 15
  %v2451 = vpop.permute.xlu0 %2450
  %2452 = vrot.lane.b32.xlu0 %v626, 15
  %v2453 = vpop.permute.xlu0 %2452
  %2454 = vrot.lane.b32.xlu0 %v634, 15
  %v2455 = vpop.permute.xlu0 %2454
  %2456 = vrot.lane.b32.xlu0 %v642, 15
  %v2457 = vpop.permute.xlu0 %2456
  %2458 = vrot.lane.b32.xlu0 %v650, 15
  %v2459 = vpop.permute.xlu0 %2458
  %2460 = vrot.lane.b32.xlu0 %v595, 15
  %v2461 = vpop.permute.xlu0 %2460
  %2462 = vrot.lane.b32.xlu0 %v603, 15
  %v2463 = vpop.permute.xlu0 %2462
  %2464 = vrot.lane.b32.xlu0 %v611, 15
  %v2465 = vpop.permute.xlu0 %2464
  %2466 = vrot.lane.b32.xlu0 %v619, 15
  %v2467 = vpop.permute.xlu0 %2466
  %2468 = vrot.lane.b32.xlu0 %v627, 15
  %v2469 = vpop.permute.xlu0 %2468
  %2470 = vrot.lane.b32.xlu0 %v635, 15
  %v2471 = vpop.permute.xlu0 %2470
  %2472 = vrot.lane.b32.xlu0 %v643, 15
  %v2473 = vpop.permute.xlu0 %2472
  %2474 = vrot.lane.b32.xlu0 %v651, 15
  %v2475 = vpop.permute.xlu0 %2474
  %2476 = vrot.lane.b32.xlu0 %v596, 15
  %v2477 = vpop.permute.xlu0 %2476
  %2478 = vrot.lane.b32.xlu0 %v604, 15
  %v2479 = vpop.permute.xlu0 %2478
  %2480 = vrot.lane.b32.xlu0 %v612, 15
  %v2481 = vpop.permute.xlu0 %2480
  %2482 = vrot.lane.b32.xlu0 %v620, 15
  %v2483 = vpop.permute.xlu0 %2482
  %2484 = vrot.lane.b32.xlu0 %v628, 15
  %v2485 = vpop.permute.xlu0 %2484
  %2486 = vrot.lane.b32.xlu0 %v636, 15
  %v2487 = vpop.permute.xlu0 %2486
  %2488 = vrot.lane.b32.xlu0 %v644, 15
  %v2489 = vpop.permute.xlu0 %2488
  %2490 = vrot.lane.b32.xlu0 %v652, 15
  %v2491 = vpop.permute.xlu0 %2490
  %2492 = vrot.lane.b32.xlu0 %v597, 15
  %v2493 = vpop.permute.xlu0 %2492
  %2494 = vrot.lane.b32.xlu0 %v605, 15
  %v2495 = vpop.permute.xlu0 %2494
  %2496 = vrot.lane.b32.xlu0 %v613, 15
  %v2497 = vpop.permute.xlu0 %2496
  %2498 = vrot.lane.b32.xlu0 %v621, 15
  %v2499 = vpop.permute.xlu0 %2498
  %2500 = vrot.lane.b32.xlu0 %v629, 15
  %v2501 = vpop.permute.xlu0 %2500
  %2502 = vrot.lane.b32.xlu0 %v637, 15
  %v2503 = vpop.permute.xlu0 %2502
  %2504 = vrot.lane.b32.xlu0 %v645, 15
  %v2505 = vpop.permute.xlu0 %2504
  %2506 = vrot.lane.b32.xlu0 %v653, 15
  %v2507 = vpop.permute.xlu0 %2506
  %2508 = vrot.lane.b32.xlu0 %v598, 15
  %v2509 = vpop.permute.xlu0 %2508
  %2510 = vrot.lane.b32.xlu0 %v606, 15
  %v2511 = vpop.permute.xlu0 %2510
  %2512 = vrot.lane.b32.xlu0 %v614, 15
  %v2513 = vpop.permute.xlu0 %2512
  %2514 = vrot.lane.b32.xlu0 %v622, 15
  %v2515 = vpop.permute.xlu0 %2514
  %2516 = vrot.lane.b32.xlu0 %v630, 15
  %v2517 = vpop.permute.xlu0 %2516
  %2518 = vrot.lane.b32.xlu0 %v638, 15
  %v2519 = vpop.permute.xlu0 %2518
  %2520 = vrot.lane.b32.xlu0 %v646, 15
  %v2521 = vpop.permute.xlu0 %2520
  %2522 = vrot.lane.b32.xlu0 %v654, 15
  %v2523 = vpop.permute.xlu0 %2522
  %2524 = vrot.lane.b32.xlu0 %v599, 15
  %v2525 = vpop.permute.xlu0 %2524
  %2526 = vrot.lane.b32.xlu0 %v607, 15
  %v2527 = vpop.permute.xlu0 %2526
  %2528 = vrot.lane.b32.xlu0 %v615, 15
  %v2529 = vpop.permute.xlu0 %2528
  %2530 = vrot.lane.b32.xlu0 %v623, 15
  %v2531 = vpop.permute.xlu0 %2530
  %2532 = vrot.lane.b32.xlu0 %v631, 15
  %v2533 = vpop.permute.xlu0 %2532
  %2534 = vrot.lane.b32.xlu0 %v639, 15
  %v2535 = vpop.permute.xlu0 %2534
  %2536 = vrot.lane.b32.xlu0 %v647, 15
  %v2537 = vpop.permute.xlu0 %2536
  %2538 = vrot.lane.b32.xlu0 %v655, 15
  %v2539 = vpop.permute.xlu0 %2538
  %vm2540 = vcmp.lt.s32.totalorder %v790, 15
  %v2541 = vsel %vm2540, %v2509, %v2525
  %v2542 = vsel %vm2540, %v2511, %v2527
  %v2543 = vsel %vm2540, %v2513, %v2529
  %v2544 = vsel %vm2540, %v2515, %v2531
  %v2545 = vsel %vm2540, %v2517, %v2533
  %v2546 = vsel %vm2540, %v2519, %v2535
  %v2547 = vsel %vm2540, %v2521, %v2537
  %v2548 = vsel %vm2540, %v2523, %v2539
  %v2549 = vsel %vm2540, %v2493, %v2509
  %v2550 = vsel %vm2540, %v2495, %v2511
  %v2551 = vsel %vm2540, %v2497, %v2513
  %v2552 = vsel %vm2540, %v2499, %v2515
  %v2553 = vsel %vm2540, %v2501, %v2517
  %v2554 = vsel %vm2540, %v2503, %v2519
  %v2555 = vsel %vm2540, %v2505, %v2521
  %v2556 = vsel %vm2540, %v2507, %v2523
  %v2557 = vsel %vm2540, %v2477, %v2493
  %v2558 = vsel %vm2540, %v2479, %v2495
  %v2559 = vsel %vm2540, %v2481, %v2497
  %v2560 = vsel %vm2540, %v2483, %v2499
  %v2561 = vsel %vm2540, %v2485, %v2501
  %v2562 = vsel %vm2540, %v2487, %v2503
  %v2563 = vsel %vm2540, %v2489, %v2505
  %v2564 = vsel %vm2540, %v2491, %v2507
  %v2565 = vsel %vm2540, %v2461, %v2477
  %v2566 = vsel %vm2540, %v2463, %v2479
  %v2567 = vsel %vm2540, %v2465, %v2481
  %v2568 = vsel %vm2540, %v2467, %v2483
  %v2569 = vsel %vm2540, %v2469, %v2485
  %v2570 = vsel %vm2540, %v2471, %v2487
  %v2571 = vsel %vm2540, %v2473, %v2489
  %v2572 = vsel %vm2540, %v2475, %v2491
  %v2573 = vsel %vm2540, %v2445, %v2461
  %v2574 = vsel %vm2540, %v2447, %v2463
  %v2575 = vsel %vm2540, %v2449, %v2465
  %v2576 = vsel %vm2540, %v2451, %v2467
  %v2577 = vsel %vm2540, %v2453, %v2469
  %v2578 = vsel %vm2540, %v2455, %v2471
  %v2579 = vsel %vm2540, %v2457, %v2473
  %v2580 = vsel %vm2540, %v2459, %v2475
  %v2581 = vsel %vm2540, %v2429, %v2445
  %v2582 = vsel %vm2540, %v2431, %v2447
  %v2583 = vsel %vm2540, %v2433, %v2449
  %v2584 = vsel %vm2540, %v2435, %v2451
  %v2585 = vsel %vm2540, %v2437, %v2453
  %v2586 = vsel %vm2540, %v2439, %v2455
  %v2587 = vsel %vm2540, %v2441, %v2457
  %v2588 = vsel %vm2540, %v2443, %v2459
  %v2589 = vsel %vm2540, %v2413, %v2429
  %v2590 = vsel %vm2540, %v2415, %v2431
  %v2591 = vsel %vm2540, %v2417, %v2433
  %v2592 = vsel %vm2540, %v2419, %v2435
  %v2593 = vsel %vm2540, %v2421, %v2437
  %v2594 = vsel %vm2540, %v2423, %v2439
  %v2595 = vsel %vm2540, %v2425, %v2441
  %v2596 = vsel %vm2540, %v2427, %v2443
  %v2597 = vsel %vm2540, %v2525, %v2413
  %v2598 = vsel %vm2540, %v2527, %v2415
  %v2599 = vsel %vm2540, %v2529, %v2417
  %v2600 = vsel %vm2540, %v2531, %v2419
  %v2601 = vsel %vm2540, %v2533, %v2421
  %v2602 = vsel %vm2540, %v2535, %v2423
  %v2603 = vsel %vm2540, %v2537, %v2425
  %v2604 = vsel %vm2540, %v2539, %v2427
  %s2605 = scalar_lea.vmem %s1, 2
  %v2606 = vld [vmem:[%s2605] ss:$8 sm:$0xf]
  %v2607 = vld [vmem:[%s2605] ss:$8 sm:$0xf0]
  %v2608 = vor.u32 %v2606, %v2607
  %v2610 = vlaneseq
  %v2611 = vshrl.u32 %v2610, 7
  %v2612 = vsub.s32 0, %v2611
  %v2613 = vrot.slane %v2608, %v2612
  %v2614 = vlaneseq
  %v2615 = vshrl.u32 %v2614, 7
  %v2616 = vsub.s32 1, %v2615
  %v2617 = vrot.slane %v2608, %v2616
  %v2618 = vlaneseq
  %v2619 = vshrl.u32 %v2618, 7
  %v2620 = vsub.s32 2, %v2619
  %v2621 = vrot.slane %v2608, %v2620
  %v2622 = vlaneseq
  %v2623 = vshrl.u32 %v2622, 7
  %v2624 = vsub.s32 3, %v2623
  %v2625 = vrot.slane %v2608, %v2624
  %v2626 = vlaneseq
  %v2627 = vshrl.u32 %v2626, 7
  %v2628 = vsub.s32 4, %v2627
  %v2629 = vrot.slane %v2608, %v2628
  %v2630 = vlaneseq
  %v2631 = vshrl.u32 %v2630, 7
  %v2632 = vsub.s32 5, %v2631
  %v2633 = vrot.slane %v2608, %v2632
  %v2634 = vlaneseq
  %v2635 = vshrl.u32 %v2634, 7
  %v2636 = vsub.s32 6, %v2635
  %v2637 = vrot.slane %v2608, %v2636
  %v2638 = vlaneseq
  %v2639 = vshrl.u32 %v2638, 7
  %v2640 = vsub.s32 7, %v2639
  %v2641 = vrot.slane %v2608, %v2640
  %v2650 = vmul.f32 %v2597, %v2613
  %v2651 = vmul.f32 %v2589, %v2617
  %v2652 = vmul.f32 %v2581, %v2621
  %v2653 = vmul.f32 %v2573, %v2625
  %v2654 = vmul.f32 %v2565, %v2629
  %v2655 = vmul.f32 %v2557, %v2633
  %v2656 = vmul.f32 %v2549, %v2637
  %v2657 = vmul.f32 %v2541, %v2641
  %v2658 = vmul.f32 %v2598, %v2613
  %v2659 = vmul.f32 %v2590, %v2617
  %v2660 = vmul.f32 %v2582, %v2621
  %v2661 = vmul.f32 %v2574, %v2625
  %v2662 = vmul.f32 %v2566, %v2629
  %v2663 = vmul.f32 %v2558, %v2633
  %v2664 = vmul.f32 %v2550, %v2637
  %v2665 = vmul.f32 %v2542, %v2641
  %v2666 = vmul.f32 %v2599, %v2613
  %v2667 = vmul.f32 %v2591, %v2617
  %v2668 = vmul.f32 %v2583, %v2621
  %v2669 = vmul.f32 %v2575, %v2625
  %v2670 = vmul.f32 %v2567, %v2629
  %v2671 = vmul.f32 %v2559, %v2633
  %v2672 = vmul.f32 %v2551, %v2637
  %v2673 = vmul.f32 %v2543, %v2641
  %v2674 = vmul.f32 %v2600, %v2613
  %v2675 = vmul.f32 %v2592, %v2617
  %v2676 = vmul.f32 %v2584, %v2621
  %v2677 = vmul.f32 %v2576, %v2625
  %v2678 = vmul.f32 %v2568, %v2629
  %v2679 = vmul.f32 %v2560, %v2633
  %v2680 = vmul.f32 %v2552, %v2637
  %v2681 = vmul.f32 %v2544, %v2641
  %v2682 = vmul.f32 %v2601, %v2613
  %v2683 = vmul.f32 %v2593, %v2617
  %v2684 = vmul.f32 %v2585, %v2621
  %v2685 = vmul.f32 %v2577, %v2625
  %v2686 = vmul.f32 %v2569, %v2629
  %v2687 = vmul.f32 %v2561, %v2633
  %v2688 = vmul.f32 %v2553, %v2637
  %v2689 = vmul.f32 %v2545, %v2641
  %v2690 = vmul.f32 %v2602, %v2613
  %v2691 = vmul.f32 %v2594, %v2617
  %v2692 = vmul.f32 %v2586, %v2621
  %v2693 = vmul.f32 %v2578, %v2625
  %v2694 = vmul.f32 %v2570, %v2629
  %v2695 = vmul.f32 %v2562, %v2633
  %v2696 = vmul.f32 %v2554, %v2637
  %v2697 = vmul.f32 %v2546, %v2641
  %v2698 = vmul.f32 %v2603, %v2613
  %v2699 = vmul.f32 %v2595, %v2617
  %v2700 = vmul.f32 %v2587, %v2621
  %v2701 = vmul.f32 %v2579, %v2625
  %v2702 = vmul.f32 %v2571, %v2629
  %v2703 = vmul.f32 %v2563, %v2633
  %v2704 = vmul.f32 %v2555, %v2637
  %v2705 = vmul.f32 %v2547, %v2641
  %v2706 = vmul.f32 %v2604, %v2613
  %v2707 = vmul.f32 %v2596, %v2617
  %v2708 = vmul.f32 %v2588, %v2621
  %v2709 = vmul.f32 %v2580, %v2625
  %v2710 = vmul.f32 %v2572, %v2629
  %v2711 = vmul.f32 %v2564, %v2633
  %v2712 = vmul.f32 %v2556, %v2637
  %v2713 = vmul.f32 %v2548, %v2641
  %s2714 = scalar_lea.vmem %s4, 64
  %v2715 = vld [vmem:[%s2714] sm:$0xff]
  %v2716 = vld [vmem:[%s2714 + $0x8] sm:$0xff]
  %v2717 = vld [vmem:[%s2714 + $0x10] sm:$0xff]
  %v2718 = vld [vmem:[%s2714 + $0x18] sm:$0xff]
  %v2720 = vsel %vm968, %v2715, 0
  %v2723 = vsel %vm968, %v2716, 0
  %v2726 = vsel %vm968, %v2717, 0
  %v2729 = vsel %vm968, %v2718, 0
  %2731 = vmatprep.subr.mxu0 %v2651
  %2732 = vmatpush1.msra.mxu0 %v2650
  %2733 = vmatprep.subr.mxu0 %v2659
  %2734 = vmatpush1.msra.mxu0 %v2658
  %2735 = vmatprep.subr.mxu0 %v2667
  %2736 = vmatpush1.msra.mxu0 %v2666
  %2737 = vmatprep.subr.mxu0 %v2675
  %2738 = vmatpush1.msra.mxu0 %v2674
  %2739 = vmatprep.subr.mxu0 %v2683
  %2740 = vmatpush1.msra.mxu0 %v2682
  %2741 = vmatprep.subr.mxu0 %v2691
  %2742 = vmatpush1.msra.mxu0 %v2690
  %2743 = vmatprep.subr.mxu0 %v2699
  %2744 = vmatpush1.msra.mxu0 %v2698
  %2745 = vmatprep.subr.mxu0 %v2707
  %2746 = vmatpush1.msra.mxu0 %v2706
  %2747 = vmatprep.subr.mxu0 0.0
  %2748 = vmatpush1.msra.mxu0 0.0
  %2749 = vmatprep.subr.mxu0 0.0
  %2750 = vmatpush1.msra.mxu0 0.0
  %2751 = vmatprep.subr.mxu0 0.0
  %2752 = vmatpush1.msra.mxu0 0.0
  %2753 = vmatprep.subr.mxu0 0.0
  %2754 = vmatpush1.msra.mxu0 0.0
  %2755 = vmatprep.subr.mxu0 0.0
  %2756 = vmatpush1.msra.mxu0 0.0
  %2757 = vmatprep.subr.mxu0 0.0
  %2758 = vmatpush1.msra.mxu0 0.0
  %2759 = vmatprep.subr.mxu0 0.0
  %2760 = vmatpush1.msra.mxu0 0.0
  %2761 = vmatprep.subr.mxu0 0.0
  %2762 = vmatpush1.msra.mxu0 0.0
  %2763 = vmatprep.subr.mxu0 0.0
  %2764 = vmatpush1.msra.mxu0 0.0
  %2765 = vmatprep.subr.mxu0 0.0
  %2766 = vmatpush1.msra.mxu0 0.0
  %2767 = vmatprep.subr.mxu0 0.0
  %2768 = vmatpush1.msra.mxu0 0.0
  %2769 = vmatprep.subr.mxu0 0.0
  %2770 = vmatpush1.msra.mxu0 0.0
  %2771 = vmatprep.subr.mxu0 0.0
  %2772 = vmatpush1.msra.mxu0 0.0
  %2773 = vmatprep.subr.mxu0 0.0
  %2774 = vmatpush1.msra.mxu0 0.0
  %2775 = vmatprep.subr.mxu0 0.0
  %2776 = vmatpush1.msra.mxu0 0.0
  %2777 = vmatprep.subr.mxu0 0.0
  %2778 = vmatpush1.msra.mxu0 0.0
  %2779 = vmatprep.subr.mxu0 0.0
  %2780 = vmatpush1.msra.mxu0 0.0
  %2781 = vmatprep.subr.mxu0 0.0
  %2782 = vmatpush1.msra.mxu0 0.0
  %2783 = vmatprep.subr.mxu0 0.0
  %2784 = vmatpush1.msra.mxu0 0.0
  %2785 = vmatprep.subr.mxu0 0.0
  %2786 = vmatpush1.msra.mxu0 0.0
  %2787 = vmatprep.subr.mxu0 0.0
  %2788 = vmatpush1.msra.mxu0 0.0
  %2789 = vmatprep.subr.mxu0 0.0
  %2790 = vmatpush1.msra.mxu0 0.0
  %2791 = vmatprep.subr.mxu0 0.0
  %2792 = vmatpush1.msra.mxu0 0.0
  %2793 = vmatprep.subr.mxu0 0.0
  %2794 = vmatpush1.msra.mxu0 0.0
  %2795 = vmatprep.mubr.f32.mxu0 0.0
  %2796 = vmatmul.mubr.f32.gmra.mrb[0].mxu0 %v2720
  %v2797 = vpop.f32.mrb[0].mxu0
  %v2798 = vadd.f32 0.0, %v2797
  %v2799 = vpop.f32.mrb[0].mxu0
  %v2800 = vadd.f32 0.0, %v2799
  %2801 = vmatprep.mubr.f32.mxu0 0.0
  %2802 = vmatmul.mubr.f32.gmra.mrb[0].mxu0 %v2723
  %v2803 = vpop.f32.mrb[0].mxu0
  %v2804 = vadd.f32 0.0, %v2803
  %v2805 = vpop.f32.mrb[0].mxu0
  %v2806 = vadd.f32 0.0, %v2805
  %2807 = vmatprep.mubr.f32.mxu0 0.0
  %2808 = vmatmul.mubr.f32.gmra.mrb[0].mxu0 %v2726
  %v2809 = vpop.f32.mrb[0].mxu0
  %v2810 = vadd.f32 0.0, %v2809
  %v2811 = vpop.f32.mrb[0].mxu0
  %v2812 = vadd.f32 0.0, %v2811
  %2813 = vmatprep.mubr.f32.mxu0 0.0
  %2814 = vmatmul.mubr.f32.gmra.mrb[0].mxu0 %v2729
  %v2815 = vpop.f32.mrb[0].mxu0
  %v2816 = vadd.f32 0.0, %v2815
  %v2817 = vpop.f32.mrb[0].mxu0
  %v2818 = vadd.f32 0.0, %v2817
  %2819 = vdwg.mxu0
  %2820 = vmatprep.subr.mxu0 %v2653
  %2821 = vmatpush1.msra.mxu0 %v2652
  %2822 = vmatprep.subr.mxu0 %v2661
  %2823 = vmatpush1.msra.mxu0 %v2660
  %2824 = vmatprep.subr.mxu0 %v2669
  %2825 = vmatpush1.msra.mxu0 %v2668
  %2826 = vmatprep.subr.mxu0 %v2677
  %2827 = vmatpush1.msra.mxu0 %v2676
  %2828 = vmatprep.subr.mxu0 %v2685
  %2829 = vmatpush1.msra.mxu0 %v2684
  %2830 = vmatprep.subr.mxu0 %v2693
  %2831 = vmatpush1.msra.mxu0 %v2692
  %2832 = vmatprep.subr.mxu0 %v2701
  %2833 = vmatpush1.msra.mxu0 %v2700
  %2834 = vmatprep.subr.mxu0 %v2709
  %2835 = vmatpush1.msra.mxu0 %v2708
  %2836 = vmatprep.subr.mxu0 0.0
  %2837 = vmatpush1.msra.mxu0 0.0
  %2838 = vmatprep.subr.mxu0 0.0
  %2839 = vmatpush1.msra.mxu0 0.0
  %2840 = vmatprep.subr.mxu0 0.0
  %2841 = vmatpush1.msra.mxu0 0.0
  %2842 = vmatprep.subr.mxu0 0.0
  %2843 = vmatpush1.msra.mxu0 0.0
  %2844 = vmatprep.subr.mxu0 0.0
  %2845 = vmatpush1.msra.mxu0 0.0
  %2846 = vmatprep.subr.mxu0 0.0
  %2847 = vmatpush1.msra.mxu0 0.0
  %2848 = vmatprep.subr.mxu0 0.0
  %2849 = vmatpush1.msra.mxu0 0.0
  %2850 = vmatprep.subr.mxu0 0.0
  %2851 = vmatpush1.msra.mxu0 0.0
  %2852 = vmatprep.subr.mxu0 0.0
  %2853 = vmatpush1.msra.mxu0 0.0
  %2854 = vmatprep.subr.mxu0 0.0
  %2855 = vmatpush1.msra.mxu0 0.0
  %2856 = vmatprep.subr.mxu0 0.0
  %2857 = vmatpush1.msra.mxu0 0.0
  %2858 = vmatprep.subr.mxu0 0.0
  %2859 = vmatpush1.msra.mxu0 0.0
  %2860 = vmatprep.subr.mxu0 0.0
  %2861 = vmatpush1.msra.mxu0 0.0
  %2862 = vmatprep.subr.mxu0 0.0
  %2863 = vmatpush1.msra.mxu0 0.0
  %2864 = vmatprep.subr.mxu0 0.0
  %2865 = vmatpush1.msra.mxu0 0.0
  %2866 = vmatprep.subr.mxu0 0.0
  %2867 = vmatpush1.msra.mxu0 0.0
  %2868 = vmatprep.subr.mxu0 0.0
  %2869 = vmatpush1.msra.mxu0 0.0
  %2870 = vmatprep.subr.mxu0 0.0
  %2871 = vmatpush1.msra.mxu0 0.0
  %2872 = vmatprep.subr.mxu0 0.0
  %2873 = vmatpush1.msra.mxu0 0.0
  %2874 = vmatprep.subr.mxu0 0.0
  %2875 = vmatpush1.msra.mxu0 0.0
  %2876 = vmatprep.subr.mxu0 0.0
  %2877 = vmatpush1.msra.mxu0 0.0
  %2878 = vmatprep.subr.mxu0 0.0
  %2879 = vmatpush1.msra.mxu0 0.0
  %2880 = vmatprep.subr.mxu0 0.0
  %2881 = vmatpush1.msra.mxu0 0.0
  %2882 = vmatprep.subr.mxu0 0.0
  %2883 = vmatpush1.msra.mxu0 0.0
  %2884 = vmatprep.mubr.f32.mxu0 0.0
  %2885 = vmatmul.mubr.f32.gmra.mrb[0].mxu0 %v2720
  %v2886 = vpop.f32.mrb[0].mxu0
  %v2887 = vadd.f32 0.0, %v2886
  %v2888 = vpop.f32.mrb[0].mxu0
  %v2889 = vadd.f32 0.0, %v2888
  %2890 = vmatprep.mubr.f32.mxu0 0.0
  %2891 = vmatmul.mubr.f32.gmra.mrb[0].mxu0 %v2723
  %v2892 = vpop.f32.mrb[0].mxu0
  %v2893 = vadd.f32 0.0, %v2892
  %v2894 = vpop.f32.mrb[0].mxu0
  %v2895 = vadd.f32 0.0, %v2894
  %2896 = vmatprep.mubr.f32.mxu0 0.0
  %2897 = vmatmul.mubr.f32.gmra.mrb[0].mxu0 %v2726
  %v2898 = vpop.f32.mrb[0].mxu0
  %v2899 = vadd.f32 0.0, %v2898
  %v2900 = vpop.f32.mrb[0].mxu0
  %v2901 = vadd.f32 0.0, %v2900
  %2902 = vmatprep.mubr.f32.mxu0 0.0
  %2903 = vmatmul.mubr.f32.gmra.mrb[0].mxu0 %v2729
  %v2904 = vpop.f32.mrb[0].mxu0
  %v2905 = vadd.f32 0.0, %v2904
  %v2906 = vpop.f32.mrb[0].mxu0
  %v2907 = vadd.f32 0.0, %v2906
  %2908 = vdwg.mxu0
  %2909 = vmatprep.subr.mxu0 %v2655
  %2910 = vmatpush1.msra.mxu0 %v2654
  %2911 = vmatprep.subr.mxu0 %v2663
  %2912 = vmatpush1.msra.mxu0 %v2662
  %2913 = vmatprep.subr.mxu0 %v2671
  %2914 = vmatpush1.msra.mxu0 %v2670
  %2915 = vmatprep.subr.mxu0 %v2679
  %2916 = vmatpush1.msra.mxu0 %v2678
  %2917 = vmatprep.subr.mxu0 %v2687
  %2918 = vmatpush1.msra.mxu0 %v2686
  %2919 = vmatprep.subr.mxu0 %v2695
  %2920 = vmatpush1.msra.mxu0 %v2694
  %2921 = vmatprep.subr.mxu0 %v2703
  %2922 = vmatpush1.msra.mxu0 %v2702
  %2923 = vmatprep.subr.mxu0 %v2711
  %2924 = vmatpush1.msra.mxu0 %v2710
  %2925 = vmatprep.subr.mxu0 0.0
  %2926 = vmatpush1.msra.mxu0 0.0
  %2927 = vmatprep.subr.mxu0 0.0
  %2928 = vmatpush1.msra.mxu0 0.0
  %2929 = vmatprep.subr.mxu0 0.0
  %2930 = vmatpush1.msra.mxu0 0.0
  %2931 = vmatprep.subr.mxu0 0.0
  %2932 = vmatpush1.msra.mxu0 0.0
  %2933 = vmatprep.subr.mxu0 0.0
  %2934 = vmatpush1.msra.mxu0 0.0
  %2935 = vmatprep.subr.mxu0 0.0
  %2936 = vmatpush1.msra.mxu0 0.0
  %2937 = vmatprep.subr.mxu0 0.0
  %2938 = vmatpush1.msra.mxu0 0.0
  %2939 = vmatprep.subr.mxu0 0.0
  %2940 = vmatpush1.msra.mxu0 0.0
  %2941 = vmatprep.subr.mxu0 0.0
  %2942 = vmatpush1.msra.mxu0 0.0
  %2943 = vmatprep.subr.mxu0 0.0
  %2944 = vmatpush1.msra.mxu0 0.0
  %2945 = vmatprep.subr.mxu0 0.0
  %2946 = vmatpush1.msra.mxu0 0.0
  %2947 = vmatprep.subr.mxu0 0.0
  %2948 = vmatpush1.msra.mxu0 0.0
  %2949 = vmatprep.subr.mxu0 0.0
  %2950 = vmatpush1.msra.mxu0 0.0
  %2951 = vmatprep.subr.mxu0 0.0
  %2952 = vmatpush1.msra.mxu0 0.0
  %2953 = vmatprep.subr.mxu0 0.0
  %2954 = vmatpush1.msra.mxu0 0.0
  %2955 = vmatprep.subr.mxu0 0.0
  %2956 = vmatpush1.msra.mxu0 0.0
  %2957 = vmatprep.subr.mxu0 0.0
  %2958 = vmatpush1.msra.mxu0 0.0
  %2959 = vmatprep.subr.mxu0 0.0
  %2960 = vmatpush1.msra.mxu0 0.0
  %2961 = vmatprep.subr.mxu0 0.0
  %2962 = vmatpush1.msra.mxu0 0.0
  %2963 = vmatprep.subr.mxu0 0.0
  %2964 = vmatpush1.msra.mxu0 0.0
  %2965 = vmatprep.subr.mxu0 0.0
  %2966 = vmatpush1.msra.mxu0 0.0
  %2967 = vmatprep.subr.mxu0 0.0
  %2968 = vmatpush1.msra.mxu0 0.0
  %2969 = vmatprep.subr.mxu0 0.0
  %2970 = vmatpush1.msra.mxu0 0.0
  %2971 = vmatprep.subr.mxu0 0.0
  %2972 = vmatpush1.msra.mxu0 0.0
  %2973 = vmatprep.mubr.f32.mxu0 0.0
  %2974 = vmatmul.mubr.f32.gmra.mrb[0].mxu0 %v2720
  %v2975 = vpop.f32.mrb[0].mxu0
  %v2976 = vadd.f32 0.0, %v2975
  %v2977 = vpop.f32.mrb[0].mxu0
  %v2978 = vadd.f32 0.0, %v2977
  %2979 = vmatprep.mubr.f32.mxu0 0.0
  %2980 = vmatmul.mubr.f32.gmra.mrb[0].mxu0 %v2723
  %v2981 = vpop.f32.mrb[0].mxu0
  %v2982 = vadd.f32 0.0, %v2981
  %v2983 = vpop.f32.mrb[0].mxu0
  %v2984 = vadd.f32 0.0, %v2983
  %2985 = vmatprep.mubr.f32.mxu0 0.0
  %2986 = vmatmul.mubr.f32.gmra.mrb[0].mxu0 %v2726
  %v2987 = vpop.f32.mrb[0].mxu0
  %v2988 = vadd.f32 0.0, %v2987
  %v2989 = vpop.f32.mrb[0].mxu0
  %v2990 = vadd.f32 0.0, %v2989
  %2991 = vmatprep.mubr.f32.mxu0 0.0
  %2992 = vmatmul.mubr.f32.gmra.mrb[0].mxu0 %v2729
  %v2993 = vpop.f32.mrb[0].mxu0
  %v2994 = vadd.f32 0.0, %v2993
  %v2995 = vpop.f32.mrb[0].mxu0
  %v2996 = vadd.f32 0.0, %v2995
  %2997 = vdwg.mxu0
  %2998 = vmatprep.subr.mxu0 %v2657
  %2999 = vmatpush1.msra.mxu0 %v2656
  %3000 = vmatprep.subr.mxu0 %v2665
  %3001 = vmatpush1.msra.mxu0 %v2664
  %3002 = vmatprep.subr.mxu0 %v2673
  %3003 = vmatpush1.msra.mxu0 %v2672
  %3004 = vmatprep.subr.mxu0 %v2681
  %3005 = vmatpush1.msra.mxu0 %v2680
  %3006 = vmatprep.subr.mxu0 %v2689
  %3007 = vmatpush1.msra.mxu0 %v2688
  %3008 = vmatprep.subr.mxu0 %v2697
  %3009 = vmatpush1.msra.mxu0 %v2696
  %3010 = vmatprep.subr.mxu0 %v2705
  %3011 = vmatpush1.msra.mxu0 %v2704
  %3012 = vmatprep.subr.mxu0 %v2713
  %3013 = vmatpush1.msra.mxu0 %v2712
  %3014 = vmatprep.subr.mxu0 0.0
  %3015 = vmatpush1.msra.mxu0 0.0
  %3016 = vmatprep.subr.mxu0 0.0
  %3017 = vmatpush1.msra.mxu0 0.0
  %3018 = vmatprep.subr.mxu0 0.0
  %3019 = vmatpush1.msra.mxu0 0.0
  %3020 = vmatprep.subr.mxu0 0.0
  %3021 = vmatpush1.msra.mxu0 0.0
  %3022 = vmatprep.subr.mxu0 0.0
  %3023 = vmatpush1.msra.mxu0 0.0
  %3024 = vmatprep.subr.mxu0 0.0
  %3025 = vmatpush1.msra.mxu0 0.0
  %3026 = vmatprep.subr.mxu0 0.0
  %3027 = vmatpush1.msra.mxu0 0.0
  %3028 = vmatprep.subr.mxu0 0.0
  %3029 = vmatpush1.msra.mxu0 0.0
  %3030 = vmatprep.subr.mxu0 0.0
  %3031 = vmatpush1.msra.mxu0 0.0
  %3032 = vmatprep.subr.mxu0 0.0
  %3033 = vmatpush1.msra.mxu0 0.0
  %3034 = vmatprep.subr.mxu0 0.0
  %3035 = vmatpush1.msra.mxu0 0.0
  %3036 = vmatprep.subr.mxu0 0.0
  %3037 = vmatpush1.msra.mxu0 0.0
  %3038 = vmatprep.subr.mxu0 0.0
  %3039 = vmatpush1.msra.mxu0 0.0
  %3040 = vmatprep.subr.mxu0 0.0
  %3041 = vmatpush1.msra.mxu0 0.0
  %3042 = vmatprep.subr.mxu0 0.0
  %3043 = vmatpush1.msra.mxu0 0.0
  %3044 = vmatprep.subr.mxu0 0.0
  %3045 = vmatpush1.msra.mxu0 0.0
  %3046 = vmatprep.subr.mxu0 0.0
  %3047 = vmatpush1.msra.mxu0 0.0
  %3048 = vmatprep.subr.mxu0 0.0
  %3049 = vmatpush1.msra.mxu0 0.0
  %3050 = vmatprep.subr.mxu0 0.0
  %3051 = vmatpush1.msra.mxu0 0.0
  %3052 = vmatprep.subr.mxu0 0.0
  %3053 = vmatpush1.msra.mxu0 0.0
  %3054 = vmatprep.subr.mxu0 0.0
  %3055 = vmatpush1.msra.mxu0 0.0
  %3056 = vmatprep.subr.mxu0 0.0
  %3057 = vmatpush1.msra.mxu0 0.0
  %3058 = vmatprep.subr.mxu0 0.0
  %3059 = vmatpush1.msra.mxu0 0.0
  %3060 = vmatprep.subr.mxu0 0.0
  %3061 = vmatpush1.msra.mxu0 0.0
  %3062 = vmatprep.mubr.f32.mxu0 0.0
  %3063 = vmatmul.mubr.f32.gmra.mrb[0].mxu0 %v2720
  %v3064 = vpop.f32.mrb[0].mxu0
  %v3065 = vadd.f32 0.0, %v3064
  %v3066 = vpop.f32.mrb[0].mxu0
  %v3067 = vadd.f32 0.0, %v3066
  %3068 = vmatprep.mubr.f32.mxu0 0.0
  %3069 = vmatmul.mubr.f32.gmra.mrb[0].mxu0 %v2723
  %v3070 = vpop.f32.mrb[0].mxu0
  %v3071 = vadd.f32 0.0, %v3070
  %v3072 = vpop.f32.mrb[0].mxu0
  %v3073 = vadd.f32 0.0, %v3072
  %3074 = vmatprep.mubr.f32.mxu0 0.0
  %3075 = vmatmul.mubr.f32.gmra.mrb[0].mxu0 %v2726
  %v3076 = vpop.f32.mrb[0].mxu0
  %v3077 = vadd.f32 0.0, %v3076
  %v3078 = vpop.f32.mrb[0].mxu0
  %v3079 = vadd.f32 0.0, %v3078
  %3080 = vmatprep.mubr.f32.mxu0 0.0
  %3081 = vmatmul.mubr.f32.gmra.mrb[0].mxu0 %v2729
  %v3082 = vpop.f32.mrb[0].mxu0
  %v3083 = vadd.f32 0.0, %v3082
  %v3084 = vpop.f32.mrb[0].mxu0
  %v3085 = vadd.f32 0.0, %v3084
  %3086 = vdwg.mxu0
  %v3087 = vadd.f32 %v2380, %v2798
  %v3088 = vadd.f32 %v2381, %v2800
  %v3089 = vadd.f32 %v2382, %v2887
  %v3090 = vadd.f32 %v2383, %v2889
  %v3091 = vadd.f32 %v2384, %v2976
  %v3092 = vadd.f32 %v2385, %v2978
  %v3093 = vadd.f32 %v2386, %v3065
  %v3094 = vadd.f32 %v2387, %v3067
  %v3095 = vadd.f32 %v2388, %v2804
  %v3096 = vadd.f32 %v2389, %v2806
  %v3097 = vadd.f32 %v2390, %v2893
  %v3098 = vadd.f32 %v2391, %v2895
  %v3099 = vadd.f32 %v2392, %v2982
  %v3100 = vadd.f32 %v2393, %v2984
  %v3101 = vadd.f32 %v2394, %v3071
  %v3102 = vadd.f32 %v2395, %v3073
  %v3103 = vadd.f32 %v2396, %v2810
  %v3104 = vadd.f32 %v2397, %v2812
  %v3105 = vadd.f32 %v2398, %v2899
  %v3106 = vadd.f32 %v2399, %v2901
  %v3107 = vadd.f32 %v2400, %v2988
  %v3108 = vadd.f32 %v2401, %v2990
  %v3109 = vadd.f32 %v2402, %v3077
  %v3110 = vadd.f32 %v2403, %v3079
  %v3111 = vadd.f32 %v2404, %v2816
  %v3112 = vadd.f32 %v2405, %v2818
  %v3113 = vadd.f32 %v2406, %v2905
  %v3114 = vadd.f32 %v2407, %v2907
  %v3115 = vadd.f32 %v2408, %v2994
  %v3116 = vadd.f32 %v2409, %v2996
  %v3117 = vadd.f32 %v2410, %v3083
  %v3118 = vadd.f32 %v2411, %v3085
  %3119 = vrot.lane.b32.xlu0 %v592, 1
  %v3120 = vpop.permute.xlu0 %3119
  %3121 = vrot.lane.b32.xlu0 %v600, 1
  %v3122 = vpop.permute.xlu0 %3121
  %3123 = vrot.lane.b32.xlu0 %v608, 1
  %v3124 = vpop.permute.xlu0 %3123
  %3125 = vrot.lane.b32.xlu0 %v616, 1
  %v3126 = vpop.permute.xlu0 %3125
  %3127 = vrot.lane.b32.xlu0 %v624, 1
  %v3128 = vpop.permute.xlu0 %3127
  %3129 = vrot.lane.b32.xlu0 %v632, 1
  %v3130 = vpop.permute.xlu0 %3129
  %3131 = vrot.lane.b32.xlu0 %v640, 1
  %v3132 = vpop.permute.xlu0 %3131
  %3133 = vrot.lane.b32.xlu0 %v648, 1
  %v3134 = vpop.permute.xlu0 %3133
  %3135 = vrot.lane.b32.xlu0 %v593, 1
  %v3136 = vpop.permute.xlu0 %3135
  %3137 = vrot.lane.b32.xlu0 %v601, 1
  %v3138 = vpop.permute.xlu0 %3137
  %3139 = vrot.lane.b32.xlu0 %v609, 1
  %v3140 = vpop.permute.xlu0 %3139
  %3141 = vrot.lane.b32.xlu0 %v617, 1
  %v3142 = vpop.permute.xlu0 %3141
  %3143 = vrot.lane.b32.xlu0 %v625, 1
  %v3144 = vpop.permute.xlu0 %3143
  %3145 = vrot.lane.b32.xlu0 %v633, 1
  %v3146 = vpop.permute.xlu0 %3145
  %3147 = vrot.lane.b32.xlu0 %v641, 1
  %v3148 = vpop.permute.xlu0 %3147
  %3149 = vrot.lane.b32.xlu0 %v649, 1
  %v3150 = vpop.permute.xlu0 %3149
  %3151 = vrot.lane.b32.xlu0 %v594, 1
  %v3152 = vpop.permute.xlu0 %3151
  %3153 = vrot.lane.b32.xlu0 %v602, 1
  %v3154 = vpop.permute.xlu0 %3153
  %3155 = vrot.lane.b32.xlu0 %v610, 1
  %v3156 = vpop.permute.xlu0 %3155
  %3157 = vrot.lane.b32.xlu0 %v618, 1
  %v3158 = vpop.permute.xlu0 %3157
  %3159 = vrot.lane.b32.xlu0 %v626, 1
  %v3160 = vpop.permute.xlu0 %3159
  %3161 = vrot.lane.b32.xlu0 %v634, 1
  %v3162 = vpop.permute.xlu0 %3161
  %3163 = vrot.lane.b32.xlu0 %v642, 1
  %v3164 = vpop.permute.xlu0 %3163
  %3165 = vrot.lane.b32.xlu0 %v650, 1
  %v3166 = vpop.permute.xlu0 %3165
  %3167 = vrot.lane.b32.xlu0 %v595, 1
  %v3168 = vpop.permute.xlu0 %3167
  %3169 = vrot.lane.b32.xlu0 %v603, 1
  %v3170 = vpop.permute.xlu0 %3169
  %3171 = vrot.lane.b32.xlu0 %v611, 1
  %v3172 = vpop.permute.xlu0 %3171
  %3173 = vrot.lane.b32.xlu0 %v619, 1
  %v3174 = vpop.permute.xlu0 %3173
  %3175 = vrot.lane.b32.xlu0 %v627, 1
  %v3176 = vpop.permute.xlu0 %3175
  %3177 = vrot.lane.b32.xlu0 %v635, 1
  %v3178 = vpop.permute.xlu0 %3177
  %3179 = vrot.lane.b32.xlu0 %v643, 1
  %v3180 = vpop.permute.xlu0 %3179
  %3181 = vrot.lane.b32.xlu0 %v651, 1
  %v3182 = vpop.permute.xlu0 %3181
  %3183 = vrot.lane.b32.xlu0 %v596, 1
  %v3184 = vpop.permute.xlu0 %3183
  %3185 = vrot.lane.b32.xlu0 %v604, 1
  %v3186 = vpop.permute.xlu0 %3185
  %3187 = vrot.lane.b32.xlu0 %v612, 1
  %v3188 = vpop.permute.xlu0 %3187
  %3189 = vrot.lane.b32.xlu0 %v620, 1
  %v3190 = vpop.permute.xlu0 %3189
  %3191 = vrot.lane.b32.xlu0 %v628, 1
  %v3192 = vpop.permute.xlu0 %3191
  %3193 = vrot.lane.b32.xlu0 %v636, 1
  %v3194 = vpop.permute.xlu0 %3193
  %3195 = vrot.lane.b32.xlu0 %v644, 1
  %v3196 = vpop.permute.xlu0 %3195
  %3197 = vrot.lane.b32.xlu0 %v652, 1
  %v3198 = vpop.permute.xlu0 %3197
  %3199 = vrot.lane.b32.xlu0 %v597, 1
  %v3200 = vpop.permute.xlu0 %3199
  %3201 = vrot.lane.b32.xlu0 %v605, 1
  %v3202 = vpop.permute.xlu0 %3201
  %3203 = vrot.lane.b32.xlu0 %v613, 1
  %v3204 = vpop.permute.xlu0 %3203
  %3205 = vrot.lane.b32.xlu0 %v621, 1
  %v3206 = vpop.permute.xlu0 %3205
  %3207 = vrot.lane.b32.xlu0 %v629, 1
  %v3208 = vpop.permute.xlu0 %3207
  %3209 = vrot.lane.b32.xlu0 %v637, 1
  %v3210 = vpop.permute.xlu0 %3209
  %3211 = vrot.lane.b32.xlu0 %v645, 1
  %v3212 = vpop.permute.xlu0 %3211
  %3213 = vrot.lane.b32.xlu0 %v653, 1
  %v3214 = vpop.permute.xlu0 %3213
  %3215 = vrot.lane.b32.xlu0 %v598, 1
  %v3216 = vpop.permute.xlu0 %3215
  %3217 = vrot.lane.b32.xlu0 %v606, 1
  %v3218 = vpop.permute.xlu0 %3217
  %3219 = vrot.lane.b32.xlu0 %v614, 1
  %v3220 = vpop.permute.xlu0 %3219
  %3221 = vrot.lane.b32.xlu0 %v622, 1
  %v3222 = vpop.permute.xlu0 %3221
  %3223 = vrot.lane.b32.xlu0 %v630, 1
  %v3224 = vpop.permute.xlu0 %3223
  %3225 = vrot.lane.b32.xlu0 %v638, 1
  %v3226 = vpop.permute.xlu0 %3225
  %3227 = vrot.lane.b32.xlu0 %v646, 1
  %v3228 = vpop.permute.xlu0 %3227
  %3229 = vrot.lane.b32.xlu0 %v654, 1
  %v3230 = vpop.permute.xlu0 %3229
  %3231 = vrot.lane.b32.xlu0 %v599, 1
  %v3232 = vpop.permute.xlu0 %3231
  %3233 = vrot.lane.b32.xlu0 %v607, 1
  %v3234 = vpop.permute.xlu0 %3233
  %3235 = vrot.lane.b32.xlu0 %v615, 1
  %v3236 = vpop.permute.xlu0 %3235
  %3237 = vrot.lane.b32.xlu0 %v623, 1
  %v3238 = vpop.permute.xlu0 %3237
  %3239 = vrot.lane.b32.xlu0 %v631, 1
  %v3240 = vpop.permute.xlu0 %3239
  %3241 = vrot.lane.b32.xlu0 %v639, 1
  %v3242 = vpop.permute.xlu0 %3241
  %3243 = vrot.lane.b32.xlu0 %v647, 1
  %v3244 = vpop.permute.xlu0 %3243
  %3245 = vrot.lane.b32.xlu0 %v655, 1
  %v3246 = vpop.permute.xlu0 %3245
  %vm3247 = vcmp.lt.s32.totalorder %v790, 1
  %v3248 = vsel %vm3247, %v3216, %v3232
  %v3249 = vsel %vm3247, %v3218, %v3234
  %v3250 = vsel %vm3247, %v3220, %v3236
  %v3251 = vsel %vm3247, %v3222, %v3238
  %v3252 = vsel %vm3247, %v3224, %v3240
  %v3253 = vsel %vm3247, %v3226, %v3242
  %v3254 = vsel %vm3247, %v3228, %v3244
  %v3255 = vsel %vm3247, %v3230, %v3246
  %v3256 = vsel %vm3247, %v3200, %v3216
  %v3257 = vsel %vm3247, %v3202, %v3218
  %v3258 = vsel %vm3247, %v3204, %v3220
  %v3259 = vsel %vm3247, %v3206, %v3222
  %v3260 = vsel %vm3247, %v3208, %v3224
  %v3261 = vsel %vm3247, %v3210, %v3226
  %v3262 = vsel %vm3247, %v3212, %v3228
  %v3263 = vsel %vm3247, %v3214, %v3230
  %v3264 = vsel %vm3247, %v3184, %v3200
  %v3265 = vsel %vm3247, %v3186, %v3202
  %v3266 = vsel %vm3247, %v3188, %v3204
  %v3267 = vsel %vm3247, %v3190, %v3206
  %v3268 = vsel %vm3247, %v3192, %v3208
  %v3269 = vsel %vm3247, %v3194, %v3210
  %v3270 = vsel %vm3247, %v3196, %v3212
  %v3271 = vsel %vm3247, %v3198, %v3214
  %v3272 = vsel %vm3247, %v3168, %v3184
  %v3273 = vsel %vm3247, %v3170, %v3186
  %v3274 = vsel %vm3247, %v3172, %v3188
  %v3275 = vsel %vm3247, %v3174, %v3190
  %v3276 = vsel %vm3247, %v3176, %v3192
  %v3277 = vsel %vm3247, %v3178, %v3194
  %v3278 = vsel %vm3247, %v3180, %v3196
  %v3279 = vsel %vm3247, %v3182, %v3198
  %v3280 = vsel %vm3247, %v3152, %v3168
  %v3281 = vsel %vm3247, %v3154, %v3170
  %v3282 = vsel %vm3247, %v3156, %v3172
  %v3283 = vsel %vm3247, %v3158, %v3174
  %v3284 = vsel %vm3247, %v3160, %v3176
  %v3285 = vsel %vm3247, %v3162, %v3178
  %v3286 = vsel %vm3247, %v3164, %v3180
  %v3287 = vsel %vm3247, %v3166, %v3182
  %v3288 = vsel %vm3247, %v3136, %v3152
  %v3289 = vsel %vm3247, %v3138, %v3154
  %v3290 = vsel %vm3247, %v3140, %v3156
  %v3291 = vsel %vm3247, %v3142, %v3158
  %v3292 = vsel %vm3247, %v3144, %v3160
  %v3293 = vsel %vm3247, %v3146, %v3162
  %v3294 = vsel %vm3247, %v3148, %v3164
  %v3295 = vsel %vm3247, %v3150, %v3166
  %v3296 = vsel %vm3247, %v3120, %v3136
  %v3297 = vsel %vm3247, %v3122, %v3138
  %v3298 = vsel %vm3247, %v3124, %v3140
  %v3299 = vsel %vm3247, %v3126, %v3142
  %v3300 = vsel %vm3247, %v3128, %v3144
  %v3301 = vsel %vm3247, %v3130, %v3146
  %v3302 = vsel %vm3247, %v3132, %v3148
  %v3303 = vsel %vm3247, %v3134, %v3150
  %v3304 = vsel %vm3247, %v3232, %v3120
  %v3305 = vsel %vm3247, %v3234, %v3122
  %v3306 = vsel %vm3247, %v3236, %v3124
  %v3307 = vsel %vm3247, %v3238, %v3126
  %v3308 = vsel %vm3247, %v3240, %v3128
  %v3309 = vsel %vm3247, %v3242, %v3130
  %v3310 = vsel %vm3247, %v3244, %v3132
  %v3311 = vsel %vm3247, %v3246, %v3134
  %s3312 = scalar_lea.vmem %s1, 3
  %v3313 = vld [vmem:[%s3312] ss:$8 sm:$0xf]
  %v3314 = vld [vmem:[%s3312] ss:$8 sm:$0xf0]
  %v3315 = vor.u32 %v3313, %v3314
  %v3317 = vlaneseq
  %v3318 = vshrl.u32 %v3317, 7
  %v3319 = vsub.s32 0, %v3318
  %v3320 = vrot.slane %v3315, %v3319
  %v3321 = vlaneseq
  %v3322 = vshrl.u32 %v3321, 7
  %v3323 = vsub.s32 1, %v3322
  %v3324 = vrot.slane %v3315, %v3323
  %v3325 = vlaneseq
  %v3326 = vshrl.u32 %v3325, 7
  %v3327 = vsub.s32 2, %v3326
  %v3328 = vrot.slane %v3315, %v3327
  %v3329 = vlaneseq
  %v3330 = vshrl.u32 %v3329, 7
  %v3331 = vsub.s32 3, %v3330
  %v3332 = vrot.slane %v3315, %v3331
  %v3333 = vlaneseq
  %v3334 = vshrl.u32 %v3333, 7
  %v3335 = vsub.s32 4, %v3334
  %v3336 = vrot.slane %v3315, %v3335
  %v3337 = vlaneseq
  %v3338 = vshrl.u32 %v3337, 7
  %v3339 = vsub.s32 5, %v3338
  %v3340 = vrot.slane %v3315, %v3339
  %v3341 = vlaneseq
  %v3342 = vshrl.u32 %v3341, 7
  %v3343 = vsub.s32 6, %v3342
  %v3344 = vrot.slane %v3315, %v3343
  %v3345 = vlaneseq
  %v3346 = vshrl.u32 %v3345, 7
  %v3347 = vsub.s32 7, %v3346
  %v3348 = vrot.slane %v3315, %v3347
  %v3357 = vmul.f32 %v3304, %v3320
  %v3358 = vmul.f32 %v3296, %v3324
  %v3359 = vmul.f32 %v3288, %v3328
  %v3360 = vmul.f32 %v3280, %v3332
  %v3361 = vmul.f32 %v3272, %v3336
  %v3362 = vmul.f32 %v3264, %v3340
  %v3363 = vmul.f32 %v3256, %v3344
  %v3364 = vmul.f32 %v3248, %v3348
  %v3365 = vmul.f32 %v3305, %v3320
  %v3366 = vmul.f32 %v3297, %v3324
  %v3367 = vmul.f32 %v3289, %v3328
  %v3368 = vmul.f32 %v3281, %v3332
  %v3369 = vmul.f32 %v3273, %v3336
  %v3370 = vmul.f32 %v3265, %v3340
  %v3371 = vmul.f32 %v3257, %v3344
  %v3372 = vmul.f32 %v3249, %v3348
  %v3373 = vmul.f32 %v3306, %v3320
  %v3374 = vmul.f32 %v3298, %v3324
  %v3375 = vmul.f32 %v3290, %v3328
  %v3376 = vmul.f32 %v3282, %v3332
  %v3377 = vmul.f32 %v3274, %v3336
  %v3378 = vmul.f32 %v3266, %v3340
  %v3379 = vmul.f32 %v3258, %v3344
  %v3380 = vmul.f32 %v3250, %v3348
  %v3381 = vmul.f32 %v3307, %v3320
  %v3382 = vmul.f32 %v3299, %v3324
  %v3383 = vmul.f32 %v3291, %v3328
  %v3384 = vmul.f32 %v3283, %v3332
  %v3385 = vmul.f32 %v3275, %v3336
  %v3386 = vmul.f32 %v3267, %v3340
  %v3387 = vmul.f32 %v3259, %v3344
  %v3388 = vmul.f32 %v3251, %v3348
  %v3389 = vmul.f32 %v3308, %v3320
  %v3390 = vmul.f32 %v3300, %v3324
  %v3391 = vmul.f32 %v3292, %v3328
  %v3392 = vmul.f32 %v3284, %v3332
  %v3393 = vmul.f32 %v3276, %v3336
  %v3394 = vmul.f32 %v3268, %v3340
  %v3395 = vmul.f32 %v3260, %v3344
  %v3396 = vmul.f32 %v3252, %v3348
  %v3397 = vmul.f32 %v3309, %v3320
  %v3398 = vmul.f32 %v3301, %v3324
  %v3399 = vmul.f32 %v3293, %v3328
  %v3400 = vmul.f32 %v3285, %v3332
  %v3401 = vmul.f32 %v3277, %v3336
  %v3402 = vmul.f32 %v3269, %v3340
  %v3403 = vmul.f32 %v3261, %v3344
  %v3404 = vmul.f32 %v3253, %v3348
  %v3405 = vmul.f32 %v3310, %v3320
  %v3406 = vmul.f32 %v3302, %v3324
  %v3407 = vmul.f32 %v3294, %v3328
  %v3408 = vmul.f32 %v3286, %v3332
  %v3409 = vmul.f32 %v3278, %v3336
  %v3410 = vmul.f32 %v3270, %v3340
  %v3411 = vmul.f32 %v3262, %v3344
  %v3412 = vmul.f32 %v3254, %v3348
  %v3413 = vmul.f32 %v3311, %v3320
  %v3414 = vmul.f32 %v3303, %v3324
  %v3415 = vmul.f32 %v3295, %v3328
  %v3416 = vmul.f32 %v3287, %v3332
  %v3417 = vmul.f32 %v3279, %v3336
  %v3418 = vmul.f32 %v3271, %v3340
  %v3419 = vmul.f32 %v3263, %v3344
  %v3420 = vmul.f32 %v3255, %v3348
  %s3421 = scalar_lea.vmem %s4, 96
  %v3422 = vld [vmem:[%s3421] sm:$0xff]
  %v3423 = vld [vmem:[%s3421 + $0x8] sm:$0xff]
  %v3424 = vld [vmem:[%s3421 + $0x10] sm:$0xff]
  %v3425 = vld [vmem:[%s3421 + $0x18] sm:$0xff]
  %v3427 = vsel %vm968, %v3422, 0
  %v3430 = vsel %vm968, %v3423, 0
  %v3433 = vsel %vm968, %v3424, 0
  %v3436 = vsel %vm968, %v3425, 0
  %3438 = vmatprep.subr.mxu0 %v3358
  %3439 = vmatpush1.msra.mxu0 %v3357
  %3440 = vmatprep.subr.mxu0 %v3366
  %3441 = vmatpush1.msra.mxu0 %v3365
  %3442 = vmatprep.subr.mxu0 %v3374
  %3443 = vmatpush1.msra.mxu0 %v3373
  %3444 = vmatprep.subr.mxu0 %v3382
  %3445 = vmatpush1.msra.mxu0 %v3381
  %3446 = vmatprep.subr.mxu0 %v3390
  %3447 = vmatpush1.msra.mxu0 %v3389
  %3448 = vmatprep.subr.mxu0 %v3398
  %3449 = vmatpush1.msra.mxu0 %v3397
  %3450 = vmatprep.subr.mxu0 %v3406
  %3451 = vmatpush1.msra.mxu0 %v3405
  %3452 = vmatprep.subr.mxu0 %v3414
  %3453 = vmatpush1.msra.mxu0 %v3413
  %3454 = vmatprep.subr.mxu0 0.0
  %3455 = vmatpush1.msra.mxu0 0.0
  %3456 = vmatprep.subr.mxu0 0.0
  %3457 = vmatpush1.msra.mxu0 0.0
  %3458 = vmatprep.subr.mxu0 0.0
  %3459 = vmatpush1.msra.mxu0 0.0
  %3460 = vmatprep.subr.mxu0 0.0
  %3461 = vmatpush1.msra.mxu0 0.0
  %3462 = vmatprep.subr.mxu0 0.0
  %3463 = vmatpush1.msra.mxu0 0.0
  %3464 = vmatprep.subr.mxu0 0.0
  %3465 = vmatpush1.msra.mxu0 0.0
  %3466 = vmatprep.subr.mxu0 0.0
  %3467 = vmatpush1.msra.mxu0 0.0
  %3468 = vmatprep.subr.mxu0 0.0
  %3469 = vmatpush1.msra.mxu0 0.0
  %3470 = vmatprep.subr.mxu0 0.0
  %3471 = vmatpush1.msra.mxu0 0.0
  %3472 = vmatprep.subr.mxu0 0.0
  %3473 = vmatpush1.msra.mxu0 0.0
  %3474 = vmatprep.subr.mxu0 0.0
  %3475 = vmatpush1.msra.mxu0 0.0
  %3476 = vmatprep.subr.mxu0 0.0
  %3477 = vmatpush1.msra.mxu0 0.0
  %3478 = vmatprep.subr.mxu0 0.0
  %3479 = vmatpush1.msra.mxu0 0.0
  %3480 = vmatprep.subr.mxu0 0.0
  %3481 = vmatpush1.msra.mxu0 0.0
  %3482 = vmatprep.subr.mxu0 0.0
  %3483 = vmatpush1.msra.mxu0 0.0
  %3484 = vmatprep.subr.mxu0 0.0
  %3485 = vmatpush1.msra.mxu0 0.0
  %3486 = vmatprep.subr.mxu0 0.0
  %3487 = vmatpush1.msra.mxu0 0.0
  %3488 = vmatprep.subr.mxu0 0.0
  %3489 = vmatpush1.msra.mxu0 0.0
  %3490 = vmatprep.subr.mxu0 0.0
  %3491 = vmatpush1.msra.mxu0 0.0
  %3492 = vmatprep.subr.mxu0 0.0
  %3493 = vmatpush1.msra.mxu0 0.0
  %3494 = vmatprep.subr.mxu0 0.0
  %3495 = vmatpush1.msra.mxu0 0.0
  %3496 = vmatprep.subr.mxu0 0.0
  %3497 = vmatpush1.msra.mxu0 0.0
  %3498 = vmatprep.subr.mxu0 0.0
  %3499 = vmatpush1.msra.mxu0 0.0
  %3500 = vmatprep.subr.mxu0 0.0
  %3501 = vmatpush1.msra.mxu0 0.0
  %3502 = vmatprep.mubr.f32.mxu0 0.0
  %3503 = vmatmul.mubr.f32.gmra.mrb[0].mxu0 %v3427
  %v3504 = vpop.f32.mrb[0].mxu0
  %v3505 = vadd.f32 0.0, %v3504
  %v3506 = vpop.f32.mrb[0].mxu0
  %v3507 = vadd.f32 0.0, %v3506
  %3508 = vmatprep.mubr.f32.mxu0 0.0
  %3509 = vmatmul.mubr.f32.gmra.mrb[0].mxu0 %v3430
  %v3510 = vpop.f32.mrb[0].mxu0
  %v3511 = vadd.f32 0.0, %v3510
  %v3512 = vpop.f32.mrb[0].mxu0
  %v3513 = vadd.f32 0.0, %v3512
  %3514 = vmatprep.mubr.f32.mxu0 0.0
  %3515 = vmatmul.mubr.f32.gmra.mrb[0].mxu0 %v3433
  %v3516 = vpop.f32.mrb[0].mxu0
  %v3517 = vadd.f32 0.0, %v3516
  %v3518 = vpop.f32.mrb[0].mxu0
  %v3519 = vadd.f32 0.0, %v3518
  %3520 = vmatprep.mubr.f32.mxu0 0.0
  %3521 = vmatmul.mubr.f32.gmra.mrb[0].mxu0 %v3436
  %v3522 = vpop.f32.mrb[0].mxu0
  %v3523 = vadd.f32 0.0, %v3522
  %v3524 = vpop.f32.mrb[0].mxu0
  %v3525 = vadd.f32 0.0, %v3524
  %3526 = vdwg.mxu0
  %3527 = vmatprep.subr.mxu0 %v3360
  %3528 = vmatpush1.msra.mxu0 %v3359
  %3529 = vmatprep.subr.mxu0 %v3368
  %3530 = vmatpush1.msra.mxu0 %v3367
  %3531 = vmatprep.subr.mxu0 %v3376
  %3532 = vmatpush1.msra.mxu0 %v3375
  %3533 = vmatprep.subr.mxu0 %v3384
  %3534 = vmatpush1.msra.mxu0 %v3383
  %3535 = vmatprep.subr.mxu0 %v3392
  %3536 = vmatpush1.msra.mxu0 %v3391
  %3537 = vmatprep.subr.mxu0 %v3400
  %3538 = vmatpush1.msra.mxu0 %v3399
  %3539 = vmatprep.subr.mxu0 %v3408
  %3540 = vmatpush1.msra.mxu0 %v3407
  %3541 = vmatprep.subr.mxu0 %v3416
  %3542 = vmatpush1.msra.mxu0 %v3415
  %3543 = vmatprep.subr.mxu0 0.0
  %3544 = vmatpush1.msra.mxu0 0.0
  %3545 = vmatprep.subr.mxu0 0.0
  %3546 = vmatpush1.msra.mxu0 0.0
  %3547 = vmatprep.subr.mxu0 0.0
  %3548 = vmatpush1.msra.mxu0 0.0
  %3549 = vmatprep.subr.mxu0 0.0
  %3550 = vmatpush1.msra.mxu0 0.0
  %3551 = vmatprep.subr.mxu0 0.0
  %3552 = vmatpush1.msra.mxu0 0.0
  %3553 = vmatprep.subr.mxu0 0.0
  %3554 = vmatpush1.msra.mxu0 0.0
  %3555 = vmatprep.subr.mxu0 0.0
  %3556 = vmatpush1.msra.mxu0 0.0
  %3557 = vmatprep.subr.mxu0 0.0
  %3558 = vmatpush1.msra.mxu0 0.0
  %3559 = vmatprep.subr.mxu0 0.0
  %3560 = vmatpush1.msra.mxu0 0.0
  %3561 = vmatprep.subr.mxu0 0.0
  %3562 = vmatpush1.msra.mxu0 0.0
  %3563 = vmatprep.subr.mxu0 0.0
  %3564 = vmatpush1.msra.mxu0 0.0
  %3565 = vmatprep.subr.mxu0 0.0
  %3566 = vmatpush1.msra.mxu0 0.0
  %3567 = vmatprep.subr.mxu0 0.0
  %3568 = vmatpush1.msra.mxu0 0.0
  %3569 = vmatprep.subr.mxu0 0.0
  %3570 = vmatpush1.msra.mxu0 0.0
  %3571 = vmatprep.subr.mxu0 0.0
  %3572 = vmatpush1.msra.mxu0 0.0
  %3573 = vmatprep.subr.mxu0 0.0
  %3574 = vmatpush1.msra.mxu0 0.0
  %3575 = vmatprep.subr.mxu0 0.0
  %3576 = vmatpush1.msra.mxu0 0.0
  %3577 = vmatprep.subr.mxu0 0.0
  %3578 = vmatpush1.msra.mxu0 0.0
  %3579 = vmatprep.subr.mxu0 0.0
  %3580 = vmatpush1.msra.mxu0 0.0
  %3581 = vmatprep.subr.mxu0 0.0
  %3582 = vmatpush1.msra.mxu0 0.0
  %3583 = vmatprep.subr.mxu0 0.0
  %3584 = vmatpush1.msra.mxu0 0.0
  %3585 = vmatprep.subr.mxu0 0.0
  %3586 = vmatpush1.msra.mxu0 0.0
  %3587 = vmatprep.subr.mxu0 0.0
  %3588 = vmatpush1.msra.mxu0 0.0
  %3589 = vmatprep.subr.mxu0 0.0
  %3590 = vmatpush1.msra.mxu0 0.0
  %3591 = vmatprep.mubr.f32.mxu0 0.0
  %3592 = vmatmul.mubr.f32.gmra.mrb[0].mxu0 %v3427
  %v3593 = vpop.f32.mrb[0].mxu0
  %v3594 = vadd.f32 0.0, %v3593
  %v3595 = vpop.f32.mrb[0].mxu0
  %v3596 = vadd.f32 0.0, %v3595
  %3597 = vmatprep.mubr.f32.mxu0 0.0
  %3598 = vmatmul.mubr.f32.gmra.mrb[0].mxu0 %v3430
  %v3599 = vpop.f32.mrb[0].mxu0
  %v3600 = vadd.f32 0.0, %v3599
  %v3601 = vpop.f32.mrb[0].mxu0
  %v3602 = vadd.f32 0.0, %v3601
  %3603 = vmatprep.mubr.f32.mxu0 0.0
  %3604 = vmatmul.mubr.f32.gmra.mrb[0].mxu0 %v3433
  %v3605 = vpop.f32.mrb[0].mxu0
  %v3606 = vadd.f32 0.0, %v3605
  %v3607 = vpop.f32.mrb[0].mxu0
  %v3608 = vadd.f32 0.0, %v3607
  %3609 = vmatprep.mubr.f32.mxu0 0.0
  %3610 = vmatmul.mubr.f32.gmra.mrb[0].mxu0 %v3436
  %v3611 = vpop.f32.mrb[0].mxu0
  %v3612 = vadd.f32 0.0, %v3611
  %v3613 = vpop.f32.mrb[0].mxu0
  %v3614 = vadd.f32 0.0, %v3613
  %3615 = vdwg.mxu0
  %3616 = vmatprep.subr.mxu0 %v3362
  %3617 = vmatpush1.msra.mxu0 %v3361
  %3618 = vmatprep.subr.mxu0 %v3370
  %3619 = vmatpush1.msra.mxu0 %v3369
  %3620 = vmatprep.subr.mxu0 %v3378
  %3621 = vmatpush1.msra.mxu0 %v3377
  %3622 = vmatprep.subr.mxu0 %v3386
  %3623 = vmatpush1.msra.mxu0 %v3385
  %3624 = vmatprep.subr.mxu0 %v3394
  %3625 = vmatpush1.msra.mxu0 %v3393
  %3626 = vmatprep.subr.mxu0 %v3402
  %3627 = vmatpush1.msra.mxu0 %v3401
  %3628 = vmatprep.subr.mxu0 %v3410
  %3629 = vmatpush1.msra.mxu0 %v3409
  %3630 = vmatprep.subr.mxu0 %v3418
  %3631 = vmatpush1.msra.mxu0 %v3417
  %3632 = vmatprep.subr.mxu0 0.0
  %3633 = vmatpush1.msra.mxu0 0.0
  %3634 = vmatprep.subr.mxu0 0.0
  %3635 = vmatpush1.msra.mxu0 0.0
  %3636 = vmatprep.subr.mxu0 0.0
  %3637 = vmatpush1.msra.mxu0 0.0
  %3638 = vmatprep.subr.mxu0 0.0
  %3639 = vmatpush1.msra.mxu0 0.0
  %3640 = vmatprep.subr.mxu0 0.0
  %3641 = vmatpush1.msra.mxu0 0.0
  %3642 = vmatprep.subr.mxu0 0.0
  %3643 = vmatpush1.msra.mxu0 0.0
  %3644 = vmatprep.subr.mxu0 0.0
  %3645 = vmatpush1.msra.mxu0 0.0
  %3646 = vmatprep.subr.mxu0 0.0
  %3647 = vmatpush1.msra.mxu0 0.0
  %3648 = vmatprep.subr.mxu0 0.0
  %3649 = vmatpush1.msra.mxu0 0.0
  %3650 = vmatprep.subr.mxu0 0.0
  %3651 = vmatpush1.msra.mxu0 0.0
  %3652 = vmatprep.subr.mxu0 0.0
  %3653 = vmatpush1.msra.mxu0 0.0
  %3654 = vmatprep.subr.mxu0 0.0
  %3655 = vmatpush1.msra.mxu0 0.0
  %3656 = vmatprep.subr.mxu0 0.0
  %3657 = vmatpush1.msra.mxu0 0.0
  %3658 = vmatprep.subr.mxu0 0.0
  %3659 = vmatpush1.msra.mxu0 0.0
  %3660 = vmatprep.subr.mxu0 0.0
  %3661 = vmatpush1.msra.mxu0 0.0
  %3662 = vmatprep.subr.mxu0 0.0
  %3663 = vmatpush1.msra.mxu0 0.0
  %3664 = vmatprep.subr.mxu0 0.0
  %3665 = vmatpush1.msra.mxu0 0.0
  %3666 = vmatprep.subr.mxu0 0.0
  %3667 = vmatpush1.msra.mxu0 0.0
  %3668 = vmatprep.subr.mxu0 0.0
  %3669 = vmatpush1.msra.mxu0 0.0
  %3670 = vmatprep.subr.mxu0 0.0
  %3671 = vmatpush1.msra.mxu0 0.0
  %3672 = vmatprep.subr.mxu0 0.0
  %3673 = vmatpush1.msra.mxu0 0.0
  %3674 = vmatprep.subr.mxu0 0.0
  %3675 = vmatpush1.msra.mxu0 0.0
  %3676 = vmatprep.subr.mxu0 0.0
  %3677 = vmatpush1.msra.mxu0 0.0
  %3678 = vmatprep.subr.mxu0 0.0
  %3679 = vmatpush1.msra.mxu0 0.0
  %3680 = vmatprep.mubr.f32.mxu0 0.0
  %3681 = vmatmul.mubr.f32.gmra.mrb[0].mxu0 %v3427
  %v3682 = vpop.f32.mrb[0].mxu0
  %v3683 = vadd.f32 0.0, %v3682
  %v3684 = vpop.f32.mrb[0].mxu0
  %v3685 = vadd.f32 0.0, %v3684
  %3686 = vmatprep.mubr.f32.mxu0 0.0
  %3687 = vmatmul.mubr.f32.gmra.mrb[0].mxu0 %v3430
  %v3688 = vpop.f32.mrb[0].mxu0
  %v3689 = vadd.f32 0.0, %v3688
  %v3690 = vpop.f32.mrb[0].mxu0
  %v3691 = vadd.f32 0.0, %v3690
  %3692 = vmatprep.mubr.f32.mxu0 0.0
  %3693 = vmatmul.mubr.f32.gmra.mrb[0].mxu0 %v3433
  %v3694 = vpop.f32.mrb[0].mxu0
  %v3695 = vadd.f32 0.0, %v3694
  %v3696 = vpop.f32.mrb[0].mxu0
  %v3697 = vadd.f32 0.0, %v3696
  %3698 = vmatprep.mubr.f32.mxu0 0.0
  %3699 = vmatmul.mubr.f32.gmra.mrb[0].mxu0 %v3436
  %v3700 = vpop.f32.mrb[0].mxu0
  %v3701 = vadd.f32 0.0, %v3700
  %v3702 = vpop.f32.mrb[0].mxu0
  %v3703 = vadd.f32 0.0, %v3702
  %3704 = vdwg.mxu0
  %3705 = vmatprep.subr.mxu0 %v3364
  %3706 = vmatpush1.msra.mxu0 %v3363
  %3707 = vmatprep.subr.mxu0 %v3372
  %3708 = vmatpush1.msra.mxu0 %v3371
  %3709 = vmatprep.subr.mxu0 %v3380
  %3710 = vmatpush1.msra.mxu0 %v3379
  %3711 = vmatprep.subr.mxu0 %v3388
  %3712 = vmatpush1.msra.mxu0 %v3387
  %3713 = vmatprep.subr.mxu0 %v3396
  %3714 = vmatpush1.msra.mxu0 %v3395
  %3715 = vmatprep.subr.mxu0 %v3404
  %3716 = vmatpush1.msra.mxu0 %v3403
  %3717 = vmatprep.subr.mxu0 %v3412
  %3718 = vmatpush1.msra.mxu0 %v3411
  %3719 = vmatprep.subr.mxu0 %v3420
  %3720 = vmatpush1.msra.mxu0 %v3419
  %3721 = vmatprep.subr.mxu0 0.0
  %3722 = vmatpush1.msra.mxu0 0.0
  %3723 = vmatprep.subr.mxu0 0.0
  %3724 = vmatpush1.msra.mxu0 0.0
  %3725 = vmatprep.subr.mxu0 0.0
  %3726 = vmatpush1.msra.mxu0 0.0
  %3727 = vmatprep.subr.mxu0 0.0
  %3728 = vmatpush1.msra.mxu0 0.0
  %3729 = vmatprep.subr.mxu0 0.0
  %3730 = vmatpush1.msra.mxu0 0.0
  %3731 = vmatprep.subr.mxu0 0.0
  %3732 = vmatpush1.msra.mxu0 0.0
  %3733 = vmatprep.subr.mxu0 0.0
  %3734 = vmatpush1.msra.mxu0 0.0
  %3735 = vmatprep.subr.mxu0 0.0
  %3736 = vmatpush1.msra.mxu0 0.0
  %3737 = vmatprep.subr.mxu0 0.0
  %3738 = vmatpush1.msra.mxu0 0.0
  %3739 = vmatprep.subr.mxu0 0.0
  %3740 = vmatpush1.msra.mxu0 0.0
  %3741 = vmatprep.subr.mxu0 0.0
  %3742 = vmatpush1.msra.mxu0 0.0
  %3743 = vmatprep.subr.mxu0 0.0
  %3744 = vmatpush1.msra.mxu0 0.0
  %3745 = vmatprep.subr.mxu0 0.0
  %3746 = vmatpush1.msra.mxu0 0.0
  %3747 = vmatprep.subr.mxu0 0.0
  %3748 = vmatpush1.msra.mxu0 0.0
  %3749 = vmatprep.subr.mxu0 0.0
  %3750 = vmatpush1.msra.mxu0 0.0
  %3751 = vmatprep.subr.mxu0 0.0
  %3752 = vmatpush1.msra.mxu0 0.0
  %3753 = vmatprep.subr.mxu0 0.0
  %3754 = vmatpush1.msra.mxu0 0.0
  %3755 = vmatprep.subr.mxu0 0.0
  %3756 = vmatpush1.msra.mxu0 0.0
  %3757 = vmatprep.subr.mxu0 0.0
  %3758 = vmatpush1.msra.mxu0 0.0
  %3759 = vmatprep.subr.mxu0 0.0
  %3760 = vmatpush1.msra.mxu0 0.0
  %3761 = vmatprep.subr.mxu0 0.0
  %3762 = vmatpush1.msra.mxu0 0.0
  %3763 = vmatprep.subr.mxu0 0.0
  %3764 = vmatpush1.msra.mxu0 0.0
  %3765 = vmatprep.subr.mxu0 0.0
  %3766 = vmatpush1.msra.mxu0 0.0
  %3767 = vmatprep.subr.mxu0 0.0
  %3768 = vmatpush1.msra.mxu0 0.0
  %3769 = vmatprep.mubr.f32.mxu0 0.0
  %3770 = vmatmul.mubr.f32.gmra.mrb[0].mxu0 %v3427
  %v3771 = vpop.f32.mrb[0].mxu0
  %v3772 = vadd.f32 0.0, %v3771
  %v3773 = vpop.f32.mrb[0].mxu0
  %v3774 = vadd.f32 0.0, %v3773
  %3775 = vmatprep.mubr.f32.mxu0 0.0
  %3776 = vmatmul.mubr.f32.gmra.mrb[0].mxu0 %v3430
  %v3777 = vpop.f32.mrb[0].mxu0
  %v3778 = vadd.f32 0.0, %v3777
  %v3779 = vpop.f32.mrb[0].mxu0
  %v3780 = vadd.f32 0.0, %v3779
  %3781 = vmatprep.mubr.f32.mxu0 0.0
  %3782 = vmatmul.mubr.f32.gmra.mrb[0].mxu0 %v3433
  %v3783 = vpop.f32.mrb[0].mxu0
  %v3784 = vadd.f32 0.0, %v3783
  %v3785 = vpop.f32.mrb[0].mxu0
  %v3786 = vadd.f32 0.0, %v3785
  %3787 = vmatprep.mubr.f32.mxu0 0.0
  %3788 = vmatmul.mubr.f32.gmra.mrb[0].mxu0 %v3436
  %v3789 = vpop.f32.mrb[0].mxu0
  %v3790 = vadd.f32 0.0, %v3789
  %v3791 = vpop.f32.mrb[0].mxu0
  %v3792 = vadd.f32 0.0, %v3791
  %3793 = vdwg.mxu0
  %v3794 = vadd.f32 %v3087, %v3505
  %v3795 = vadd.f32 %v3088, %v3507
  %v3796 = vadd.f32 %v3089, %v3594
  %v3797 = vadd.f32 %v3090, %v3596
  %v3798 = vadd.f32 %v3091, %v3683
  %v3799 = vadd.f32 %v3092, %v3685
  %v3800 = vadd.f32 %v3093, %v3772
  %v3801 = vadd.f32 %v3094, %v3774
  %v3802 = vadd.f32 %v3095, %v3511
  %v3803 = vadd.f32 %v3096, %v3513
  %v3804 = vadd.f32 %v3097, %v3600
  %v3805 = vadd.f32 %v3098, %v3602
  %v3806 = vadd.f32 %v3099, %v3689
  %v3807 = vadd.f32 %v3100, %v3691
  %v3808 = vadd.f32 %v3101, %v3778
  %v3809 = vadd.f32 %v3102, %v3780
  %v3810 = vadd.f32 %v3103, %v3517
  %v3811 = vadd.f32 %v3104, %v3519
  %v3812 = vadd.f32 %v3105, %v3606
  %v3813 = vadd.f32 %v3106, %v3608
  %v3814 = vadd.f32 %v3107, %v3695
  %v3815 = vadd.f32 %v3108, %v3697
  %v3816 = vadd.f32 %v3109, %v3784
  %v3817 = vadd.f32 %v3110, %v3786
  %v3818 = vadd.f32 %v3111, %v3523
  %v3819 = vadd.f32 %v3112, %v3525
  %v3820 = vadd.f32 %v3113, %v3612
  %v3821 = vadd.f32 %v3114, %v3614
  %v3822 = vadd.f32 %v3115, %v3701
  %v3823 = vadd.f32 %v3116, %v3703
  %v3824 = vadd.f32 %v3117, %v3790
  %v3825 = vadd.f32 %v3118, %v3792
  %3826 = vrot.lane.b32.xlu0 %v592, 127
  %v3827 = vpop.permute.xlu0 %3826
  %3828 = vrot.lane.b32.xlu0 %v600, 127
  %v3829 = vpop.permute.xlu0 %3828
  %3830 = vrot.lane.b32.xlu0 %v608, 127
  %v3831 = vpop.permute.xlu0 %3830
  %3832 = vrot.lane.b32.xlu0 %v616, 127
  %v3833 = vpop.permute.xlu0 %3832
  %3834 = vrot.lane.b32.xlu0 %v624, 127
  %v3835 = vpop.permute.xlu0 %3834
  %3836 = vrot.lane.b32.xlu0 %v632, 127
  %v3837 = vpop.permute.xlu0 %3836
  %3838 = vrot.lane.b32.xlu0 %v640, 127
  %v3839 = vpop.permute.xlu0 %3838
  %3840 = vrot.lane.b32.xlu0 %v648, 127
  %v3841 = vpop.permute.xlu0 %3840
  %3842 = vrot.lane.b32.xlu0 %v593, 127
  %v3843 = vpop.permute.xlu0 %3842
  %3844 = vrot.lane.b32.xlu0 %v601, 127
  %v3845 = vpop.permute.xlu0 %3844
  %3846 = vrot.lane.b32.xlu0 %v609, 127
  %v3847 = vpop.permute.xlu0 %3846
  %3848 = vrot.lane.b32.xlu0 %v617, 127
  %v3849 = vpop.permute.xlu0 %3848
  %3850 = vrot.lane.b32.xlu0 %v625, 127
  %v3851 = vpop.permute.xlu0 %3850
  %3852 = vrot.lane.b32.xlu0 %v633, 127
  %v3853 = vpop.permute.xlu0 %3852
  %3854 = vrot.lane.b32.xlu0 %v641, 127
  %v3855 = vpop.permute.xlu0 %3854
  %3856 = vrot.lane.b32.xlu0 %v649, 127
  %v3857 = vpop.permute.xlu0 %3856
  %3858 = vrot.lane.b32.xlu0 %v594, 127
  %v3859 = vpop.permute.xlu0 %3858
  %3860 = vrot.lane.b32.xlu0 %v602, 127
  %v3861 = vpop.permute.xlu0 %3860
  %3862 = vrot.lane.b32.xlu0 %v610, 127
  %v3863 = vpop.permute.xlu0 %3862
  %3864 = vrot.lane.b32.xlu0 %v618, 127
  %v3865 = vpop.permute.xlu0 %3864
  %3866 = vrot.lane.b32.xlu0 %v626, 127
  %v3867 = vpop.permute.xlu0 %3866
  %3868 = vrot.lane.b32.xlu0 %v634, 127
  %v3869 = vpop.permute.xlu0 %3868
  %3870 = vrot.lane.b32.xlu0 %v642, 127
  %v3871 = vpop.permute.xlu0 %3870
  %3872 = vrot.lane.b32.xlu0 %v650, 127
  %v3873 = vpop.permute.xlu0 %3872
  %3874 = vrot.lane.b32.xlu0 %v595, 127
  %v3875 = vpop.permute.xlu0 %3874
  %3876 = vrot.lane.b32.xlu0 %v603, 127
  %v3877 = vpop.permute.xlu0 %3876
  %3878 = vrot.lane.b32.xlu0 %v611, 127
  %v3879 = vpop.permute.xlu0 %3878
  %3880 = vrot.lane.b32.xlu0 %v619, 127
  %v3881 = vpop.permute.xlu0 %3880
  %3882 = vrot.lane.b32.xlu0 %v627, 127
  %v3883 = vpop.permute.xlu0 %3882
  %3884 = vrot.lane.b32.xlu0 %v635, 127
  %v3885 = vpop.permute.xlu0 %3884
  %3886 = vrot.lane.b32.xlu0 %v643, 127
  %v3887 = vpop.permute.xlu0 %3886
  %3888 = vrot.lane.b32.xlu0 %v651, 127
  %v3889 = vpop.permute.xlu0 %3888
  %3890 = vrot.lane.b32.xlu0 %v596, 127
  %v3891 = vpop.permute.xlu0 %3890
  %3892 = vrot.lane.b32.xlu0 %v604, 127
  %v3893 = vpop.permute.xlu0 %3892
  %3894 = vrot.lane.b32.xlu0 %v612, 127
  %v3895 = vpop.permute.xlu0 %3894
  %3896 = vrot.lane.b32.xlu0 %v620, 127
  %v3897 = vpop.permute.xlu0 %3896
  %3898 = vrot.lane.b32.xlu0 %v628, 127
  %v3899 = vpop.permute.xlu0 %3898
  %3900 = vrot.lane.b32.xlu0 %v636, 127
  %v3901 = vpop.permute.xlu0 %3900
  %3902 = vrot.lane.b32.xlu0 %v644, 127
  %v3903 = vpop.permute.xlu0 %3902
  %3904 = vrot.lane.b32.xlu0 %v652, 127
  %v3905 = vpop.permute.xlu0 %3904
  %3906 = vrot.lane.b32.xlu0 %v597, 127
  %v3907 = vpop.permute.xlu0 %3906
  %3908 = vrot.lane.b32.xlu0 %v605, 127
  %v3909 = vpop.permute.xlu0 %3908
  %3910 = vrot.lane.b32.xlu0 %v613, 127
  %v3911 = vpop.permute.xlu0 %3910
  %3912 = vrot.lane.b32.xlu0 %v621, 127
  %v3913 = vpop.permute.xlu0 %3912
  %3914 = vrot.lane.b32.xlu0 %v629, 127
  %v3915 = vpop.permute.xlu0 %3914
  %3916 = vrot.lane.b32.xlu0 %v637, 127
  %v3917 = vpop.permute.xlu0 %3916
  %3918 = vrot.lane.b32.xlu0 %v645, 127
  %v3919 = vpop.permute.xlu0 %3918
  %3920 = vrot.lane.b32.xlu0 %v653, 127
  %v3921 = vpop.permute.xlu0 %3920
  %3922 = vrot.lane.b32.xlu0 %v598, 127
  %v3923 = vpop.permute.xlu0 %3922
  %3924 = vrot.lane.b32.xlu0 %v606, 127
  %v3925 = vpop.permute.xlu0 %3924
  %3926 = vrot.lane.b32.xlu0 %v614, 127
  %v3927 = vpop.permute.xlu0 %3926
  %3928 = vrot.lane.b32.xlu0 %v622, 127
  %v3929 = vpop.permute.xlu0 %3928
  %3930 = vrot.lane.b32.xlu0 %v630, 127
  %v3931 = vpop.permute.xlu0 %3930
  %3932 = vrot.lane.b32.xlu0 %v638, 127
  %v3933 = vpop.permute.xlu0 %3932
  %3934 = vrot.lane.b32.xlu0 %v646, 127
  %v3935 = vpop.permute.xlu0 %3934
  %3936 = vrot.lane.b32.xlu0 %v654, 127
  %v3937 = vpop.permute.xlu0 %3936
  %3938 = vrot.lane.b32.xlu0 %v599, 127
  %v3939 = vpop.permute.xlu0 %3938
  %3940 = vrot.lane.b32.xlu0 %v607, 127
  %v3941 = vpop.permute.xlu0 %3940
  %3942 = vrot.lane.b32.xlu0 %v615, 127
  %v3943 = vpop.permute.xlu0 %3942
  %3944 = vrot.lane.b32.xlu0 %v623, 127
  %v3945 = vpop.permute.xlu0 %3944
  %3946 = vrot.lane.b32.xlu0 %v631, 127
  %v3947 = vpop.permute.xlu0 %3946
  %3948 = vrot.lane.b32.xlu0 %v639, 127
  %v3949 = vpop.permute.xlu0 %3948
  %3950 = vrot.lane.b32.xlu0 %v647, 127
  %v3951 = vpop.permute.xlu0 %3950
  %3952 = vrot.lane.b32.xlu0 %v655, 127
  %v3953 = vpop.permute.xlu0 %3952
  %vm3954 = vcmp.lt.s32.totalorder %v790, 127
  %v3955 = vsel %vm3954, %v3923, %v3939
  %v3956 = vsel %vm3954, %v3925, %v3941
  %v3957 = vsel %vm3954, %v3927, %v3943
  %v3958 = vsel %vm3954, %v3929, %v3945
  %v3959 = vsel %vm3954, %v3931, %v3947
  %v3960 = vsel %vm3954, %v3933, %v3949
  %v3961 = vsel %vm3954, %v3935, %v3951
  %v3962 = vsel %vm3954, %v3937, %v3953
  %v3963 = vsel %vm3954, %v3907, %v3923
  %v3964 = vsel %vm3954, %v3909, %v3925
  %v3965 = vsel %vm3954, %v3911, %v3927
  %v3966 = vsel %vm3954, %v3913, %v3929
  %v3967 = vsel %vm3954, %v3915, %v3931
  %v3968 = vsel %vm3954, %v3917, %v3933
  %v3969 = vsel %vm3954, %v3919, %v3935
  %v3970 = vsel %vm3954, %v3921, %v3937
  %v3971 = vsel %vm3954, %v3891, %v3907
  %v3972 = vsel %vm3954, %v3893, %v3909
  %v3973 = vsel %vm3954, %v3895, %v3911
  %v3974 = vsel %vm3954, %v3897, %v3913
  %v3975 = vsel %vm3954, %v3899, %v3915
  %v3976 = vsel %vm3954, %v3901, %v3917
  %v3977 = vsel %vm3954, %v3903, %v3919
  %v3978 = vsel %vm3954, %v3905, %v3921
  %v3979 = vsel %vm3954, %v3875, %v3891
  %v3980 = vsel %vm3954, %v3877, %v3893
  %v3981 = vsel %vm3954, %v3879, %v3895
  %v3982 = vsel %vm3954, %v3881, %v3897
  %v3983 = vsel %vm3954, %v3883, %v3899
  %v3984 = vsel %vm3954, %v3885, %v3901
  %v3985 = vsel %vm3954, %v3887, %v3903
  %v3986 = vsel %vm3954, %v3889, %v3905
  %v3987 = vsel %vm3954, %v3859, %v3875
  %v3988 = vsel %vm3954, %v3861, %v3877
  %v3989 = vsel %vm3954, %v3863, %v3879
  %v3990 = vsel %vm3954, %v3865, %v3881
  %v3991 = vsel %vm3954, %v3867, %v3883
  %v3992 = vsel %vm3954, %v3869, %v3885
  %v3993 = vsel %vm3954, %v3871, %v3887
  %v3994 = vsel %vm3954, %v3873, %v3889
  %v3995 = vsel %vm3954, %v3843, %v3859
  %v3996 = vsel %vm3954, %v3845, %v3861
  %v3997 = vsel %vm3954, %v3847, %v3863
  %v3998 = vsel %vm3954, %v3849, %v3865
  %v3999 = vsel %vm3954, %v3851, %v3867
  %v4000 = vsel %vm3954, %v3853, %v3869
  %v4001 = vsel %vm3954, %v3855, %v3871
  %v4002 = vsel %vm3954, %v3857, %v3873
  %v4003 = vsel %vm3954, %v3827, %v3843
  %v4004 = vsel %vm3954, %v3829, %v3845
  %v4005 = vsel %vm3954, %v3831, %v3847
  %v4006 = vsel %vm3954, %v3833, %v3849
  %v4007 = vsel %vm3954, %v3835, %v3851
  %v4008 = vsel %vm3954, %v3837, %v3853
  %v4009 = vsel %vm3954, %v3839, %v3855
  %v4010 = vsel %vm3954, %v3841, %v3857
  %v4011 = vsel %vm3954, %v3939, %v3827
  %v4012 = vsel %vm3954, %v3941, %v3829
  %v4013 = vsel %vm3954, %v3943, %v3831
  %v4014 = vsel %vm3954, %v3945, %v3833
  %v4015 = vsel %vm3954, %v3947, %v3835
  %v4016 = vsel %vm3954, %v3949, %v3837
  %v4017 = vsel %vm3954, %v3951, %v3839
  %v4018 = vsel %vm3954, %v3953, %v3841
  %s4019 = scalar_lea.vmem %s1, 4
  %v4020 = vld [vmem:[%s4019] ss:$8 sm:$0xf]
  %v4021 = vld [vmem:[%s4019] ss:$8 sm:$0xf0]
  %v4022 = vor.u32 %v4020, %v4021
  %v4024 = vlaneseq
  %v4025 = vshrl.u32 %v4024, 7
  %v4026 = vsub.s32 0, %v4025
  %v4027 = vrot.slane %v4022, %v4026
  %v4028 = vlaneseq
  %v4029 = vshrl.u32 %v4028, 7
  %v4030 = vsub.s32 1, %v4029
  %v4031 = vrot.slane %v4022, %v4030
  %v4032 = vlaneseq
  %v4033 = vshrl.u32 %v4032, 7
  %v4034 = vsub.s32 2, %v4033
  %v4035 = vrot.slane %v4022, %v4034
  %v4036 = vlaneseq
  %v4037 = vshrl.u32 %v4036, 7
  %v4038 = vsub.s32 3, %v4037
  %v4039 = vrot.slane %v4022, %v4038
  %v4040 = vlaneseq
  %v4041 = vshrl.u32 %v4040, 7
  %v4042 = vsub.s32 4, %v4041
  %v4043 = vrot.slane %v4022, %v4042
  %v4044 = vlaneseq
  %v4045 = vshrl.u32 %v4044, 7
  %v4046 = vsub.s32 5, %v4045
  %v4047 = vrot.slane %v4022, %v4046
  %v4048 = vlaneseq
  %v4049 = vshrl.u32 %v4048, 7
  %v4050 = vsub.s32 6, %v4049
  %v4051 = vrot.slane %v4022, %v4050
  %v4052 = vlaneseq
  %v4053 = vshrl.u32 %v4052, 7
  %v4054 = vsub.s32 7, %v4053
  %v4055 = vrot.slane %v4022, %v4054
  %v4064 = vmul.f32 %v4003, %v4027
  %v4065 = vmul.f32 %v3995, %v4031
  %v4066 = vmul.f32 %v3987, %v4035
  %v4067 = vmul.f32 %v3979, %v4039
  %v4068 = vmul.f32 %v3971, %v4043
  %v4069 = vmul.f32 %v3963, %v4047
  %v4070 = vmul.f32 %v3955, %v4051
  %v4071 = vmul.f32 %v4011, %v4055
  %v4072 = vmul.f32 %v4004, %v4027
  %v4073 = vmul.f32 %v3996, %v4031
  %v4074 = vmul.f32 %v3988, %v4035
  %v4075 = vmul.f32 %v3980, %v4039
  %v4076 = vmul.f32 %v3972, %v4043
  %v4077 = vmul.f32 %v3964, %v4047
  %v4078 = vmul.f32 %v3956, %v4051
  %v4079 = vmul.f32 %v4012, %v4055
  %v4080 = vmul.f32 %v4005, %v4027
  %v4081 = vmul.f32 %v3997, %v4031
  %v4082 = vmul.f32 %v3989, %v4035
  %v4083 = vmul.f32 %v3981, %v4039
  %v4084 = vmul.f32 %v3973, %v4043
  %v4085 = vmul.f32 %v3965, %v4047
  %v4086 = vmul.f32 %v3957, %v4051
  %v4087 = vmul.f32 %v4013, %v4055
  %v4088 = vmul.f32 %v4006, %v4027
  %v4089 = vmul.f32 %v3998, %v4031
  %v4090 = vmul.f32 %v3990, %v4035
  %v4091 = vmul.f32 %v3982, %v4039
  %v4092 = vmul.f32 %v3974, %v4043
  %v4093 = vmul.f32 %v3966, %v4047
  %v4094 = vmul.f32 %v3958, %v4051
  %v4095 = vmul.f32 %v4014, %v4055
  %v4096 = vmul.f32 %v4007, %v4027
  %v4097 = vmul.f32 %v3999, %v4031
  %v4098 = vmul.f32 %v3991, %v4035
  %v4099 = vmul.f32 %v3983, %v4039
  %v4100 = vmul.f32 %v3975, %v4043
  %v4101 = vmul.f32 %v3967, %v4047
  %v4102 = vmul.f32 %v3959, %v4051
  %v4103 = vmul.f32 %v4015, %v4055
  %v4104 = vmul.f32 %v4008, %v4027
  %v4105 = vmul.f32 %v4000, %v4031
  %v4106 = vmul.f32 %v3992, %v4035
  %v4107 = vmul.f32 %v3984, %v4039
  %v4108 = vmul.f32 %v3976, %v4043
  %v4109 = vmul.f32 %v3968, %v4047
  %v4110 = vmul.f32 %v3960, %v4051
  %v4111 = vmul.f32 %v4016, %v4055
  %v4112 = vmul.f32 %v4009, %v4027
  %v4113 = vmul.f32 %v4001, %v4031
  %v4114 = vmul.f32 %v3993, %v4035
  %v4115 = vmul.f32 %v3985, %v4039
  %v4116 = vmul.f32 %v3977, %v4043
  %v4117 = vmul.f32 %v3969, %v4047
  %v4118 = vmul.f32 %v3961, %v4051
  %v4119 = vmul.f32 %v4017, %v4055
  %v4120 = vmul.f32 %v4010, %v4027
  %v4121 = vmul.f32 %v4002, %v4031
  %v4122 = vmul.f32 %v3994, %v4035
  %v4123 = vmul.f32 %v3986, %v4039
  %v4124 = vmul.f32 %v3978, %v4043
  %v4125 = vmul.f32 %v3970, %v4047
  %v4126 = vmul.f32 %v3962, %v4051
  %v4127 = vmul.f32 %v4018, %v4055
  %s4128 = scalar_lea.vmem %s4, 160
  %v4129 = vld [vmem:[%s4128] sm:$0xff]
  %v4130 = vld [vmem:[%s4128 + $0x8] sm:$0xff]
  %v4131 = vld [vmem:[%s4128 + $0x10] sm:$0xff]
  %v4132 = vld [vmem:[%s4128 + $0x18] sm:$0xff]
  %v4134 = vsel %vm968, %v4129, 0
  %v4137 = vsel %vm968, %v4130, 0
  %v4140 = vsel %vm968, %v4131, 0
  %v4143 = vsel %vm968, %v4132, 0
  %4145 = vmatprep.subr.mxu0 %v4065
  %4146 = vmatpush1.msra.mxu0 %v4064
  %4147 = vmatprep.subr.mxu0 %v4073
  %4148 = vmatpush1.msra.mxu0 %v4072
  %4149 = vmatprep.subr.mxu0 %v4081
  %4150 = vmatpush1.msra.mxu0 %v4080
  %4151 = vmatprep.subr.mxu0 %v4089
  %4152 = vmatpush1.msra.mxu0 %v4088
  %4153 = vmatprep.subr.mxu0 %v4097
  %4154 = vmatpush1.msra.mxu0 %v4096
  %4155 = vmatprep.subr.mxu0 %v4105
  %4156 = vmatpush1.msra.mxu0 %v4104
  %4157 = vmatprep.subr.mxu0 %v4113
  %4158 = vmatpush1.msra.mxu0 %v4112
  %4159 = vmatprep.subr.mxu0 %v4121
  %4160 = vmatpush1.msra.mxu0 %v4120
  %4161 = vmatprep.subr.mxu0 0.0
  %4162 = vmatpush1.msra.mxu0 0.0
  %4163 = vmatprep.subr.mxu0 0.0
  %4164 = vmatpush1.msra.mxu0 0.0
  %4165 = vmatprep.subr.mxu0 0.0
  %4166 = vmatpush1.msra.mxu0 0.0
  %4167 = vmatprep.subr.mxu0 0.0
  %4168 = vmatpush1.msra.mxu0 0.0
  %4169 = vmatprep.subr.mxu0 0.0
  %4170 = vmatpush1.msra.mxu0 0.0
  %4171 = vmatprep.subr.mxu0 0.0
  %4172 = vmatpush1.msra.mxu0 0.0
  %4173 = vmatprep.subr.mxu0 0.0
  %4174 = vmatpush1.msra.mxu0 0.0
  %4175 = vmatprep.subr.mxu0 0.0
  %4176 = vmatpush1.msra.mxu0 0.0
  %4177 = vmatprep.subr.mxu0 0.0
  %4178 = vmatpush1.msra.mxu0 0.0
  %4179 = vmatprep.subr.mxu0 0.0
  %4180 = vmatpush1.msra.mxu0 0.0
  %4181 = vmatprep.subr.mxu0 0.0
  %4182 = vmatpush1.msra.mxu0 0.0
  %4183 = vmatprep.subr.mxu0 0.0
  %4184 = vmatpush1.msra.mxu0 0.0
  %4185 = vmatprep.subr.mxu0 0.0
  %4186 = vmatpush1.msra.mxu0 0.0
  %4187 = vmatprep.subr.mxu0 0.0
  %4188 = vmatpush1.msra.mxu0 0.0
  %4189 = vmatprep.subr.mxu0 0.0
  %4190 = vmatpush1.msra.mxu0 0.0
  %4191 = vmatprep.subr.mxu0 0.0
  %4192 = vmatpush1.msra.mxu0 0.0
  %4193 = vmatprep.subr.mxu0 0.0
  %4194 = vmatpush1.msra.mxu0 0.0
  %4195 = vmatprep.subr.mxu0 0.0
  %4196 = vmatpush1.msra.mxu0 0.0
  %4197 = vmatprep.subr.mxu0 0.0
  %4198 = vmatpush1.msra.mxu0 0.0
  %4199 = vmatprep.subr.mxu0 0.0
  %4200 = vmatpush1.msra.mxu0 0.0
  %4201 = vmatprep.subr.mxu0 0.0
  %4202 = vmatpush1.msra.mxu0 0.0
  %4203 = vmatprep.subr.mxu0 0.0
  %4204 = vmatpush1.msra.mxu0 0.0
  %4205 = vmatprep.subr.mxu0 0.0
  %4206 = vmatpush1.msra.mxu0 0.0
  %4207 = vmatprep.subr.mxu0 0.0
  %4208 = vmatpush1.msra.mxu0 0.0
  %4209 = vmatprep.mubr.f32.mxu0 0.0
  %4210 = vmatmul.mubr.f32.gmra.mrb[0].mxu0 %v4134
  %v4211 = vpop.f32.mrb[0].mxu0
  %v4212 = vadd.f32 0.0, %v4211
  %v4213 = vpop.f32.mrb[0].mxu0
  %v4214 = vadd.f32 0.0, %v4213
  %4215 = vmatprep.mubr.f32.mxu0 0.0
  %4216 = vmatmul.mubr.f32.gmra.mrb[0].mxu0 %v4137
  %v4217 = vpop.f32.mrb[0].mxu0
  %v4218 = vadd.f32 0.0, %v4217
  %v4219 = vpop.f32.mrb[0].mxu0
  %v4220 = vadd.f32 0.0, %v4219
  %4221 = vmatprep.mubr.f32.mxu0 0.0
  %4222 = vmatmul.mubr.f32.gmra.mrb[0].mxu0 %v4140
  %v4223 = vpop.f32.mrb[0].mxu0
  %v4224 = vadd.f32 0.0, %v4223
  %v4225 = vpop.f32.mrb[0].mxu0
  %v4226 = vadd.f32 0.0, %v4225
  %4227 = vmatprep.mubr.f32.mxu0 0.0
  %4228 = vmatmul.mubr.f32.gmra.mrb[0].mxu0 %v4143
  %v4229 = vpop.f32.mrb[0].mxu0
  %v4230 = vadd.f32 0.0, %v4229
  %v4231 = vpop.f32.mrb[0].mxu0
  %v4232 = vadd.f32 0.0, %v4231
  %4233 = vdwg.mxu0
  %4234 = vmatprep.subr.mxu0 %v4067
  %4235 = vmatpush1.msra.mxu0 %v4066
  %4236 = vmatprep.subr.mxu0 %v4075
  %4237 = vmatpush1.msra.mxu0 %v4074
  %4238 = vmatprep.subr.mxu0 %v4083
  %4239 = vmatpush1.msra.mxu0 %v4082
  %4240 = vmatprep.subr.mxu0 %v4091
  %4241 = vmatpush1.msra.mxu0 %v4090
  %4242 = vmatprep.subr.mxu0 %v4099
  %4243 = vmatpush1.msra.mxu0 %v4098
  %4244 = vmatprep.subr.mxu0 %v4107
  %4245 = vmatpush1.msra.mxu0 %v4106
  %4246 = vmatprep.subr.mxu0 %v4115
  %4247 = vmatpush1.msra.mxu0 %v4114
  %4248 = vmatprep.subr.mxu0 %v4123
  %4249 = vmatpush1.msra.mxu0 %v4122
  %4250 = vmatprep.subr.mxu0 0.0
  %4251 = vmatpush1.msra.mxu0 0.0
  %4252 = vmatprep.subr.mxu0 0.0
  %4253 = vmatpush1.msra.mxu0 0.0
  %4254 = vmatprep.subr.mxu0 0.0
  %4255 = vmatpush1.msra.mxu0 0.0
  %4256 = vmatprep.subr.mxu0 0.0
  %4257 = vmatpush1.msra.mxu0 0.0
  %4258 = vmatprep.subr.mxu0 0.0
  %4259 = vmatpush1.msra.mxu0 0.0
  %4260 = vmatprep.subr.mxu0 0.0
  %4261 = vmatpush1.msra.mxu0 0.0
  %4262 = vmatprep.subr.mxu0 0.0
  %4263 = vmatpush1.msra.mxu0 0.0
  %4264 = vmatprep.subr.mxu0 0.0
  %4265 = vmatpush1.msra.mxu0 0.0
  %4266 = vmatprep.subr.mxu0 0.0
  %4267 = vmatpush1.msra.mxu0 0.0
  %4268 = vmatprep.subr.mxu0 0.0
  %4269 = vmatpush1.msra.mxu0 0.0
  %4270 = vmatprep.subr.mxu0 0.0
  %4271 = vmatpush1.msra.mxu0 0.0
  %4272 = vmatprep.subr.mxu0 0.0
  %4273 = vmatpush1.msra.mxu0 0.0
  %4274 = vmatprep.subr.mxu0 0.0
  %4275 = vmatpush1.msra.mxu0 0.0
  %4276 = vmatprep.subr.mxu0 0.0
  %4277 = vmatpush1.msra.mxu0 0.0
  %4278 = vmatprep.subr.mxu0 0.0
  %4279 = vmatpush1.msra.mxu0 0.0
  %4280 = vmatprep.subr.mxu0 0.0
  %4281 = vmatpush1.msra.mxu0 0.0
  %4282 = vmatprep.subr.mxu0 0.0
  %4283 = vmatpush1.msra.mxu0 0.0
  %4284 = vmatprep.subr.mxu0 0.0
  %4285 = vmatpush1.msra.mxu0 0.0
  %4286 = vmatprep.subr.mxu0 0.0
  %4287 = vmatpush1.msra.mxu0 0.0
  %4288 = vmatprep.subr.mxu0 0.0
  %4289 = vmatpush1.msra.mxu0 0.0
  %4290 = vmatprep.subr.mxu0 0.0
  %4291 = vmatpush1.msra.mxu0 0.0
  %4292 = vmatprep.subr.mxu0 0.0
  %4293 = vmatpush1.msra.mxu0 0.0
  %4294 = vmatprep.subr.mxu0 0.0
  %4295 = vmatpush1.msra.mxu0 0.0
  %4296 = vmatprep.subr.mxu0 0.0
  %4297 = vmatpush1.msra.mxu0 0.0
  %4298 = vmatprep.mubr.f32.mxu0 0.0
  %4299 = vmatmul.mubr.f32.gmra.mrb[0].mxu0 %v4134
  %v4300 = vpop.f32.mrb[0].mxu0
  %v4301 = vadd.f32 0.0, %v4300
  %v4302 = vpop.f32.mrb[0].mxu0
  %v4303 = vadd.f32 0.0, %v4302
  %4304 = vmatprep.mubr.f32.mxu0 0.0
  %4305 = vmatmul.mubr.f32.gmra.mrb[0].mxu0 %v4137
  %v4306 = vpop.f32.mrb[0].mxu0
  %v4307 = vadd.f32 0.0, %v4306
  %v4308 = vpop.f32.mrb[0].mxu0
  %v4309 = vadd.f32 0.0, %v4308
  %4310 = vmatprep.mubr.f32.mxu0 0.0
  %4311 = vmatmul.mubr.f32.gmra.mrb[0].mxu0 %v4140
  %v4312 = vpop.f32.mrb[0].mxu0
  %v4313 = vadd.f32 0.0, %v4312
  %v4314 = vpop.f32.mrb[0].mxu0
  %v4315 = vadd.f32 0.0, %v4314
  %4316 = vmatprep.mubr.f32.mxu0 0.0
  %4317 = vmatmul.mubr.f32.gmra.mrb[0].mxu0 %v4143
  %v4318 = vpop.f32.mrb[0].mxu0
  %v4319 = vadd.f32 0.0, %v4318
  %v4320 = vpop.f32.mrb[0].mxu0
  %v4321 = vadd.f32 0.0, %v4320
  %4322 = vdwg.mxu0
  %4323 = vmatprep.subr.mxu0 %v4069
  %4324 = vmatpush1.msra.mxu0 %v4068
  %4325 = vmatprep.subr.mxu0 %v4077
  %4326 = vmatpush1.msra.mxu0 %v4076
  %4327 = vmatprep.subr.mxu0 %v4085
  %4328 = vmatpush1.msra.mxu0 %v4084
  %4329 = vmatprep.subr.mxu0 %v4093
  %4330 = vmatpush1.msra.mxu0 %v4092
  %4331 = vmatprep.subr.mxu0 %v4101
  %4332 = vmatpush1.msra.mxu0 %v4100
  %4333 = vmatprep.subr.mxu0 %v4109
  %4334 = vmatpush1.msra.mxu0 %v4108
  %4335 = vmatprep.subr.mxu0 %v4117
  %4336 = vmatpush1.msra.mxu0 %v4116
  %4337 = vmatprep.subr.mxu0 %v4125
  %4338 = vmatpush1.msra.mxu0 %v4124
  %4339 = vmatprep.subr.mxu0 0.0
  %4340 = vmatpush1.msra.mxu0 0.0
  %4341 = vmatprep.subr.mxu0 0.0
  %4342 = vmatpush1.msra.mxu0 0.0
  %4343 = vmatprep.subr.mxu0 0.0
  %4344 = vmatpush1.msra.mxu0 0.0
  %4345 = vmatprep.subr.mxu0 0.0
  %4346 = vmatpush1.msra.mxu0 0.0
  %4347 = vmatprep.subr.mxu0 0.0
  %4348 = vmatpush1.msra.mxu0 0.0
  %4349 = vmatprep.subr.mxu0 0.0
  %4350 = vmatpush1.msra.mxu0 0.0
  %4351 = vmatprep.subr.mxu0 0.0
  %4352 = vmatpush1.msra.mxu0 0.0
  %4353 = vmatprep.subr.mxu0 0.0
  %4354 = vmatpush1.msra.mxu0 0.0
  %4355 = vmatprep.subr.mxu0 0.0
  %4356 = vmatpush1.msra.mxu0 0.0
  %4357 = vmatprep.subr.mxu0 0.0
  %4358 = vmatpush1.msra.mxu0 0.0
  %4359 = vmatprep.subr.mxu0 0.0
  %4360 = vmatpush1.msra.mxu0 0.0
  %4361 = vmatprep.subr.mxu0 0.0
  %4362 = vmatpush1.msra.mxu0 0.0
  %4363 = vmatprep.subr.mxu0 0.0
  %4364 = vmatpush1.msra.mxu0 0.0
  %4365 = vmatprep.subr.mxu0 0.0
  %4366 = vmatpush1.msra.mxu0 0.0
  %4367 = vmatprep.subr.mxu0 0.0
  %4368 = vmatpush1.msra.mxu0 0.0
  %4369 = vmatprep.subr.mxu0 0.0
  %4370 = vmatpush1.msra.mxu0 0.0
  %4371 = vmatprep.subr.mxu0 0.0
  %4372 = vmatpush1.msra.mxu0 0.0
  %4373 = vmatprep.subr.mxu0 0.0
  %4374 = vmatpush1.msra.mxu0 0.0
  %4375 = vmatprep.subr.mxu0 0.0
  %4376 = vmatpush1.msra.mxu0 0.0
  %4377 = vmatprep.subr.mxu0 0.0
  %4378 = vmatpush1.msra.mxu0 0.0
  %4379 = vmatprep.subr.mxu0 0.0
  %4380 = vmatpush1.msra.mxu0 0.0
  %4381 = vmatprep.subr.mxu0 0.0
  %4382 = vmatpush1.msra.mxu0 0.0
  %4383 = vmatprep.subr.mxu0 0.0
  %4384 = vmatpush1.msra.mxu0 0.0
  %4385 = vmatprep.subr.mxu0 0.0
  %4386 = vmatpush1.msra.mxu0 0.0
  %4387 = vmatprep.mubr.f32.mxu0 0.0
  %4388 = vmatmul.mubr.f32.gmra.mrb[0].mxu0 %v4134
  %v4389 = vpop.f32.mrb[0].mxu0
  %v4390 = vadd.f32 0.0, %v4389
  %v4391 = vpop.f32.mrb[0].mxu0
  %v4392 = vadd.f32 0.0, %v4391
  %4393 = vmatprep.mubr.f32.mxu0 0.0
  %4394 = vmatmul.mubr.f32.gmra.mrb[0].mxu0 %v4137
  %v4395 = vpop.f32.mrb[0].mxu0
  %v4396 = vadd.f32 0.0, %v4395
  %v4397 = vpop.f32.mrb[0].mxu0
  %v4398 = vadd.f32 0.0, %v4397
  %4399 = vmatprep.mubr.f32.mxu0 0.0
  %4400 = vmatmul.mubr.f32.gmra.mrb[0].mxu0 %v4140
  %v4401 = vpop.f32.mrb[0].mxu0
  %v4402 = vadd.f32 0.0, %v4401
  %v4403 = vpop.f32.mrb[0].mxu0
  %v4404 = vadd.f32 0.0, %v4403
  %4405 = vmatprep.mubr.f32.mxu0 0.0
  %4406 = vmatmul.mubr.f32.gmra.mrb[0].mxu0 %v4143
  %v4407 = vpop.f32.mrb[0].mxu0
  %v4408 = vadd.f32 0.0, %v4407
  %v4409 = vpop.f32.mrb[0].mxu0
  %v4410 = vadd.f32 0.0, %v4409
  %4411 = vdwg.mxu0
  %4412 = vmatprep.subr.mxu0 %v4071
  %4413 = vmatpush1.msra.mxu0 %v4070
  %4414 = vmatprep.subr.mxu0 %v4079
  %4415 = vmatpush1.msra.mxu0 %v4078
  %4416 = vmatprep.subr.mxu0 %v4087
  %4417 = vmatpush1.msra.mxu0 %v4086
  %4418 = vmatprep.subr.mxu0 %v4095
  %4419 = vmatpush1.msra.mxu0 %v4094
  %4420 = vmatprep.subr.mxu0 %v4103
  %4421 = vmatpush1.msra.mxu0 %v4102
  %4422 = vmatprep.subr.mxu0 %v4111
  %4423 = vmatpush1.msra.mxu0 %v4110
  %4424 = vmatprep.subr.mxu0 %v4119
  %4425 = vmatpush1.msra.mxu0 %v4118
  %4426 = vmatprep.subr.mxu0 %v4127
  %4427 = vmatpush1.msra.mxu0 %v4126
  %4428 = vmatprep.subr.mxu0 0.0
  %4429 = vmatpush1.msra.mxu0 0.0
  %4430 = vmatprep.subr.mxu0 0.0
  %4431 = vmatpush1.msra.mxu0 0.0
  %4432 = vmatprep.subr.mxu0 0.0
  %4433 = vmatpush1.msra.mxu0 0.0
  %4434 = vmatprep.subr.mxu0 0.0
  %4435 = vmatpush1.msra.mxu0 0.0
  %4436 = vmatprep.subr.mxu0 0.0
  %4437 = vmatpush1.msra.mxu0 0.0
  %4438 = vmatprep.subr.mxu0 0.0
  %4439 = vmatpush1.msra.mxu0 0.0
  %4440 = vmatprep.subr.mxu0 0.0
  %4441 = vmatpush1.msra.mxu0 0.0
  %4442 = vmatprep.subr.mxu0 0.0
  %4443 = vmatpush1.msra.mxu0 0.0
  %4444 = vmatprep.subr.mxu0 0.0
  %4445 = vmatpush1.msra.mxu0 0.0
  %4446 = vmatprep.subr.mxu0 0.0
  %4447 = vmatpush1.msra.mxu0 0.0
  %4448 = vmatprep.subr.mxu0 0.0
  %4449 = vmatpush1.msra.mxu0 0.0
  %4450 = vmatprep.subr.mxu0 0.0
  %4451 = vmatpush1.msra.mxu0 0.0
  %4452 = vmatprep.subr.mxu0 0.0
  %4453 = vmatpush1.msra.mxu0 0.0
  %4454 = vmatprep.subr.mxu0 0.0
  %4455 = vmatpush1.msra.mxu0 0.0
  %4456 = vmatprep.subr.mxu0 0.0
  %4457 = vmatpush1.msra.mxu0 0.0
  %4458 = vmatprep.subr.mxu0 0.0
  %4459 = vmatpush1.msra.mxu0 0.0
  %4460 = vmatprep.subr.mxu0 0.0
  %4461 = vmatpush1.msra.mxu0 0.0
  %4462 = vmatprep.subr.mxu0 0.0
  %4463 = vmatpush1.msra.mxu0 0.0
  %4464 = vmatprep.subr.mxu0 0.0
  %4465 = vmatpush1.msra.mxu0 0.0
  %4466 = vmatprep.subr.mxu0 0.0
  %4467 = vmatpush1.msra.mxu0 0.0
  %4468 = vmatprep.subr.mxu0 0.0
  %4469 = vmatpush1.msra.mxu0 0.0
  %4470 = vmatprep.subr.mxu0 0.0
  %4471 = vmatpush1.msra.mxu0 0.0
  %4472 = vmatprep.subr.mxu0 0.0
  %4473 = vmatpush1.msra.mxu0 0.0
  %4474 = vmatprep.subr.mxu0 0.0
  %4475 = vmatpush1.msra.mxu0 0.0
  %4476 = vmatprep.mubr.f32.mxu0 0.0
  %4477 = vmatmul.mubr.f32.gmra.mrb[0].mxu0 %v4134
  %v4478 = vpop.f32.mrb[0].mxu0
  %v4479 = vadd.f32 0.0, %v4478
  %v4480 = vpop.f32.mrb[0].mxu0
  %v4481 = vadd.f32 0.0, %v4480
  %4482 = vmatprep.mubr.f32.mxu0 0.0
  %4483 = vmatmul.mubr.f32.gmra.mrb[0].mxu0 %v4137
  %v4484 = vpop.f32.mrb[0].mxu0
  %v4485 = vadd.f32 0.0, %v4484
  %v4486 = vpop.f32.mrb[0].mxu0
  %v4487 = vadd.f32 0.0, %v4486
  %4488 = vmatprep.mubr.f32.mxu0 0.0
  %4489 = vmatmul.mubr.f32.gmra.mrb[0].mxu0 %v4140
  %v4490 = vpop.f32.mrb[0].mxu0
  %v4491 = vadd.f32 0.0, %v4490
  %v4492 = vpop.f32.mrb[0].mxu0
  %v4493 = vadd.f32 0.0, %v4492
  %4494 = vmatprep.mubr.f32.mxu0 0.0
  %4495 = vmatmul.mubr.f32.gmra.mrb[0].mxu0 %v4143
  %v4496 = vpop.f32.mrb[0].mxu0
  %v4497 = vadd.f32 0.0, %v4496
  %v4498 = vpop.f32.mrb[0].mxu0
  %v4499 = vadd.f32 0.0, %v4498
  %4500 = vdwg.mxu0
  %v4501 = vadd.f32 %v3794, %v4212
  %v4502 = vadd.f32 %v3795, %v4214
  %v4503 = vadd.f32 %v3796, %v4301
  %v4504 = vadd.f32 %v3797, %v4303
  %v4505 = vadd.f32 %v3798, %v4390
  %v4506 = vadd.f32 %v3799, %v4392
  %v4507 = vadd.f32 %v3800, %v4479
  %v4508 = vadd.f32 %v3801, %v4481
  %v4509 = vadd.f32 %v3802, %v4218
  %v4510 = vadd.f32 %v3803, %v4220
  %v4511 = vadd.f32 %v3804, %v4307
  %v4512 = vadd.f32 %v3805, %v4309
  %v4513 = vadd.f32 %v3806, %v4396
  %v4514 = vadd.f32 %v3807, %v4398
  %v4515 = vadd.f32 %v3808, %v4485
  %v4516 = vadd.f32 %v3809, %v4487
  %v4517 = vadd.f32 %v3810, %v4224
  %v4518 = vadd.f32 %v3811, %v4226
  %v4519 = vadd.f32 %v3812, %v4313
  %v4520 = vadd.f32 %v3813, %v4315
  %v4521 = vadd.f32 %v3814, %v4402
  %v4522 = vadd.f32 %v3815, %v4404
  %v4523 = vadd.f32 %v3816, %v4491
  %v4524 = vadd.f32 %v3817, %v4493
  %v4525 = vadd.f32 %v3818, %v4230
  %v4526 = vadd.f32 %v3819, %v4232
  %v4527 = vadd.f32 %v3820, %v4319
  %v4528 = vadd.f32 %v3821, %v4321
  %v4529 = vadd.f32 %v3822, %v4408
  %v4530 = vadd.f32 %v3823, %v4410
  %v4531 = vadd.f32 %v3824, %v4497
  %v4532 = vadd.f32 %v3825, %v4499
  %4533 = vrot.lane.b32.xlu0 %v592, 113
  %v4534 = vpop.permute.xlu0 %4533
  %4535 = vrot.lane.b32.xlu0 %v600, 113
  %v4536 = vpop.permute.xlu0 %4535
  %4537 = vrot.lane.b32.xlu0 %v608, 113
  %v4538 = vpop.permute.xlu0 %4537
  %4539 = vrot.lane.b32.xlu0 %v616, 113
  %v4540 = vpop.permute.xlu0 %4539
  %4541 = vrot.lane.b32.xlu0 %v624, 113
  %v4542 = vpop.permute.xlu0 %4541
  %4543 = vrot.lane.b32.xlu0 %v632, 113
  %v4544 = vpop.permute.xlu0 %4543
  %4545 = vrot.lane.b32.xlu0 %v640, 113
  %v4546 = vpop.permute.xlu0 %4545
  %4547 = vrot.lane.b32.xlu0 %v648, 113
  %v4548 = vpop.permute.xlu0 %4547
  %4549 = vrot.lane.b32.xlu0 %v593, 113
  %v4550 = vpop.permute.xlu0 %4549
  %4551 = vrot.lane.b32.xlu0 %v601, 113
  %v4552 = vpop.permute.xlu0 %4551
  %4553 = vrot.lane.b32.xlu0 %v609, 113
  %v4554 = vpop.permute.xlu0 %4553
  %4555 = vrot.lane.b32.xlu0 %v617, 113
  %v4556 = vpop.permute.xlu0 %4555
  %4557 = vrot.lane.b32.xlu0 %v625, 113
  %v4558 = vpop.permute.xlu0 %4557
  %4559 = vrot.lane.b32.xlu0 %v633, 113
  %v4560 = vpop.permute.xlu0 %4559
  %4561 = vrot.lane.b32.xlu0 %v641, 113
  %v4562 = vpop.permute.xlu0 %4561
  %4563 = vrot.lane.b32.xlu0 %v649, 113
  %v4564 = vpop.permute.xlu0 %4563
  %4565 = vrot.lane.b32.xlu0 %v594, 113
  %v4566 = vpop.permute.xlu0 %4565
  %4567 = vrot.lane.b32.xlu0 %v602, 113
  %v4568 = vpop.permute.xlu0 %4567
  %4569 = vrot.lane.b32.xlu0 %v610, 113
  %v4570 = vpop.permute.xlu0 %4569
  %4571 = vrot.lane.b32.xlu0 %v618, 113
  %v4572 = vpop.permute.xlu0 %4571
  %4573 = vrot.lane.b32.xlu0 %v626, 113
  %v4574 = vpop.permute.xlu0 %4573
  %4575 = vrot.lane.b32.xlu0 %v634, 113
  %v4576 = vpop.permute.xlu0 %4575
  %4577 = vrot.lane.b32.xlu0 %v642, 113
  %v4578 = vpop.permute.xlu0 %4577
  %4579 = vrot.lane.b32.xlu0 %v650, 113
  %v4580 = vpop.permute.xlu0 %4579
  %4581 = vrot.lane.b32.xlu0 %v595, 113
  %v4582 = vpop.permute.xlu0 %4581
  %4583 = vrot.lane.b32.xlu0 %v603, 113
  %v4584 = vpop.permute.xlu0 %4583
  %4585 = vrot.lane.b32.xlu0 %v611, 113
  %v4586 = vpop.permute.xlu0 %4585
  %4587 = vrot.lane.b32.xlu0 %v619, 113
  %v4588 = vpop.permute.xlu0 %4587
  %4589 = vrot.lane.b32.xlu0 %v627, 113
  %v4590 = vpop.permute.xlu0 %4589
  %4591 = vrot.lane.b32.xlu0 %v635, 113
  %v4592 = vpop.permute.xlu0 %4591
  %4593 = vrot.lane.b32.xlu0 %v643, 113
  %v4594 = vpop.permute.xlu0 %4593
  %4595 = vrot.lane.b32.xlu0 %v651, 113
  %v4596 = vpop.permute.xlu0 %4595
  %4597 = vrot.lane.b32.xlu0 %v596, 113
  %v4598 = vpop.permute.xlu0 %4597
  %4599 = vrot.lane.b32.xlu0 %v604, 113
  %v4600 = vpop.permute.xlu0 %4599
  %4601 = vrot.lane.b32.xlu0 %v612, 113
  %v4602 = vpop.permute.xlu0 %4601
  %4603 = vrot.lane.b32.xlu0 %v620, 113
  %v4604 = vpop.permute.xlu0 %4603
  %4605 = vrot.lane.b32.xlu0 %v628, 113
  %v4606 = vpop.permute.xlu0 %4605
  %4607 = vrot.lane.b32.xlu0 %v636, 113
  %v4608 = vpop.permute.xlu0 %4607
  %4609 = vrot.lane.b32.xlu0 %v644, 113
  %v4610 = vpop.permute.xlu0 %4609
  %4611 = vrot.lane.b32.xlu0 %v652, 113
  %v4612 = vpop.permute.xlu0 %4611
  %4613 = vrot.lane.b32.xlu0 %v597, 113
  %v4614 = vpop.permute.xlu0 %4613
  %4615 = vrot.lane.b32.xlu0 %v605, 113
  %v4616 = vpop.permute.xlu0 %4615
  %4617 = vrot.lane.b32.xlu0 %v613, 113
  %v4618 = vpop.permute.xlu0 %4617
  %4619 = vrot.lane.b32.xlu0 %v621, 113
  %v4620 = vpop.permute.xlu0 %4619
  %4621 = vrot.lane.b32.xlu0 %v629, 113
  %v4622 = vpop.permute.xlu0 %4621
  %4623 = vrot.lane.b32.xlu0 %v637, 113
  %v4624 = vpop.permute.xlu0 %4623
  %4625 = vrot.lane.b32.xlu0 %v645, 113
  %v4626 = vpop.permute.xlu0 %4625
  %4627 = vrot.lane.b32.xlu0 %v653, 113
  %v4628 = vpop.permute.xlu0 %4627
  %4629 = vrot.lane.b32.xlu0 %v598, 113
  %v4630 = vpop.permute.xlu0 %4629
  %4631 = vrot.lane.b32.xlu0 %v606, 113
  %v4632 = vpop.permute.xlu0 %4631
  %4633 = vrot.lane.b32.xlu0 %v614, 113
  %v4634 = vpop.permute.xlu0 %4633
  %4635 = vrot.lane.b32.xlu0 %v622, 113
  %v4636 = vpop.permute.xlu0 %4635
  %4637 = vrot.lane.b32.xlu0 %v630, 113
  %v4638 = vpop.permute.xlu0 %4637
  %4639 = vrot.lane.b32.xlu0 %v638, 113
  %v4640 = vpop.permute.xlu0 %4639
  %4641 = vrot.lane.b32.xlu0 %v646, 113
  %v4642 = vpop.permute.xlu0 %4641
  %4643 = vrot.lane.b32.xlu0 %v654, 113
  %v4644 = vpop.permute.xlu0 %4643
  %4645 = vrot.lane.b32.xlu0 %v599, 113
  %v4646 = vpop.permute.xlu0 %4645
  %4647 = vrot.lane.b32.xlu0 %v607, 113
  %v4648 = vpop.permute.xlu0 %4647
  %4649 = vrot.lane.b32.xlu0 %v615, 113
  %v4650 = vpop.permute.xlu0 %4649
  %4651 = vrot.lane.b32.xlu0 %v623, 113
  %v4652 = vpop.permute.xlu0 %4651
  %4653 = vrot.lane.b32.xlu0 %v631, 113
  %v4654 = vpop.permute.xlu0 %4653
  %4655 = vrot.lane.b32.xlu0 %v639, 113
  %v4656 = vpop.permute.xlu0 %4655
  %4657 = vrot.lane.b32.xlu0 %v647, 113
  %v4658 = vpop.permute.xlu0 %4657
  %4659 = vrot.lane.b32.xlu0 %v655, 113
  %v4660 = vpop.permute.xlu0 %4659
  %vm4661 = vcmp.lt.s32.totalorder %v790, 113
  %v4662 = vsel %vm4661, %v4630, %v4646
  %v4663 = vsel %vm4661, %v4632, %v4648
  %v4664 = vsel %vm4661, %v4634, %v4650
  %v4665 = vsel %vm4661, %v4636, %v4652
  %v4666 = vsel %vm4661, %v4638, %v4654
  %v4667 = vsel %vm4661, %v4640, %v4656
  %v4668 = vsel %vm4661, %v4642, %v4658
  %v4669 = vsel %vm4661, %v4644, %v4660
  %v4670 = vsel %vm4661, %v4614, %v4630
  %v4671 = vsel %vm4661, %v4616, %v4632
  %v4672 = vsel %vm4661, %v4618, %v4634
  %v4673 = vsel %vm4661, %v4620, %v4636
  %v4674 = vsel %vm4661, %v4622, %v4638
  %v4675 = vsel %vm4661, %v4624, %v4640
  %v4676 = vsel %vm4661, %v4626, %v4642
  %v4677 = vsel %vm4661, %v4628, %v4644
  %v4678 = vsel %vm4661, %v4598, %v4614
  %v4679 = vsel %vm4661, %v4600, %v4616
  %v4680 = vsel %vm4661, %v4602, %v4618
  %v4681 = vsel %vm4661, %v4604, %v4620
  %v4682 = vsel %vm4661, %v4606, %v4622
  %v4683 = vsel %vm4661, %v4608, %v4624
  %v4684 = vsel %vm4661, %v4610, %v4626
  %v4685 = vsel %vm4661, %v4612, %v4628
  %v4686 = vsel %vm4661, %v4582, %v4598
  %v4687 = vsel %vm4661, %v4584, %v4600
  %v4688 = vsel %vm4661, %v4586, %v4602
  %v4689 = vsel %vm4661, %v4588, %v4604
  %v4690 = vsel %vm4661, %v4590, %v4606
  %v4691 = vsel %vm4661, %v4592, %v4608
  %v4692 = vsel %vm4661, %v4594, %v4610
  %v4693 = vsel %vm4661, %v4596, %v4612
  %v4694 = vsel %vm4661, %v4566, %v4582
  %v4695 = vsel %vm4661, %v4568, %v4584
  %v4696 = vsel %vm4661, %v4570, %v4586
  %v4697 = vsel %vm4661, %v4572, %v4588
  %v4698 = vsel %vm4661, %v4574, %v4590
  %v4699 = vsel %vm4661, %v4576, %v4592
  %v4700 = vsel %vm4661, %v4578, %v4594
  %v4701 = vsel %vm4661, %v4580, %v4596
  %v4702 = vsel %vm4661, %v4550, %v4566
  %v4703 = vsel %vm4661, %v4552, %v4568
  %v4704 = vsel %vm4661, %v4554, %v4570
  %v4705 = vsel %vm4661, %v4556, %v4572
  %v4706 = vsel %vm4661, %v4558, %v4574
  %v4707 = vsel %vm4661, %v4560, %v4576
  %v4708 = vsel %vm4661, %v4562, %v4578
  %v4709 = vsel %vm4661, %v4564, %v4580
  %v4710 = vsel %vm4661, %v4534, %v4550
  %v4711 = vsel %vm4661, %v4536, %v4552
  %v4712 = vsel %vm4661, %v4538, %v4554
  %v4713 = vsel %vm4661, %v4540, %v4556
  %v4714 = vsel %vm4661, %v4542, %v4558
  %v4715 = vsel %vm4661, %v4544, %v4560
  %v4716 = vsel %vm4661, %v4546, %v4562
  %v4717 = vsel %vm4661, %v4548, %v4564
  %v4718 = vsel %vm4661, %v4646, %v4534
  %v4719 = vsel %vm4661, %v4648, %v4536
  %v4720 = vsel %vm4661, %v4650, %v4538
  %v4721 = vsel %vm4661, %v4652, %v4540
  %v4722 = vsel %vm4661, %v4654, %v4542
  %v4723 = vsel %vm4661, %v4656, %v4544
  %v4724 = vsel %vm4661, %v4658, %v4546
  %v4725 = vsel %vm4661, %v4660, %v4548
  %s4726 = scalar_lea.vmem %s1, 5
  %v4727 = vld [vmem:[%s4726] ss:$8 sm:$0xf]
  %v4728 = vld [vmem:[%s4726] ss:$8 sm:$0xf0]
  %v4729 = vor.u32 %v4727, %v4728
  %v4731 = vlaneseq
  %v4732 = vshrl.u32 %v4731, 7
  %v4733 = vsub.s32 0, %v4732
  %v4734 = vrot.slane %v4729, %v4733
  %v4735 = vlaneseq
  %v4736 = vshrl.u32 %v4735, 7
  %v4737 = vsub.s32 1, %v4736
  %v4738 = vrot.slane %v4729, %v4737
  %v4739 = vlaneseq
  %v4740 = vshrl.u32 %v4739, 7
  %v4741 = vsub.s32 2, %v4740
  %v4742 = vrot.slane %v4729, %v4741
  %v4743 = vlaneseq
  %v4744 = vshrl.u32 %v4743, 7
  %v4745 = vsub.s32 3, %v4744
  %v4746 = vrot.slane %v4729, %v4745
  %v4747 = vlaneseq
  %v4748 = vshrl.u32 %v4747, 7
  %v4749 = vsub.s32 4, %v4748
  %v4750 = vrot.slane %v4729, %v4749
  %v4751 = vlaneseq
  %v4752 = vshrl.u32 %v4751, 7
  %v4753 = vsub.s32 5, %v4752
  %v4754 = vrot.slane %v4729, %v4753
  %v4755 = vlaneseq
  %v4756 = vshrl.u32 %v4755, 7
  %v4757 = vsub.s32 6, %v4756
  %v4758 = vrot.slane %v4729, %v4757
  %v4759 = vlaneseq
  %v4760 = vshrl.u32 %v4759, 7
  %v4761 = vsub.s32 7, %v4760
  %v4762 = vrot.slane %v4729, %v4761
  %v4771 = vmul.f32 %v4710, %v4734
  %v4772 = vmul.f32 %v4702, %v4738
  %v4773 = vmul.f32 %v4694, %v4742
  %v4774 = vmul.f32 %v4686, %v4746
  %v4775 = vmul.f32 %v4678, %v4750
  %v4776 = vmul.f32 %v4670, %v4754
  %v4777 = vmul.f32 %v4662, %v4758
  %v4778 = vmul.f32 %v4718, %v4762
  %v4779 = vmul.f32 %v4711, %v4734
  %v4780 = vmul.f32 %v4703, %v4738
  %v4781 = vmul.f32 %v4695, %v4742
  %v4782 = vmul.f32 %v4687, %v4746
  %v4783 = vmul.f32 %v4679, %v4750
  %v4784 = vmul.f32 %v4671, %v4754
  %v4785 = vmul.f32 %v4663, %v4758
  %v4786 = vmul.f32 %v4719, %v4762
  %v4787 = vmul.f32 %v4712, %v4734
  %v4788 = vmul.f32 %v4704, %v4738
  %v4789 = vmul.f32 %v4696, %v4742
  %v4790 = vmul.f32 %v4688, %v4746
  %v4791 = vmul.f32 %v4680, %v4750
  %v4792 = vmul.f32 %v4672, %v4754
  %v4793 = vmul.f32 %v4664, %v4758
  %v4794 = vmul.f32 %v4720, %v4762
  %v4795 = vmul.f32 %v4713, %v4734
  %v4796 = vmul.f32 %v4705, %v4738
  %v4797 = vmul.f32 %v4697, %v4742
  %v4798 = vmul.f32 %v4689, %v4746
  %v4799 = vmul.f32 %v4681, %v4750
  %v4800 = vmul.f32 %v4673, %v4754
  %v4801 = vmul.f32 %v4665, %v4758
  %v4802 = vmul.f32 %v4721, %v4762
  %v4803 = vmul.f32 %v4714, %v4734
  %v4804 = vmul.f32 %v4706, %v4738
  %v4805 = vmul.f32 %v4698, %v4742
  %v4806 = vmul.f32 %v4690, %v4746
  %v4807 = vmul.f32 %v4682, %v4750
  %v4808 = vmul.f32 %v4674, %v4754
  %v4809 = vmul.f32 %v4666, %v4758
  %v4810 = vmul.f32 %v4722, %v4762
  %v4811 = vmul.f32 %v4715, %v4734
  %v4812 = vmul.f32 %v4707, %v4738
  %v4813 = vmul.f32 %v4699, %v4742
  %v4814 = vmul.f32 %v4691, %v4746
  %v4815 = vmul.f32 %v4683, %v4750
  %v4816 = vmul.f32 %v4675, %v4754
  %v4817 = vmul.f32 %v4667, %v4758
  %v4818 = vmul.f32 %v4723, %v4762
  %v4819 = vmul.f32 %v4716, %v4734
  %v4820 = vmul.f32 %v4708, %v4738
  %v4821 = vmul.f32 %v4700, %v4742
  %v4822 = vmul.f32 %v4692, %v4746
  %v4823 = vmul.f32 %v4684, %v4750
  %v4824 = vmul.f32 %v4676, %v4754
  %v4825 = vmul.f32 %v4668, %v4758
  %v4826 = vmul.f32 %v4724, %v4762
  %v4827 = vmul.f32 %v4717, %v4734
  %v4828 = vmul.f32 %v4709, %v4738
  %v4829 = vmul.f32 %v4701, %v4742
  %v4830 = vmul.f32 %v4693, %v4746
  %v4831 = vmul.f32 %v4685, %v4750
  %v4832 = vmul.f32 %v4677, %v4754
  %v4833 = vmul.f32 %v4669, %v4758
  %v4834 = vmul.f32 %v4725, %v4762
  %s4835 = scalar_lea.vmem %s4, 192
  %v4836 = vld [vmem:[%s4835] sm:$0xff]
  %v4837 = vld [vmem:[%s4835 + $0x8] sm:$0xff]
  %v4838 = vld [vmem:[%s4835 + $0x10] sm:$0xff]
  %v4839 = vld [vmem:[%s4835 + $0x18] sm:$0xff]
  %v4841 = vsel %vm968, %v4836, 0
  %v4844 = vsel %vm968, %v4837, 0
  %v4847 = vsel %vm968, %v4838, 0
  %v4850 = vsel %vm968, %v4839, 0
  %4852 = vmatprep.subr.mxu0 %v4772
  %4853 = vmatpush1.msra.mxu0 %v4771
  %4854 = vmatprep.subr.mxu0 %v4780
  %4855 = vmatpush1.msra.mxu0 %v4779
  %4856 = vmatprep.subr.mxu0 %v4788
  %4857 = vmatpush1.msra.mxu0 %v4787
  %4858 = vmatprep.subr.mxu0 %v4796
  %4859 = vmatpush1.msra.mxu0 %v4795
  %4860 = vmatprep.subr.mxu0 %v4804
  %4861 = vmatpush1.msra.mxu0 %v4803
  %4862 = vmatprep.subr.mxu0 %v4812
  %4863 = vmatpush1.msra.mxu0 %v4811
  %4864 = vmatprep.subr.mxu0 %v4820
  %4865 = vmatpush1.msra.mxu0 %v4819
  %4866 = vmatprep.subr.mxu0 %v4828
  %4867 = vmatpush1.msra.mxu0 %v4827
  %4868 = vmatprep.subr.mxu0 0.0
  %4869 = vmatpush1.msra.mxu0 0.0
  %4870 = vmatprep.subr.mxu0 0.0
  %4871 = vmatpush1.msra.mxu0 0.0
  %4872 = vmatprep.subr.mxu0 0.0
  %4873 = vmatpush1.msra.mxu0 0.0
  %4874 = vmatprep.subr.mxu0 0.0
  %4875 = vmatpush1.msra.mxu0 0.0
  %4876 = vmatprep.subr.mxu0 0.0
  %4877 = vmatpush1.msra.mxu0 0.0
  %4878 = vmatprep.subr.mxu0 0.0
  %4879 = vmatpush1.msra.mxu0 0.0
  %4880 = vmatprep.subr.mxu0 0.0
  %4881 = vmatpush1.msra.mxu0 0.0
  %4882 = vmatprep.subr.mxu0 0.0
  %4883 = vmatpush1.msra.mxu0 0.0
  %4884 = vmatprep.subr.mxu0 0.0
  %4885 = vmatpush1.msra.mxu0 0.0
  %4886 = vmatprep.subr.mxu0 0.0
  %4887 = vmatpush1.msra.mxu0 0.0
  %4888 = vmatprep.subr.mxu0 0.0
  %4889 = vmatpush1.msra.mxu0 0.0
  %4890 = vmatprep.subr.mxu0 0.0
  %4891 = vmatpush1.msra.mxu0 0.0
  %4892 = vmatprep.subr.mxu0 0.0
  %4893 = vmatpush1.msra.mxu0 0.0
  %4894 = vmatprep.subr.mxu0 0.0
  %4895 = vmatpush1.msra.mxu0 0.0
  %4896 = vmatprep.subr.mxu0 0.0
  %4897 = vmatpush1.msra.mxu0 0.0
  %4898 = vmatprep.subr.mxu0 0.0
  %4899 = vmatpush1.msra.mxu0 0.0
  %4900 = vmatprep.subr.mxu0 0.0
  %4901 = vmatpush1.msra.mxu0 0.0
  %4902 = vmatprep.subr.mxu0 0.0
  %4903 = vmatpush1.msra.mxu0 0.0
  %4904 = vmatprep.subr.mxu0 0.0
  %4905 = vmatpush1.msra.mxu0 0.0
  %4906 = vmatprep.subr.mxu0 0.0
  %4907 = vmatpush1.msra.mxu0 0.0
  %4908 = vmatprep.subr.mxu0 0.0
  %4909 = vmatpush1.msra.mxu0 0.0
  %4910 = vmatprep.subr.mxu0 0.0
  %4911 = vmatpush1.msra.mxu0 0.0
  %4912 = vmatprep.subr.mxu0 0.0
  %4913 = vmatpush1.msra.mxu0 0.0
  %4914 = vmatprep.subr.mxu0 0.0
  %4915 = vmatpush1.msra.mxu0 0.0
  %4916 = vmatprep.mubr.f32.mxu0 0.0
  %4917 = vmatmul.mubr.f32.gmra.mrb[0].mxu0 %v4841
  %v4918 = vpop.f32.mrb[0].mxu0
  %v4919 = vadd.f32 0.0, %v4918
  %v4920 = vpop.f32.mrb[0].mxu0
  %v4921 = vadd.f32 0.0, %v4920
  %4922 = vmatprep.mubr.f32.mxu0 0.0
  %4923 = vmatmul.mubr.f32.gmra.mrb[0].mxu0 %v4844
  %v4924 = vpop.f32.mrb[0].mxu0
  %v4925 = vadd.f32 0.0, %v4924
  %v4926 = vpop.f32.mrb[0].mxu0
  %v4927 = vadd.f32 0.0, %v4926
  %4928 = vmatprep.mubr.f32.mxu0 0.0
  %4929 = vmatmul.mubr.f32.gmra.mrb[0].mxu0 %v4847
  %v4930 = vpop.f32.mrb[0].mxu0
  %v4931 = vadd.f32 0.0, %v4930
  %v4932 = vpop.f32.mrb[0].mxu0
  %v4933 = vadd.f32 0.0, %v4932
  %4934 = vmatprep.mubr.f32.mxu0 0.0
  %4935 = vmatmul.mubr.f32.gmra.mrb[0].mxu0 %v4850
  %v4936 = vpop.f32.mrb[0].mxu0
  %v4937 = vadd.f32 0.0, %v4936
  %v4938 = vpop.f32.mrb[0].mxu0
  %v4939 = vadd.f32 0.0, %v4938
  %4940 = vdwg.mxu0
  %4941 = vmatprep.subr.mxu0 %v4774
  %4942 = vmatpush1.msra.mxu0 %v4773
  %4943 = vmatprep.subr.mxu0 %v4782
  %4944 = vmatpush1.msra.mxu0 %v4781
  %4945 = vmatprep.subr.mxu0 %v4790
  %4946 = vmatpush1.msra.mxu0 %v4789
  %4947 = vmatprep.subr.mxu0 %v4798
  %4948 = vmatpush1.msra.mxu0 %v4797
  %4949 = vmatprep.subr.mxu0 %v4806
  %4950 = vmatpush1.msra.mxu0 %v4805
  %4951 = vmatprep.subr.mxu0 %v4814
  %4952 = vmatpush1.msra.mxu0 %v4813
  %4953 = vmatprep.subr.mxu0 %v4822
  %4954 = vmatpush1.msra.mxu0 %v4821
  %4955 = vmatprep.subr.mxu0 %v4830
  %4956 = vmatpush1.msra.mxu0 %v4829
  %4957 = vmatprep.subr.mxu0 0.0
  %4958 = vmatpush1.msra.mxu0 0.0
  %4959 = vmatprep.subr.mxu0 0.0
  %4960 = vmatpush1.msra.mxu0 0.0
  %4961 = vmatprep.subr.mxu0 0.0
  %4962 = vmatpush1.msra.mxu0 0.0
  %4963 = vmatprep.subr.mxu0 0.0
  %4964 = vmatpush1.msra.mxu0 0.0
  %4965 = vmatprep.subr.mxu0 0.0
  %4966 = vmatpush1.msra.mxu0 0.0
  %4967 = vmatprep.subr.mxu0 0.0
  %4968 = vmatpush1.msra.mxu0 0.0
  %4969 = vmatprep.subr.mxu0 0.0
  %4970 = vmatpush1.msra.mxu0 0.0
  %4971 = vmatprep.subr.mxu0 0.0
  %4972 = vmatpush1.msra.mxu0 0.0
  %4973 = vmatprep.subr.mxu0 0.0
  %4974 = vmatpush1.msra.mxu0 0.0
  %4975 = vmatprep.subr.mxu0 0.0
  %4976 = vmatpush1.msra.mxu0 0.0
  %4977 = vmatprep.subr.mxu0 0.0
  %4978 = vmatpush1.msra.mxu0 0.0
  %4979 = vmatprep.subr.mxu0 0.0
  %4980 = vmatpush1.msra.mxu0 0.0
  %4981 = vmatprep.subr.mxu0 0.0
  %4982 = vmatpush1.msra.mxu0 0.0
  %4983 = vmatprep.subr.mxu0 0.0
  %4984 = vmatpush1.msra.mxu0 0.0
  %4985 = vmatprep.subr.mxu0 0.0
  %4986 = vmatpush1.msra.mxu0 0.0
  %4987 = vmatprep.subr.mxu0 0.0
  %4988 = vmatpush1.msra.mxu0 0.0
  %4989 = vmatprep.subr.mxu0 0.0
  %4990 = vmatpush1.msra.mxu0 0.0
  %4991 = vmatprep.subr.mxu0 0.0
  %4992 = vmatpush1.msra.mxu0 0.0
  %4993 = vmatprep.subr.mxu0 0.0
  %4994 = vmatpush1.msra.mxu0 0.0
  %4995 = vmatprep.subr.mxu0 0.0
  %4996 = vmatpush1.msra.mxu0 0.0
  %4997 = vmatprep.subr.mxu0 0.0
  %4998 = vmatpush1.msra.mxu0 0.0
  %4999 = vmatprep.subr.mxu0 0.0
  %5000 = vmatpush1.msra.mxu0 0.0
  %5001 = vmatprep.subr.mxu0 0.0
  %5002 = vmatpush1.msra.mxu0 0.0
  %5003 = vmatprep.subr.mxu0 0.0
  %5004 = vmatpush1.msra.mxu0 0.0
  %5005 = vmatprep.mubr.f32.mxu0 0.0
  %5006 = vmatmul.mubr.f32.gmra.mrb[0].mxu0 %v4841
  %v5007 = vpop.f32.mrb[0].mxu0
  %v5008 = vadd.f32 0.0, %v5007
  %v5009 = vpop.f32.mrb[0].mxu0
  %v5010 = vadd.f32 0.0, %v5009
  %5011 = vmatprep.mubr.f32.mxu0 0.0
  %5012 = vmatmul.mubr.f32.gmra.mrb[0].mxu0 %v4844
  %v5013 = vpop.f32.mrb[0].mxu0
  %v5014 = vadd.f32 0.0, %v5013
  %v5015 = vpop.f32.mrb[0].mxu0
  %v5016 = vadd.f32 0.0, %v5015
  %5017 = vmatprep.mubr.f32.mxu0 0.0
  %5018 = vmatmul.mubr.f32.gmra.mrb[0].mxu0 %v4847
  %v5019 = vpop.f32.mrb[0].mxu0
  %v5020 = vadd.f32 0.0, %v5019
  %v5021 = vpop.f32.mrb[0].mxu0
  %v5022 = vadd.f32 0.0, %v5021
  %5023 = vmatprep.mubr.f32.mxu0 0.0
  %5024 = vmatmul.mubr.f32.gmra.mrb[0].mxu0 %v4850
  %v5025 = vpop.f32.mrb[0].mxu0
  %v5026 = vadd.f32 0.0, %v5025
  %v5027 = vpop.f32.mrb[0].mxu0
  %v5028 = vadd.f32 0.0, %v5027
  %5029 = vdwg.mxu0
  %5030 = vmatprep.subr.mxu0 %v4776
  %5031 = vmatpush1.msra.mxu0 %v4775
  %5032 = vmatprep.subr.mxu0 %v4784
  %5033 = vmatpush1.msra.mxu0 %v4783
  %5034 = vmatprep.subr.mxu0 %v4792
  %5035 = vmatpush1.msra.mxu0 %v4791
  %5036 = vmatprep.subr.mxu0 %v4800
  %5037 = vmatpush1.msra.mxu0 %v4799
  %5038 = vmatprep.subr.mxu0 %v4808
  %5039 = vmatpush1.msra.mxu0 %v4807
  %5040 = vmatprep.subr.mxu0 %v4816
  %5041 = vmatpush1.msra.mxu0 %v4815
  %5042 = vmatprep.subr.mxu0 %v4824
  %5043 = vmatpush1.msra.mxu0 %v4823
  %5044 = vmatprep.subr.mxu0 %v4832
  %5045 = vmatpush1.msra.mxu0 %v4831
  %5046 = vmatprep.subr.mxu0 0.0
  %5047 = vmatpush1.msra.mxu0 0.0
  %5048 = vmatprep.subr.mxu0 0.0
  %5049 = vmatpush1.msra.mxu0 0.0
  %5050 = vmatprep.subr.mxu0 0.0
  %5051 = vmatpush1.msra.mxu0 0.0
  %5052 = vmatprep.subr.mxu0 0.0
  %5053 = vmatpush1.msra.mxu0 0.0
  %5054 = vmatprep.subr.mxu0 0.0
  %5055 = vmatpush1.msra.mxu0 0.0
  %5056 = vmatprep.subr.mxu0 0.0
  %5057 = vmatpush1.msra.mxu0 0.0
  %5058 = vmatprep.subr.mxu0 0.0
  %5059 = vmatpush1.msra.mxu0 0.0
  %5060 = vmatprep.subr.mxu0 0.0
  %5061 = vmatpush1.msra.mxu0 0.0
  %5062 = vmatprep.subr.mxu0 0.0
  %5063 = vmatpush1.msra.mxu0 0.0
  %5064 = vmatprep.subr.mxu0 0.0
  %5065 = vmatpush1.msra.mxu0 0.0
  %5066 = vmatprep.subr.mxu0 0.0
  %5067 = vmatpush1.msra.mxu0 0.0
  %5068 = vmatprep.subr.mxu0 0.0
  %5069 = vmatpush1.msra.mxu0 0.0
  %5070 = vmatprep.subr.mxu0 0.0
  %5071 = vmatpush1.msra.mxu0 0.0
  %5072 = vmatprep.subr.mxu0 0.0
  %5073 = vmatpush1.msra.mxu0 0.0
  %5074 = vmatprep.subr.mxu0 0.0
  %5075 = vmatpush1.msra.mxu0 0.0
  %5076 = vmatprep.subr.mxu0 0.0
  %5077 = vmatpush1.msra.mxu0 0.0
  %5078 = vmatprep.subr.mxu0 0.0
  %5079 = vmatpush1.msra.mxu0 0.0
  %5080 = vmatprep.subr.mxu0 0.0
  %5081 = vmatpush1.msra.mxu0 0.0
  %5082 = vmatprep.subr.mxu0 0.0
  %5083 = vmatpush1.msra.mxu0 0.0
  %5084 = vmatprep.subr.mxu0 0.0
  %5085 = vmatpush1.msra.mxu0 0.0
  %5086 = vmatprep.subr.mxu0 0.0
  %5087 = vmatpush1.msra.mxu0 0.0
  %5088 = vmatprep.subr.mxu0 0.0
  %5089 = vmatpush1.msra.mxu0 0.0
  %5090 = vmatprep.subr.mxu0 0.0
  %5091 = vmatpush1.msra.mxu0 0.0
  %5092 = vmatprep.subr.mxu0 0.0
  %5093 = vmatpush1.msra.mxu0 0.0
  %5094 = vmatprep.mubr.f32.mxu0 0.0
  %5095 = vmatmul.mubr.f32.gmra.mrb[0].mxu0 %v4841
  %v5096 = vpop.f32.mrb[0].mxu0
  %v5097 = vadd.f32 0.0, %v5096
  %v5098 = vpop.f32.mrb[0].mxu0
  %v5099 = vadd.f32 0.0, %v5098
  %5100 = vmatprep.mubr.f32.mxu0 0.0
  %5101 = vmatmul.mubr.f32.gmra.mrb[0].mxu0 %v4844
  %v5102 = vpop.f32.mrb[0].mxu0
  %v5103 = vadd.f32 0.0, %v5102
  %v5104 = vpop.f32.mrb[0].mxu0
  %v5105 = vadd.f32 0.0, %v5104
  %5106 = vmatprep.mubr.f32.mxu0 0.0
  %5107 = vmatmul.mubr.f32.gmra.mrb[0].mxu0 %v4847
  %v5108 = vpop.f32.mrb[0].mxu0
  %v5109 = vadd.f32 0.0, %v5108
  %v5110 = vpop.f32.mrb[0].mxu0
  %v5111 = vadd.f32 0.0, %v5110
  %5112 = vmatprep.mubr.f32.mxu0 0.0
  %5113 = vmatmul.mubr.f32.gmra.mrb[0].mxu0 %v4850
  %v5114 = vpop.f32.mrb[0].mxu0
  %v5115 = vadd.f32 0.0, %v5114
  %v5116 = vpop.f32.mrb[0].mxu0
  %v5117 = vadd.f32 0.0, %v5116
  %5118 = vdwg.mxu0
  %5119 = vmatprep.subr.mxu0 %v4778
  %5120 = vmatpush1.msra.mxu0 %v4777
  %5121 = vmatprep.subr.mxu0 %v4786
  %5122 = vmatpush1.msra.mxu0 %v4785
  %5123 = vmatprep.subr.mxu0 %v4794
  %5124 = vmatpush1.msra.mxu0 %v4793
  %5125 = vmatprep.subr.mxu0 %v4802
  %5126 = vmatpush1.msra.mxu0 %v4801
  %5127 = vmatprep.subr.mxu0 %v4810
  %5128 = vmatpush1.msra.mxu0 %v4809
  %5129 = vmatprep.subr.mxu0 %v4818
  %5130 = vmatpush1.msra.mxu0 %v4817
  %5131 = vmatprep.subr.mxu0 %v4826
  %5132 = vmatpush1.msra.mxu0 %v4825
  %5133 = vmatprep.subr.mxu0 %v4834
  %5134 = vmatpush1.msra.mxu0 %v4833
  %5135 = vmatprep.subr.mxu0 0.0
  %5136 = vmatpush1.msra.mxu0 0.0
  %5137 = vmatprep.subr.mxu0 0.0
  %5138 = vmatpush1.msra.mxu0 0.0
  %5139 = vmatprep.subr.mxu0 0.0
  %5140 = vmatpush1.msra.mxu0 0.0
  %5141 = vmatprep.subr.mxu0 0.0
  %5142 = vmatpush1.msra.mxu0 0.0
  %5143 = vmatprep.subr.mxu0 0.0
  %5144 = vmatpush1.msra.mxu0 0.0
  %5145 = vmatprep.subr.mxu0 0.0
  %5146 = vmatpush1.msra.mxu0 0.0
  %5147 = vmatprep.subr.mxu0 0.0
  %5148 = vmatpush1.msra.mxu0 0.0
  %5149 = vmatprep.subr.mxu0 0.0
  %5150 = vmatpush1.msra.mxu0 0.0
  %5151 = vmatprep.subr.mxu0 0.0
  %5152 = vmatpush1.msra.mxu0 0.0
  %5153 = vmatprep.subr.mxu0 0.0
  %5154 = vmatpush1.msra.mxu0 0.0
  %5155 = vmatprep.subr.mxu0 0.0
  %5156 = vmatpush1.msra.mxu0 0.0
  %5157 = vmatprep.subr.mxu0 0.0
  %5158 = vmatpush1.msra.mxu0 0.0
  %5159 = vmatprep.subr.mxu0 0.0
  %5160 = vmatpush1.msra.mxu0 0.0
  %5161 = vmatprep.subr.mxu0 0.0
  %5162 = vmatpush1.msra.mxu0 0.0
  %5163 = vmatprep.subr.mxu0 0.0
  %5164 = vmatpush1.msra.mxu0 0.0
  %5165 = vmatprep.subr.mxu0 0.0
  %5166 = vmatpush1.msra.mxu0 0.0
  %5167 = vmatprep.subr.mxu0 0.0
  %5168 = vmatpush1.msra.mxu0 0.0
  %5169 = vmatprep.subr.mxu0 0.0
  %5170 = vmatpush1.msra.mxu0 0.0
  %5171 = vmatprep.subr.mxu0 0.0
  %5172 = vmatpush1.msra.mxu0 0.0
  %5173 = vmatprep.subr.mxu0 0.0
  %5174 = vmatpush1.msra.mxu0 0.0
  %5175 = vmatprep.subr.mxu0 0.0
  %5176 = vmatpush1.msra.mxu0 0.0
  %5177 = vmatprep.subr.mxu0 0.0
  %5178 = vmatpush1.msra.mxu0 0.0
  %5179 = vmatprep.subr.mxu0 0.0
  %5180 = vmatpush1.msra.mxu0 0.0
  %5181 = vmatprep.subr.mxu0 0.0
  %5182 = vmatpush1.msra.mxu0 0.0
  %5183 = vmatprep.mubr.f32.mxu0 0.0
  %5184 = vmatmul.mubr.f32.gmra.mrb[0].mxu0 %v4841
  %v5185 = vpop.f32.mrb[0].mxu0
  %v5186 = vadd.f32 0.0, %v5185
  %v5187 = vpop.f32.mrb[0].mxu0
  %v5188 = vadd.f32 0.0, %v5187
  %5189 = vmatprep.mubr.f32.mxu0 0.0
  %5190 = vmatmul.mubr.f32.gmra.mrb[0].mxu0 %v4844
  %v5191 = vpop.f32.mrb[0].mxu0
  %v5192 = vadd.f32 0.0, %v5191
  %v5193 = vpop.f32.mrb[0].mxu0
  %v5194 = vadd.f32 0.0, %v5193
  %5195 = vmatprep.mubr.f32.mxu0 0.0
  %5196 = vmatmul.mubr.f32.gmra.mrb[0].mxu0 %v4847
  %v5197 = vpop.f32.mrb[0].mxu0
  %v5198 = vadd.f32 0.0, %v5197
  %v5199 = vpop.f32.mrb[0].mxu0
  %v5200 = vadd.f32 0.0, %v5199
  %5201 = vmatprep.mubr.f32.mxu0 0.0
  %5202 = vmatmul.mubr.f32.gmra.mrb[0].mxu0 %v4850
  %v5203 = vpop.f32.mrb[0].mxu0
  %v5204 = vadd.f32 0.0, %v5203
  %v5205 = vpop.f32.mrb[0].mxu0
  %v5206 = vadd.f32 0.0, %v5205
  %5207 = vdwg.mxu0
  %v5208 = vadd.f32 %v4501, %v4919
  %v5209 = vadd.f32 %v4502, %v4921
  %v5210 = vadd.f32 %v4503, %v5008
  %v5211 = vadd.f32 %v4504, %v5010
  %v5212 = vadd.f32 %v4505, %v5097
  %v5213 = vadd.f32 %v4506, %v5099
  %v5214 = vadd.f32 %v4507, %v5186
  %v5215 = vadd.f32 %v4508, %v5188
  %v5216 = vadd.f32 %v4509, %v4925
  %v5217 = vadd.f32 %v4510, %v4927
  %v5218 = vadd.f32 %v4511, %v5014
  %v5219 = vadd.f32 %v4512, %v5016
  %v5220 = vadd.f32 %v4513, %v5103
  %v5221 = vadd.f32 %v4514, %v5105
  %v5222 = vadd.f32 %v4515, %v5192
  %v5223 = vadd.f32 %v4516, %v5194
  %v5224 = vadd.f32 %v4517, %v4931
  %v5225 = vadd.f32 %v4518, %v4933
  %v5226 = vadd.f32 %v4519, %v5020
  %v5227 = vadd.f32 %v4520, %v5022
  %v5228 = vadd.f32 %v4521, %v5109
  %v5229 = vadd.f32 %v4522, %v5111
  %v5230 = vadd.f32 %v4523, %v5198
  %v5231 = vadd.f32 %v4524, %v5200
  %v5232 = vadd.f32 %v4525, %v4937
  %v5233 = vadd.f32 %v4526, %v4939
  %v5234 = vadd.f32 %v4527, %v5026
  %v5235 = vadd.f32 %v4528, %v5028
  %v5236 = vadd.f32 %v4529, %v5115
  %v5237 = vadd.f32 %v4530, %v5117
  %v5238 = vadd.f32 %v4531, %v5204
  %v5239 = vadd.f32 %v4532, %v5206
  %5240 = vrot.lane.b32.xlu0 %v592, 112
  %v5241 = vpop.permute.xlu0 %5240
  %5242 = vrot.lane.b32.xlu0 %v600, 112
  %v5243 = vpop.permute.xlu0 %5242
  %5244 = vrot.lane.b32.xlu0 %v608, 112
  %v5245 = vpop.permute.xlu0 %5244
  %5246 = vrot.lane.b32.xlu0 %v616, 112
  %v5247 = vpop.permute.xlu0 %5246
  %5248 = vrot.lane.b32.xlu0 %v624, 112
  %v5249 = vpop.permute.xlu0 %5248
  %5250 = vrot.lane.b32.xlu0 %v632, 112
  %v5251 = vpop.permute.xlu0 %5250
  %5252 = vrot.lane.b32.xlu0 %v640, 112
  %v5253 = vpop.permute.xlu0 %5252
  %5254 = vrot.lane.b32.xlu0 %v648, 112
  %v5255 = vpop.permute.xlu0 %5254
  %5256 = vrot.lane.b32.xlu0 %v593, 112
  %v5257 = vpop.permute.xlu0 %5256
  %5258 = vrot.lane.b32.xlu0 %v601, 112
  %v5259 = vpop.permute.xlu0 %5258
  %5260 = vrot.lane.b32.xlu0 %v609, 112
  %v5261 = vpop.permute.xlu0 %5260
  %5262 = vrot.lane.b32.xlu0 %v617, 112
  %v5263 = vpop.permute.xlu0 %5262
  %5264 = vrot.lane.b32.xlu0 %v625, 112
  %v5265 = vpop.permute.xlu0 %5264
  %5266 = vrot.lane.b32.xlu0 %v633, 112
  %v5267 = vpop.permute.xlu0 %5266
  %5268 = vrot.lane.b32.xlu0 %v641, 112
  %v5269 = vpop.permute.xlu0 %5268
  %5270 = vrot.lane.b32.xlu0 %v649, 112
  %v5271 = vpop.permute.xlu0 %5270
  %5272 = vrot.lane.b32.xlu0 %v594, 112
  %v5273 = vpop.permute.xlu0 %5272
  %5274 = vrot.lane.b32.xlu0 %v602, 112
  %v5275 = vpop.permute.xlu0 %5274
  %5276 = vrot.lane.b32.xlu0 %v610, 112
  %v5277 = vpop.permute.xlu0 %5276
  %5278 = vrot.lane.b32.xlu0 %v618, 112
  %v5279 = vpop.permute.xlu0 %5278
  %5280 = vrot.lane.b32.xlu0 %v626, 112
  %v5281 = vpop.permute.xlu0 %5280
  %5282 = vrot.lane.b32.xlu0 %v634, 112
  %v5283 = vpop.permute.xlu0 %5282
  %5284 = vrot.lane.b32.xlu0 %v642, 112
  %v5285 = vpop.permute.xlu0 %5284
  %5286 = vrot.lane.b32.xlu0 %v650, 112
  %v5287 = vpop.permute.xlu0 %5286
  %5288 = vrot.lane.b32.xlu0 %v595, 112
  %v5289 = vpop.permute.xlu0 %5288
  %5290 = vrot.lane.b32.xlu0 %v603, 112
  %v5291 = vpop.permute.xlu0 %5290
  %5292 = vrot.lane.b32.xlu0 %v611, 112
  %v5293 = vpop.permute.xlu0 %5292
  %5294 = vrot.lane.b32.xlu0 %v619, 112
  %v5295 = vpop.permute.xlu0 %5294
  %5296 = vrot.lane.b32.xlu0 %v627, 112
  %v5297 = vpop.permute.xlu0 %5296
  %5298 = vrot.lane.b32.xlu0 %v635, 112
  %v5299 = vpop.permute.xlu0 %5298
  %5300 = vrot.lane.b32.xlu0 %v643, 112
  %v5301 = vpop.permute.xlu0 %5300
  %5302 = vrot.lane.b32.xlu0 %v651, 112
  %v5303 = vpop.permute.xlu0 %5302
  %5304 = vrot.lane.b32.xlu0 %v596, 112
  %v5305 = vpop.permute.xlu0 %5304
  %5306 = vrot.lane.b32.xlu0 %v604, 112
  %v5307 = vpop.permute.xlu0 %5306
  %5308 = vrot.lane.b32.xlu0 %v612, 112
  %v5309 = vpop.permute.xlu0 %5308
  %5310 = vrot.lane.b32.xlu0 %v620, 112
  %v5311 = vpop.permute.xlu0 %5310
  %5312 = vrot.lane.b32.xlu0 %v628, 112
  %v5313 = vpop.permute.xlu0 %5312
  %5314 = vrot.lane.b32.xlu0 %v636, 112
  %v5315 = vpop.permute.xlu0 %5314
  %5316 = vrot.lane.b32.xlu0 %v644, 112
  %v5317 = vpop.permute.xlu0 %5316
  %5318 = vrot.lane.b32.xlu0 %v652, 112
  %v5319 = vpop.permute.xlu0 %5318
  %5320 = vrot.lane.b32.xlu0 %v597, 112
  %v5321 = vpop.permute.xlu0 %5320
  %5322 = vrot.lane.b32.xlu0 %v605, 112
  %v5323 = vpop.permute.xlu0 %5322
  %5324 = vrot.lane.b32.xlu0 %v613, 112
  %v5325 = vpop.permute.xlu0 %5324
  %5326 = vrot.lane.b32.xlu0 %v621, 112
  %v5327 = vpop.permute.xlu0 %5326
  %5328 = vrot.lane.b32.xlu0 %v629, 112
  %v5329 = vpop.permute.xlu0 %5328
  %5330 = vrot.lane.b32.xlu0 %v637, 112
  %v5331 = vpop.permute.xlu0 %5330
  %5332 = vrot.lane.b32.xlu0 %v645, 112
  %v5333 = vpop.permute.xlu0 %5332
  %5334 = vrot.lane.b32.xlu0 %v653, 112
  %v5335 = vpop.permute.xlu0 %5334
  %5336 = vrot.lane.b32.xlu0 %v598, 112
  %v5337 = vpop.permute.xlu0 %5336
  %5338 = vrot.lane.b32.xlu0 %v606, 112
  %v5339 = vpop.permute.xlu0 %5338
  %5340 = vrot.lane.b32.xlu0 %v614, 112
  %v5341 = vpop.permute.xlu0 %5340
  %5342 = vrot.lane.b32.xlu0 %v622, 112
  %v5343 = vpop.permute.xlu0 %5342
  %5344 = vrot.lane.b32.xlu0 %v630, 112
  %v5345 = vpop.permute.xlu0 %5344
  %5346 = vrot.lane.b32.xlu0 %v638, 112
  %v5347 = vpop.permute.xlu0 %5346
  %5348 = vrot.lane.b32.xlu0 %v646, 112
  %v5349 = vpop.permute.xlu0 %5348
  %5350 = vrot.lane.b32.xlu0 %v654, 112
  %v5351 = vpop.permute.xlu0 %5350
  %5352 = vrot.lane.b32.xlu0 %v599, 112
  %v5353 = vpop.permute.xlu0 %5352
  %5354 = vrot.lane.b32.xlu0 %v607, 112
  %v5355 = vpop.permute.xlu0 %5354
  %5356 = vrot.lane.b32.xlu0 %v615, 112
  %v5357 = vpop.permute.xlu0 %5356
  %5358 = vrot.lane.b32.xlu0 %v623, 112
  %v5359 = vpop.permute.xlu0 %5358
  %5360 = vrot.lane.b32.xlu0 %v631, 112
  %v5361 = vpop.permute.xlu0 %5360
  %5362 = vrot.lane.b32.xlu0 %v639, 112
  %v5363 = vpop.permute.xlu0 %5362
  %5364 = vrot.lane.b32.xlu0 %v647, 112
  %v5365 = vpop.permute.xlu0 %5364
  %5366 = vrot.lane.b32.xlu0 %v655, 112
  %v5367 = vpop.permute.xlu0 %5366
  %vm5368 = vcmp.lt.s32.totalorder %v790, 112
  %v5369 = vsel %vm5368, %v5337, %v5353
  %v5370 = vsel %vm5368, %v5339, %v5355
  %v5371 = vsel %vm5368, %v5341, %v5357
  %v5372 = vsel %vm5368, %v5343, %v5359
  %v5373 = vsel %vm5368, %v5345, %v5361
  %v5374 = vsel %vm5368, %v5347, %v5363
  %v5375 = vsel %vm5368, %v5349, %v5365
  %v5376 = vsel %vm5368, %v5351, %v5367
  %v5377 = vsel %vm5368, %v5321, %v5337
  %v5378 = vsel %vm5368, %v5323, %v5339
  %v5379 = vsel %vm5368, %v5325, %v5341
  %v5380 = vsel %vm5368, %v5327, %v5343
  %v5381 = vsel %vm5368, %v5329, %v5345
  %v5382 = vsel %vm5368, %v5331, %v5347
  %v5383 = vsel %vm5368, %v5333, %v5349
  %v5384 = vsel %vm5368, %v5335, %v5351
  %v5385 = vsel %vm5368, %v5305, %v5321
  %v5386 = vsel %vm5368, %v5307, %v5323
  %v5387 = vsel %vm5368, %v5309, %v5325
  %v5388 = vsel %vm5368, %v5311, %v5327
  %v5389 = vsel %vm5368, %v5313, %v5329
  %v5390 = vsel %vm5368, %v5315, %v5331
  %v5391 = vsel %vm5368, %v5317, %v5333
  %v5392 = vsel %vm5368, %v5319, %v5335
  %v5393 = vsel %vm5368, %v5289, %v5305
  %v5394 = vsel %vm5368, %v5291, %v5307
  %v5395 = vsel %vm5368, %v5293, %v5309
  %v5396 = vsel %vm5368, %v5295, %v5311
  %v5397 = vsel %vm5368, %v5297, %v5313
  %v5398 = vsel %vm5368, %v5299, %v5315
  %v5399 = vsel %vm5368, %v5301, %v5317
  %v5400 = vsel %vm5368, %v5303, %v5319
  %v5401 = vsel %vm5368, %v5273, %v5289
  %v5402 = vsel %vm5368, %v5275, %v5291
  %v5403 = vsel %vm5368, %v5277, %v5293
  %v5404 = vsel %vm5368, %v5279, %v5295
  %v5405 = vsel %vm5368, %v5281, %v5297
  %v5406 = vsel %vm5368, %v5283, %v5299
  %v5407 = vsel %vm5368, %v5285, %v5301
  %v5408 = vsel %vm5368, %v5287, %v5303
  %v5409 = vsel %vm5368, %v5257, %v5273
  %v5410 = vsel %vm5368, %v5259, %v5275
  %v5411 = vsel %vm5368, %v5261, %v5277
  %v5412 = vsel %vm5368, %v5263, %v5279
  %v5413 = vsel %vm5368, %v5265, %v5281
  %v5414 = vsel %vm5368, %v5267, %v5283
  %v5415 = vsel %vm5368, %v5269, %v5285
  %v5416 = vsel %vm5368, %v5271, %v5287
  %v5417 = vsel %vm5368, %v5241, %v5257
  %v5418 = vsel %vm5368, %v5243, %v5259
  %v5419 = vsel %vm5368, %v5245, %v5261
  %v5420 = vsel %vm5368, %v5247, %v5263
  %v5421 = vsel %vm5368, %v5249, %v5265
  %v5422 = vsel %vm5368, %v5251, %v5267
  %v5423 = vsel %vm5368, %v5253, %v5269
  %v5424 = vsel %vm5368, %v5255, %v5271
  %v5425 = vsel %vm5368, %v5353, %v5241
  %v5426 = vsel %vm5368, %v5355, %v5243
  %v5427 = vsel %vm5368, %v5357, %v5245
  %v5428 = vsel %vm5368, %v5359, %v5247
  %v5429 = vsel %vm5368, %v5361, %v5249
  %v5430 = vsel %vm5368, %v5363, %v5251
  %v5431 = vsel %vm5368, %v5365, %v5253
  %v5432 = vsel %vm5368, %v5367, %v5255
  %s5433 = scalar_lea.vmem %s1, 6
  %v5434 = vld [vmem:[%s5433] ss:$8 sm:$0xf]
  %v5435 = vld [vmem:[%s5433] ss:$8 sm:$0xf0]
  %v5436 = vor.u32 %v5434, %v5435
  %v5438 = vlaneseq
  %v5439 = vshrl.u32 %v5438, 7
  %v5440 = vsub.s32 0, %v5439
  %v5441 = vrot.slane %v5436, %v5440
  %v5442 = vlaneseq
  %v5443 = vshrl.u32 %v5442, 7
  %v5444 = vsub.s32 1, %v5443
  %v5445 = vrot.slane %v5436, %v5444
  %v5446 = vlaneseq
  %v5447 = vshrl.u32 %v5446, 7
  %v5448 = vsub.s32 2, %v5447
  %v5449 = vrot.slane %v5436, %v5448
  %v5450 = vlaneseq
  %v5451 = vshrl.u32 %v5450, 7
  %v5452 = vsub.s32 3, %v5451
  %v5453 = vrot.slane %v5436, %v5452
  %v5454 = vlaneseq
  %v5455 = vshrl.u32 %v5454, 7
  %v5456 = vsub.s32 4, %v5455
  %v5457 = vrot.slane %v5436, %v5456
  %v5458 = vlaneseq
  %v5459 = vshrl.u32 %v5458, 7
  %v5460 = vsub.s32 5, %v5459
  %v5461 = vrot.slane %v5436, %v5460
  %v5462 = vlaneseq
  %v5463 = vshrl.u32 %v5462, 7
  %v5464 = vsub.s32 6, %v5463
  %v5465 = vrot.slane %v5436, %v5464
  %v5466 = vlaneseq
  %v5467 = vshrl.u32 %v5466, 7
  %v5468 = vsub.s32 7, %v5467
  %v5469 = vrot.slane %v5436, %v5468
  %v5478 = vmul.f32 %v5417, %v5441
  %v5479 = vmul.f32 %v5409, %v5445
  %v5480 = vmul.f32 %v5401, %v5449
  %v5481 = vmul.f32 %v5393, %v5453
  %v5482 = vmul.f32 %v5385, %v5457
  %v5483 = vmul.f32 %v5377, %v5461
  %v5484 = vmul.f32 %v5369, %v5465
  %v5485 = vmul.f32 %v5425, %v5469
  %v5486 = vmul.f32 %v5418, %v5441
  %v5487 = vmul.f32 %v5410, %v5445
  %v5488 = vmul.f32 %v5402, %v5449
  %v5489 = vmul.f32 %v5394, %v5453
  %v5490 = vmul.f32 %v5386, %v5457
  %v5491 = vmul.f32 %v5378, %v5461
  %v5492 = vmul.f32 %v5370, %v5465
  %v5493 = vmul.f32 %v5426, %v5469
  %v5494 = vmul.f32 %v5419, %v5441
  %v5495 = vmul.f32 %v5411, %v5445
  %v5496 = vmul.f32 %v5403, %v5449
  %v5497 = vmul.f32 %v5395, %v5453
  %v5498 = vmul.f32 %v5387, %v5457
  %v5499 = vmul.f32 %v5379, %v5461
  %v5500 = vmul.f32 %v5371, %v5465
  %v5501 = vmul.f32 %v5427, %v5469
  %v5502 = vmul.f32 %v5420, %v5441
  %v5503 = vmul.f32 %v5412, %v5445
  %v5504 = vmul.f32 %v5404, %v5449
  %v5505 = vmul.f32 %v5396, %v5453
  %v5506 = vmul.f32 %v5388, %v5457
  %v5507 = vmul.f32 %v5380, %v5461
  %v5508 = vmul.f32 %v5372, %v5465
  %v5509 = vmul.f32 %v5428, %v5469
  %v5510 = vmul.f32 %v5421, %v5441
  %v5511 = vmul.f32 %v5413, %v5445
  %v5512 = vmul.f32 %v5405, %v5449
  %v5513 = vmul.f32 %v5397, %v5453
  %v5514 = vmul.f32 %v5389, %v5457
  %v5515 = vmul.f32 %v5381, %v5461
  %v5516 = vmul.f32 %v5373, %v5465
  %v5517 = vmul.f32 %v5429, %v5469
  %v5518 = vmul.f32 %v5422, %v5441
  %v5519 = vmul.f32 %v5414, %v5445
  %v5520 = vmul.f32 %v5406, %v5449
  %v5521 = vmul.f32 %v5398, %v5453
  %v5522 = vmul.f32 %v5390, %v5457
  %v5523 = vmul.f32 %v5382, %v5461
  %v5524 = vmul.f32 %v5374, %v5465
  %v5525 = vmul.f32 %v5430, %v5469
  %v5526 = vmul.f32 %v5423, %v5441
  %v5527 = vmul.f32 %v5415, %v5445
  %v5528 = vmul.f32 %v5407, %v5449
  %v5529 = vmul.f32 %v5399, %v5453
  %v5530 = vmul.f32 %v5391, %v5457
  %v5531 = vmul.f32 %v5383, %v5461
  %v5532 = vmul.f32 %v5375, %v5465
  %v5533 = vmul.f32 %v5431, %v5469
  %v5534 = vmul.f32 %v5424, %v5441
  %v5535 = vmul.f32 %v5416, %v5445
  %v5536 = vmul.f32 %v5408, %v5449
  %v5537 = vmul.f32 %v5400, %v5453
  %v5538 = vmul.f32 %v5392, %v5457
  %v5539 = vmul.f32 %v5384, %v5461
  %v5540 = vmul.f32 %v5376, %v5465
  %v5541 = vmul.f32 %v5432, %v5469
  %s5542 = scalar_lea.vmem %s4, 224
  %v5543 = vld [vmem:[%s5542] sm:$0xff]
  %v5544 = vld [vmem:[%s5542 + $0x8] sm:$0xff]
  %v5545 = vld [vmem:[%s5542 + $0x10] sm:$0xff]
  %v5546 = vld [vmem:[%s5542 + $0x18] sm:$0xff]
  %v5548 = vsel %vm968, %v5543, 0
  %v5551 = vsel %vm968, %v5544, 0
  %v5554 = vsel %vm968, %v5545, 0
  %v5557 = vsel %vm968, %v5546, 0
  %5559 = vmatprep.subr.mxu0 %v5479
  %5560 = vmatpush1.msra.mxu0 %v5478
  %5561 = vmatprep.subr.mxu0 %v5487
  %5562 = vmatpush1.msra.mxu0 %v5486
  %5563 = vmatprep.subr.mxu0 %v5495
  %5564 = vmatpush1.msra.mxu0 %v5494
  %5565 = vmatprep.subr.mxu0 %v5503
  %5566 = vmatpush1.msra.mxu0 %v5502
  %5567 = vmatprep.subr.mxu0 %v5511
  %5568 = vmatpush1.msra.mxu0 %v5510
  %5569 = vmatprep.subr.mxu0 %v5519
  %5570 = vmatpush1.msra.mxu0 %v5518
  %5571 = vmatprep.subr.mxu0 %v5527
  %5572 = vmatpush1.msra.mxu0 %v5526
  %5573 = vmatprep.subr.mxu0 %v5535
  %5574 = vmatpush1.msra.mxu0 %v5534
  %5575 = vmatprep.subr.mxu0 0.0
  %5576 = vmatpush1.msra.mxu0 0.0
  %5577 = vmatprep.subr.mxu0 0.0
  %5578 = vmatpush1.msra.mxu0 0.0
  %5579 = vmatprep.subr.mxu0 0.0
  %5580 = vmatpush1.msra.mxu0 0.0
  %5581 = vmatprep.subr.mxu0 0.0
  %5582 = vmatpush1.msra.mxu0 0.0
  %5583 = vmatprep.subr.mxu0 0.0
  %5584 = vmatpush1.msra.mxu0 0.0
  %5585 = vmatprep.subr.mxu0 0.0
  %5586 = vmatpush1.msra.mxu0 0.0
  %5587 = vmatprep.subr.mxu0 0.0
  %5588 = vmatpush1.msra.mxu0 0.0
  %5589 = vmatprep.subr.mxu0 0.0
  %5590 = vmatpush1.msra.mxu0 0.0
  %5591 = vmatprep.subr.mxu0 0.0
  %5592 = vmatpush1.msra.mxu0 0.0
  %5593 = vmatprep.subr.mxu0 0.0
  %5594 = vmatpush1.msra.mxu0 0.0
  %5595 = vmatprep.subr.mxu0 0.0
  %5596 = vmatpush1.msra.mxu0 0.0
  %5597 = vmatprep.subr.mxu0 0.0
  %5598 = vmatpush1.msra.mxu0 0.0
  %5599 = vmatprep.subr.mxu0 0.0
  %5600 = vmatpush1.msra.mxu0 0.0
  %5601 = vmatprep.subr.mxu0 0.0
  %5602 = vmatpush1.msra.mxu0 0.0
  %5603 = vmatprep.subr.mxu0 0.0
  %5604 = vmatpush1.msra.mxu0 0.0
  %5605 = vmatprep.subr.mxu0 0.0
  %5606 = vmatpush1.msra.mxu0 0.0
  %5607 = vmatprep.subr.mxu0 0.0
  %5608 = vmatpush1.msra.mxu0 0.0
  %5609 = vmatprep.subr.mxu0 0.0
  %5610 = vmatpush1.msra.mxu0 0.0
  %5611 = vmatprep.subr.mxu0 0.0
  %5612 = vmatpush1.msra.mxu0 0.0
  %5613 = vmatprep.subr.mxu0 0.0
  %5614 = vmatpush1.msra.mxu0 0.0
  %5615 = vmatprep.subr.mxu0 0.0
  %5616 = vmatpush1.msra.mxu0 0.0
  %5617 = vmatprep.subr.mxu0 0.0
  %5618 = vmatpush1.msra.mxu0 0.0
  %5619 = vmatprep.subr.mxu0 0.0
  %5620 = vmatpush1.msra.mxu0 0.0
  %5621 = vmatprep.subr.mxu0 0.0
  %5622 = vmatpush1.msra.mxu0 0.0
  %5623 = vmatprep.mubr.f32.mxu0 0.0
  %5624 = vmatmul.mubr.f32.gmra.mrb[0].mxu0 %v5548
  %v5625 = vpop.f32.mrb[0].mxu0
  %v5626 = vadd.f32 0.0, %v5625
  %v5627 = vpop.f32.mrb[0].mxu0
  %v5628 = vadd.f32 0.0, %v5627
  %5629 = vmatprep.mubr.f32.mxu0 0.0
  %5630 = vmatmul.mubr.f32.gmra.mrb[0].mxu0 %v5551
  %v5631 = vpop.f32.mrb[0].mxu0
  %v5632 = vadd.f32 0.0, %v5631
  %v5633 = vpop.f32.mrb[0].mxu0
  %v5634 = vadd.f32 0.0, %v5633
  %5635 = vmatprep.mubr.f32.mxu0 0.0
  %5636 = vmatmul.mubr.f32.gmra.mrb[0].mxu0 %v5554
  %v5637 = vpop.f32.mrb[0].mxu0
  %v5638 = vadd.f32 0.0, %v5637
  %v5639 = vpop.f32.mrb[0].mxu0
  %v5640 = vadd.f32 0.0, %v5639
  %5641 = vmatprep.mubr.f32.mxu0 0.0
  %5642 = vmatmul.mubr.f32.gmra.mrb[0].mxu0 %v5557
  %v5643 = vpop.f32.mrb[0].mxu0
  %v5644 = vadd.f32 0.0, %v5643
  %v5645 = vpop.f32.mrb[0].mxu0
  %v5646 = vadd.f32 0.0, %v5645
  %5647 = vdwg.mxu0
  %5648 = vmatprep.subr.mxu0 %v5481
  %5649 = vmatpush1.msra.mxu0 %v5480
  %5650 = vmatprep.subr.mxu0 %v5489
  %5651 = vmatpush1.msra.mxu0 %v5488
  %5652 = vmatprep.subr.mxu0 %v5497
  %5653 = vmatpush1.msra.mxu0 %v5496
  %5654 = vmatprep.subr.mxu0 %v5505
  %5655 = vmatpush1.msra.mxu0 %v5504
  %5656 = vmatprep.subr.mxu0 %v5513
  %5657 = vmatpush1.msra.mxu0 %v5512
  %5658 = vmatprep.subr.mxu0 %v5521
  %5659 = vmatpush1.msra.mxu0 %v5520
  %5660 = vmatprep.subr.mxu0 %v5529
  %5661 = vmatpush1.msra.mxu0 %v5528
  %5662 = vmatprep.subr.mxu0 %v5537
  %5663 = vmatpush1.msra.mxu0 %v5536
  %5664 = vmatprep.subr.mxu0 0.0
  %5665 = vmatpush1.msra.mxu0 0.0
  %5666 = vmatprep.subr.mxu0 0.0
  %5667 = vmatpush1.msra.mxu0 0.0
  %5668 = vmatprep.subr.mxu0 0.0
  %5669 = vmatpush1.msra.mxu0 0.0
  %5670 = vmatprep.subr.mxu0 0.0
  %5671 = vmatpush1.msra.mxu0 0.0
  %5672 = vmatprep.subr.mxu0 0.0
  %5673 = vmatpush1.msra.mxu0 0.0
  %5674 = vmatprep.subr.mxu0 0.0
  %5675 = vmatpush1.msra.mxu0 0.0
  %5676 = vmatprep.subr.mxu0 0.0
  %5677 = vmatpush1.msra.mxu0 0.0
  %5678 = vmatprep.subr.mxu0 0.0
  %5679 = vmatpush1.msra.mxu0 0.0
  %5680 = vmatprep.subr.mxu0 0.0
  %5681 = vmatpush1.msra.mxu0 0.0
  %5682 = vmatprep.subr.mxu0 0.0
  %5683 = vmatpush1.msra.mxu0 0.0
  %5684 = vmatprep.subr.mxu0 0.0
  %5685 = vmatpush1.msra.mxu0 0.0
  %5686 = vmatprep.subr.mxu0 0.0
  %5687 = vmatpush1.msra.mxu0 0.0
  %5688 = vmatprep.subr.mxu0 0.0
  %5689 = vmatpush1.msra.mxu0 0.0
  %5690 = vmatprep.subr.mxu0 0.0
  %5691 = vmatpush1.msra.mxu0 0.0
  %5692 = vmatprep.subr.mxu0 0.0
  %5693 = vmatpush1.msra.mxu0 0.0
  %5694 = vmatprep.subr.mxu0 0.0
  %5695 = vmatpush1.msra.mxu0 0.0
  %5696 = vmatprep.subr.mxu0 0.0
  %5697 = vmatpush1.msra.mxu0 0.0
  %5698 = vmatprep.subr.mxu0 0.0
  %5699 = vmatpush1.msra.mxu0 0.0
  %5700 = vmatprep.subr.mxu0 0.0
  %5701 = vmatpush1.msra.mxu0 0.0
  %5702 = vmatprep.subr.mxu0 0.0
  %5703 = vmatpush1.msra.mxu0 0.0
  %5704 = vmatprep.subr.mxu0 0.0
  %5705 = vmatpush1.msra.mxu0 0.0
  %5706 = vmatprep.subr.mxu0 0.0
  %5707 = vmatpush1.msra.mxu0 0.0
  %5708 = vmatprep.subr.mxu0 0.0
  %5709 = vmatpush1.msra.mxu0 0.0
  %5710 = vmatprep.subr.mxu0 0.0
  %5711 = vmatpush1.msra.mxu0 0.0
  %5712 = vmatprep.mubr.f32.mxu0 0.0
  %5713 = vmatmul.mubr.f32.gmra.mrb[0].mxu0 %v5548
  %v5714 = vpop.f32.mrb[0].mxu0
  %v5715 = vadd.f32 0.0, %v5714
  %v5716 = vpop.f32.mrb[0].mxu0
  %v5717 = vadd.f32 0.0, %v5716
  %5718 = vmatprep.mubr.f32.mxu0 0.0
  %5719 = vmatmul.mubr.f32.gmra.mrb[0].mxu0 %v5551
  %v5720 = vpop.f32.mrb[0].mxu0
  %v5721 = vadd.f32 0.0, %v5720
  %v5722 = vpop.f32.mrb[0].mxu0
  %v5723 = vadd.f32 0.0, %v5722
  %5724 = vmatprep.mubr.f32.mxu0 0.0
  %5725 = vmatmul.mubr.f32.gmra.mrb[0].mxu0 %v5554
  %v5726 = vpop.f32.mrb[0].mxu0
  %v5727 = vadd.f32 0.0, %v5726
  %v5728 = vpop.f32.mrb[0].mxu0
  %v5729 = vadd.f32 0.0, %v5728
  %5730 = vmatprep.mubr.f32.mxu0 0.0
  %5731 = vmatmul.mubr.f32.gmra.mrb[0].mxu0 %v5557
  %v5732 = vpop.f32.mrb[0].mxu0
  %v5733 = vadd.f32 0.0, %v5732
  %v5734 = vpop.f32.mrb[0].mxu0
  %v5735 = vadd.f32 0.0, %v5734
  %5736 = vdwg.mxu0
  %5737 = vmatprep.subr.mxu0 %v5483
  %5738 = vmatpush1.msra.mxu0 %v5482
  %5739 = vmatprep.subr.mxu0 %v5491
  %5740 = vmatpush1.msra.mxu0 %v5490
  %5741 = vmatprep.subr.mxu0 %v5499
  %5742 = vmatpush1.msra.mxu0 %v5498
  %5743 = vmatprep.subr.mxu0 %v5507
  %5744 = vmatpush1.msra.mxu0 %v5506
  %5745 = vmatprep.subr.mxu0 %v5515
  %5746 = vmatpush1.msra.mxu0 %v5514
  %5747 = vmatprep.subr.mxu0 %v5523
  %5748 = vmatpush1.msra.mxu0 %v5522
  %5749 = vmatprep.subr.mxu0 %v5531
  %5750 = vmatpush1.msra.mxu0 %v5530
  %5751 = vmatprep.subr.mxu0 %v5539
  %5752 = vmatpush1.msra.mxu0 %v5538
  %5753 = vmatprep.subr.mxu0 0.0
  %5754 = vmatpush1.msra.mxu0 0.0
  %5755 = vmatprep.subr.mxu0 0.0
  %5756 = vmatpush1.msra.mxu0 0.0
  %5757 = vmatprep.subr.mxu0 0.0
  %5758 = vmatpush1.msra.mxu0 0.0
  %5759 = vmatprep.subr.mxu0 0.0
  %5760 = vmatpush1.msra.mxu0 0.0
  %5761 = vmatprep.subr.mxu0 0.0
  %5762 = vmatpush1.msra.mxu0 0.0
  %5763 = vmatprep.subr.mxu0 0.0
  %5764 = vmatpush1.msra.mxu0 0.0
  %5765 = vmatprep.subr.mxu0 0.0
  %5766 = vmatpush1.msra.mxu0 0.0
  %5767 = vmatprep.subr.mxu0 0.0
  %5768 = vmatpush1.msra.mxu0 0.0
  %5769 = vmatprep.subr.mxu0 0.0
  %5770 = vmatpush1.msra.mxu0 0.0
  %5771 = vmatprep.subr.mxu0 0.0
  %5772 = vmatpush1.msra.mxu0 0.0
  %5773 = vmatprep.subr.mxu0 0.0
  %5774 = vmatpush1.msra.mxu0 0.0
  %5775 = vmatprep.subr.mxu0 0.0
  %5776 = vmatpush1.msra.mxu0 0.0
  %5777 = vmatprep.subr.mxu0 0.0
  %5778 = vmatpush1.msra.mxu0 0.0
  %5779 = vmatprep.subr.mxu0 0.0
  %5780 = vmatpush1.msra.mxu0 0.0
  %5781 = vmatprep.subr.mxu0 0.0
  %5782 = vmatpush1.msra.mxu0 0.0
  %5783 = vmatprep.subr.mxu0 0.0
  %5784 = vmatpush1.msra.mxu0 0.0
  %5785 = vmatprep.subr.mxu0 0.0
  %5786 = vmatpush1.msra.mxu0 0.0
  %5787 = vmatprep.subr.mxu0 0.0
  %5788 = vmatpush1.msra.mxu0 0.0
  %5789 = vmatprep.subr.mxu0 0.0
  %5790 = vmatpush1.msra.mxu0 0.0
  %5791 = vmatprep.subr.mxu0 0.0
  %5792 = vmatpush1.msra.mxu0 0.0
  %5793 = vmatprep.subr.mxu0 0.0
  %5794 = vmatpush1.msra.mxu0 0.0
  %5795 = vmatprep.subr.mxu0 0.0
  %5796 = vmatpush1.msra.mxu0 0.0
  %5797 = vmatprep.subr.mxu0 0.0
  %5798 = vmatpush1.msra.mxu0 0.0
  %5799 = vmatprep.subr.mxu0 0.0
  %5800 = vmatpush1.msra.mxu0 0.0
  %5801 = vmatprep.mubr.f32.mxu0 0.0
  %5802 = vmatmul.mubr.f32.gmra.mrb[0].mxu0 %v5548
  %v5803 = vpop.f32.mrb[0].mxu0
  %v5804 = vadd.f32 0.0, %v5803
  %v5805 = vpop.f32.mrb[0].mxu0
  %v5806 = vadd.f32 0.0, %v5805
  %5807 = vmatprep.mubr.f32.mxu0 0.0
  %5808 = vmatmul.mubr.f32.gmra.mrb[0].mxu0 %v5551
  %v5809 = vpop.f32.mrb[0].mxu0
  %v5810 = vadd.f32 0.0, %v5809
  %v5811 = vpop.f32.mrb[0].mxu0
  %v5812 = vadd.f32 0.0, %v5811
  %5813 = vmatprep.mubr.f32.mxu0 0.0
  %5814 = vmatmul.mubr.f32.gmra.mrb[0].mxu0 %v5554
  %v5815 = vpop.f32.mrb[0].mxu0
  %v5816 = vadd.f32 0.0, %v5815
  %v5817 = vpop.f32.mrb[0].mxu0
  %v5818 = vadd.f32 0.0, %v5817
  %5819 = vmatprep.mubr.f32.mxu0 0.0
  %5820 = vmatmul.mubr.f32.gmra.mrb[0].mxu0 %v5557
  %v5821 = vpop.f32.mrb[0].mxu0
  %v5822 = vadd.f32 0.0, %v5821
  %v5823 = vpop.f32.mrb[0].mxu0
  %v5824 = vadd.f32 0.0, %v5823
  %5825 = vdwg.mxu0
  %5826 = vmatprep.subr.mxu0 %v5485
  %5827 = vmatpush1.msra.mxu0 %v5484
  %5828 = vmatprep.subr.mxu0 %v5493
  %5829 = vmatpush1.msra.mxu0 %v5492
  %5830 = vmatprep.subr.mxu0 %v5501
  %5831 = vmatpush1.msra.mxu0 %v5500
  %5832 = vmatprep.subr.mxu0 %v5509
  %5833 = vmatpush1.msra.mxu0 %v5508
  %5834 = vmatprep.subr.mxu0 %v5517
  %5835 = vmatpush1.msra.mxu0 %v5516
  %5836 = vmatprep.subr.mxu0 %v5525
  %5837 = vmatpush1.msra.mxu0 %v5524
  %5838 = vmatprep.subr.mxu0 %v5533
  %5839 = vmatpush1.msra.mxu0 %v5532
  %5840 = vmatprep.subr.mxu0 %v5541
  %5841 = vmatpush1.msra.mxu0 %v5540
  %5842 = vmatprep.subr.mxu0 0.0
  %5843 = vmatpush1.msra.mxu0 0.0
  %5844 = vmatprep.subr.mxu0 0.0
  %5845 = vmatpush1.msra.mxu0 0.0
  %5846 = vmatprep.subr.mxu0 0.0
  %5847 = vmatpush1.msra.mxu0 0.0
  %5848 = vmatprep.subr.mxu0 0.0
  %5849 = vmatpush1.msra.mxu0 0.0
  %5850 = vmatprep.subr.mxu0 0.0
  %5851 = vmatpush1.msra.mxu0 0.0
  %5852 = vmatprep.subr.mxu0 0.0
  %5853 = vmatpush1.msra.mxu0 0.0
  %5854 = vmatprep.subr.mxu0 0.0
  %5855 = vmatpush1.msra.mxu0 0.0
  %5856 = vmatprep.subr.mxu0 0.0
  %5857 = vmatpush1.msra.mxu0 0.0
  %5858 = vmatprep.subr.mxu0 0.0
  %5859 = vmatpush1.msra.mxu0 0.0
  %5860 = vmatprep.subr.mxu0 0.0
  %5861 = vmatpush1.msra.mxu0 0.0
  %5862 = vmatprep.subr.mxu0 0.0
  %5863 = vmatpush1.msra.mxu0 0.0
  %5864 = vmatprep.subr.mxu0 0.0
  %5865 = vmatpush1.msra.mxu0 0.0
  %5866 = vmatprep.subr.mxu0 0.0
  %5867 = vmatpush1.msra.mxu0 0.0
  %5868 = vmatprep.subr.mxu0 0.0
  %5869 = vmatpush1.msra.mxu0 0.0
  %5870 = vmatprep.subr.mxu0 0.0
  %5871 = vmatpush1.msra.mxu0 0.0
  %5872 = vmatprep.subr.mxu0 0.0
  %5873 = vmatpush1.msra.mxu0 0.0
  %5874 = vmatprep.subr.mxu0 0.0
  %5875 = vmatpush1.msra.mxu0 0.0
  %5876 = vmatprep.subr.mxu0 0.0
  %5877 = vmatpush1.msra.mxu0 0.0
  %5878 = vmatprep.subr.mxu0 0.0
  %5879 = vmatpush1.msra.mxu0 0.0
  %5880 = vmatprep.subr.mxu0 0.0
  %5881 = vmatpush1.msra.mxu0 0.0
  %5882 = vmatprep.subr.mxu0 0.0
  %5883 = vmatpush1.msra.mxu0 0.0
  %5884 = vmatprep.subr.mxu0 0.0
  %5885 = vmatpush1.msra.mxu0 0.0
  %5886 = vmatprep.subr.mxu0 0.0
  %5887 = vmatpush1.msra.mxu0 0.0
  %5888 = vmatprep.subr.mxu0 0.0
  %5889 = vmatpush1.msra.mxu0 0.0
  %5890 = vmatprep.mubr.f32.mxu0 0.0
  %5891 = vmatmul.mubr.f32.gmra.mrb[0].mxu0 %v5548
  %v5892 = vpop.f32.mrb[0].mxu0
  %v5893 = vadd.f32 0.0, %v5892
  %v5894 = vpop.f32.mrb[0].mxu0
  %v5895 = vadd.f32 0.0, %v5894
  %5896 = vmatprep.mubr.f32.mxu0 0.0
  %5897 = vmatmul.mubr.f32.gmra.mrb[0].mxu0 %v5551
  %v5898 = vpop.f32.mrb[0].mxu0
  %v5899 = vadd.f32 0.0, %v5898
  %v5900 = vpop.f32.mrb[0].mxu0
  %v5901 = vadd.f32 0.0, %v5900
  %5902 = vmatprep.mubr.f32.mxu0 0.0
  %5903 = vmatmul.mubr.f32.gmra.mrb[0].mxu0 %v5554
  %v5904 = vpop.f32.mrb[0].mxu0
  %v5905 = vadd.f32 0.0, %v5904
  %v5906 = vpop.f32.mrb[0].mxu0
  %v5907 = vadd.f32 0.0, %v5906
  %5908 = vmatprep.mubr.f32.mxu0 0.0
  %5909 = vmatmul.mubr.f32.gmra.mrb[0].mxu0 %v5557
  %v5910 = vpop.f32.mrb[0].mxu0
  %v5911 = vadd.f32 0.0, %v5910
  %v5912 = vpop.f32.mrb[0].mxu0
  %v5913 = vadd.f32 0.0, %v5912
  %5914 = vdwg.mxu0
  %v5915 = vadd.f32 %v5208, %v5626
  %v5916 = vadd.f32 %v5209, %v5628
  %v5917 = vadd.f32 %v5210, %v5715
  %v5918 = vadd.f32 %v5211, %v5717
  %v5919 = vadd.f32 %v5212, %v5804
  %v5920 = vadd.f32 %v5213, %v5806
  %v5921 = vadd.f32 %v5214, %v5893
  %v5922 = vadd.f32 %v5215, %v5895
  %v5923 = vadd.f32 %v5216, %v5632
  %v5924 = vadd.f32 %v5217, %v5634
  %v5925 = vadd.f32 %v5218, %v5721
  %v5926 = vadd.f32 %v5219, %v5723
  %v5927 = vadd.f32 %v5220, %v5810
  %v5928 = vadd.f32 %v5221, %v5812
  %v5929 = vadd.f32 %v5222, %v5899
  %v5930 = vadd.f32 %v5223, %v5901
  %v5931 = vadd.f32 %v5224, %v5638
  %v5932 = vadd.f32 %v5225, %v5640
  %v5933 = vadd.f32 %v5226, %v5727
  %v5934 = vadd.f32 %v5227, %v5729
  %v5935 = vadd.f32 %v5228, %v5816
  %v5936 = vadd.f32 %v5229, %v5818
  %v5937 = vadd.f32 %v5230, %v5905
  %v5938 = vadd.f32 %v5231, %v5907
  %v5939 = vadd.f32 %v5232, %v5644
  %v5940 = vadd.f32 %v5233, %v5646
  %v5941 = vadd.f32 %v5234, %v5733
  %v5942 = vadd.f32 %v5235, %v5735
  %v5943 = vadd.f32 %v5236, %v5822
  %v5944 = vadd.f32 %v5237, %v5824
  %v5945 = vadd.f32 %v5238, %v5911
  %v5946 = vadd.f32 %v5239, %v5913
  %5947 = vrot.lane.b32.xlu0 %v592, 111
  %v5948 = vpop.permute.xlu0 %5947
  %5949 = vrot.lane.b32.xlu0 %v600, 111
  %v5950 = vpop.permute.xlu0 %5949
  %5951 = vrot.lane.b32.xlu0 %v608, 111
  %v5952 = vpop.permute.xlu0 %5951
  %5953 = vrot.lane.b32.xlu0 %v616, 111
  %v5954 = vpop.permute.xlu0 %5953
  %5955 = vrot.lane.b32.xlu0 %v624, 111
  %v5956 = vpop.permute.xlu0 %5955
  %5957 = vrot.lane.b32.xlu0 %v632, 111
  %v5958 = vpop.permute.xlu0 %5957
  %5959 = vrot.lane.b32.xlu0 %v640, 111
  %v5960 = vpop.permute.xlu0 %5959
  %5961 = vrot.lane.b32.xlu0 %v648, 111
  %v5962 = vpop.permute.xlu0 %5961
  %5963 = vrot.lane.b32.xlu0 %v593, 111
  %v5964 = vpop.permute.xlu0 %5963
  %5965 = vrot.lane.b32.xlu0 %v601, 111
  %v5966 = vpop.permute.xlu0 %5965
  %5967 = vrot.lane.b32.xlu0 %v609, 111
  %v5968 = vpop.permute.xlu0 %5967
  %5969 = vrot.lane.b32.xlu0 %v617, 111
  %v5970 = vpop.permute.xlu0 %5969
  %5971 = vrot.lane.b32.xlu0 %v625, 111
  %v5972 = vpop.permute.xlu0 %5971
  %5973 = vrot.lane.b32.xlu0 %v633, 111
  %v5974 = vpop.permute.xlu0 %5973
  %5975 = vrot.lane.b32.xlu0 %v641, 111
  %v5976 = vpop.permute.xlu0 %5975
  %5977 = vrot.lane.b32.xlu0 %v649, 111
  %v5978 = vpop.permute.xlu0 %5977
  %5979 = vrot.lane.b32.xlu0 %v594, 111
  %v5980 = vpop.permute.xlu0 %5979
  %5981 = vrot.lane.b32.xlu0 %v602, 111
  %v5982 = vpop.permute.xlu0 %5981
  %5983 = vrot.lane.b32.xlu0 %v610, 111
  %v5984 = vpop.permute.xlu0 %5983
  %5985 = vrot.lane.b32.xlu0 %v618, 111
  %v5986 = vpop.permute.xlu0 %5985
  %5987 = vrot.lane.b32.xlu0 %v626, 111
  %v5988 = vpop.permute.xlu0 %5987
  %5989 = vrot.lane.b32.xlu0 %v634, 111
  %v5990 = vpop.permute.xlu0 %5989
  %5991 = vrot.lane.b32.xlu0 %v642, 111
  %v5992 = vpop.permute.xlu0 %5991
  %5993 = vrot.lane.b32.xlu0 %v650, 111
  %v5994 = vpop.permute.xlu0 %5993
  %5995 = vrot.lane.b32.xlu0 %v595, 111
  %v5996 = vpop.permute.xlu0 %5995
  %5997 = vrot.lane.b32.xlu0 %v603, 111
  %v5998 = vpop.permute.xlu0 %5997
  %5999 = vrot.lane.b32.xlu0 %v611, 111
  %v6000 = vpop.permute.xlu0 %5999
  %6001 = vrot.lane.b32.xlu0 %v619, 111
  %v6002 = vpop.permute.xlu0 %6001
  %6003 = vrot.lane.b32.xlu0 %v627, 111
  %v6004 = vpop.permute.xlu0 %6003
  %6005 = vrot.lane.b32.xlu0 %v635, 111
  %v6006 = vpop.permute.xlu0 %6005
  %6007 = vrot.lane.b32.xlu0 %v643, 111
  %v6008 = vpop.permute.xlu0 %6007
  %6009 = vrot.lane.b32.xlu0 %v651, 111
  %v6010 = vpop.permute.xlu0 %6009
  %6011 = vrot.lane.b32.xlu0 %v596, 111
  %v6012 = vpop.permute.xlu0 %6011
  %6013 = vrot.lane.b32.xlu0 %v604, 111
  %v6014 = vpop.permute.xlu0 %6013
  %6015 = vrot.lane.b32.xlu0 %v612, 111
  %v6016 = vpop.permute.xlu0 %6015
  %6017 = vrot.lane.b32.xlu0 %v620, 111
  %v6018 = vpop.permute.xlu0 %6017
  %6019 = vrot.lane.b32.xlu0 %v628, 111
  %v6020 = vpop.permute.xlu0 %6019
  %6021 = vrot.lane.b32.xlu0 %v636, 111
  %v6022 = vpop.permute.xlu0 %6021
  %6023 = vrot.lane.b32.xlu0 %v644, 111
  %v6024 = vpop.permute.xlu0 %6023
  %6025 = vrot.lane.b32.xlu0 %v652, 111
  %v6026 = vpop.permute.xlu0 %6025
  %6027 = vrot.lane.b32.xlu0 %v597, 111
  %v6028 = vpop.permute.xlu0 %6027
  %6029 = vrot.lane.b32.xlu0 %v605, 111
  %v6030 = vpop.permute.xlu0 %6029
  %6031 = vrot.lane.b32.xlu0 %v613, 111
  %v6032 = vpop.permute.xlu0 %6031
  %6033 = vrot.lane.b32.xlu0 %v621, 111
  %v6034 = vpop.permute.xlu0 %6033
  %6035 = vrot.lane.b32.xlu0 %v629, 111
  %v6036 = vpop.permute.xlu0 %6035
  %6037 = vrot.lane.b32.xlu0 %v637, 111
  %v6038 = vpop.permute.xlu0 %6037
  %6039 = vrot.lane.b32.xlu0 %v645, 111
  %v6040 = vpop.permute.xlu0 %6039
  %6041 = vrot.lane.b32.xlu0 %v653, 111
  %v6042 = vpop.permute.xlu0 %6041
  %6043 = vrot.lane.b32.xlu0 %v598, 111
  %v6044 = vpop.permute.xlu0 %6043
  %6045 = vrot.lane.b32.xlu0 %v606, 111
  %v6046 = vpop.permute.xlu0 %6045
  %6047 = vrot.lane.b32.xlu0 %v614, 111
  %v6048 = vpop.permute.xlu0 %6047
  %6049 = vrot.lane.b32.xlu0 %v622, 111
  %v6050 = vpop.permute.xlu0 %6049
  %6051 = vrot.lane.b32.xlu0 %v630, 111
  %v6052 = vpop.permute.xlu0 %6051
  %6053 = vrot.lane.b32.xlu0 %v638, 111
  %v6054 = vpop.permute.xlu0 %6053
  %6055 = vrot.lane.b32.xlu0 %v646, 111
  %v6056 = vpop.permute.xlu0 %6055
  %6057 = vrot.lane.b32.xlu0 %v654, 111
  %v6058 = vpop.permute.xlu0 %6057
  %6059 = vrot.lane.b32.xlu0 %v599, 111
  %v6060 = vpop.permute.xlu0 %6059
  %6061 = vrot.lane.b32.xlu0 %v607, 111
  %v6062 = vpop.permute.xlu0 %6061
  %6063 = vrot.lane.b32.xlu0 %v615, 111
  %v6064 = vpop.permute.xlu0 %6063
  %6065 = vrot.lane.b32.xlu0 %v623, 111
  %v6066 = vpop.permute.xlu0 %6065
  %6067 = vrot.lane.b32.xlu0 %v631, 111
  %v6068 = vpop.permute.xlu0 %6067
  %6069 = vrot.lane.b32.xlu0 %v639, 111
  %v6070 = vpop.permute.xlu0 %6069
  %6071 = vrot.lane.b32.xlu0 %v647, 111
  %v6072 = vpop.permute.xlu0 %6071
  %6073 = vrot.lane.b32.xlu0 %v655, 111
  %v6074 = vpop.permute.xlu0 %6073
  %vm6075 = vcmp.lt.s32.totalorder %v790, 111
  %v6076 = vsel %vm6075, %v6044, %v6060
  %v6077 = vsel %vm6075, %v6046, %v6062
  %v6078 = vsel %vm6075, %v6048, %v6064
  %v6079 = vsel %vm6075, %v6050, %v6066
  %v6080 = vsel %vm6075, %v6052, %v6068
  %v6081 = vsel %vm6075, %v6054, %v6070
  %v6082 = vsel %vm6075, %v6056, %v6072
  %v6083 = vsel %vm6075, %v6058, %v6074
  %v6084 = vsel %vm6075, %v6028, %v6044
  %v6085 = vsel %vm6075, %v6030, %v6046
  %v6086 = vsel %vm6075, %v6032, %v6048
  %v6087 = vsel %vm6075, %v6034, %v6050
  %v6088 = vsel %vm6075, %v6036, %v6052
  %v6089 = vsel %vm6075, %v6038, %v6054
  %v6090 = vsel %vm6075, %v6040, %v6056
  %v6091 = vsel %vm6075, %v6042, %v6058
  %v6092 = vsel %vm6075, %v6012, %v6028
  %v6093 = vsel %vm6075, %v6014, %v6030
  %v6094 = vsel %vm6075, %v6016, %v6032
  %v6095 = vsel %vm6075, %v6018, %v6034
  %v6096 = vsel %vm6075, %v6020, %v6036
  %v6097 = vsel %vm6075, %v6022, %v6038
  %v6098 = vsel %vm6075, %v6024, %v6040
  %v6099 = vsel %vm6075, %v6026, %v6042
  %v6100 = vsel %vm6075, %v5996, %v6012
  %v6101 = vsel %vm6075, %v5998, %v6014
  %v6102 = vsel %vm6075, %v6000, %v6016
  %v6103 = vsel %vm6075, %v6002, %v6018
  %v6104 = vsel %vm6075, %v6004, %v6020
  %v6105 = vsel %vm6075, %v6006, %v6022
  %v6106 = vsel %vm6075, %v6008, %v6024
  %v6107 = vsel %vm6075, %v6010, %v6026
  %v6108 = vsel %vm6075, %v5980, %v5996
  %v6109 = vsel %vm6075, %v5982, %v5998
  %v6110 = vsel %vm6075, %v5984, %v6000
  %v6111 = vsel %vm6075, %v5986, %v6002
  %v6112 = vsel %vm6075, %v5988, %v6004
  %v6113 = vsel %vm6075, %v5990, %v6006
  %v6114 = vsel %vm6075, %v5992, %v6008
  %v6115 = vsel %vm6075, %v5994, %v6010
  %v6116 = vsel %vm6075, %v5964, %v5980
  %v6117 = vsel %vm6075, %v5966, %v5982
  %v6118 = vsel %vm6075, %v5968, %v5984
  %v6119 = vsel %vm6075, %v5970, %v5986
  %v6120 = vsel %vm6075, %v5972, %v5988
  %v6121 = vsel %vm6075, %v5974, %v5990
  %v6122 = vsel %vm6075, %v5976, %v5992
  %v6123 = vsel %vm6075, %v5978, %v5994
  %v6124 = vsel %vm6075, %v5948, %v5964
  %v6125 = vsel %vm6075, %v5950, %v5966
  %v6126 = vsel %vm6075, %v5952, %v5968
  %v6127 = vsel %vm6075, %v5954, %v5970
  %v6128 = vsel %vm6075, %v5956, %v5972
  %v6129 = vsel %vm6075, %v5958, %v5974
  %v6130 = vsel %vm6075, %v5960, %v5976
  %v6131 = vsel %vm6075, %v5962, %v5978
  %v6132 = vsel %vm6075, %v6060, %v5948
  %v6133 = vsel %vm6075, %v6062, %v5950
  %v6134 = vsel %vm6075, %v6064, %v5952
  %v6135 = vsel %vm6075, %v6066, %v5954
  %v6136 = vsel %vm6075, %v6068, %v5956
  %v6137 = vsel %vm6075, %v6070, %v5958
  %v6138 = vsel %vm6075, %v6072, %v5960
  %v6139 = vsel %vm6075, %v6074, %v5962
  %s6140 = scalar_lea.vmem %s1, 7
  %v6141 = vld [vmem:[%s6140] ss:$8 sm:$0xf]
  %v6142 = vld [vmem:[%s6140] ss:$8 sm:$0xf0]
  %v6143 = vor.u32 %v6141, %v6142
  %v6145 = vlaneseq
  %v6146 = vshrl.u32 %v6145, 7
  %v6147 = vsub.s32 0, %v6146
  %v6148 = vrot.slane %v6143, %v6147
  %v6149 = vlaneseq
  %v6150 = vshrl.u32 %v6149, 7
  %v6151 = vsub.s32 1, %v6150
  %v6152 = vrot.slane %v6143, %v6151
  %v6153 = vlaneseq
  %v6154 = vshrl.u32 %v6153, 7
  %v6155 = vsub.s32 2, %v6154
  %v6156 = vrot.slane %v6143, %v6155
  %v6157 = vlaneseq
  %v6158 = vshrl.u32 %v6157, 7
  %v6159 = vsub.s32 3, %v6158
  %v6160 = vrot.slane %v6143, %v6159
  %v6161 = vlaneseq
  %v6162 = vshrl.u32 %v6161, 7
  %v6163 = vsub.s32 4, %v6162
  %v6164 = vrot.slane %v6143, %v6163
  %v6165 = vlaneseq
  %v6166 = vshrl.u32 %v6165, 7
  %v6167 = vsub.s32 5, %v6166
  %v6168 = vrot.slane %v6143, %v6167
  %v6169 = vlaneseq
  %v6170 = vshrl.u32 %v6169, 7
  %v6171 = vsub.s32 6, %v6170
  %v6172 = vrot.slane %v6143, %v6171
  %v6173 = vlaneseq
  %v6174 = vshrl.u32 %v6173, 7
  %v6175 = vsub.s32 7, %v6174
  %v6176 = vrot.slane %v6143, %v6175
  %v6185 = vmul.f32 %v6124, %v6148
  %v6186 = vmul.f32 %v6116, %v6152
  %v6187 = vmul.f32 %v6108, %v6156
  %v6188 = vmul.f32 %v6100, %v6160
  %v6189 = vmul.f32 %v6092, %v6164
  %v6190 = vmul.f32 %v6084, %v6168
  %v6191 = vmul.f32 %v6076, %v6172
  %v6192 = vmul.f32 %v6132, %v6176
  %v6193 = vmul.f32 %v6125, %v6148
  %v6194 = vmul.f32 %v6117, %v6152
  %v6195 = vmul.f32 %v6109, %v6156
  %v6196 = vmul.f32 %v6101, %v6160
  %v6197 = vmul.f32 %v6093, %v6164
  %v6198 = vmul.f32 %v6085, %v6168
  %v6199 = vmul.f32 %v6077, %v6172
  %v6200 = vmul.f32 %v6133, %v6176
  %v6201 = vmul.f32 %v6126, %v6148
  %v6202 = vmul.f32 %v6118, %v6152
  %v6203 = vmul.f32 %v6110, %v6156
  %v6204 = vmul.f32 %v6102, %v6160
  %v6205 = vmul.f32 %v6094, %v6164
  %v6206 = vmul.f32 %v6086, %v6168
  %v6207 = vmul.f32 %v6078, %v6172
  %v6208 = vmul.f32 %v6134, %v6176
  %v6209 = vmul.f32 %v6127, %v6148
  %v6210 = vmul.f32 %v6119, %v6152
  %v6211 = vmul.f32 %v6111, %v6156
  %v6212 = vmul.f32 %v6103, %v6160
  %v6213 = vmul.f32 %v6095, %v6164
  %v6214 = vmul.f32 %v6087, %v6168
  %v6215 = vmul.f32 %v6079, %v6172
  %v6216 = vmul.f32 %v6135, %v6176
  %v6217 = vmul.f32 %v6128, %v6148
  %v6218 = vmul.f32 %v6120, %v6152
  %v6219 = vmul.f32 %v6112, %v6156
  %v6220 = vmul.f32 %v6104, %v6160
  %v6221 = vmul.f32 %v6096, %v6164
  %v6222 = vmul.f32 %v6088, %v6168
  %v6223 = vmul.f32 %v6080, %v6172
  %v6224 = vmul.f32 %v6136, %v6176
  %v6225 = vmul.f32 %v6129, %v6148
  %v6226 = vmul.f32 %v6121, %v6152
  %v6227 = vmul.f32 %v6113, %v6156
  %v6228 = vmul.f32 %v6105, %v6160
  %v6229 = vmul.f32 %v6097, %v6164
  %v6230 = vmul.f32 %v6089, %v6168
  %v6231 = vmul.f32 %v6081, %v6172
  %v6232 = vmul.f32 %v6137, %v6176
  %v6233 = vmul.f32 %v6130, %v6148
  %v6234 = vmul.f32 %v6122, %v6152
  %v6235 = vmul.f32 %v6114, %v6156
  %v6236 = vmul.f32 %v6106, %v6160
  %v6237 = vmul.f32 %v6098, %v6164
  %v6238 = vmul.f32 %v6090, %v6168
  %v6239 = vmul.f32 %v6082, %v6172
  %v6240 = vmul.f32 %v6138, %v6176
  %v6241 = vmul.f32 %v6131, %v6148
  %v6242 = vmul.f32 %v6123, %v6152
  %v6243 = vmul.f32 %v6115, %v6156
  %v6244 = vmul.f32 %v6107, %v6160
  %v6245 = vmul.f32 %v6099, %v6164
  %v6246 = vmul.f32 %v6091, %v6168
  %v6247 = vmul.f32 %v6083, %v6172
  %v6248 = vmul.f32 %v6139, %v6176
  %s6249 = scalar_lea.vmem %s4, 256
  %v6250 = vld [vmem:[%s6249] sm:$0xff]
  %v6251 = vld [vmem:[%s6249 + $0x8] sm:$0xff]
  %v6252 = vld [vmem:[%s6249 + $0x10] sm:$0xff]
  %v6253 = vld [vmem:[%s6249 + $0x18] sm:$0xff]
  %v6255 = vsel %vm968, %v6250, 0
  %v6258 = vsel %vm968, %v6251, 0
  %v6261 = vsel %vm968, %v6252, 0
  %v6264 = vsel %vm968, %v6253, 0
  %6266 = vmatprep.subr.mxu0 %v6186
  %6267 = vmatpush1.msra.mxu0 %v6185
  %6268 = vmatprep.subr.mxu0 %v6194
  %6269 = vmatpush1.msra.mxu0 %v6193
  %6270 = vmatprep.subr.mxu0 %v6202
  %6271 = vmatpush1.msra.mxu0 %v6201
  %6272 = vmatprep.subr.mxu0 %v6210
  %6273 = vmatpush1.msra.mxu0 %v6209
  %6274 = vmatprep.subr.mxu0 %v6218
  %6275 = vmatpush1.msra.mxu0 %v6217
  %6276 = vmatprep.subr.mxu0 %v6226
  %6277 = vmatpush1.msra.mxu0 %v6225
  %6278 = vmatprep.subr.mxu0 %v6234
  %6279 = vmatpush1.msra.mxu0 %v6233
  %6280 = vmatprep.subr.mxu0 %v6242
  %6281 = vmatpush1.msra.mxu0 %v6241
  %6282 = vmatprep.subr.mxu0 0.0
  %6283 = vmatpush1.msra.mxu0 0.0
  %6284 = vmatprep.subr.mxu0 0.0
  %6285 = vmatpush1.msra.mxu0 0.0
  %6286 = vmatprep.subr.mxu0 0.0
  %6287 = vmatpush1.msra.mxu0 0.0
  %6288 = vmatprep.subr.mxu0 0.0
  %6289 = vmatpush1.msra.mxu0 0.0
  %6290 = vmatprep.subr.mxu0 0.0
  %6291 = vmatpush1.msra.mxu0 0.0
  %6292 = vmatprep.subr.mxu0 0.0
  %6293 = vmatpush1.msra.mxu0 0.0
  %6294 = vmatprep.subr.mxu0 0.0
  %6295 = vmatpush1.msra.mxu0 0.0
  %6296 = vmatprep.subr.mxu0 0.0
  %6297 = vmatpush1.msra.mxu0 0.0
  %6298 = vmatprep.subr.mxu0 0.0
  %6299 = vmatpush1.msra.mxu0 0.0
  %6300 = vmatprep.subr.mxu0 0.0
  %6301 = vmatpush1.msra.mxu0 0.0
  %6302 = vmatprep.subr.mxu0 0.0
  %6303 = vmatpush1.msra.mxu0 0.0
  %6304 = vmatprep.subr.mxu0 0.0
  %6305 = vmatpush1.msra.mxu0 0.0
  %6306 = vmatprep.subr.mxu0 0.0
  %6307 = vmatpush1.msra.mxu0 0.0
  %6308 = vmatprep.subr.mxu0 0.0
  %6309 = vmatpush1.msra.mxu0 0.0
  %6310 = vmatprep.subr.mxu0 0.0
  %6311 = vmatpush1.msra.mxu0 0.0
  %6312 = vmatprep.subr.mxu0 0.0
  %6313 = vmatpush1.msra.mxu0 0.0
  %6314 = vmatprep.subr.mxu0 0.0
  %6315 = vmatpush1.msra.mxu0 0.0
  %6316 = vmatprep.subr.mxu0 0.0
  %6317 = vmatpush1.msra.mxu0 0.0
  %6318 = vmatprep.subr.mxu0 0.0
  %6319 = vmatpush1.msra.mxu0 0.0
  %6320 = vmatprep.subr.mxu0 0.0
  %6321 = vmatpush1.msra.mxu0 0.0
  %6322 = vmatprep.subr.mxu0 0.0
  %6323 = vmatpush1.msra.mxu0 0.0
  %6324 = vmatprep.subr.mxu0 0.0
  %6325 = vmatpush1.msra.mxu0 0.0
  %6326 = vmatprep.subr.mxu0 0.0
  %6327 = vmatpush1.msra.mxu0 0.0
  %6328 = vmatprep.subr.mxu0 0.0
  %6329 = vmatpush1.msra.mxu0 0.0
  %6330 = vmatprep.mubr.f32.mxu0 0.0
  %6331 = vmatmul.mubr.f32.gmra.mrb[0].mxu0 %v6255
  %v6332 = vpop.f32.mrb[0].mxu0
  %v6333 = vadd.f32 0.0, %v6332
  %v6334 = vpop.f32.mrb[0].mxu0
  %v6335 = vadd.f32 0.0, %v6334
  %6336 = vmatprep.mubr.f32.mxu0 0.0
  %6337 = vmatmul.mubr.f32.gmra.mrb[0].mxu0 %v6258
  %v6338 = vpop.f32.mrb[0].mxu0
  %v6339 = vadd.f32 0.0, %v6338
  %v6340 = vpop.f32.mrb[0].mxu0
  %v6341 = vadd.f32 0.0, %v6340
  %6342 = vmatprep.mubr.f32.mxu0 0.0
  %6343 = vmatmul.mubr.f32.gmra.mrb[0].mxu0 %v6261
  %v6344 = vpop.f32.mrb[0].mxu0
  %v6345 = vadd.f32 0.0, %v6344
  %v6346 = vpop.f32.mrb[0].mxu0
  %v6347 = vadd.f32 0.0, %v6346
  %6348 = vmatprep.mubr.f32.mxu0 0.0
  %6349 = vmatmul.mubr.f32.gmra.mrb[0].mxu0 %v6264
  %v6350 = vpop.f32.mrb[0].mxu0
  %v6351 = vadd.f32 0.0, %v6350
  %v6352 = vpop.f32.mrb[0].mxu0
  %v6353 = vadd.f32 0.0, %v6352
  %6354 = vdwg.mxu0
  %6355 = vmatprep.subr.mxu0 %v6188
  %6356 = vmatpush1.msra.mxu0 %v6187
  %6357 = vmatprep.subr.mxu0 %v6196
  %6358 = vmatpush1.msra.mxu0 %v6195
  %6359 = vmatprep.subr.mxu0 %v6204
  %6360 = vmatpush1.msra.mxu0 %v6203
  %6361 = vmatprep.subr.mxu0 %v6212
  %6362 = vmatpush1.msra.mxu0 %v6211
  %6363 = vmatprep.subr.mxu0 %v6220
  %6364 = vmatpush1.msra.mxu0 %v6219
  %6365 = vmatprep.subr.mxu0 %v6228
  %6366 = vmatpush1.msra.mxu0 %v6227
  %6367 = vmatprep.subr.mxu0 %v6236
  %6368 = vmatpush1.msra.mxu0 %v6235
  %6369 = vmatprep.subr.mxu0 %v6244
  %6370 = vmatpush1.msra.mxu0 %v6243
  %6371 = vmatprep.subr.mxu0 0.0
  %6372 = vmatpush1.msra.mxu0 0.0
  %6373 = vmatprep.subr.mxu0 0.0
  %6374 = vmatpush1.msra.mxu0 0.0
  %6375 = vmatprep.subr.mxu0 0.0
  %6376 = vmatpush1.msra.mxu0 0.0
  %6377 = vmatprep.subr.mxu0 0.0
  %6378 = vmatpush1.msra.mxu0 0.0
  %6379 = vmatprep.subr.mxu0 0.0
  %6380 = vmatpush1.msra.mxu0 0.0
  %6381 = vmatprep.subr.mxu0 0.0
  %6382 = vmatpush1.msra.mxu0 0.0
  %6383 = vmatprep.subr.mxu0 0.0
  %6384 = vmatpush1.msra.mxu0 0.0
  %6385 = vmatprep.subr.mxu0 0.0
  %6386 = vmatpush1.msra.mxu0 0.0
  %6387 = vmatprep.subr.mxu0 0.0
  %6388 = vmatpush1.msra.mxu0 0.0
  %6389 = vmatprep.subr.mxu0 0.0
  %6390 = vmatpush1.msra.mxu0 0.0
  %6391 = vmatprep.subr.mxu0 0.0
  %6392 = vmatpush1.msra.mxu0 0.0
  %6393 = vmatprep.subr.mxu0 0.0
  %6394 = vmatpush1.msra.mxu0 0.0
  %6395 = vmatprep.subr.mxu0 0.0
  %6396 = vmatpush1.msra.mxu0 0.0
  %6397 = vmatprep.subr.mxu0 0.0
  %6398 = vmatpush1.msra.mxu0 0.0
  %6399 = vmatprep.subr.mxu0 0.0
  %6400 = vmatpush1.msra.mxu0 0.0
  %6401 = vmatprep.subr.mxu0 0.0
  %6402 = vmatpush1.msra.mxu0 0.0
  %6403 = vmatprep.subr.mxu0 0.0
  %6404 = vmatpush1.msra.mxu0 0.0
  %6405 = vmatprep.subr.mxu0 0.0
  %6406 = vmatpush1.msra.mxu0 0.0
  %6407 = vmatprep.subr.mxu0 0.0
  %6408 = vmatpush1.msra.mxu0 0.0
  %6409 = vmatprep.subr.mxu0 0.0
  %6410 = vmatpush1.msra.mxu0 0.0
  %6411 = vmatprep.subr.mxu0 0.0
  %6412 = vmatpush1.msra.mxu0 0.0
  %6413 = vmatprep.subr.mxu0 0.0
  %6414 = vmatpush1.msra.mxu0 0.0
  %6415 = vmatprep.subr.mxu0 0.0
  %6416 = vmatpush1.msra.mxu0 0.0
  %6417 = vmatprep.subr.mxu0 0.0
  %6418 = vmatpush1.msra.mxu0 0.0
  %6419 = vmatprep.mubr.f32.mxu0 0.0
  %6420 = vmatmul.mubr.f32.gmra.mrb[0].mxu0 %v6255
  %v6421 = vpop.f32.mrb[0].mxu0
  %v6422 = vadd.f32 0.0, %v6421
  %v6423 = vpop.f32.mrb[0].mxu0
  %v6424 = vadd.f32 0.0, %v6423
  %6425 = vmatprep.mubr.f32.mxu0 0.0
  %6426 = vmatmul.mubr.f32.gmra.mrb[0].mxu0 %v6258
  %v6427 = vpop.f32.mrb[0].mxu0
  %v6428 = vadd.f32 0.0, %v6427
  %v6429 = vpop.f32.mrb[0].mxu0
  %v6430 = vadd.f32 0.0, %v6429
  %6431 = vmatprep.mubr.f32.mxu0 0.0
  %6432 = vmatmul.mubr.f32.gmra.mrb[0].mxu0 %v6261
  %v6433 = vpop.f32.mrb[0].mxu0
  %v6434 = vadd.f32 0.0, %v6433
  %v6435 = vpop.f32.mrb[0].mxu0
  %v6436 = vadd.f32 0.0, %v6435
  %6437 = vmatprep.mubr.f32.mxu0 0.0
  %6438 = vmatmul.mubr.f32.gmra.mrb[0].mxu0 %v6264
  %v6439 = vpop.f32.mrb[0].mxu0
  %v6440 = vadd.f32 0.0, %v6439
  %v6441 = vpop.f32.mrb[0].mxu0
  %v6442 = vadd.f32 0.0, %v6441
  %6443 = vdwg.mxu0
  %6444 = vmatprep.subr.mxu0 %v6190
  %6445 = vmatpush1.msra.mxu0 %v6189
  %6446 = vmatprep.subr.mxu0 %v6198
  %6447 = vmatpush1.msra.mxu0 %v6197
  %6448 = vmatprep.subr.mxu0 %v6206
  %6449 = vmatpush1.msra.mxu0 %v6205
  %6450 = vmatprep.subr.mxu0 %v6214
  %6451 = vmatpush1.msra.mxu0 %v6213
  %6452 = vmatprep.subr.mxu0 %v6222
  %6453 = vmatpush1.msra.mxu0 %v6221
  %6454 = vmatprep.subr.mxu0 %v6230
  %6455 = vmatpush1.msra.mxu0 %v6229
  %6456 = vmatprep.subr.mxu0 %v6238
  %6457 = vmatpush1.msra.mxu0 %v6237
  %6458 = vmatprep.subr.mxu0 %v6246
  %6459 = vmatpush1.msra.mxu0 %v6245
  %6460 = vmatprep.subr.mxu0 0.0
  %6461 = vmatpush1.msra.mxu0 0.0
  %6462 = vmatprep.subr.mxu0 0.0
  %6463 = vmatpush1.msra.mxu0 0.0
  %6464 = vmatprep.subr.mxu0 0.0
  %6465 = vmatpush1.msra.mxu0 0.0
  %6466 = vmatprep.subr.mxu0 0.0
  %6467 = vmatpush1.msra.mxu0 0.0
  %6468 = vmatprep.subr.mxu0 0.0
  %6469 = vmatpush1.msra.mxu0 0.0
  %6470 = vmatprep.subr.mxu0 0.0
  %6471 = vmatpush1.msra.mxu0 0.0
  %6472 = vmatprep.subr.mxu0 0.0
  %6473 = vmatpush1.msra.mxu0 0.0
  %6474 = vmatprep.subr.mxu0 0.0
  %6475 = vmatpush1.msra.mxu0 0.0
  %6476 = vmatprep.subr.mxu0 0.0
  %6477 = vmatpush1.msra.mxu0 0.0
  %6478 = vmatprep.subr.mxu0 0.0
  %6479 = vmatpush1.msra.mxu0 0.0
  %6480 = vmatprep.subr.mxu0 0.0
  %6481 = vmatpush1.msra.mxu0 0.0
  %6482 = vmatprep.subr.mxu0 0.0
  %6483 = vmatpush1.msra.mxu0 0.0
  %6484 = vmatprep.subr.mxu0 0.0
  %6485 = vmatpush1.msra.mxu0 0.0
  %6486 = vmatprep.subr.mxu0 0.0
  %6487 = vmatpush1.msra.mxu0 0.0
  %6488 = vmatprep.subr.mxu0 0.0
  %6489 = vmatpush1.msra.mxu0 0.0
  %6490 = vmatprep.subr.mxu0 0.0
  %6491 = vmatpush1.msra.mxu0 0.0
  %6492 = vmatprep.subr.mxu0 0.0
  %6493 = vmatpush1.msra.mxu0 0.0
  %6494 = vmatprep.subr.mxu0 0.0
  %6495 = vmatpush1.msra.mxu0 0.0
  %6496 = vmatprep.subr.mxu0 0.0
  %6497 = vmatpush1.msra.mxu0 0.0
  %6498 = vmatprep.subr.mxu0 0.0
  %6499 = vmatpush1.msra.mxu0 0.0
  %6500 = vmatprep.subr.mxu0 0.0
  %6501 = vmatpush1.msra.mxu0 0.0
  %6502 = vmatprep.subr.mxu0 0.0
  %6503 = vmatpush1.msra.mxu0 0.0
  %6504 = vmatprep.subr.mxu0 0.0
  %6505 = vmatpush1.msra.mxu0 0.0
  %6506 = vmatprep.subr.mxu0 0.0
  %6507 = vmatpush1.msra.mxu0 0.0
  %6508 = vmatprep.mubr.f32.mxu0 0.0
  %6509 = vmatmul.mubr.f32.gmra.mrb[0].mxu0 %v6255
  %v6510 = vpop.f32.mrb[0].mxu0
  %v6511 = vadd.f32 0.0, %v6510
  %v6512 = vpop.f32.mrb[0].mxu0
  %v6513 = vadd.f32 0.0, %v6512
  %6514 = vmatprep.mubr.f32.mxu0 0.0
  %6515 = vmatmul.mubr.f32.gmra.mrb[0].mxu0 %v6258
  %v6516 = vpop.f32.mrb[0].mxu0
  %v6517 = vadd.f32 0.0, %v6516
  %v6518 = vpop.f32.mrb[0].mxu0
  %v6519 = vadd.f32 0.0, %v6518
  %6520 = vmatprep.mubr.f32.mxu0 0.0
  %6521 = vmatmul.mubr.f32.gmra.mrb[0].mxu0 %v6261
  %v6522 = vpop.f32.mrb[0].mxu0
  %v6523 = vadd.f32 0.0, %v6522
  %v6524 = vpop.f32.mrb[0].mxu0
  %v6525 = vadd.f32 0.0, %v6524
  %6526 = vmatprep.mubr.f32.mxu0 0.0
  %6527 = vmatmul.mubr.f32.gmra.mrb[0].mxu0 %v6264
  %v6528 = vpop.f32.mrb[0].mxu0
  %v6529 = vadd.f32 0.0, %v6528
  %v6530 = vpop.f32.mrb[0].mxu0
  %v6531 = vadd.f32 0.0, %v6530
  %6532 = vdwg.mxu0
  %6533 = vmatprep.subr.mxu0 %v6192
  %6534 = vmatpush1.msra.mxu0 %v6191
  %6535 = vmatprep.subr.mxu0 %v6200
  %6536 = vmatpush1.msra.mxu0 %v6199
  %6537 = vmatprep.subr.mxu0 %v6208
  %6538 = vmatpush1.msra.mxu0 %v6207
  %6539 = vmatprep.subr.mxu0 %v6216
  %6540 = vmatpush1.msra.mxu0 %v6215
  %6541 = vmatprep.subr.mxu0 %v6224
  %6542 = vmatpush1.msra.mxu0 %v6223
  %6543 = vmatprep.subr.mxu0 %v6232
  %6544 = vmatpush1.msra.mxu0 %v6231
  %6545 = vmatprep.subr.mxu0 %v6240
  %6546 = vmatpush1.msra.mxu0 %v6239
  %6547 = vmatprep.subr.mxu0 %v6248
  %6548 = vmatpush1.msra.mxu0 %v6247
  %6549 = vmatprep.subr.mxu0 0.0
  %6550 = vmatpush1.msra.mxu0 0.0
  %6551 = vmatprep.subr.mxu0 0.0
  %6552 = vmatpush1.msra.mxu0 0.0
  %6553 = vmatprep.subr.mxu0 0.0
  %6554 = vmatpush1.msra.mxu0 0.0
  %6555 = vmatprep.subr.mxu0 0.0
  %6556 = vmatpush1.msra.mxu0 0.0
  %6557 = vmatprep.subr.mxu0 0.0
  %6558 = vmatpush1.msra.mxu0 0.0
  %6559 = vmatprep.subr.mxu0 0.0
  %6560 = vmatpush1.msra.mxu0 0.0
  %6561 = vmatprep.subr.mxu0 0.0
  %6562 = vmatpush1.msra.mxu0 0.0
  %6563 = vmatprep.subr.mxu0 0.0
  %6564 = vmatpush1.msra.mxu0 0.0
  %6565 = vmatprep.subr.mxu0 0.0
  %6566 = vmatpush1.msra.mxu0 0.0
  %6567 = vmatprep.subr.mxu0 0.0
  %6568 = vmatpush1.msra.mxu0 0.0
  %6569 = vmatprep.subr.mxu0 0.0
  %6570 = vmatpush1.msra.mxu0 0.0
  %6571 = vmatprep.subr.mxu0 0.0
  %6572 = vmatpush1.msra.mxu0 0.0
  %6573 = vmatprep.subr.mxu0 0.0
  %6574 = vmatpush1.msra.mxu0 0.0
  %6575 = vmatprep.subr.mxu0 0.0
  %6576 = vmatpush1.msra.mxu0 0.0
  %6577 = vmatprep.subr.mxu0 0.0
  %6578 = vmatpush1.msra.mxu0 0.0
  %6579 = vmatprep.subr.mxu0 0.0
  %6580 = vmatpush1.msra.mxu0 0.0
  %6581 = vmatprep.subr.mxu0 0.0
  %6582 = vmatpush1.msra.mxu0 0.0
  %6583 = vmatprep.subr.mxu0 0.0
  %6584 = vmatpush1.msra.mxu0 0.0
  %6585 = vmatprep.subr.mxu0 0.0
  %6586 = vmatpush1.msra.mxu0 0.0
  %6587 = vmatprep.subr.mxu0 0.0
  %6588 = vmatpush1.msra.mxu0 0.0
  %6589 = vmatprep.subr.mxu0 0.0
  %6590 = vmatpush1.msra.mxu0 0.0
  %6591 = vmatprep.subr.mxu0 0.0
  %6592 = vmatpush1.msra.mxu0 0.0
  %6593 = vmatprep.subr.mxu0 0.0
  %6594 = vmatpush1.msra.mxu0 0.0
  %6595 = vmatprep.subr.mxu0 0.0
  %6596 = vmatpush1.msra.mxu0 0.0
  %6597 = vmatprep.mubr.f32.mxu0 0.0
  %6598 = vmatmul.mubr.f32.gmra.mrb[0].mxu0 %v6255
  %v6599 = vpop.f32.mrb[0].mxu0
  %v6600 = vadd.f32 0.0, %v6599
  %v6601 = vpop.f32.mrb[0].mxu0
  %v6602 = vadd.f32 0.0, %v6601
  %6603 = vmatprep.mubr.f32.mxu0 0.0
  %6604 = vmatmul.mubr.f32.gmra.mrb[0].mxu0 %v6258
  %v6605 = vpop.f32.mrb[0].mxu0
  %v6606 = vadd.f32 0.0, %v6605
  %v6607 = vpop.f32.mrb[0].mxu0
  %v6608 = vadd.f32 0.0, %v6607
  %6609 = vmatprep.mubr.f32.mxu0 0.0
  %6610 = vmatmul.mubr.f32.gmra.mrb[0].mxu0 %v6261
  %v6611 = vpop.f32.mrb[0].mxu0
  %v6612 = vadd.f32 0.0, %v6611
  %v6613 = vpop.f32.mrb[0].mxu0
  %v6614 = vadd.f32 0.0, %v6613
  %6615 = vmatprep.mubr.f32.mxu0 0.0
  %6616 = vmatmul.mubr.f32.gmra.mrb[0].mxu0 %v6264
  %v6617 = vpop.f32.mrb[0].mxu0
  %v6618 = vadd.f32 0.0, %v6617
  %v6619 = vpop.f32.mrb[0].mxu0
  %v6620 = vadd.f32 0.0, %v6619
  %6621 = vdwg.mxu0
  %v6622 = vadd.f32 %v5915, %v6333
  %v6623 = vadd.f32 %v5916, %v6335
  %v6624 = vadd.f32 %v5917, %v6422
  %v6625 = vadd.f32 %v5918, %v6424
  %v6626 = vadd.f32 %v5919, %v6511
  %v6627 = vadd.f32 %v5920, %v6513
  %v6628 = vadd.f32 %v5921, %v6600
  %v6629 = vadd.f32 %v5922, %v6602
  %v6630 = vadd.f32 %v5923, %v6339
  %v6631 = vadd.f32 %v5924, %v6341
  %v6632 = vadd.f32 %v5925, %v6428
  %v6633 = vadd.f32 %v5926, %v6430
  %v6634 = vadd.f32 %v5927, %v6517
  %v6635 = vadd.f32 %v5928, %v6519
  %v6636 = vadd.f32 %v5929, %v6606
  %v6637 = vadd.f32 %v5930, %v6608
  %v6638 = vadd.f32 %v5931, %v6345
  %v6639 = vadd.f32 %v5932, %v6347
  %v6640 = vadd.f32 %v5933, %v6434
  %v6641 = vadd.f32 %v5934, %v6436
  %v6642 = vadd.f32 %v5935, %v6523
  %v6643 = vadd.f32 %v5936, %v6525
  %v6644 = vadd.f32 %v5937, %v6612
  %v6645 = vadd.f32 %v5938, %v6614
  %v6646 = vadd.f32 %v5939, %v6351
  %v6647 = vadd.f32 %v5940, %v6353
  %v6648 = vadd.f32 %v5941, %v6440
  %v6649 = vadd.f32 %v5942, %v6442
  %v6650 = vadd.f32 %v5943, %v6529
  %v6651 = vadd.f32 %v5944, %v6531
  %v6652 = vadd.f32 %v5945, %v6618
  %v6653 = vadd.f32 %v5946, %v6620
  %v6654 = vld [vmem:[%s5] sm:$0xff]
  %v6655 = vld [vmem:[%s5 + $0x8] sm:$0xff]
  %v6656 = vld [vmem:[%s5 + $0x10] sm:$0xff]
  %v6657 = vld [vmem:[%s5 + $0x18] sm:$0xff]
  %6659 = vset.pattern.permute.xlu0 0
  %6660 = vperm.xlu0 %6659, %v6654
  %v6661 = vpop.permute.xlu0 %6660
  %6664 = vset.pattern.permute.xlu0 0
  %6665 = vperm.xlu0 %6664, %v6655
  %v6666 = vpop.permute.xlu0 %6665
  %6669 = vset.pattern.permute.xlu0 0
  %6670 = vperm.xlu0 %6669, %v6656
  %v6671 = vpop.permute.xlu0 %6670
  %6674 = vset.pattern.permute.xlu0 0
  %6675 = vperm.xlu0 %6674, %v6657
  %v6676 = vpop.permute.xlu0 %6675
  %v6678 = vadd.f32 %v6622, %v6661
  %v6679 = vadd.f32 %v6623, %v6661
  %v6680 = vadd.f32 %v6624, %v6661
  %v6681 = vadd.f32 %v6625, %v6661
  %v6682 = vadd.f32 %v6626, %v6661
  %v6683 = vadd.f32 %v6627, %v6661
  %v6684 = vadd.f32 %v6628, %v6661
  %v6685 = vadd.f32 %v6629, %v6661
  %v6686 = vadd.f32 %v6630, %v6666
  %v6687 = vadd.f32 %v6631, %v6666
  %v6688 = vadd.f32 %v6632, %v6666
  %v6689 = vadd.f32 %v6633, %v6666
  %v6690 = vadd.f32 %v6634, %v6666
  %v6691 = vadd.f32 %v6635, %v6666
  %v6692 = vadd.f32 %v6636, %v6666
  %v6693 = vadd.f32 %v6637, %v6666
  %v6694 = vadd.f32 %v6638, %v6671
  %v6695 = vadd.f32 %v6639, %v6671
  %v6696 = vadd.f32 %v6640, %v6671
  %v6697 = vadd.f32 %v6641, %v6671
  %v6698 = vadd.f32 %v6642, %v6671
  %v6699 = vadd.f32 %v6643, %v6671
  %v6700 = vadd.f32 %v6644, %v6671
  %v6701 = vadd.f32 %v6645, %v6671
  %v6702 = vadd.f32 %v6646, %v6676
  %v6703 = vadd.f32 %v6647, %v6676
  %v6704 = vadd.f32 %v6648, %v6676
  %v6705 = vadd.f32 %v6649, %v6676
  %v6706 = vadd.f32 %v6650, %v6676
  %v6707 = vadd.f32 %v6651, %v6676
  %v6708 = vadd.f32 %v6652, %v6676
  %v6709 = vadd.f32 %v6653, %v6676
  %v6710 = vmax.f32 %v6678, 0.0
  %v6711 = vmax.f32 %v6679, 0.0
  %v6712 = vmax.f32 %v6680, 0.0
  %v6713 = vmax.f32 %v6681, 0.0
  %v6714 = vmax.f32 %v6682, 0.0
  %v6715 = vmax.f32 %v6683, 0.0
  %v6716 = vmax.f32 %v6684, 0.0
  %v6717 = vmax.f32 %v6685, 0.0
  %v6718 = vmax.f32 %v6686, 0.0
  %v6719 = vmax.f32 %v6687, 0.0
  %v6720 = vmax.f32 %v6688, 0.0
  %v6721 = vmax.f32 %v6689, 0.0
  %v6722 = vmax.f32 %v6690, 0.0
  %v6723 = vmax.f32 %v6691, 0.0
  %v6724 = vmax.f32 %v6692, 0.0
  %v6725 = vmax.f32 %v6693, 0.0
  %v6726 = vmax.f32 %v6694, 0.0
  %v6727 = vmax.f32 %v6695, 0.0
  %v6728 = vmax.f32 %v6696, 0.0
  %v6729 = vmax.f32 %v6697, 0.0
  %v6730 = vmax.f32 %v6698, 0.0
  %v6731 = vmax.f32 %v6699, 0.0
  %v6732 = vmax.f32 %v6700, 0.0
  %v6733 = vmax.f32 %v6701, 0.0
  %v6734 = vmax.f32 %v6702, 0.0
  %v6735 = vmax.f32 %v6703, 0.0
  %v6736 = vmax.f32 %v6704, 0.0
  %v6737 = vmax.f32 %v6705, 0.0
  %v6738 = vmax.f32 %v6706, 0.0
  %v6739 = vmax.f32 %v6707, 0.0
  %v6740 = vmax.f32 %v6708, 0.0
  %v6741 = vmax.f32 %v6709, 0.0
  %v6742 = vld [vmem:[%s6] sm:$0xff]
  %vm6743 = vcmask 261120
  %v6745 = vsel %vm6743, %v6742, 0
  %6747 = vmatprep.subr.mxu0 %v6711
  %6748 = vmatpush1.msra.mxu0 %v6710
  %6749 = vmatprep.subr.mxu0 %v6719
  %6750 = vmatpush1.msra.mxu0 %v6718
  %6751 = vmatprep.subr.mxu0 %v6727
  %6752 = vmatpush1.msra.mxu0 %v6726
  %6753 = vmatprep.subr.mxu0 %v6735
  %6754 = vmatpush1.msra.mxu0 %v6734
  %6755 = vmatprep.subr.mxu0 0.0
  %6756 = vmatpush1.msra.mxu0 0.0
  %6757 = vmatprep.subr.mxu0 0.0
  %6758 = vmatpush1.msra.mxu0 0.0
  %6759 = vmatprep.subr.mxu0 0.0
  %6760 = vmatpush1.msra.mxu0 0.0
  %6761 = vmatprep.subr.mxu0 0.0
  %6762 = vmatpush1.msra.mxu0 0.0
  %6763 = vmatprep.subr.mxu0 0.0
  %6764 = vmatpush1.msra.mxu0 0.0
  %6765 = vmatprep.subr.mxu0 0.0
  %6766 = vmatpush1.msra.mxu0 0.0
  %6767 = vmatprep.subr.mxu0 0.0
  %6768 = vmatpush1.msra.mxu0 0.0
  %6769 = vmatprep.subr.mxu0 0.0
  %6770 = vmatpush1.msra.mxu0 0.0
  %6771 = vmatprep.subr.mxu0 0.0
  %6772 = vmatpush1.msra.mxu0 0.0
  %6773 = vmatprep.subr.mxu0 0.0
  %6774 = vmatpush1.msra.mxu0 0.0
  %6775 = vmatprep.subr.mxu0 0.0
  %6776 = vmatpush1.msra.mxu0 0.0
  %6777 = vmatprep.subr.mxu0 0.0
  %6778 = vmatpush1.msra.mxu0 0.0
  %6779 = vmatprep.subr.mxu0 0.0
  %6780 = vmatpush1.msra.mxu0 0.0
  %6781 = vmatprep.subr.mxu0 0.0
  %6782 = vmatpush1.msra.mxu0 0.0
  %6783 = vmatprep.subr.mxu0 0.0
  %6784 = vmatpush1.msra.mxu0 0.0
  %6785 = vmatprep.subr.mxu0 0.0
  %6786 = vmatpush1.msra.mxu0 0.0
  %6787 = vmatprep.subr.mxu0 0.0
  %6788 = vmatpush1.msra.mxu0 0.0
  %6789 = vmatprep.subr.mxu0 0.0
  %6790 = vmatpush1.msra.mxu0 0.0
  %6791 = vmatprep.subr.mxu0 0.0
  %6792 = vmatpush1.msra.mxu0 0.0
  %6793 = vmatprep.subr.mxu0 0.0
  %6794 = vmatpush1.msra.mxu0 0.0
  %6795 = vmatprep.subr.mxu0 0.0
  %6796 = vmatpush1.msra.mxu0 0.0
  %6797 = vmatprep.subr.mxu0 0.0
  %6798 = vmatpush1.msra.mxu0 0.0
  %6799 = vmatprep.subr.mxu0 0.0
  %6800 = vmatpush1.msra.mxu0 0.0
  %6801 = vmatprep.subr.mxu0 0.0
  %6802 = vmatpush1.msra.mxu0 0.0
  %6803 = vmatprep.subr.mxu0 0.0
  %6804 = vmatpush1.msra.mxu0 0.0
  %6805 = vmatprep.subr.mxu0 0.0
  %6806 = vmatpush1.msra.mxu0 0.0
  %6807 = vmatprep.subr.mxu0 0.0
  %6808 = vmatpush1.msra.mxu0 0.0
  %6809 = vmatprep.subr.mxu0 0.0
  %6810 = vmatpush1.msra.mxu0 0.0
  %6811 = vmatprep.mubr.f32.mxu0 0.0
  %6812 = vmatmul.mubr.f32.gmra.mrb[0].mxu0 %v6745
  %v6813 = vpop.f32.mrb[0].mxu0
  %v6814 = vadd.f32 0.0, %v6813
  %v6815 = vpop.f32.mrb[0].mxu0
  %v6816 = vadd.f32 0.0, %v6815
  %6817 = vdwg.mxu0
  %6818 = vmatprep.subr.mxu0 %v6713
  %6819 = vmatpush1.msra.mxu0 %v6712
  %6820 = vmatprep.subr.mxu0 %v6721
  %6821 = vmatpush1.msra.mxu0 %v6720
  %6822 = vmatprep.subr.mxu0 %v6729
  %6823 = vmatpush1.msra.mxu0 %v6728
  %6824 = vmatprep.subr.mxu0 %v6737
  %6825 = vmatpush1.msra.mxu0 %v6736
  %6826 = vmatprep.subr.mxu0 0.0
  %6827 = vmatpush1.msra.mxu0 0.0
  %6828 = vmatprep.subr.mxu0 0.0
  %6829 = vmatpush1.msra.mxu0 0.0
  %6830 = vmatprep.subr.mxu0 0.0
  %6831 = vmatpush1.msra.mxu0 0.0
  %6832 = vmatprep.subr.mxu0 0.0
  %6833 = vmatpush1.msra.mxu0 0.0
  %6834 = vmatprep.subr.mxu0 0.0
  %6835 = vmatpush1.msra.mxu0 0.0
  %6836 = vmatprep.subr.mxu0 0.0
  %6837 = vmatpush1.msra.mxu0 0.0
  %6838 = vmatprep.subr.mxu0 0.0
  %6839 = vmatpush1.msra.mxu0 0.0
  %6840 = vmatprep.subr.mxu0 0.0
  %6841 = vmatpush1.msra.mxu0 0.0
  %6842 = vmatprep.subr.mxu0 0.0
  %6843 = vmatpush1.msra.mxu0 0.0
  %6844 = vmatprep.subr.mxu0 0.0
  %6845 = vmatpush1.msra.mxu0 0.0
  %6846 = vmatprep.subr.mxu0 0.0
  %6847 = vmatpush1.msra.mxu0 0.0
  %6848 = vmatprep.subr.mxu0 0.0
  %6849 = vmatpush1.msra.mxu0 0.0
  %6850 = vmatprep.subr.mxu0 0.0
  %6851 = vmatpush1.msra.mxu0 0.0
  %6852 = vmatprep.subr.mxu0 0.0
  %6853 = vmatpush1.msra.mxu0 0.0
  %6854 = vmatprep.subr.mxu0 0.0
  %6855 = vmatpush1.msra.mxu0 0.0
  %6856 = vmatprep.subr.mxu0 0.0
  %6857 = vmatpush1.msra.mxu0 0.0
  %6858 = vmatprep.subr.mxu0 0.0
  %6859 = vmatpush1.msra.mxu0 0.0
  %6860 = vmatprep.subr.mxu0 0.0
  %6861 = vmatpush1.msra.mxu0 0.0
  %6862 = vmatprep.subr.mxu0 0.0
  %6863 = vmatpush1.msra.mxu0 0.0
  %6864 = vmatprep.subr.mxu0 0.0
  %6865 = vmatpush1.msra.mxu0 0.0
  %6866 = vmatprep.subr.mxu0 0.0
  %6867 = vmatpush1.msra.mxu0 0.0
  %6868 = vmatprep.subr.mxu0 0.0
  %6869 = vmatpush1.msra.mxu0 0.0
  %6870 = vmatprep.subr.mxu0 0.0
  %6871 = vmatpush1.msra.mxu0 0.0
  %6872 = vmatprep.subr.mxu0 0.0
  %6873 = vmatpush1.msra.mxu0 0.0
  %6874 = vmatprep.subr.mxu0 0.0
  %6875 = vmatpush1.msra.mxu0 0.0
  %6876 = vmatprep.subr.mxu0 0.0
  %6877 = vmatpush1.msra.mxu0 0.0
  %6878 = vmatprep.subr.mxu0 0.0
  %6879 = vmatpush1.msra.mxu0 0.0
  %6880 = vmatprep.subr.mxu0 0.0
  %6881 = vmatpush1.msra.mxu0 0.0
  %6882 = vmatprep.mubr.f32.mxu0 0.0
  %6883 = vmatmul.mubr.f32.gmra.mrb[0].mxu0 %v6745
  %v6884 = vpop.f32.mrb[0].mxu0
  %v6885 = vadd.f32 0.0, %v6884
  %v6886 = vpop.f32.mrb[0].mxu0
  %v6887 = vadd.f32 0.0, %v6886
  %6888 = vdwg.mxu0
  %6889 = vmatprep.subr.mxu0 %v6715
  %6890 = vmatpush1.msra.mxu0 %v6714
  %6891 = vmatprep.subr.mxu0 %v6723
  %6892 = vmatpush1.msra.mxu0 %v6722
  %6893 = vmatprep.subr.mxu0 %v6731
  %6894 = vmatpush1.msra.mxu0 %v6730
  %6895 = vmatprep.subr.mxu0 %v6739
  %6896 = vmatpush1.msra.mxu0 %v6738
  %6897 = vmatprep.subr.mxu0 0.0
  %6898 = vmatpush1.msra.mxu0 0.0
  %6899 = vmatprep.subr.mxu0 0.0
  %6900 = vmatpush1.msra.mxu0 0.0
  %6901 = vmatprep.subr.mxu0 0.0
  %6902 = vmatpush1.msra.mxu0 0.0
  %6903 = vmatprep.subr.mxu0 0.0
  %6904 = vmatpush1.msra.mxu0 0.0
  %6905 = vmatprep.subr.mxu0 0.0
  %6906 = vmatpush1.msra.mxu0 0.0
  %6907 = vmatprep.subr.mxu0 0.0
  %6908 = vmatpush1.msra.mxu0 0.0
  %6909 = vmatprep.subr.mxu0 0.0
  %6910 = vmatpush1.msra.mxu0 0.0
  %6911 = vmatprep.subr.mxu0 0.0
  %6912 = vmatpush1.msra.mxu0 0.0
  %6913 = vmatprep.subr.mxu0 0.0
  %6914 = vmatpush1.msra.mxu0 0.0
  %6915 = vmatprep.subr.mxu0 0.0
  %6916 = vmatpush1.msra.mxu0 0.0
  %6917 = vmatprep.subr.mxu0 0.0
  %6918 = vmatpush1.msra.mxu0 0.0
  %6919 = vmatprep.subr.mxu0 0.0
  %6920 = vmatpush1.msra.mxu0 0.0
  %6921 = vmatprep.subr.mxu0 0.0
  %6922 = vmatpush1.msra.mxu0 0.0
  %6923 = vmatprep.subr.mxu0 0.0
  %6924 = vmatpush1.msra.mxu0 0.0
  %6925 = vmatprep.subr.mxu0 0.0
  %6926 = vmatpush1.msra.mxu0 0.0
  %6927 = vmatprep.subr.mxu0 0.0
  %6928 = vmatpush1.msra.mxu0 0.0
  %6929 = vmatprep.subr.mxu0 0.0
  %6930 = vmatpush1.msra.mxu0 0.0
  %6931 = vmatprep.subr.mxu0 0.0
  %6932 = vmatpush1.msra.mxu0 0.0
  %6933 = vmatprep.subr.mxu0 0.0
  %6934 = vmatpush1.msra.mxu0 0.0
  %6935 = vmatprep.subr.mxu0 0.0
  %6936 = vmatpush1.msra.mxu0 0.0
  %6937 = vmatprep.subr.mxu0 0.0
  %6938 = vmatpush1.msra.mxu0 0.0
  %6939 = vmatprep.subr.mxu0 0.0
  %6940 = vmatpush1.msra.mxu0 0.0
  %6941 = vmatprep.subr.mxu0 0.0
  %6942 = vmatpush1.msra.mxu0 0.0
  %6943 = vmatprep.subr.mxu0 0.0
  %6944 = vmatpush1.msra.mxu0 0.0
  %6945 = vmatprep.subr.mxu0 0.0
  %6946 = vmatpush1.msra.mxu0 0.0
  %6947 = vmatprep.subr.mxu0 0.0
  %6948 = vmatpush1.msra.mxu0 0.0
  %6949 = vmatprep.subr.mxu0 0.0
  %6950 = vmatpush1.msra.mxu0 0.0
  %6951 = vmatprep.subr.mxu0 0.0
  %6952 = vmatpush1.msra.mxu0 0.0
  %6953 = vmatprep.mubr.f32.mxu0 0.0
  %6954 = vmatmul.mubr.f32.gmra.mrb[0].mxu0 %v6745
  %v6955 = vpop.f32.mrb[0].mxu0
  %v6956 = vadd.f32 0.0, %v6955
  %v6957 = vpop.f32.mrb[0].mxu0
  %v6958 = vadd.f32 0.0, %v6957
  %6959 = vdwg.mxu0
  %6960 = vmatprep.subr.mxu0 %v6717
  %6961 = vmatpush1.msra.mxu0 %v6716
  %6962 = vmatprep.subr.mxu0 %v6725
  %6963 = vmatpush1.msra.mxu0 %v6724
  %6964 = vmatprep.subr.mxu0 %v6733
  %6965 = vmatpush1.msra.mxu0 %v6732
  %6966 = vmatprep.subr.mxu0 %v6741
  %6967 = vmatpush1.msra.mxu0 %v6740
  %6968 = vmatprep.subr.mxu0 0.0
  %6969 = vmatpush1.msra.mxu0 0.0
  %6970 = vmatprep.subr.mxu0 0.0
  %6971 = vmatpush1.msra.mxu0 0.0
  %6972 = vmatprep.subr.mxu0 0.0
  %6973 = vmatpush1.msra.mxu0 0.0
  %6974 = vmatprep.subr.mxu0 0.0
  %6975 = vmatpush1.msra.mxu0 0.0
  %6976 = vmatprep.subr.mxu0 0.0
  %6977 = vmatpush1.msra.mxu0 0.0
  %6978 = vmatprep.subr.mxu0 0.0
  %6979 = vmatpush1.msra.mxu0 0.0
  %6980 = vmatprep.subr.mxu0 0.0
  %6981 = vmatpush1.msra.mxu0 0.0
  %6982 = vmatprep.subr.mxu0 0.0
  %6983 = vmatpush1.msra.mxu0 0.0
  %6984 = vmatprep.subr.mxu0 0.0
  %6985 = vmatpush1.msra.mxu0 0.0
  %6986 = vmatprep.subr.mxu0 0.0
  %6987 = vmatpush1.msra.mxu0 0.0
  %6988 = vmatprep.subr.mxu0 0.0
  %6989 = vmatpush1.msra.mxu0 0.0
  %6990 = vmatprep.subr.mxu0 0.0
  %6991 = vmatpush1.msra.mxu0 0.0
  %6992 = vmatprep.subr.mxu0 0.0
  %6993 = vmatpush1.msra.mxu0 0.0
  %6994 = vmatprep.subr.mxu0 0.0
  %6995 = vmatpush1.msra.mxu0 0.0
  %6996 = vmatprep.subr.mxu0 0.0
  %6997 = vmatpush1.msra.mxu0 0.0
  %6998 = vmatprep.subr.mxu0 0.0
  %6999 = vmatpush1.msra.mxu0 0.0
  %7000 = vmatprep.subr.mxu0 0.0
  %7001 = vmatpush1.msra.mxu0 0.0
  %7002 = vmatprep.subr.mxu0 0.0
  %7003 = vmatpush1.msra.mxu0 0.0
  %7004 = vmatprep.subr.mxu0 0.0
  %7005 = vmatpush1.msra.mxu0 0.0
  %7006 = vmatprep.subr.mxu0 0.0
  %7007 = vmatpush1.msra.mxu0 0.0
  %7008 = vmatprep.subr.mxu0 0.0
  %7009 = vmatpush1.msra.mxu0 0.0
  %7010 = vmatprep.subr.mxu0 0.0
  %7011 = vmatpush1.msra.mxu0 0.0
  %7012 = vmatprep.subr.mxu0 0.0
  %7013 = vmatpush1.msra.mxu0 0.0
  %7014 = vmatprep.subr.mxu0 0.0
  %7015 = vmatpush1.msra.mxu0 0.0
  %7016 = vmatprep.subr.mxu0 0.0
  %7017 = vmatpush1.msra.mxu0 0.0
  %7018 = vmatprep.subr.mxu0 0.0
  %7019 = vmatpush1.msra.mxu0 0.0
  %7020 = vmatprep.subr.mxu0 0.0
  %7021 = vmatpush1.msra.mxu0 0.0
  %7022 = vmatprep.subr.mxu0 0.0
  %7023 = vmatpush1.msra.mxu0 0.0
  %7024 = vmatprep.mubr.f32.mxu0 0.0
  %7025 = vmatmul.mubr.f32.gmra.mrb[0].mxu0 %v6745
  %v7026 = vpop.f32.mrb[0].mxu0
  %v7027 = vadd.f32 0.0, %v7026
  %v7028 = vpop.f32.mrb[0].mxu0
  %v7029 = vadd.f32 0.0, %v7028
  %7030 = vdwg.mxu0
  %s7031 = sld [smem:[#allocation2]]
  %v7032 = vstv %s7031
  %v7033 = vadd.f32 %v6814, %v7032
  %v7034 = vadd.f32 %v6816, %v7032
  %v7035 = vadd.f32 %v6885, %v7032
  %v7036 = vadd.f32 %v6887, %v7032
  %v7037 = vadd.f32 %v6956, %v7032
  %v7038 = vadd.f32 %v6958, %v7032
  %v7039 = vadd.f32 %v7027, %v7032
  %v7040 = vadd.f32 %v7029, %v7032
  %v7041 = vmax.f32 %v7033, 0.0
  %v7042 = vmax.f32 %v7034, 0.0
  %v7043 = vmax.f32 %v7035, 0.0
  %v7044 = vmax.f32 %v7036, 0.0
  %v7045 = vmax.f32 %v7037, 0.0
  %v7046 = vmax.f32 %v7038, 0.0
  %v7047 = vmax.f32 %v7039, 0.0
  %v7048 = vmax.f32 %v7040, 0.0
  %v7049 = vmax.f32 %v7041, %v7045
  %v7050 = vmax.f32 %v7042, %v7046
  %v7051 = vmax.f32 %v7043, %v7047
  %v7052 = vmax.f32 %v7044, %v7048
  %v7053 = vsub.f32 %v7041, %v7049
  %v7054 = vsub.f32 %v7042, %v7050
  %v7055 = vsub.f32 %v7043, %v7051
  %v7056 = vsub.f32 %v7044, %v7052
  %v7057 = vmul.f32 %v7053, 1.442695
  %v7058 = vpow.pop %v7057
  %v7059 = vmul.f32 %v7054, 1.442695
  %v7060 = vpow.pop %v7059
  %v7061 = vmul.f32 %v7055, 1.442695
  %v7062 = vpow.pop %v7061
  %v7063 = vmul.f32 %v7056, 1.442695
  %v7064 = vpow.pop %v7063
  %v7065 = vsub.f32 %v7045, %v7049
  %v7066 = vsub.f32 %v7046, %v7050
  %v7067 = vsub.f32 %v7047, %v7051
  %v7068 = vsub.f32 %v7048, %v7052
  %v7069 = vmul.f32 %v7065, 1.442695
  %v7070 = vpow.pop %v7069
  %v7071 = vmul.f32 %v7066, 1.442695
  %v7072 = vpow.pop %v7071
  %v7073 = vmul.f32 %v7067, 1.442695
  %v7074 = vpow.pop %v7073
  %v7075 = vmul.f32 %v7068, 1.442695
  %v7076 = vpow.pop %v7075
  %v7077 = vadd.f32 %v7058, %v7070
  %v7078 = vadd.f32 %v7060, %v7072
  %v7079 = vadd.f32 %v7062, %v7074
  %v7080 = vadd.f32 %v7064, %v7076
  %v7081 = vrcp.pop %v7077
  %v7082 = vmul.f32 1.0, %v7081
  %v7083 = vrcp.pop %v7078
  %v7084 = vmul.f32 1.0, %v7083
  %v7085 = vrcp.pop %v7079
  %v7086 = vmul.f32 1.0, %v7085
  %v7087 = vrcp.pop %v7080
  %v7088 = vmul.f32 1.0, %v7087
  %v7089 = vmul.f32 %v7058, %v7082
  %v7090 = vmul.f32 %v7060, %v7084
  %v7091 = vmul.f32 %v7062, %v7086
  %v7092 = vmul.f32 %v7064, %v7088
  %v7093 = vmul.f32 %v7070, %v7082
  %v7094 = vmul.f32 %v7072, %v7084
  %v7095 = vmul.f32 %v7074, %v7086
  %v7096 = vmul.f32 %v7076, %v7088
  %v7097 = vlaneseq
  %v7098 = vshrl.u32 %v7097, 7
  %v7099 = vsub.s32 0, %v7098
  %v7100 = vrot.slane %v7089, %v7099
  %v7101 = vlaneseq
  %v7102 = vshrl.u32 %v7101, 7
  %v7103 = vsub.s32 0, %v7102
  %v7104 = vrot.slane %v7090, %v7103
  %v7105 = vlaneseq
  %v7106 = vshrl.u32 %v7105, 7
  %v7107 = vsub.s32 0, %v7106
  %v7108 = vrot.slane %v7091, %v7107
  %v7109 = vlaneseq
  %v7110 = vshrl.u32 %v7109, 7
  %v7111 = vsub.s32 0, %v7110
  %v7112 = vrot.slane %v7092, %v7111
  %v7115 = vmul.f32 %v7100, %v30
  %v7116 = vmul.f32 %v7104, %v94
  %v7117 = vmul.f32 %v7108, %v31
  %v7118 = vmul.f32 %v7112, %v95
  %v7119 = vlaneseq
  %v7120 = vshrl.u32 %v7119, 7
  %v7121 = vsub.s32 0, %v7120
  %v7122 = vrot.slane %v7093, %v7121
  %v7123 = vlaneseq
  %v7124 = vshrl.u32 %v7123, 7
  %v7125 = vsub.s32 0, %v7124
  %v7126 = vrot.slane %v7094, %v7125
  %v7127 = vlaneseq
  %v7128 = vshrl.u32 %v7127, 7
  %v7129 = vsub.s32 0, %v7128
  %v7130 = vrot.slane %v7095, %v7129
  %v7131 = vlaneseq
  %v7132 = vshrl.u32 %v7131, 7
  %v7133 = vsub.s32 0, %v7132
  %v7134 = vrot.slane %v7096, %v7133
  %v7137 = vmul.f32 %v7122, %v32
  %v7138 = vmul.f32 %v7126, %v96
  %v7139 = vmul.f32 %v7130, %v33
  %v7140 = vmul.f32 %v7134, %v97
  %v7141 = vadd.f32 %v7115, %v7137
  %v7142 = vadd.f32 %v7116, %v7138
  %v7143 = vadd.f32 %v7117, %v7139
  %v7144 = vadd.f32 %v7118, %v7140
  %v7149 = vcombine.low %v7141, %v7142
  %v7150 = vcombine.low %v7143, %v7144
  %7153 = vst [vmem:[%s8] sm:$0xff] %v7149
  %7154 = vst [vmem:[%s8 + $0x8] sm:$0xff] %v7150
  // Predicated region
  $region34: #{aggregation_pallas.1} parent=0 // pred_check
    _
  $region35: #{aggregation_pallas.1} parent=0 // pred_check_branch
    %7156 = sbr.rel (0) target = $region37
  $region36: #{aggregation_pallas.1} parent=0 // pred_region
    _
  $region37: #{aggregation_pallas.1} parent=0 // pred_fallthru
    _
  // Predicated region
  $region38: #{aggregation_pallas.1} parent=0 // pred_check
    _
  $region39: #{aggregation_pallas.1} parent=0 // pred_check_branch
    %7158 = sbr.rel (0) target = $region41
  $region40: #{aggregation_pallas.1} parent=0 // pred_region
    _
  $region41: #{aggregation_pallas.1} parent=0 // pred_fallthru
    _

</llo_original>
